<compile_context>
chip_gen: v5e
topology: v5e:2x2
jax: 0.10.0
libtpu: 0.0.40
codegen_flags: <defaults>
</compile_context>

<pallas_src>
import jax
import jax.numpy as jnp
from jax.experimental import pallas as pl
from jax.experimental.pallas import tpu as pltpu

IN_DIM = 180 * 6          # 1080
OUT_PAD = 1152            # 9 * 128 lane-aligned output slab (padding sliced off)
HIDDEN = 512
LATENT = 32               # latent_dims
LAT_PAD = 128             # latent padded to one full lane group


def _round_up(n, m):
    return (n + m - 1) // m * m


def _vmem_capacity_bytes():
    """Physical VMEM of the current part; conservative (v7x-sized) fallback."""
    try:
        return int(pltpu.get_tpu_info().vmem_capacity_bytes)
    except Exception:
        return 64 << 20


def _pick_tiling(B):
    vmem_cap = _vmem_capacity_bytes()
    big_vmem = vmem_cap >= (96 << 20)          # v5e/v6e: 128 MiB; v7x: 64 MiB/TC
    tb_cap = 1024 if big_vmem else 512
    vmem_limit = (64 << 20) if big_vmem else (32 << 20)

    B8 = _round_up(B, 8)
    TB = min(tb_cap, B8)
    # Keep >= 2 grid steps when the batch is big enough: engages both v7x
    # TensorCores and gives the software pipeline something to overlap.
    if B8 >= 16:
        TB = min(TB, _round_up((B8 + 1) // 2, 8))
    B_pad = _round_up(B8, TB)
    return TB, B_pad, vmem_limit


def autoencoder_kernel(x_ref,
                       w1_ref, b1_ref,   # encoder.linear1: 1080 -> 512
                       w2_ref, b2_ref,   # encoder.linear2: 512  -> 128 (latent padded)
                       w3_ref, b3_ref,   # decoder.linear1: 128  -> 512
                       w4_ref, b4_ref,   # decoder.linear2: 512  -> 1152 (out padded)
                       out_ref):
    # bf16 MXU inputs, f32 accumulation; bias / relu / sigmoid stay in f32
    # (v5e VPU/EUP have no bf16).  If x is already bf16 the astype is a no-op.
    x = x_ref[...].astype(jnp.bfloat16)                                # (TB, 1080)

    # Encoder: linear1 + relu
    h = jnp.dot(x, w1_ref[...], preferred_element_type=jnp.float32) + b1_ref[...]
    h = jnp.maximum(h, 0.0)

    # Encoder: linear2 (latent, no activation)
    z = jnp.dot(h.astype(jnp.bfloat16), w2_ref[...],
                preferred_element_type=jnp.float32) + b2_ref[...]

    # Decoder: linear1 + relu
    d = jnp.dot(z.astype(jnp.bfloat16), w3_ref[...],
                preferred_element_type=jnp.float32) + b3_ref[...]
    d = jnp.maximum(d, 0.0)

    # Decoder: linear2 + sigmoid; cast to bf16 only at the store (halves the
    # dominant HBM store stream).
    y = jnp.dot(d.astype(jnp.bfloat16), w4_ref[...],
                preferred_element_type=jnp.float32) + b4_ref[...]
    out_ref[...] = jax.nn.sigmoid(y).astype(out_ref.dtype)


def init_params(key):
    """PyTorch-Linear-style init. Weights stored as (in_features, out_features)
    for x @ W (== torch's x @ W.T), biases as (1, out_features). All float32."""
    dims = [(IN_DIM, HIDDEN), (HIDDEN, LATENT), (LATENT, HIDDEN), (HIDDEN, IN_DIM)]
    params = []
    for fan_in, fan_out in dims:
        kw, kb, key = jax.random.split(key, 3)
        bound = 1.0 / (fan_in ** 0.5)
        w = jax.random.uniform(kw, (fan_in, fan_out), jnp.float32, -bound, bound)
        b = jax.random.uniform(kb, (1, fan_out), jnp.float32, -bound, bound)
        params += [w, b]
    return tuple(params)


def prepare_params(params):
    """One-time prep: cast weights to bf16, keep biases f32, zero-pad the
    latent path 32 -> 128 lanes and the output path 1080 -> 1152 lanes."""
    w1, b1, w2, b2, w3, b3, w4, b4 = params
    lat_pad = LAT_PAD - LATENT
    out_pad = OUT_PAD - IN_DIM
    w2p = jnp.pad(w2, ((0, 0), (0, lat_pad)))        # (512, 128)
    b2p = jnp.pad(b2, ((0, 0), (0, lat_pad)))        # (1, 128)
    w3p = jnp.pad(w3, ((0, lat_pad), (0, 0)))        # (128, 512)
    w4p = jnp.pad(w4, ((0, 0), (0, out_pad)))        # (512, 1152)
    b4p = jnp.pad(b4, ((0, 0), (0, out_pad)))        # (1, 1152)
    return (w1.astype(jnp.bfloat16), b1,
            w2p.astype(jnp.bfloat16), b2p,
            w3p.astype(jnp.bfloat16), b3,
            w4p.astype(jnp.bfloat16), b4p)


def autoencoder_forward(x, prepared_params):
    """x: (B, ...) flattenable to (B, 1080); f32 or bf16. Returns (B, 1080) f32."""
    B = x.shape[0]
    if x.dtype == jnp.bfloat16:
        # Producer already supplies bf16: keep it (halves the input DMA stream).
        x_flat = jnp.reshape(x, (B, -1))
    else:
        x_flat = jnp.reshape(x, (B, -1)).astype(jnp.float32)   # torch.flatten(x.float(), 1)
    assert x_flat.shape[1] == IN_DIM, x_flat.shape

    TB, B_pad, vmem_limit = _pick_tiling(B)
    if B_pad != B:
        x_flat = jnp.pad(x_flat, ((0, B_pad - B), (0, 0)))

    w1, b1, w2, b2, w3, b3, w4, b4 = prepared_params
    weights = (w1, b1, w2, b2, w3, b3, w4, b4)

    flops = 2 * B_pad * (IN_DIM * HIDDEN + HIDDEN * LAT_PAD
                         + LAT_PAD * HIDDEN + HIDDEN * OUT_PAD)
    bytes_accessed = (int(x_flat.size) * x_flat.dtype.itemsize
                      + B_pad * OUT_PAD * 2
                      + sum(int(p.size) * p.dtype.itemsize for p in weights))
    cost = pl.CostEstimate(flops=flops,
                           transcendentals=B_pad * OUT_PAD,
                           bytes_accessed=bytes_accessed)

    def _const(i):                 # weights/biases: same block for every grid step
        return (0, 0)

    def _weight_spec(shape, single_buffer):
        if single_buffer:
            return pl.BlockSpec(shape, _const, pipeline_mode=pl.Buffered(1))
        return pl.BlockSpec(shape, _const)

    def _call(single_buffer_weights):
        in_specs = [pl.BlockSpec((TB, IN_DIM), lambda i: (i, 0))]     # x tiled on batch
        in_specs += [_weight_spec(p.shape, single_buffer_weights) for p in weights]
        out_specs = pl.BlockSpec((TB, OUT_PAD), lambda i: (i, 0))
        return pl.pallas_call(
            autoencoder_kernel,
            out_shape=jax.ShapeDtypeStruct((B_pad, OUT_PAD), jnp.bfloat16),
            grid=(B_pad // TB,),
            in_specs=in_specs,
            out_specs=out_specs,
            compiler_params=pltpu.CompilerParams(
                dimension_semantics=("parallel",),
                vmem_limit_bytes=vmem_limit,
            ),
            cost_estimate=cost,
        )(x_flat, *weights)

    try:
        out = _call(True)
    except Exception:
        # TODO(synk): pipeline_mode=pl.Buffered(1) unsupported on this JAX build;
        # fall back to default double-buffering of the resident weights.
        out = _call(False)

    # Strip batch / lane padding and upcast; slice + convert fuse in XLA.
    return out[:B, :IN_DIM].astype(jnp.float32)


def reference_forward(x, params):
    """Pure-JAX f32 reference matching the PyTorch module."""
    w1, b1, w2, b2, w3, b3, w4, b4 = params
    xf = jnp.reshape(x, (x.shape[0], -1)).astype(jnp.float32)
    h = jax.nn.relu(xf @ w1 + b1)
    z = h @ w2 + b2
    d = jax.nn.relu(z @ w3 + b3)
    return jax.nn.sigmoid(d @ w4 + b4)


if __name__ == "__main__":
    key = jax.random.PRNGKey(0)
    kx, kx2, kp = jax.random.split(key, 3)

    params = init_params(kp)
    prepared = prepare_params(params)

    # Small test consistent with the module: flattens to (B, 180*6)
    x = jax.random.normal(kx, (2, 180, 6), dtype=jnp.float32)
    out = autoencoder_forward(x, prepared)
    jax.block_until_ready(out)

    assert out.shape == (2, IN_DIM), out.shape
    assert bool(jnp.all(jnp.isfinite(out)))
    assert bool(jnp.all((out >= 0.0) & (out <= 1.0)))      # sigmoid range

    ref = reference_forward(x, params)
    err = float(jnp.max(jnp.abs(out - ref)))
    assert err < 5e-2, err                                  # bf16 weights/output -> loose tol

    # Batch not a multiple of the sublane tile (exercises batch padding path).
    x2 = jax.random.normal(kx2, (10, 180, 6), dtype=jnp.float32)
    out2 = autoencoder_forward(x2, prepared)
    jax.block_until_ready(out2)
    ref2 = reference_forward(x2, params)
    assert out2.shape == (10, IN_DIM), out2.shape
    assert float(jnp.max(jnp.abs(out2 - ref2))) < 5e-2

    print("KERNEL_OK")
</pallas_src>

<mosaic_0001>
module attributes {stable_mosaic.version = 11 : i64} {
  func.func @autoencoder_kernel(%arg0: i32, %arg1: memref<8x1080xf32, #tpu.memory_space<vmem>>, %arg2: memref<1080x512xbf16, #tpu.memory_space<vmem>>, %arg3: memref<1x512xf32, #tpu.memory_space<vmem>>, %arg4: memref<512x128xbf16, #tpu.memory_space<vmem>>, %arg5: memref<1x128xf32, #tpu.memory_space<vmem>>, %arg6: memref<128x512xbf16, #tpu.memory_space<vmem>>, %arg7: memref<1x512xf32, #tpu.memory_space<vmem>>, %arg8: memref<512x1152xbf16, #tpu.memory_space<vmem>>, %arg9: memref<1x1152xf32, #tpu.memory_space<vmem>>, %arg10: memref<8x1152xbf16, #tpu.memory_space<vmem>>) attributes {dimension_semantics = [#tpu.dimension_semantics<parallel>], iteration_bounds = array<i64: 1>, scalar_prefetch = 0 : i64, scratch_operands = 0 : i64, tpu.core_type = #tpu.core_type<tc>, window_params = [{transform_indices = @transform_0, window_bounds = array<i64: 8, 1080>}, {pipeline_mode = #tpu.pipeline_mode<synchronous>, transform_indices = @transform_1, window_bounds = array<i64: 1080, 512>}, {pipeline_mode = #tpu.pipeline_mode<synchronous>, transform_indices = @transform_2, window_bounds = array<i64: 1, 512>}, {pipeline_mode = #tpu.pipeline_mode<synchronous>, transform_indices = @transform_3, window_bounds = array<i64: 512, 128>}, {pipeline_mode = #tpu.pipeline_mode<synchronous>, transform_indices = @transform_4, window_bounds = array<i64: 1, 128>}, {pipeline_mode = #tpu.pipeline_mode<synchronous>, transform_indices = @transform_5, window_bounds = array<i64: 128, 512>}, {pipeline_mode = #tpu.pipeline_mode<synchronous>, transform_indices = @transform_6, window_bounds = array<i64: 1, 512>}, {pipeline_mode = #tpu.pipeline_mode<synchronous>, transform_indices = @transform_7, window_bounds = array<i64: 512, 1152>}, {pipeline_mode = #tpu.pipeline_mode<synchronous>, transform_indices = @transform_8, window_bounds = array<i64: 1, 1152>}, {transform_indices = @transform_9, window_bounds = array<i64: 8, 1152>}]} {
    %c0 = arith.constant 0 : index
    %c0_0 = arith.constant 0 : index
    %0 = vector.load %arg1[%c0, %c0_0] : memref<8x1080xf32, #tpu.memory_space<vmem>>, vector<8x1080xf32>
    %1 = arith.truncf %0 : vector<8x1080xf32> to vector<8x1080xbf16>
    %c0_1 = arith.constant 0 : index
    %c0_2 = arith.constant 0 : index
    %2 = vector.load %arg2[%c0_1, %c0_2] : memref<1080x512xbf16, #tpu.memory_space<vmem>>, vector<1080x512xbf16>
    %cst = arith.constant dense<0.000000e+00> : vector<8x512xf32>
    %3 = tpu.matmul %1, %2, %cst {dimension_numbers = #tpu.dot_dimension_numbers<[1], [0], [0], [1], [0, 0, 1, 1], [], []>} : vector<8x1080xbf16>, vector<1080x512xbf16>, vector<8x512xf32> -> vector<8x512xf32>
    %c0_3 = arith.constant 0 : index
    %c0_4 = arith.constant 0 : index
    %4 = vector.load %arg3[%c0_3, %c0_4] : memref<1x512xf32, #tpu.memory_space<vmem>>, vector<1x512xf32>
    %5 = vector.broadcast %4 : vector<1x512xf32> to vector<8x512xf32>
    %6 = arith.addf %3, %5 : vector<8x512xf32>
    %cst_5 = arith.constant 0.000000e+00 : f32
    %7 = vector.broadcast %cst_5 : f32 to vector<8x512xf32>
    %8 = arith.maximumf %6, %7 : vector<8x512xf32>
    %9 = arith.truncf %8 : vector<8x512xf32> to vector<8x512xbf16>
    %c0_6 = arith.constant 0 : index
    %c0_7 = arith.constant 0 : index
    %10 = vector.load %arg4[%c0_6, %c0_7] : memref<512x128xbf16, #tpu.memory_space<vmem>>, vector<512x128xbf16>
    %cst_8 = arith.constant dense<0.000000e+00> : vector<8x128xf32>
    %11 = tpu.matmul %9, %10, %cst_8 {dimension_numbers = #tpu.dot_dimension_numbers<[1], [0], [0], [1], [0, 0, 1, 1], [], []>} : vector<8x512xbf16>, vector<512x128xbf16>, vector<8x128xf32> -> vector<8x128xf32>
    %c0_9 = arith.constant 0 : index
    %c0_10 = arith.constant 0 : index
    %12 = vector.load %arg5[%c0_9, %c0_10] : memref<1x128xf32, #tpu.memory_space<vmem>>, vector<1x128xf32>
    %13 = vector.broadcast %12 : vector<1x128xf32> to vector<8x128xf32>
    %14 = arith.addf %11, %13 : vector<8x128xf32>
    %15 = arith.truncf %14 : vector<8x128xf32> to vector<8x128xbf16>
    %c0_11 = arith.constant 0 : index
    %c0_12 = arith.constant 0 : index
    %16 = vector.load %arg6[%c0_11, %c0_12] : memref<128x512xbf16, #tpu.memory_space<vmem>>, vector<128x512xbf16>
    %cst_13 = arith.constant dense<0.000000e+00> : vector<8x512xf32>
    %17 = tpu.matmul %15, %16, %cst_13 {dimension_numbers = #tpu.dot_dimension_numbers<[1], [0], [0], [1], [0, 0, 1, 1], [], []>} : vector<8x128xbf16>, vector<128x512xbf16>, vector<8x512xf32> -> vector<8x512xf32>
    %c0_14 = arith.constant 0 : index
    %c0_15 = arith.constant 0 : index
    %18 = vector.load %arg7[%c0_14, %c0_15] : memref<1x512xf32, #tpu.memory_space<vmem>>, vector<1x512xf32>
    %19 = vector.broadcast %18 : vector<1x512xf32> to vector<8x512xf32>
    %20 = arith.addf %17, %19 : vector<8x512xf32>
    %cst_16 = arith.constant 0.000000e+00 : f32
    %21 = vector.broadcast %cst_16 : f32 to vector<8x512xf32>
    %22 = arith.maximumf %20, %21 : vector<8x512xf32>
    %23 = arith.truncf %22 : vector<8x512xf32> to vector<8x512xbf16>
    %c0_17 = arith.constant 0 : index
    %c0_18 = arith.constant 0 : index
    %24 = vector.load %arg8[%c0_17, %c0_18] : memref<512x1152xbf16, #tpu.memory_space<vmem>>, vector<512x1152xbf16>
    %cst_19 = arith.constant dense<0.000000e+00> : vector<8x1152xf32>
    %25 = tpu.matmul %23, %24, %cst_19 {dimension_numbers = #tpu.dot_dimension_numbers<[1], [0], [0], [1], [0, 0, 1, 1], [], []>} : vector<8x512xbf16>, vector<512x1152xbf16>, vector<8x1152xf32> -> vector<8x1152xf32>
    %c0_20 = arith.constant 0 : index
    %c0_21 = arith.constant 0 : index
    %26 = vector.load %arg9[%c0_20, %c0_21] : memref<1x1152xf32, #tpu.memory_space<vmem>>, vector<1x1152xf32>
    %27 = vector.broadcast %26 : vector<1x1152xf32> to vector<8x1152xf32>
    %28 = arith.addf %25, %27 : vector<8x1152xf32>
    %29 = arith.negf %28 : vector<8x1152xf32>
    %30 = math.exp %29 : vector<8x1152xf32>
    %cst_22 = arith.constant 1.000000e+00 : f32
    %31 = vector.broadcast %cst_22 : f32 to vector<8x1152xf32>
    %32 = arith.addf %31, %30 : vector<8x1152xf32>
    %33 = arith.divf %31, %32 : vector<8x1152xf32>
    %34 = arith.truncf %33 : vector<8x1152xf32> to vector<8x1152xbf16>
    %c0_23 = arith.constant 0 : index
    %c0_24 = arith.constant 0 : index
    %35 = vector.load %arg10[%c0_23, %c0_24] : memref<8x1152xbf16, #tpu.memory_space<vmem>>, vector<8x1152xbf16>
    tpu.vector_store %arg10[%c0_23, %c0_24], %34 {strides = array<i32>} : memref<8x1152xbf16, #tpu.memory_space<vmem>>, vector<8x1152xbf16>,
    return
  }
  func.func @transform_0(%arg0: i32) -> (i32, i32) {
    %c0_i32 = arith.constant 0 : i32
    %c0_i32_0 = arith.constant 0 : i32
    return %arg0, %c0_i32 : i32, i32
  }
  func.func @transform_1(%arg0: i32) -> (i32, i32) {
    %c0_i32 = arith.constant 0 : i32
    %c0_i32_0 = arith.constant 0 : i32
    %c0_i32_1 = arith.constant 0 : i32
    return %c0_i32, %c0_i32_0 : i32, i32
  }
  func.func @transform_2(%arg0: i32) -> (i32, i32) {
    %c0_i32 = arith.constant 0 : i32
    %c0_i32_0 = arith.constant 0 : i32
    %c0_i32_1 = arith.constant 0 : i32
    return %c0_i32, %c0_i32_0 : i32, i32
  }
  func.func @transform_3(%arg0: i32) -> (i32, i32) {
    %c0_i32 = arith.constant 0 : i32
    %c0_i32_0 = arith.constant 0 : i32
    %c0_i32_1 = arith.constant 0 : i32
    return %c0_i32, %c0_i32_0 : i32, i32
  }
  func.func @transform_4(%arg0: i32) -> (i32, i32) {
    %c0_i32 = arith.constant 0 : i32
    %c0_i32_0 = arith.constant 0 : i32
    %c0_i32_1 = arith.constant 0 : i32
    return %c0_i32, %c0_i32_0 : i32, i32
  }
  func.func @transform_5(%arg0: i32) -> (i32, i32) {
    %c0_i32 = arith.constant 0 : i32
    %c0_i32_0 = arith.constant 0 : i32
    %c0_i32_1 = arith.constant 0 : i32
    return %c0_i32, %c0_i32_0 : i32, i32
  }
  func.func @transform_6(%arg0: i32) -> (i32, i32) {
    %c0_i32 = arith.constant 0 : i32
    %c0_i32_0 = arith.constant 0 : i32
    %c0_i32_1 = arith.constant 0 : i32
    return %c0_i32, %c0_i32_0 : i32, i32
  }
  func.func @transform_7(%arg0: i32) -> (i32, i32) {
    %c0_i32 = arith.constant 0 : i32
    %c0_i32_0 = arith.constant 0 : i32
    %c0_i32_1 = arith.constant 0 : i32
    return %c0_i32, %c0_i32_0 : i32, i32
  }
  func.func @transform_8(%arg0: i32) -> (i32, i32) {
    %c0_i32 = arith.constant 0 : i32
    %c0_i32_0 = arith.constant 0 : i32
    %c0_i32_1 = arith.constant 0 : i32
    return %c0_i32, %c0_i32_0 : i32, i32
  }
  func.func @transform_9(%arg0: i32) -> (i32, i32) {
    %c0_i32 = arith.constant 0 : i32
    %c0_i32_0 = arith.constant 0 : i32
    return %arg0, %c0_i32 : i32, i32
  }
}

module attributes {stable_mosaic.version = 11 : i64} {
  func.func @autoencoder_kernel(%arg0: i32, %arg1: memref<8x1080xf32, #tpu.memory_space<vmem>>, %arg2: memref<1080x512xbf16, #tpu.memory_space<vmem>>, %arg3: memref<1x512xf32, #tpu.memory_space<vmem>>, %arg4: memref<512x128xbf16, #tpu.memory_space<vmem>>, %arg5: memref<1x128xf32, #tpu.memory_space<vmem>>, %arg6: memref<128x512xbf16, #tpu.memory_space<vmem>>, %arg7: memref<1x512xf32, #tpu.memory_space<vmem>>, %arg8: memref<512x1152xbf16, #tpu.memory_space<vmem>>, %arg9: memref<1x1152xf32, #tpu.memory_space<vmem>>, %arg10: memref<8x1152xbf16, #tpu.memory_space<vmem>>) attributes {dimension_semantics = [#tpu.dimension_semantics<parallel>], iteration_bounds = array<i64: 1>, scalar_prefetch = 0 : i64, scratch_operands = 0 : i64, tpu.core_type = #tpu.core_type<tc>, window_params = [{transform_indices = @transform_0, window_bounds = array<i64: 8, 1080>}, {pipeline_mode = #tpu.pipeline_mode<synchronous>, transform_indices = @transform_1, window_bounds = array<i64: 1080, 512>}, {pipeline_mode = #tpu.pipeline_mode<synchronous>, transform_indices = @transform_2, window_bounds = array<i64: 1, 512>}, {pipeline_mode = #tpu.pipeline_mode<synchronous>, transform_indices = @transform_3, window_bounds = array<i64: 512, 128>}, {pipeline_mode = #tpu.pipeline_mode<synchronous>, transform_indices = @transform_4, window_bounds = array<i64: 1, 128>}, {pipeline_mode = #tpu.pipeline_mode<synchronous>, transform_indices = @transform_5, window_bounds = array<i64: 128, 512>}, {pipeline_mode = #tpu.pipeline_mode<synchronous>, transform_indices = @transform_6, window_bounds = array<i64: 1, 512>}, {pipeline_mode = #tpu.pipeline_mode<synchronous>, transform_indices = @transform_7, window_bounds = array<i64: 512, 1152>}, {pipeline_mode = #tpu.pipeline_mode<synchronous>, transform_indices = @transform_8, window_bounds = array<i64: 1, 1152>}, {transform_indices = @transform_9, window_bounds = array<i64: 8, 1152>}]} {
    %c0 = arith.constant 0 : index
    %c0_0 = arith.constant 0 : index
    %0 = vector.load %arg1[%c0, %c0_0] : memref<8x1080xf32, #tpu.memory_space<vmem>>, vector<8x1080xf32>
    %1 = arith.truncf %0 : vector<8x1080xf32> to vector<8x1080xbf16>
    %c0_1 = arith.constant 0 : index
    %c0_2 = arith.constant 0 : index
    %2 = vector.load %arg2[%c0_1, %c0_2] : memref<1080x512xbf16, #tpu.memory_space<vmem>>, vector<1080x512xbf16>
    %cst = arith.constant dense<0.000000e+00> : vector<8x512xf32>
    %3 = tpu.matmul %1, %2, %cst {dimension_numbers = #tpu.dot_dimension_numbers<[1], [0], [0], [1], [0, 0, 1, 1], [], []>} : vector<8x1080xbf16>, vector<1080x512xbf16>, vector<8x512xf32> -> vector<8x512xf32>
    %c0_3 = arith.constant 0 : index
    %c0_4 = arith.constant 0 : index
    %4 = vector.load %arg3[%c0_3, %c0_4] : memref<1x512xf32, #tpu.memory_space<vmem>>, vector<1x512xf32>
    %5 = vector.broadcast %4 : vector<1x512xf32> to vector<8x512xf32>
    %6 = arith.addf %3, %5 : vector<8x512xf32>
    %cst_5 = arith.constant 0.000000e+00 : f32
    %7 = vector.broadcast %cst_5 : f32 to vector<8x512xf32>
    %8 = arith.maximumf %6, %7 : vector<8x512xf32>
    %9 = arith.truncf %8 : vector<8x512xf32> to vector<8x512xbf16>
    %c0_6 = arith.constant 0 : index
    %c0_7 = arith.constant 0 : index
    %10 = vector.load %arg4[%c0_6, %c0_7] : memref<512x128xbf16, #tpu.memory_space<vmem>>, vector<512x128xbf16>
    %cst_8 = arith.constant dense<0.000000e+00> : vector<8x128xf32>
    %11 = tpu.matmul %9, %10, %cst_8 {dimension_numbers = #tpu.dot_dimension_numbers<[1], [0], [0], [1], [0, 0, 1, 1], [], []>} : vector<8x512xbf16>, vector<512x128xbf16>, vector<8x128xf32> -> vector<8x128xf32>
    %c0_9 = arith.constant 0 : index
    %c0_10 = arith.constant 0 : index
    %12 = vector.load %arg5[%c0_9, %c0_10] : memref<1x128xf32, #tpu.memory_space<vmem>>, vector<1x128xf32>
    %13 = vector.broadcast %12 : vector<1x128xf32> to vector<8x128xf32>
    %14 = arith.addf %11, %13 : vector<8x128xf32>
    %15 = arith.truncf %14 : vector<8x128xf32> to vector<8x128xbf16>
    %c0_11 = arith.constant 0 : index
    %c0_12 = arith.constant 0 : index
    %16 = vector.load %arg6[%c0_11, %c0_12] : memref<128x512xbf16, #tpu.memory_space<vmem>>, vector<128x512xbf16>
    %cst_13 = arith.constant dense<0.000000e+00> : vector<8x512xf32>
    %17 = tpu.matmul %15, %16, %cst_13 {dimension_numbers = #tpu.dot_dimension_numbers<[1], [0], [0], [1], [0, 0, 1, 1], [], []>} : vector<8x128xbf16>, vector<128x512xbf16>, vector<8x512xf32> -> vector<8x512xf32>
    %c0_14 = arith.constant 0 : index
    %c0_15 = arith.constant 0 : index
    %18 = vector.load %arg7[%c0_14, %c0_15] : memref<1x512xf32, #tpu.memory_space<vmem>>, vector<1x512xf32>
    %19 = vector.broadcast %18 : vector<1x512xf32> to vector<8x512xf32>
    %20 = arith.addf %17, %19 : vector<8x512xf32>
    %cst_16 = arith.constant 0.000000e+00 : f32
    %21 = vector.broadcast %cst_16 : f32 to vector<8x512xf32>
    %22 = arith.maximumf %20, %21 : vector<8x512xf32>
    %23 = arith.truncf %22 : vector<8x512xf32> to vector<8x512xbf16>
    %c0_17 = arith.constant 0 : index
    %c0_18 = arith.constant 0 : index
    %24 = vector.load %arg8[%c0_17, %c0_18] : memref<512x1152xbf16, #tpu.memory_space<vmem>>, vector<512x1152xbf16>
    %cst_19 = arith.constant dense<0.000000e+00> : vector<8x1152xf32>
    %25 = tpu.matmul %23, %24, %cst_19 {dimension_numbers = #tpu.dot_dimension_numbers<[1], [0], [0], [1], [0, 0, 1, 1], [], []>} : vector<8x512xbf16>, vector<512x1152xbf16>, vector<8x1152xf32> -> vector<8x1152xf32>
    %c0_20 = arith.constant 0 : index
    %c0_21 = arith.constant 0 : index
    %26 = vector.load %arg9[%c0_20, %c0_21] : memref<1x1152xf32, #tpu.memory_space<vmem>>, vector<1x1152xf32>
    %27 = vector.broadcast %26 : vector<1x1152xf32> to vector<8x1152xf32>
    %28 = arith.addf %25, %27 : vector<8x1152xf32>
    %29 = arith.negf %28 : vector<8x1152xf32>
    %30 = math.exp %29 : vector<8x1152xf32>
    %cst_22 = arith.constant 1.000000e+00 : f32
    %31 = vector.broadcast %cst_22 : f32 to vector<8x1152xf32>
    %32 = arith.addf %31, %30 : vector<8x1152xf32>
    %33 = arith.divf %31, %32 : vector<8x1152xf32>
    %34 = arith.truncf %33 : vector<8x1152xf32> to vector<8x1152xbf16>
    %c0_23 = arith.constant 0 : index
    %c0_24 = arith.constant 0 : index
    %35 = vector.load %arg10[%c0_23, %c0_24] : memref<8x1152xbf16, #tpu.memory_space<vmem>>, vector<8x1152xbf16>
    tpu.vector_store %arg10[%c0_23, %c0_24], %34 {strides = array<i32>} : memref<8x1152xbf16, #tpu.memory_space<vmem>>, vector<8x1152xbf16>,
    return
  }
  func.func @transform_0(%arg0: i32) -> (i32, i32) {
    %c0_i32 = arith.constant 0 : i32
    %c0_i32_0 = arith.constant 0 : i32
    return %arg0, %c0_i32 : i32, i32
  }
  func.func @transform_1(%arg0: i32) -> (i32, i32) {
    %c0_i32 = arith.constant 0 : i32
    %c0_i32_0 = arith.constant 0 : i32
    %c0_i32_1 = arith.constant 0 : i32
    return %c0_i32, %c0_i32_0 : i32, i32
  }
  func.func @transform_2(%arg0: i32) -> (i32, i32) {
    %c0_i32 = arith.constant 0 : i32
    %c0_i32_0 = arith.constant 0 : i32
    %c0_i32_1 = arith.constant 0 : i32
    return %c0_i32, %c0_i32_0 : i32, i32
  }
  func.func @transform_3(%arg0: i32) -> (i32, i32) {
    %c0_i32 = arith.constant 0 : i32
    %c0_i32_0 = arith.constant 0 : i32
    %c0_i32_1 = arith.constant 0 : i32
    return %c0_i32, %c0_i32_0 : i32, i32
  }
  func.func @transform_4(%arg0: i32) -> (i32, i32) {
    %c0_i32 = arith.constant 0 : i32
    %c0_i32_0 = arith.constant 0 : i32
    %c0_i32_1 = arith.constant 0 : i32
    return %c0_i32, %c0_i32_0 : i32, i32
  }
  func.func @transform_5(%arg0: i32) -> (i32, i32) {
    %c0_i32 = arith.constant 0 : i32
    %c0_i32_0 = arith.constant 0 : i32
    %c0_i32_1 = arith.constant 0 : i32
    return %c0_i32, %c0_i32_0 : i32, i32
  }
  func.func @transform_6(%arg0: i32) -> (i32, i32) {
    %c0_i32 = arith.constant 0 : i32
    %c0_i32_0 = arith.constant 0 : i32
    %c0_i32_1 = arith.constant 0 : i32
    return %c0_i32, %c0_i32_0 : i32, i32
  }
  func.func @transform_7(%arg0: i32) -> (i32, i32) {
    %c0_i32 = arith.constant 0 : i32
    %c0_i32_0 = arith.constant 0 : i32
    %c0_i32_1 = arith.constant 0 : i32
    return %c0_i32, %c0_i32_0 : i32, i32
  }
  func.func @transform_8(%arg0: i32) -> (i32, i32) {
    %c0_i32 = arith.constant 0 : i32
    %c0_i32_0 = arith.constant 0 : i32
    %c0_i32_1 = arith.constant 0 : i32
    return %c0_i32, %c0_i32_0 : i32, i32
  }
  func.func @transform_9(%arg0: i32) -> (i32, i32) {
    %c0_i32 = arith.constant 0 : i32
    %c0_i32_0 = arith.constant 0 : i32
    return %arg0, %c0_i32 : i32, i32
  }
}

</mosaic_0001>

<llo_original>
// kernel: tpu_custom_call.1
$region0: #{tpu_custom_call.1}
  #allocation0 [shape = 'u32[]', space=smem, size = 0x4, offset = 0x4, fixed_abs, tag = 'smem constant byte address 0x4 - core index']
  #allocation1 [shape = 'u32[72,128]{1,0:T(1,128)}', space=vmem, size = 0x9000, scoped, tag = 'internal scratch']
  %s0 = inlined_call_operand.hbm [shape: f32[8,1080], index: 0, kind: input, shape index: {}]
  %s1 = inlined_call_operand.hbm [shape: bf16[1080,512], index: 1, kind: input, shape index: {}]
  %s2 = inlined_call_operand.hbm [shape: f32[1,512], index: 2, kind: input, shape index: {}]
  %s3 = inlined_call_operand.hbm [shape: bf16[512,128], index: 3, kind: input, shape index: {}]
  %s4 = inlined_call_operand.hbm [shape: f32[1,128], index: 4, kind: input, shape index: {}]
  %s5 = inlined_call_operand.hbm [shape: bf16[128,512], index: 5, kind: input, shape index: {}]
  %s6 = inlined_call_operand.hbm [shape: f32[1,512], index: 6, kind: input, shape index: {}]
  %s7 = inlined_call_operand.hbm [shape: bf16[512,1152], index: 7, kind: input, shape index: {}]
  %s8 = inlined_call_operand.hbm [shape: f32[1,1152], index: 8, kind: input, shape index: {}]
  %s9 = inlined_call_operand.hbm [shape: bf16[8,1152], index: 9, kind: output, shape index: {}]
  %s10 = sld [smem:[#allocation0]]
  $region82: #{tpu_custom_call.1} parent=0
    _
  %s12 = ssub.s32 1, %s10
  %s13 = scalar_select 0, %s12, %s10
  $region1: #{tpu_custom_call.1} parent=0
    #allocation2 [shape = 'u8[36864]{0}', space=vmem, size = 0x9000, scoped, tag = 'input window, operand 0, single buffered']
    #allocation3 [shape = 's32[1]{0}', space=sflag, size = 0x4, scoped, tag = 'scoped memory for tpu_custom_call.1']
    #allocation4 [shape = 's32[1]{0}', space=sflag, size = 0x4, scoped, tag = 'scoped memory for tpu_custom_call.1']
    #allocation5 [shape = 'u8[1105920]{0}', space=vmem, size = 0x10e000, scoped, tag = 'input window, operand 1, single buffered']
    #allocation6 [shape = 's32[1]{0}', space=sflag, size = 0x4, scoped, tag = 'scoped memory for tpu_custom_call.1']
    #allocation7 [shape = 'u8[2048]{0}', space=vmem, size = 0x800, scoped, tag = 'input window, operand 2, single buffered']
    #allocation8 [shape = 'u8[131072]{0}', space=vmem, size = 0x20000, scoped, tag = 'input window, operand 3, single buffered']
    #allocation9 [shape = 's32[1]{0}', space=sflag, size = 0x4, scoped, tag = 'scoped memory for tpu_custom_call.1']
    #allocation10 [shape = 'u8[512]{0}', space=vmem, size = 0x400, scoped, tag = 'input window, operand 4, single buffered']
    #allocation11 [shape = 'u8[131072]{0}', space=vmem, size = 0x20000, scoped, tag = 'input window, operand 5, single buffered']
    #allocation12 [shape = 's32[1]{0}', space=sflag, size = 0x4, scoped, tag = 'scoped memory for tpu_custom_call.1']
    #allocation13 [shape = 'u8[2048]{0}', space=vmem, size = 0x800, scoped, tag = 'input window, operand 6, single buffered']
    #allocation14 [shape = 'u8[1179648]{0}', space=vmem, size = 0x120000, scoped, tag = 'input window, operand 7, single buffered']
    #allocation15 [shape = 's32[1]{0}', space=sflag, size = 0x4, scoped, tag = 'scoped memory for tpu_custom_call.1']
    #allocation16 [shape = 'u8[4608]{0}', space=vmem, size = 0x1400, scoped, tag = 'input window, operand 8, single buffered']
    #allocation17 [shape = 'u8[18432]{0}', space=vmem, size = 0x4800, scoped, tag = 'output window, operand 0, single buffered']
    %14 = vsyncpa [#allocation3], 0
    %15 = vsyncpa [#allocation6], 0
    %16 = vsyncpa [#allocation9], 0
    %17 = vsyncpa [#allocation12], 0
    %18 = vsyncpa [#allocation15], 0
    %19 = vsyncpa [#allocation4], 0
    // Predicated region
    $region2: #{tpu_custom_call.1} parent=1 // pred_check
      _
    $region3: #{tpu_custom_call.1} parent=1 // pred_check_branch
      %21 = sbr.rel (0) target = $region5
    $region4: #{tpu_custom_call.1} parent=1 // pred_region
      %23 = vsyncadd [#allocation3], 0
      %s25 = sshll.u32 %s0, 4
      %s26 = int_to_ptr.hbm [resolvable:$true] %s25
      %s27 = sshll.u32 [#allocation2], 4
      %s28 = int_to_ptr.vmem [resolvable:$true] %s27
      %30 = dma.hbm_to_vmem [thread:$0]  %s26, 1152, %s28, [#allocation3]
    $region5: #{tpu_custom_call.1} parent=1 // pred_fallthru
      _
    // Predicated region
    $region6: #{tpu_custom_call.1} parent=1 // pred_check
      _
    $region7: #{tpu_custom_call.1} parent=1 // pred_check_branch
      %32 = sbr.rel (0) target = $region9
    $region8: #{tpu_custom_call.1} parent=1 // pred_region
      %34 = vsyncadd [#allocation6], 0
      %s35 = sshll.u32 %s1, 4
      %s36 = int_to_ptr.hbm [resolvable:$true] %s35
      %s37 = sshll.u32 [#allocation5], 4
      %s38 = int_to_ptr.vmem [resolvable:$true] %s37
      %43 = dma.hbm_to_vmem [thread:$0]  %s36, 34560, %s38, [#allocation6], 256, 256, 16
    $region9: #{tpu_custom_call.1} parent=1 // pred_fallthru
      _
    // Predicated region
    $region10: #{tpu_custom_call.1} parent=1 // pred_check
      _
    $region11: #{tpu_custom_call.1} parent=1 // pred_check_branch
      %45 = sbr.rel (0) target = $region13
    $region12: #{tpu_custom_call.1} parent=1 // pred_region
      %47 = vsyncadd [#allocation6], 0
      %s49 = sshll.u32 %s2, 4
      %s50 = int_to_ptr.hbm [resolvable:$true] %s49
      %s51 = sshll.u32 [#allocation7], 4
      %s52 = int_to_ptr.vmem [resolvable:$true] %s51
      %54 = dma.hbm_to_vmem [thread:$0]  %s50, 64, %s52, [#allocation6]
    $region13: #{tpu_custom_call.1} parent=1 // pred_fallthru
      _
    // Predicated region
    $region14: #{tpu_custom_call.1} parent=1 // pred_check
      _
    $region15: #{tpu_custom_call.1} parent=1 // pred_check_branch
      %56 = sbr.rel (0) target = $region17
    $region16: #{tpu_custom_call.1} parent=1 // pred_region
      %58 = vsyncadd [#allocation9], 0
      %s59 = sshll.u32 %s3, 4
      %s60 = int_to_ptr.hbm [resolvable:$true] %s59
      %s61 = sshll.u32 [#allocation8], 4
      %s62 = int_to_ptr.vmem [resolvable:$true] %s61
      %67 = dma.hbm_to_vmem [thread:$0]  %s60, 4096, %s62, [#allocation9], 64, 64, 4
    $region17: #{tpu_custom_call.1} parent=1 // pred_fallthru
      _
    // Predicated region
    $region18: #{tpu_custom_call.1} parent=1 // pred_check
      _
    $region19: #{tpu_custom_call.1} parent=1 // pred_check_branch
      %69 = sbr.rel (0) target = $region21
    $region20: #{tpu_custom_call.1} parent=1 // pred_region
      %71 = vsyncadd [#allocation9], 0
      %s73 = sshll.u32 %s4, 4
      %s74 = int_to_ptr.hbm [resolvable:$true] %s73
      %s75 = sshll.u32 [#allocation10], 4
      %s76 = int_to_ptr.vmem [resolvable:$true] %s75
      %78 = dma.hbm_to_vmem [thread:$0]  %s74, 16, %s76, [#allocation9]
    $region21: #{tpu_custom_call.1} parent=1 // pred_fallthru
      _
    // Predicated region
    $region22: #{tpu_custom_call.1} parent=1 // pred_check
      _
    $region23: #{tpu_custom_call.1} parent=1 // pred_check_branch
      %80 = sbr.rel (0) target = $region25
    $region24: #{tpu_custom_call.1} parent=1 // pred_region
      %82 = vsyncadd [#allocation12], 0
      %s83 = sshll.u32 %s5, 4
      %s84 = int_to_ptr.hbm [resolvable:$true] %s83
      %s85 = sshll.u32 [#allocation11], 4
      %s86 = int_to_ptr.vmem [resolvable:$true] %s85
      %91 = dma.hbm_to_vmem [thread:$0]  %s84, 4096, %s86, [#allocation12], 256, 256, 16
    $region25: #{tpu_custom_call.1} parent=1 // pred_fallthru
      _
    // Predicated region
    $region26: #{tpu_custom_call.1} parent=1 // pred_check
      _
    $region27: #{tpu_custom_call.1} parent=1 // pred_check_branch
      %93 = sbr.rel (0) target = $region29
    $region28: #{tpu_custom_call.1} parent=1 // pred_region
      %95 = vsyncadd [#allocation12], 0
      %s97 = sshll.u32 %s6, 4
      %s98 = int_to_ptr.hbm [resolvable:$true] %s97
      %s99 = sshll.u32 [#allocation13], 4
      %s100 = int_to_ptr.vmem [resolvable:$true] %s99
      %102 = dma.hbm_to_vmem [thread:$0]  %s98, 64, %s100, [#allocation12]
    $region29: #{tpu_custom_call.1} parent=1 // pred_fallthru
      _
    // Predicated region
    $region30: #{tpu_custom_call.1} parent=1 // pred_check
      _
    $region31: #{tpu_custom_call.1} parent=1 // pred_check_branch
      %104 = sbr.rel (0) target = $region33
    $region32: #{tpu_custom_call.1} parent=1 // pred_region
      %106 = vsyncadd [#allocation15], 0
      %s107 = sshll.u32 %s7, 4
      %s108 = int_to_ptr.hbm [resolvable:$true] %s107
      %s109 = sshll.u32 [#allocation14], 4
      %s110 = int_to_ptr.vmem [resolvable:$true] %s109
      %115 = dma.hbm_to_vmem [thread:$0]  %s108, 36864, %s110, [#allocation15], 576, 576, 36
    $region33: #{tpu_custom_call.1} parent=1 // pred_fallthru
      _
    // Predicated region
    $region34: #{tpu_custom_call.1} parent=1 // pred_check
      _
    $region35: #{tpu_custom_call.1} parent=1 // pred_check_branch
      %117 = sbr.rel (0) target = $region37
    $region36: #{tpu_custom_call.1} parent=1 // pred_region
      %119 = vsyncadd [#allocation15], 0
      %s121 = sshll.u32 %s8, 4
      %s122 = int_to_ptr.hbm [resolvable:$true] %s121
      %s123 = sshll.u32 [#allocation16], 4
      %s124 = int_to_ptr.vmem [resolvable:$true] %s123
      %126 = dma.hbm_to_vmem [thread:$0]  %s122, 144, %s124, [#allocation15]
    $region37: #{tpu_custom_call.1} parent=1 // pred_fallthru
      _
    // Predicated region
    $region38: #{tpu_custom_call.1} parent=1 // pred_check
      _
    $region39: #{tpu_custom_call.1} parent=1 // pred_check_branch
      %128 = sbr.rel (0) target = $region41
    $region40: #{tpu_custom_call.1} parent=1 // pred_region
      %130 = dma.done [#allocation3], 1152
    $region41: #{tpu_custom_call.1} parent=1 // pred_fallthru
      _
    // Predicated region
    $region42: #{tpu_custom_call.1} parent=1 // pred_check
      _
    $region43: #{tpu_custom_call.1} parent=1 // pred_check_branch
      %132 = sbr.rel (0) target = $region45
    $region44: #{tpu_custom_call.1} parent=1 // pred_region
      %134 = dma.done [#allocation6], 34560
    $region45: #{tpu_custom_call.1} parent=1 // pred_fallthru
      _
    // Predicated region
    $region46: #{tpu_custom_call.1} parent=1 // pred_check
      _
    $region47: #{tpu_custom_call.1} parent=1 // pred_check_branch
      %136 = sbr.rel (0) target = $region49
    $region48: #{tpu_custom_call.1} parent=1 // pred_region
      %138 = dma.done [#allocation6], 64
    $region49: #{tpu_custom_call.1} parent=1 // pred_fallthru
      _
    // Predicated region
    $region50: #{tpu_custom_call.1} parent=1 // pred_check
      _
    $region51: #{tpu_custom_call.1} parent=1 // pred_check_branch
      %140 = sbr.rel (0) target = $region53
    $region52: #{tpu_custom_call.1} parent=1 // pred_region
      %142 = dma.done [#allocation9], 4096
    $region53: #{tpu_custom_call.1} parent=1 // pred_fallthru
      _
    // Predicated region
    $region54: #{tpu_custom_call.1} parent=1 // pred_check
      _
    $region55: #{tpu_custom_call.1} parent=1 // pred_check_branch
      %144 = sbr.rel (0) target = $region57
    $region56: #{tpu_custom_call.1} parent=1 // pred_region
      %146 = dma.done [#allocation9], 16
    $region57: #{tpu_custom_call.1} parent=1 // pred_fallthru
      _
    // Predicated region
    $region58: #{tpu_custom_call.1} parent=1 // pred_check
      _
    $region59: #{tpu_custom_call.1} parent=1 // pred_check_branch
      %148 = sbr.rel (0) target = $region61
    $region60: #{tpu_custom_call.1} parent=1 // pred_region
      %150 = dma.done [#allocation12], 4096
    $region61: #{tpu_custom_call.1} parent=1 // pred_fallthru
      _
    // Predicated region
    $region62: #{tpu_custom_call.1} parent=1 // pred_check
      _
    $region63: #{tpu_custom_call.1} parent=1 // pred_check_branch
      %152 = sbr.rel (0) target = $region65
    $region64: #{tpu_custom_call.1} parent=1 // pred_region
      %154 = dma.done [#allocation12], 64
    $region65: #{tpu_custom_call.1} parent=1 // pred_fallthru
      _
    // Predicated region
    $region66: #{tpu_custom_call.1} parent=1 // pred_check
      _
    $region67: #{tpu_custom_call.1} parent=1 // pred_check_branch
      %156 = sbr.rel (0) target = $region69
    $region68: #{tpu_custom_call.1} parent=1 // pred_region
      %158 = dma.done [#allocation15], 36864
    $region69: #{tpu_custom_call.1} parent=1 // pred_fallthru
      _
    // Predicated region
    $region70: #{tpu_custom_call.1} parent=1 // pred_check
      _
    $region71: #{tpu_custom_call.1} parent=1 // pred_check_branch
      %160 = sbr.rel (0) target = $region73
    $region72: #{tpu_custom_call.1} parent=1 // pred_region
      %162 = dma.done [#allocation15], 144
    $region73: #{tpu_custom_call.1} parent=1 // pred_fallthru
      _
    %v164 = vld [vmem:[#allocation2] sm:$0xff]
    %v165 = vld [vmem:[#allocation2 + $0x8] sm:$0xff]
    %v166 = vld [vmem:[#allocation2 + $0x10] sm:$0xff]
    %v167 = vld [vmem:[#allocation2 + $0x18] sm:$0xff]
    %v168 = vld [vmem:[#allocation2 + $0x20] sm:$0xff]
    %v169 = vld [vmem:[#allocation2 + $0x28] sm:$0xff]
    %v170 = vld [vmem:[#allocation2 + $0x30] sm:$0xff]
    %v171 = vld [vmem:[#allocation2 + $0x38] sm:$0xff]
    %v172 = vld [vmem:[#allocation2 + $0x40] sm:$0xff]
    %v173 = vpack.c.bf16 %v164, %v164
    %v174 = vpack.c.bf16 %v165, %v165
    %v175 = vpack.c.bf16 %v166, %v166
    %v176 = vpack.c.bf16 %v167, %v167
    %v177 = vpack.c.bf16 %v168, %v168
    %v178 = vpack.c.bf16 %v169, %v169
    %v179 = vpack.c.bf16 %v170, %v170
    %v180 = vpack.c.bf16 %v171, %v171
    %v181 = vpack.c.bf16 %v172, %v172
    %v182 = vld [vmem:[#allocation5] sm:$0xff]
    %v183 = vld [vmem:[#allocation5 + $0x8] sm:$0xff]
    %v184 = vld [vmem:[#allocation5 + $0x10] sm:$0xff]
    %v185 = vld [vmem:[#allocation5 + $0x18] sm:$0xff]
    %v186 = vld [vmem:[#allocation5 + $0x20] sm:$0xff]
    %v187 = vld [vmem:[#allocation5 + $0x28] sm:$0xff]
    %v188 = vld [vmem:[#allocation5 + $0x30] sm:$0xff]
    %v189 = vld [vmem:[#allocation5 + $0x38] sm:$0xff]
    %v190 = vld [vmem:[#allocation5 + $0x40] sm:$0xff]
    %v191 = vld [vmem:[#allocation5 + $0x48] sm:$0xff]
    %v192 = vld [vmem:[#allocation5 + $0x50] sm:$0xff]
    %v193 = vld [vmem:[#allocation5 + $0x58] sm:$0xff]
    %v194 = vld [vmem:[#allocation5 + $0x60] sm:$0xff]
    %v195 = vld [vmem:[#allocation5 + $0x68] sm:$0xff]
    %v196 = vld [vmem:[#allocation5 + $0x70] sm:$0xff]
    %v197 = vld [vmem:[#allocation5 + $0x78] sm:$0xff]
    %v198 = vld [vmem:[#allocation5 + $0x80] sm:$0xff]
    %v199 = vld [vmem:[#allocation5 + $0x88] sm:$0xff]
    %v200 = vld [vmem:[#allocation5 + $0x90] sm:$0xff]
    %v201 = vld [vmem:[#allocation5 + $0x98] sm:$0xff]
    %v202 = vld [vmem:[#allocation5 + $0xa0] sm:$0xff]
    %v203 = vld [vmem:[#allocation5 + $0xa8] sm:$0xff]
    %v204 = vld [vmem:[#allocation5 + $0xb0] sm:$0xff]
    %v205 = vld [vmem:[#allocation5 + $0xb8] sm:$0xff]
    %v206 = vld [vmem:[#allocation5 + $0xc0] sm:$0xff]
    %v207 = vld [vmem:[#allocation5 + $0xc8] sm:$0xff]
    %v208 = vld [vmem:[#allocation5 + $0xd0] sm:$0xff]
    %v209 = vld [vmem:[#allocation5 + $0xd8] sm:$0xff]
    %v210 = vld [vmem:[#allocation5 + $0xe0] sm:$0xff]
    %v211 = vld [vmem:[#allocation5 + $0xe8] sm:$0xff]
    %v212 = vld [vmem:[#allocation5 + $0xf0] sm:$0xff]
    %v213 = vld [vmem:[#allocation5 + $0xf8] sm:$0xff]
    %v214 = vld [vmem:[#allocation5 + $0x100] sm:$0xff]
    %v215 = vld [vmem:[#allocation5 + $0x108] sm:$0xff]
    %v216 = vld [vmem:[#allocation5 + $0x110] sm:$0xff]
    %v217 = vld [vmem:[#allocation5 + $0x118] sm:$0xff]
    %v218 = vld [vmem:[#allocation5 + $0x120] sm:$0xff]
    %v219 = vld [vmem:[#allocation5 + $0x128] sm:$0xff]
    %v220 = vld [vmem:[#allocation5 + $0x130] sm:$0xff]
    %v221 = vld [vmem:[#allocation5 + $0x138] sm:$0xff]
    %v222 = vld [vmem:[#allocation5 + $0x140] sm:$0xff]
    %v223 = vld [vmem:[#allocation5 + $0x148] sm:$0xff]
    %v224 = vld [vmem:[#allocation5 + $0x150] sm:$0xff]
    %v225 = vld [vmem:[#allocation5 + $0x158] sm:$0xff]
    %v226 = vld [vmem:[#allocation5 + $0x160] sm:$0xff]
    %v227 = vld [vmem:[#allocation5 + $0x168] sm:$0xff]
    %v228 = vld [vmem:[#allocation5 + $0x170] sm:$0xff]
    %v229 = vld [vmem:[#allocation5 + $0x178] sm:$0xff]
    %v230 = vld [vmem:[#allocation5 + $0x180] sm:$0xff]
    %v231 = vld [vmem:[#allocation5 + $0x188] sm:$0xff]
    %v232 = vld [vmem:[#allocation5 + $0x190] sm:$0xff]
    %v233 = vld [vmem:[#allocation5 + $0x198] sm:$0xff]
    %v234 = vld [vmem:[#allocation5 + $0x1a0] sm:$0xff]
    %v235 = vld [vmem:[#allocation5 + $0x1a8] sm:$0xff]
    %v236 = vld [vmem:[#allocation5 + $0x1b0] sm:$0xff]
    %v237 = vld [vmem:[#allocation5 + $0x1b8] sm:$0xff]
    %v238 = vld [vmem:[#allocation5 + $0x1c0] sm:$0xff]
    %v239 = vld [vmem:[#allocation5 + $0x1c8] sm:$0xff]
    %v240 = vld [vmem:[#allocation5 + $0x1d0] sm:$0xff]
    %v241 = vld [vmem:[#allocation5 + $0x1d8] sm:$0xff]
    %v242 = vld [vmem:[#allocation5 + $0x1e0] sm:$0xff]
    %v243 = vld [vmem:[#allocation5 + $0x1e8] sm:$0xff]
    %v244 = vld [vmem:[#allocation5 + $0x1f0] sm:$0xff]
    %v245 = vld [vmem:[#allocation5 + $0x1f8] sm:$0xff]
    %v246 = vld [vmem:[#allocation5 + $0x200] sm:$0xff]
    %v247 = vld [vmem:[#allocation5 + $0x208] sm:$0xff]
    %v248 = vld [vmem:[#allocation5 + $0x210] sm:$0xff]
    %v249 = vld [vmem:[#allocation5 + $0x218] sm:$0xff]
    %v250 = vld [vmem:[#allocation5 + $0x220] sm:$0xff]
    %v251 = vld [vmem:[#allocation5 + $0x228] sm:$0xff]
    %v252 = vld [vmem:[#allocation5 + $0x230] sm:$0xff]
    %v253 = vld [vmem:[#allocation5 + $0x238] sm:$0xff]
    %v254 = vld [vmem:[#allocation5 + $0x240] sm:$0xff]
    %v255 = vld [vmem:[#allocation5 + $0x248] sm:$0xff]
    %v256 = vld [vmem:[#allocation5 + $0x250] sm:$0xff]
    %v257 = vld [vmem:[#allocation5 + $0x258] sm:$0xff]
    %v258 = vld [vmem:[#allocation5 + $0x260] sm:$0xff]
    %v259 = vld [vmem:[#allocation5 + $0x268] sm:$0xff]
    %v260 = vld [vmem:[#allocation5 + $0x270] sm:$0xff]
    %v261 = vld [vmem:[#allocation5 + $0x278] sm:$0xff]
    %v262 = vld [vmem:[#allocation5 + $0x280] sm:$0xff]
    %v263 = vld [vmem:[#allocation5 + $0x288] sm:$0xff]
    %v264 = vld [vmem:[#allocation5 + $0x290] sm:$0xff]
    %v265 = vld [vmem:[#allocation5 + $0x298] sm:$0xff]
    %v266 = vld [vmem:[#allocation5 + $0x2a0] sm:$0xff]
    %v267 = vld [vmem:[#allocation5 + $0x2a8] sm:$0xff]
    %v268 = vld [vmem:[#allocation5 + $0x2b0] sm:$0xff]
    %v269 = vld [vmem:[#allocation5 + $0x2b8] sm:$0xff]
    %v270 = vld [vmem:[#allocation5 + $0x2c0] sm:$0xff]
    %v271 = vld [vmem:[#allocation5 + $0x2c8] sm:$0xff]
    %v272 = vld [vmem:[#allocation5 + $0x2d0] sm:$0xff]
    %v273 = vld [vmem:[#allocation5 + $0x2d8] sm:$0xff]
    %v274 = vld [vmem:[#allocation5 + $0x2e0] sm:$0xff]
    %v275 = vld [vmem:[#allocation5 + $0x2e8] sm:$0xff]
    %v276 = vld [vmem:[#allocation5 + $0x2f0] sm:$0xff]
    %v277 = vld [vmem:[#allocation5 + $0x2f8] sm:$0xff]
    %v278 = vld [vmem:[#allocation5 + $0x300] sm:$0xff]
    %v279 = vld [vmem:[#allocation5 + $0x308] sm:$0xff]
    %v280 = vld [vmem:[#allocation5 + $0x310] sm:$0xff]
    %v281 = vld [vmem:[#allocation5 + $0x318] sm:$0xff]
    %v282 = vld [vmem:[#allocation5 + $0x320] sm:$0xff]
    %v283 = vld [vmem:[#allocation5 + $0x328] sm:$0xff]
    %v284 = vld [vmem:[#allocation5 + $0x330] sm:$0xff]
    %v285 = vld [vmem:[#allocation5 + $0x338] sm:$0xff]
    %v286 = vld [vmem:[#allocation5 + $0x340] sm:$0xff]
    %v287 = vld [vmem:[#allocation5 + $0x348] sm:$0xff]
    %v288 = vld [vmem:[#allocation5 + $0x350] sm:$0xff]
    %v289 = vld [vmem:[#allocation5 + $0x358] sm:$0xff]
    %v290 = vld [vmem:[#allocation5 + $0x360] sm:$0xff]
    %v291 = vld [vmem:[#allocation5 + $0x368] sm:$0xff]
    %v292 = vld [vmem:[#allocation5 + $0x370] sm:$0xff]
    %v293 = vld [vmem:[#allocation5 + $0x378] sm:$0xff]
    %v294 = vld [vmem:[#allocation5 + $0x380] sm:$0xff]
    %v295 = vld [vmem:[#allocation5 + $0x388] sm:$0xff]
    %v296 = vld [vmem:[#allocation5 + $0x390] sm:$0xff]
    %v297 = vld [vmem:[#allocation5 + $0x398] sm:$0xff]
    %v298 = vld [vmem:[#allocation5 + $0x3a0] sm:$0xff]
    %v299 = vld [vmem:[#allocation5 + $0x3a8] sm:$0xff]
    %v300 = vld [vmem:[#allocation5 + $0x3b0] sm:$0xff]
    %v301 = vld [vmem:[#allocation5 + $0x3b8] sm:$0xff]
    %v302 = vld [vmem:[#allocation5 + $0x3c0] sm:$0xff]
    %v303 = vld [vmem:[#allocation5 + $0x3c8] sm:$0xff]
    %v304 = vld [vmem:[#allocation5 + $0x3d0] sm:$0xff]
    %v305 = vld [vmem:[#allocation5 + $0x3d8] sm:$0xff]
    %v306 = vld [vmem:[#allocation5 + $0x3e0] sm:$0xff]
    %v307 = vld [vmem:[#allocation5 + $0x3e8] sm:$0xff]
    %v308 = vld [vmem:[#allocation5 + $0x3f0] sm:$0xff]
    %v309 = vld [vmem:[#allocation5 + $0x3f8] sm:$0xff]
    %v310 = vld [vmem:[#allocation5 + $0x400] sm:$0xff]
    %v311 = vld [vmem:[#allocation5 + $0x408] sm:$0xff]
    %v312 = vld [vmem:[#allocation5 + $0x410] sm:$0xff]
    %v313 = vld [vmem:[#allocation5 + $0x418] sm:$0xff]
    %v314 = vld [vmem:[#allocation5 + $0x420] sm:$0xff]
    %v315 = vld [vmem:[#allocation5 + $0x428] sm:$0xff]
    %v316 = vld [vmem:[#allocation5 + $0x430] sm:$0xff]
    %v317 = vld [vmem:[#allocation5 + $0x438] sm:$0xff]
    %v318 = vld [vmem:[#allocation5 + $0x440] sm:$0xff]
    %v319 = vld [vmem:[#allocation5 + $0x448] sm:$0xff]
    %v320 = vld [vmem:[#allocation5 + $0x450] sm:$0xff]
    %v321 = vld [vmem:[#allocation5 + $0x458] sm:$0xff]
    %v322 = vld [vmem:[#allocation5 + $0x460] sm:$0xff]
    %v323 = vld [vmem:[#allocation5 + $0x468] sm:$0xff]
    %v324 = vld [vmem:[#allocation5 + $0x470] sm:$0xff]
    %v325 = vld [vmem:[#allocation5 + $0x478] sm:$0xff]
    %v326 = vld [vmem:[#allocation5 + $0x480] sm:$0xff]
    %v327 = vld [vmem:[#allocation5 + $0x488] sm:$0xff]
    %v328 = vld [vmem:[#allocation5 + $0x490] sm:$0xff]
    %v329 = vld [vmem:[#allocation5 + $0x498] sm:$0xff]
    %v330 = vld [vmem:[#allocation5 + $0x4a0] sm:$0xff]
    %v331 = vld [vmem:[#allocation5 + $0x4a8] sm:$0xff]
    %v332 = vld [vmem:[#allocation5 + $0x4b0] sm:$0xff]
    %v333 = vld [vmem:[#allocation5 + $0x4b8] sm:$0xff]
    %v334 = vld [vmem:[#allocation5 + $0x4c0] sm:$0xff]
    %v335 = vld [vmem:[#allocation5 + $0x4c8] sm:$0xff]
    %v336 = vld [vmem:[#allocation5 + $0x4d0] sm:$0xff]
    %v337 = vld [vmem:[#allocation5 + $0x4d8] sm:$0xff]
    %v338 = vld [vmem:[#allocation5 + $0x4e0] sm:$0xff]
    %v339 = vld [vmem:[#allocation5 + $0x4e8] sm:$0xff]
    %v340 = vld [vmem:[#allocation5 + $0x4f0] sm:$0xff]
    %v341 = vld [vmem:[#allocation5 + $0x4f8] sm:$0xff]
    %v342 = vld [vmem:[#allocation5 + $0x500] sm:$0xff]
    %v343 = vld [vmem:[#allocation5 + $0x508] sm:$0xff]
    %v344 = vld [vmem:[#allocation5 + $0x510] sm:$0xff]
    %v345 = vld [vmem:[#allocation5 + $0x518] sm:$0xff]
    %v346 = vld [vmem:[#allocation5 + $0x520] sm:$0xff]
    %v347 = vld [vmem:[#allocation5 + $0x528] sm:$0xff]
    %v348 = vld [vmem:[#allocation5 + $0x530] sm:$0xff]
    %v349 = vld [vmem:[#allocation5 + $0x538] sm:$0xff]
    %v350 = vld [vmem:[#allocation5 + $0x540] sm:$0xff]
    %v351 = vld [vmem:[#allocation5 + $0x548] sm:$0xff]
    %v352 = vld [vmem:[#allocation5 + $0x550] sm:$0xff]
    %v353 = vld [vmem:[#allocation5 + $0x558] sm:$0xff]
    %v354 = vld [vmem:[#allocation5 + $0x560] sm:$0xff]
    %v355 = vld [vmem:[#allocation5 + $0x568] sm:$0xff]
    %v356 = vld [vmem:[#allocation5 + $0x570] sm:$0xff]
    %v357 = vld [vmem:[#allocation5 + $0x578] sm:$0xff]
    %v358 = vld [vmem:[#allocation5 + $0x580] sm:$0xff]
    %v359 = vld [vmem:[#allocation5 + $0x588] sm:$0xff]
    %v360 = vld [vmem:[#allocation5 + $0x590] sm:$0xff]
    %v361 = vld [vmem:[#allocation5 + $0x598] sm:$0xff]
    %v362 = vld [vmem:[#allocation5 + $0x5a0] sm:$0xff]
    %v363 = vld [vmem:[#allocation5 + $0x5a8] sm:$0xff]
    %v364 = vld [vmem:[#allocation5 + $0x5b0] sm:$0xff]
    %v365 = vld [vmem:[#allocation5 + $0x5b8] sm:$0xff]
    %v366 = vld [vmem:[#allocation5 + $0x5c0] sm:$0xff]
    %v367 = vld [vmem:[#allocation5 + $0x5c8] sm:$0xff]
    %v368 = vld [vmem:[#allocation5 + $0x5d0] sm:$0xff]
    %v369 = vld [vmem:[#allocation5 + $0x5d8] sm:$0xff]
    %v370 = vld [vmem:[#allocation5 + $0x5e0] sm:$0xff]
    %v371 = vld [vmem:[#allocation5 + $0x5e8] sm:$0xff]
    %v372 = vld [vmem:[#allocation5 + $0x5f0] sm:$0xff]
    %v373 = vld [vmem:[#allocation5 + $0x5f8] sm:$0xff]
    %v374 = vld [vmem:[#allocation5 + $0x600] sm:$0xff]
    %v375 = vld [vmem:[#allocation5 + $0x608] sm:$0xff]
    %v376 = vld [vmem:[#allocation5 + $0x610] sm:$0xff]
    %v377 = vld [vmem:[#allocation5 + $0x618] sm:$0xff]
    %v378 = vld [vmem:[#allocation5 + $0x620] sm:$0xff]
    %v379 = vld [vmem:[#allocation5 + $0x628] sm:$0xff]
    %v380 = vld [vmem:[#allocation5 + $0x630] sm:$0xff]
    %v381 = vld [vmem:[#allocation5 + $0x638] sm:$0xff]
    %v382 = vld [vmem:[#allocation5 + $0x640] sm:$0xff]
    %v383 = vld [vmem:[#allocation5 + $0x648] sm:$0xff]
    %v384 = vld [vmem:[#allocation5 + $0x650] sm:$0xff]
    %v385 = vld [vmem:[#allocation5 + $0x658] sm:$0xff]
    %v386 = vld [vmem:[#allocation5 + $0x660] sm:$0xff]
    %v387 = vld [vmem:[#allocation5 + $0x668] sm:$0xff]
    %v388 = vld [vmem:[#allocation5 + $0x670] sm:$0xff]
    %v389 = vld [vmem:[#allocation5 + $0x678] sm:$0xff]
    %v390 = vld [vmem:[#allocation5 + $0x680] sm:$0xff]
    %v391 = vld [vmem:[#allocation5 + $0x688] sm:$0xff]
    %v392 = vld [vmem:[#allocation5 + $0x690] sm:$0xff]
    %v393 = vld [vmem:[#allocation5 + $0x698] sm:$0xff]
    %v394 = vld [vmem:[#allocation5 + $0x6a0] sm:$0xff]
    %v395 = vld [vmem:[#allocation5 + $0x6a8] sm:$0xff]
    %v396 = vld [vmem:[#allocation5 + $0x6b0] sm:$0xff]
    %v397 = vld [vmem:[#allocation5 + $0x6b8] sm:$0xff]
    %v398 = vld [vmem:[#allocation5 + $0x6c0] sm:$0xff]
    %v399 = vld [vmem:[#allocation5 + $0x6c8] sm:$0xff]
    %v400 = vld [vmem:[#allocation5 + $0x6d0] sm:$0xff]
    %v401 = vld [vmem:[#allocation5 + $0x6d8] sm:$0xff]
    %v402 = vld [vmem:[#allocation5 + $0x6e0] sm:$0xff]
    %v403 = vld [vmem:[#allocation5 + $0x6e8] sm:$0xff]
    %v404 = vld [vmem:[#allocation5 + $0x6f0] sm:$0xff]
    %v405 = vld [vmem:[#allocation5 + $0x6f8] sm:$0xff]
    %v406 = vld [vmem:[#allocation5 + $0x700] sm:$0xff]
    %v407 = vld [vmem:[#allocation5 + $0x708] sm:$0xff]
    %v408 = vld [vmem:[#allocation5 + $0x710] sm:$0xff]
    %v409 = vld [vmem:[#allocation5 + $0x718] sm:$0xff]
    %v410 = vld [vmem:[#allocation5 + $0x720] sm:$0xff]
    %v411 = vld [vmem:[#allocation5 + $0x728] sm:$0xff]
    %v412 = vld [vmem:[#allocation5 + $0x730] sm:$0xff]
    %v413 = vld [vmem:[#allocation5 + $0x738] sm:$0xff]
    %v414 = vld [vmem:[#allocation5 + $0x740] sm:$0xff]
    %v415 = vld [vmem:[#allocation5 + $0x748] sm:$0xff]
    %v416 = vld [vmem:[#allocation5 + $0x750] sm:$0xff]
    %v417 = vld [vmem:[#allocation5 + $0x758] sm:$0xff]
    %v418 = vld [vmem:[#allocation5 + $0x760] sm:$0xff]
    %v419 = vld [vmem:[#allocation5 + $0x768] sm:$0xff]
    %v420 = vld [vmem:[#allocation5 + $0x770] sm:$0xff]
    %v421 = vld [vmem:[#allocation5 + $0x778] sm:$0xff]
    %v422 = vld [vmem:[#allocation5 + $0x780] sm:$0xff]
    %v423 = vld [vmem:[#allocation5 + $0x788] sm:$0xff]
    %v424 = vld [vmem:[#allocation5 + $0x790] sm:$0xff]
    %v425 = vld [vmem:[#allocation5 + $0x798] sm:$0xff]
    %v426 = vld [vmem:[#allocation5 + $0x7a0] sm:$0xff]
    %v427 = vld [vmem:[#allocation5 + $0x7a8] sm:$0xff]
    %v428 = vld [vmem:[#allocation5 + $0x7b0] sm:$0xff]
    %v429 = vld [vmem:[#allocation5 + $0x7b8] sm:$0xff]
    %v430 = vld [vmem:[#allocation5 + $0x7c0] sm:$0xff]
    %v431 = vld [vmem:[#allocation5 + $0x7c8] sm:$0xff]
    %v432 = vld [vmem:[#allocation5 + $0x7d0] sm:$0xff]
    %v433 = vld [vmem:[#allocation5 + $0x7d8] sm:$0xff]
    %v434 = vld [vmem:[#allocation5 + $0x7e0] sm:$0xff]
    %v435 = vld [vmem:[#allocation5 + $0x7e8] sm:$0xff]
    %v436 = vld [vmem:[#allocation5 + $0x7f0] sm:$0xff]
    %v437 = vld [vmem:[#allocation5 + $0x7f8] sm:$0xff]
    %v438 = vld [vmem:[#allocation5 + $0x800] sm:$0xff]
    %v439 = vld [vmem:[#allocation5 + $0x808] sm:$0xff]
    %v440 = vld [vmem:[#allocation5 + $0x810] sm:$0xff]
    %v441 = vld [vmem:[#allocation5 + $0x818] sm:$0xff]
    %v442 = vld [vmem:[#allocation5 + $0x820] sm:$0xff]
    %v443 = vld [vmem:[#allocation5 + $0x828] sm:$0xff]
    %v444 = vld [vmem:[#allocation5 + $0x830] sm:$0xff]
    %v445 = vld [vmem:[#allocation5 + $0x838] sm:$0xff]
    %v446 = vld [vmem:[#allocation5 + $0x840] sm:$0xff]
    %v447 = vld [vmem:[#allocation5 + $0x848] sm:$0xff]
    %v448 = vld [vmem:[#allocation5 + $0x850] sm:$0xff]
    %v449 = vld [vmem:[#allocation5 + $0x858] sm:$0xff]
    %v450 = vld [vmem:[#allocation5 + $0x860] sm:$0xff]
    %v451 = vld [vmem:[#allocation5 + $0x868] sm:$0xff]
    %v452 = vld [vmem:[#allocation7] sm:$0xf]
    %v454 = vperm.slane %v452, 0
    %v455 = vperm.slane %v452, 1
    %v456 = vperm.slane %v452, 2
    %v457 = vperm.slane %v452, 3
    %v732 = vunpack.c.l.b16 %v182
    %v733 = vunpack.c.h.b16 %v182
    %v734 = vunpack.c.l.b16 %v183
    %v735 = vunpack.c.h.b16 %v183
    %v736 = vunpack.c.l.b16 %v184
    %v737 = vunpack.c.h.b16 %v184
    %v738 = vunpack.c.l.b16 %v185
    %v739 = vunpack.c.h.b16 %v185
    %v740 = vunpack.c.l.b16 %v186
    %v741 = vunpack.c.h.b16 %v186
    %v742 = vunpack.c.l.b16 %v187
    %v743 = vunpack.c.h.b16 %v187
    %v744 = vunpack.c.l.b16 %v188
    %v745 = vunpack.c.h.b16 %v188
    %v746 = vunpack.c.l.b16 %v189
    %v747 = vunpack.c.h.b16 %v189
    %v748 = vunpack.c.l.b16 %v190
    %v749 = vunpack.c.h.b16 %v190
    %v750 = vunpack.c.l.b16 %v191
    %v751 = vunpack.c.h.b16 %v191
    %v752 = vunpack.c.l.b16 %v192
    %v753 = vunpack.c.h.b16 %v192
    %v754 = vunpack.c.l.b16 %v193
    %v755 = vunpack.c.h.b16 %v193
    %v756 = vunpack.c.l.b16 %v194
    %v757 = vunpack.c.h.b16 %v194
    %v758 = vunpack.c.l.b16 %v195
    %v759 = vunpack.c.h.b16 %v195
    %v760 = vunpack.c.l.b16 %v196
    %v761 = vunpack.c.h.b16 %v196
    %v762 = vunpack.c.l.b16 %v197
    %v763 = vunpack.c.h.b16 %v197
    %v764 = vunpack.c.l.b16 %v198
    %v765 = vunpack.c.h.b16 %v198
    %v766 = vunpack.c.l.b16 %v199
    %v767 = vunpack.c.h.b16 %v199
    %v768 = vunpack.c.l.b16 %v200
    %v769 = vunpack.c.h.b16 %v200
    %v770 = vunpack.c.l.b16 %v201
    %v771 = vunpack.c.h.b16 %v201
    %v772 = vunpack.c.l.b16 %v202
    %v773 = vunpack.c.h.b16 %v202
    %v774 = vunpack.c.l.b16 %v203
    %v775 = vunpack.c.h.b16 %v203
    %v776 = vunpack.c.l.b16 %v204
    %v777 = vunpack.c.h.b16 %v204
    %v778 = vunpack.c.l.b16 %v205
    %v779 = vunpack.c.h.b16 %v205
    %v780 = vunpack.c.l.b16 %v206
    %v781 = vunpack.c.h.b16 %v206
    %v782 = vunpack.c.l.b16 %v207
    %v783 = vunpack.c.h.b16 %v207
    %v784 = vunpack.c.l.b16 %v208
    %v785 = vunpack.c.h.b16 %v208
    %v786 = vunpack.c.l.b16 %v209
    %v787 = vunpack.c.h.b16 %v209
    %v788 = vunpack.c.l.b16 %v210
    %v789 = vunpack.c.h.b16 %v210
    %v790 = vunpack.c.l.b16 %v211
    %v791 = vunpack.c.h.b16 %v211
    %v792 = vunpack.c.l.b16 %v212
    %v793 = vunpack.c.h.b16 %v212
    %v794 = vunpack.c.l.b16 %v213
    %v795 = vunpack.c.h.b16 %v213
    %v796 = vunpack.c.l.b16 %v214
    %v797 = vunpack.c.h.b16 %v214
    %v798 = vunpack.c.l.b16 %v215
    %v799 = vunpack.c.h.b16 %v215
    %v800 = vunpack.c.l.b16 %v216
    %v801 = vunpack.c.h.b16 %v216
    %v802 = vunpack.c.l.b16 %v217
    %v803 = vunpack.c.h.b16 %v217
    %v804 = vunpack.c.l.b16 %v218
    %v805 = vunpack.c.h.b16 %v218
    %v806 = vunpack.c.l.b16 %v219
    %v807 = vunpack.c.h.b16 %v219
    %v808 = vunpack.c.l.b16 %v220
    %v809 = vunpack.c.h.b16 %v220
    %v810 = vunpack.c.l.b16 %v221
    %v811 = vunpack.c.h.b16 %v221
    %v812 = vunpack.c.l.b16 %v222
    %v813 = vunpack.c.h.b16 %v222
    %v814 = vunpack.c.l.b16 %v223
    %v815 = vunpack.c.h.b16 %v223
    %v816 = vunpack.c.l.b16 %v224
    %v817 = vunpack.c.h.b16 %v224
    %v818 = vunpack.c.l.b16 %v225
    %v819 = vunpack.c.h.b16 %v225
    %v820 = vunpack.c.l.b16 %v226
    %v821 = vunpack.c.h.b16 %v226
    %v822 = vunpack.c.l.b16 %v227
    %v823 = vunpack.c.h.b16 %v227
    %v824 = vunpack.c.l.b16 %v228
    %v825 = vunpack.c.h.b16 %v228
    %v826 = vunpack.c.l.b16 %v229
    %v827 = vunpack.c.h.b16 %v229
    %v828 = vunpack.c.l.b16 %v230
    %v829 = vunpack.c.h.b16 %v230
    %v830 = vunpack.c.l.b16 %v231
    %v831 = vunpack.c.h.b16 %v231
    %v832 = vunpack.c.l.b16 %v232
    %v833 = vunpack.c.h.b16 %v232
    %v834 = vunpack.c.l.b16 %v233
    %v835 = vunpack.c.h.b16 %v233
    %v836 = vunpack.c.l.b16 %v234
    %v837 = vunpack.c.h.b16 %v234
    %v838 = vunpack.c.l.b16 %v235
    %v839 = vunpack.c.h.b16 %v235
    %v840 = vunpack.c.l.b16 %v236
    %v841 = vunpack.c.h.b16 %v236
    %v842 = vunpack.c.l.b16 %v237
    %v843 = vunpack.c.h.b16 %v237
    %v844 = vunpack.c.l.b16 %v238
    %v845 = vunpack.c.h.b16 %v238
    %v846 = vunpack.c.l.b16 %v239
    %v847 = vunpack.c.h.b16 %v239
    %v848 = vunpack.c.l.b16 %v240
    %v849 = vunpack.c.h.b16 %v240
    %v850 = vunpack.c.l.b16 %v241
    %v851 = vunpack.c.h.b16 %v241
    %v852 = vunpack.c.l.b16 %v242
    %v853 = vunpack.c.h.b16 %v242
    %v854 = vunpack.c.l.b16 %v243
    %v855 = vunpack.c.h.b16 %v243
    %v856 = vunpack.c.l.b16 %v244
    %v857 = vunpack.c.h.b16 %v244
    %v858 = vunpack.c.l.b16 %v245
    %v859 = vunpack.c.h.b16 %v245
    %v860 = vunpack.c.l.b16 %v246
    %v861 = vunpack.c.h.b16 %v246
    %v862 = vunpack.c.l.b16 %v247
    %v863 = vunpack.c.h.b16 %v247
    %v864 = vunpack.c.l.b16 %v248
    %v865 = vunpack.c.h.b16 %v248
    %v866 = vunpack.c.l.b16 %v249
    %v867 = vunpack.c.h.b16 %v249
    %v868 = vunpack.c.l.b16 %v250
    %v869 = vunpack.c.h.b16 %v250
    %v870 = vunpack.c.l.b16 %v251
    %v871 = vunpack.c.h.b16 %v251
    %v872 = vunpack.c.l.b16 %v252
    %v873 = vunpack.c.h.b16 %v252
    %v874 = vunpack.c.l.b16 %v253
    %v875 = vunpack.c.h.b16 %v253
    %v876 = vunpack.c.l.b16 %v254
    %v877 = vunpack.c.h.b16 %v254
    %v878 = vunpack.c.l.b16 %v255
    %v879 = vunpack.c.h.b16 %v255
    %v880 = vunpack.c.l.b16 %v256
    %v881 = vunpack.c.h.b16 %v256
    %v882 = vunpack.c.l.b16 %v257
    %v883 = vunpack.c.h.b16 %v257
    %v884 = vunpack.c.l.b16 %v258
    %v885 = vunpack.c.h.b16 %v258
    %v886 = vunpack.c.l.b16 %v259
    %v887 = vunpack.c.h.b16 %v259
    %v888 = vunpack.c.l.b16 %v260
    %v889 = vunpack.c.h.b16 %v260
    %v890 = vunpack.c.l.b16 %v261
    %v891 = vunpack.c.h.b16 %v261
    %v892 = vunpack.c.l.b16 %v262
    %v893 = vunpack.c.h.b16 %v262
    %v894 = vunpack.c.l.b16 %v263
    %v895 = vunpack.c.h.b16 %v263
    %v896 = vunpack.c.l.b16 %v264
    %v897 = vunpack.c.h.b16 %v264
    %v898 = vunpack.c.l.b16 %v265
    %v899 = vunpack.c.h.b16 %v265
    %v900 = vunpack.c.l.b16 %v266
    %v901 = vunpack.c.h.b16 %v266
    %v902 = vunpack.c.l.b16 %v267
    %v903 = vunpack.c.h.b16 %v267
    %v904 = vunpack.c.l.b16 %v268
    %v905 = vunpack.c.h.b16 %v268
    %v906 = vunpack.c.l.b16 %v269
    %v907 = vunpack.c.h.b16 %v269
    %v908 = vunpack.c.l.b16 %v270
    %v909 = vunpack.c.h.b16 %v270
    %v910 = vunpack.c.l.b16 %v271
    %v911 = vunpack.c.h.b16 %v271
    %v912 = vunpack.c.l.b16 %v272
    %v913 = vunpack.c.h.b16 %v272
    %v914 = vunpack.c.l.b16 %v273
    %v915 = vunpack.c.h.b16 %v273
    %v916 = vunpack.c.l.b16 %v274
    %v917 = vunpack.c.h.b16 %v274
    %v918 = vunpack.c.l.b16 %v275
    %v919 = vunpack.c.h.b16 %v275
    %v920 = vunpack.c.l.b16 %v276
    %v921 = vunpack.c.h.b16 %v276
    %v922 = vunpack.c.l.b16 %v277
    %v923 = vunpack.c.h.b16 %v277
    %v924 = vunpack.c.l.b16 %v278
    %v925 = vunpack.c.h.b16 %v278
    %v926 = vunpack.c.l.b16 %v279
    %v927 = vunpack.c.h.b16 %v279
    %v928 = vunpack.c.l.b16 %v280
    %v929 = vunpack.c.h.b16 %v280
    %v930 = vunpack.c.l.b16 %v281
    %v931 = vunpack.c.h.b16 %v281
    %v932 = vunpack.c.l.b16 %v282
    %v933 = vunpack.c.h.b16 %v282
    %v934 = vunpack.c.l.b16 %v283
    %v935 = vunpack.c.h.b16 %v283
    %v936 = vunpack.c.l.b16 %v284
    %v937 = vunpack.c.h.b16 %v284
    %v938 = vunpack.c.l.b16 %v285
    %v939 = vunpack.c.h.b16 %v285
    %v940 = vunpack.c.l.b16 %v286
    %v941 = vunpack.c.h.b16 %v286
    %v942 = vunpack.c.l.b16 %v287
    %v943 = vunpack.c.h.b16 %v287
    %v944 = vunpack.c.l.b16 %v288
    %v945 = vunpack.c.h.b16 %v288
    %v946 = vunpack.c.l.b16 %v289
    %v947 = vunpack.c.h.b16 %v289
    %v948 = vunpack.c.l.b16 %v290
    %v949 = vunpack.c.h.b16 %v290
    %v950 = vunpack.c.l.b16 %v291
    %v951 = vunpack.c.h.b16 %v291
    %v952 = vunpack.c.l.b16 %v292
    %v953 = vunpack.c.h.b16 %v292
    %v954 = vunpack.c.l.b16 %v293
    %v955 = vunpack.c.h.b16 %v293
    %v956 = vunpack.c.l.b16 %v294
    %v957 = vunpack.c.h.b16 %v294
    %v958 = vunpack.c.l.b16 %v295
    %v959 = vunpack.c.h.b16 %v295
    %v960 = vunpack.c.l.b16 %v296
    %v961 = vunpack.c.h.b16 %v296
    %v962 = vunpack.c.l.b16 %v297
    %v963 = vunpack.c.h.b16 %v297
    %v964 = vunpack.c.l.b16 %v298
    %v965 = vunpack.c.h.b16 %v298
    %v966 = vunpack.c.l.b16 %v299
    %v967 = vunpack.c.h.b16 %v299
    %v968 = vunpack.c.l.b16 %v300
    %v969 = vunpack.c.h.b16 %v300
    %v970 = vunpack.c.l.b16 %v301
    %v971 = vunpack.c.h.b16 %v301
    %v972 = vunpack.c.l.b16 %v302
    %v973 = vunpack.c.h.b16 %v302
    %v974 = vunpack.c.l.b16 %v303
    %v975 = vunpack.c.h.b16 %v303
    %v976 = vunpack.c.l.b16 %v304
    %v977 = vunpack.c.h.b16 %v304
    %v978 = vunpack.c.l.b16 %v305
    %v979 = vunpack.c.h.b16 %v305
    %v980 = vunpack.c.l.b16 %v306
    %v981 = vunpack.c.h.b16 %v306
    %v982 = vunpack.c.l.b16 %v307
    %v983 = vunpack.c.h.b16 %v307
    %v984 = vunpack.c.l.b16 %v308
    %v985 = vunpack.c.h.b16 %v308
    %v986 = vunpack.c.l.b16 %v309
    %v987 = vunpack.c.h.b16 %v309
    %v988 = vunpack.c.l.b16 %v310
    %v989 = vunpack.c.h.b16 %v310
    %v990 = vunpack.c.l.b16 %v311
    %v991 = vunpack.c.h.b16 %v311
    %v992 = vunpack.c.l.b16 %v312
    %v993 = vunpack.c.h.b16 %v312
    %v994 = vunpack.c.l.b16 %v313
    %v995 = vunpack.c.h.b16 %v313
    %v996 = vunpack.c.l.b16 %v314
    %v997 = vunpack.c.h.b16 %v314
    %v998 = vunpack.c.l.b16 %v315
    %v999 = vunpack.c.h.b16 %v315
    %v1000 = vunpack.c.l.b16 %v316
    %v1001 = vunpack.c.h.b16 %v316
    %v1002 = vunpack.c.l.b16 %v317
    %v1003 = vunpack.c.h.b16 %v317
    %v1004 = vunpack.c.l.b16 %v318
    %v1005 = vunpack.c.h.b16 %v318
    %v1006 = vunpack.c.l.b16 %v319
    %v1007 = vunpack.c.h.b16 %v319
    %v1008 = vunpack.c.l.b16 %v320
    %v1009 = vunpack.c.h.b16 %v320
    %v1010 = vunpack.c.l.b16 %v321
    %v1011 = vunpack.c.h.b16 %v321
    %v1012 = vunpack.c.l.b16 %v322
    %v1013 = vunpack.c.h.b16 %v322
    %v1014 = vunpack.c.l.b16 %v323
    %v1015 = vunpack.c.h.b16 %v323
    %v1016 = vunpack.c.l.b16 %v324
    %v1017 = vunpack.c.h.b16 %v324
    %v1018 = vunpack.c.l.b16 %v325
    %v1019 = vunpack.c.h.b16 %v325
    %v1020 = vunpack.c.l.b16 %v326
    %v1021 = vunpack.c.h.b16 %v326
    %v1022 = vunpack.c.l.b16 %v327
    %v1023 = vunpack.c.h.b16 %v327
    %v1024 = vunpack.c.l.b16 %v328
    %v1025 = vunpack.c.h.b16 %v328
    %v1026 = vunpack.c.l.b16 %v329
    %v1027 = vunpack.c.h.b16 %v329
    %v1028 = vunpack.c.l.b16 %v330
    %v1029 = vunpack.c.h.b16 %v330
    %v1030 = vunpack.c.l.b16 %v331
    %v1031 = vunpack.c.h.b16 %v331
    %v1032 = vunpack.c.l.b16 %v332
    %v1033 = vunpack.c.h.b16 %v332
    %v1034 = vunpack.c.l.b16 %v333
    %v1035 = vunpack.c.h.b16 %v333
    %v1036 = vunpack.c.l.b16 %v334
    %v1037 = vunpack.c.h.b16 %v334
    %v1038 = vunpack.c.l.b16 %v335
    %v1039 = vunpack.c.h.b16 %v335
    %v1040 = vunpack.c.l.b16 %v336
    %v1041 = vunpack.c.h.b16 %v336
    %v1042 = vunpack.c.l.b16 %v337
    %v1043 = vunpack.c.h.b16 %v337
    %v1044 = vunpack.c.l.b16 %v338
    %v1045 = vunpack.c.h.b16 %v338
    %v1046 = vunpack.c.l.b16 %v339
    %v1047 = vunpack.c.h.b16 %v339
    %v1048 = vunpack.c.l.b16 %v340
    %v1049 = vunpack.c.h.b16 %v340
    %v1050 = vunpack.c.l.b16 %v341
    %v1051 = vunpack.c.h.b16 %v341
    %v1052 = vunpack.c.l.b16 %v342
    %v1053 = vunpack.c.h.b16 %v342
    %v1054 = vunpack.c.l.b16 %v343
    %v1055 = vunpack.c.h.b16 %v343
    %v1056 = vunpack.c.l.b16 %v344
    %v1057 = vunpack.c.h.b16 %v344
    %v1058 = vunpack.c.l.b16 %v345
    %v1059 = vunpack.c.h.b16 %v345
    %v1060 = vunpack.c.l.b16 %v346
    %v1061 = vunpack.c.h.b16 %v346
    %v1062 = vunpack.c.l.b16 %v347
    %v1063 = vunpack.c.h.b16 %v347
    %v1064 = vunpack.c.l.b16 %v348
    %v1065 = vunpack.c.h.b16 %v348
    %v1066 = vunpack.c.l.b16 %v349
    %v1067 = vunpack.c.h.b16 %v349
    %v1068 = vunpack.c.l.b16 %v350
    %v1069 = vunpack.c.h.b16 %v350
    %v1070 = vunpack.c.l.b16 %v351
    %v1071 = vunpack.c.h.b16 %v351
    %v1072 = vunpack.c.l.b16 %v352
    %v1073 = vunpack.c.h.b16 %v352
    %v1074 = vunpack.c.l.b16 %v353
    %v1075 = vunpack.c.h.b16 %v353
    %v1076 = vunpack.c.l.b16 %v354
    %v1077 = vunpack.c.h.b16 %v354
    %v1078 = vunpack.c.l.b16 %v355
    %v1079 = vunpack.c.h.b16 %v355
    %v1080 = vunpack.c.l.b16 %v356
    %v1081 = vunpack.c.h.b16 %v356
    %v1082 = vunpack.c.l.b16 %v357
    %v1083 = vunpack.c.h.b16 %v357
    %v1084 = vunpack.c.l.b16 %v358
    %v1085 = vunpack.c.h.b16 %v358
    %v1086 = vunpack.c.l.b16 %v359
    %v1087 = vunpack.c.h.b16 %v359
    %v1088 = vunpack.c.l.b16 %v360
    %v1089 = vunpack.c.h.b16 %v360
    %v1090 = vunpack.c.l.b16 %v361
    %v1091 = vunpack.c.h.b16 %v361
    %v1092 = vunpack.c.l.b16 %v362
    %v1093 = vunpack.c.h.b16 %v362
    %v1094 = vunpack.c.l.b16 %v363
    %v1095 = vunpack.c.h.b16 %v363
    %v1096 = vunpack.c.l.b16 %v364
    %v1097 = vunpack.c.h.b16 %v364
    %v1098 = vunpack.c.l.b16 %v365
    %v1099 = vunpack.c.h.b16 %v365
    %v1100 = vunpack.c.l.b16 %v366
    %v1101 = vunpack.c.h.b16 %v366
    %v1102 = vunpack.c.l.b16 %v367
    %v1103 = vunpack.c.h.b16 %v367
    %v1104 = vunpack.c.l.b16 %v368
    %v1105 = vunpack.c.h.b16 %v368
    %v1106 = vunpack.c.l.b16 %v369
    %v1107 = vunpack.c.h.b16 %v369
    %v1108 = vunpack.c.l.b16 %v370
    %v1109 = vunpack.c.h.b16 %v370
    %v1110 = vunpack.c.l.b16 %v371
    %v1111 = vunpack.c.h.b16 %v371
    %v1112 = vunpack.c.l.b16 %v372
    %v1113 = vunpack.c.h.b16 %v372
    %v1114 = vunpack.c.l.b16 %v373
    %v1115 = vunpack.c.h.b16 %v373
    %v1116 = vunpack.c.l.b16 %v374
    %v1117 = vunpack.c.h.b16 %v374
    %v1118 = vunpack.c.l.b16 %v375
    %v1119 = vunpack.c.h.b16 %v375
    %v1120 = vunpack.c.l.b16 %v376
    %v1121 = vunpack.c.h.b16 %v376
    %v1122 = vunpack.c.l.b16 %v377
    %v1123 = vunpack.c.h.b16 %v377
    %v1124 = vunpack.c.l.b16 %v378
    %v1125 = vunpack.c.h.b16 %v378
    %v1126 = vunpack.c.l.b16 %v379
    %v1127 = vunpack.c.h.b16 %v379
    %v1128 = vunpack.c.l.b16 %v380
    %v1129 = vunpack.c.h.b16 %v380
    %v1130 = vunpack.c.l.b16 %v381
    %v1131 = vunpack.c.h.b16 %v381
    %v1132 = vunpack.c.l.b16 %v382
    %v1133 = vunpack.c.h.b16 %v382
    %v1134 = vunpack.c.l.b16 %v383
    %v1135 = vunpack.c.h.b16 %v383
    %v1136 = vunpack.c.l.b16 %v384
    %v1137 = vunpack.c.h.b16 %v384
    %v1138 = vunpack.c.l.b16 %v385
    %v1139 = vunpack.c.h.b16 %v385
    %v1140 = vunpack.c.l.b16 %v386
    %v1141 = vunpack.c.h.b16 %v386
    %v1142 = vunpack.c.l.b16 %v387
    %v1143 = vunpack.c.h.b16 %v387
    %v1144 = vunpack.c.l.b16 %v388
    %v1145 = vunpack.c.h.b16 %v388
    %v1146 = vunpack.c.l.b16 %v389
    %v1147 = vunpack.c.h.b16 %v389
    %v1148 = vunpack.c.l.b16 %v390
    %v1149 = vunpack.c.h.b16 %v390
    %v1150 = vunpack.c.l.b16 %v391
    %v1151 = vunpack.c.h.b16 %v391
    %v1152 = vunpack.c.l.b16 %v392
    %v1153 = vunpack.c.h.b16 %v392
    %v1154 = vunpack.c.l.b16 %v393
    %v1155 = vunpack.c.h.b16 %v393
    %v1156 = vunpack.c.l.b16 %v394
    %v1157 = vunpack.c.h.b16 %v394
    %v1158 = vunpack.c.l.b16 %v395
    %v1159 = vunpack.c.h.b16 %v395
    %v1160 = vunpack.c.l.b16 %v396
    %v1161 = vunpack.c.h.b16 %v396
    %v1162 = vunpack.c.l.b16 %v397
    %v1163 = vunpack.c.h.b16 %v397
    %v1164 = vunpack.c.l.b16 %v398
    %v1165 = vunpack.c.h.b16 %v398
    %v1166 = vunpack.c.l.b16 %v399
    %v1167 = vunpack.c.h.b16 %v399
    %v1168 = vunpack.c.l.b16 %v400
    %v1169 = vunpack.c.h.b16 %v400
    %v1170 = vunpack.c.l.b16 %v401
    %v1171 = vunpack.c.h.b16 %v401
    %v1172 = vunpack.c.l.b16 %v402
    %v1173 = vunpack.c.h.b16 %v402
    %v1174 = vunpack.c.l.b16 %v403
    %v1175 = vunpack.c.h.b16 %v403
    %v1176 = vunpack.c.l.b16 %v404
    %v1177 = vunpack.c.h.b16 %v404
    %v1178 = vunpack.c.l.b16 %v405
    %v1179 = vunpack.c.h.b16 %v405
    %v1180 = vunpack.c.l.b16 %v406
    %v1181 = vunpack.c.h.b16 %v406
    %v1182 = vunpack.c.l.b16 %v407
    %v1183 = vunpack.c.h.b16 %v407
    %v1184 = vunpack.c.l.b16 %v408
    %v1185 = vunpack.c.h.b16 %v408
    %v1186 = vunpack.c.l.b16 %v409
    %v1187 = vunpack.c.h.b16 %v409
    %v1188 = vunpack.c.l.b16 %v410
    %v1189 = vunpack.c.h.b16 %v410
    %v1190 = vunpack.c.l.b16 %v411
    %v1191 = vunpack.c.h.b16 %v411
    %v1192 = vunpack.c.l.b16 %v412
    %v1193 = vunpack.c.h.b16 %v412
    %v1194 = vunpack.c.l.b16 %v413
    %v1195 = vunpack.c.h.b16 %v413
    %v1196 = vunpack.c.l.b16 %v414
    %v1197 = vunpack.c.h.b16 %v414
    %v1198 = vunpack.c.l.b16 %v415
    %v1199 = vunpack.c.h.b16 %v415
    %v1200 = vunpack.c.l.b16 %v416
    %v1201 = vunpack.c.h.b16 %v416
    %v1202 = vunpack.c.l.b16 %v417
    %v1203 = vunpack.c.h.b16 %v417
    %v1204 = vunpack.c.l.b16 %v418
    %v1205 = vunpack.c.h.b16 %v418
    %v1206 = vunpack.c.l.b16 %v419
    %v1207 = vunpack.c.h.b16 %v419
    %v1208 = vunpack.c.l.b16 %v420
    %v1209 = vunpack.c.h.b16 %v420
    %v1210 = vunpack.c.l.b16 %v421
    %v1211 = vunpack.c.h.b16 %v421
    %v1212 = vunpack.c.l.b16 %v422
    %v1213 = vunpack.c.h.b16 %v422
    %v1214 = vunpack.c.l.b16 %v423
    %v1215 = vunpack.c.h.b16 %v423
    %v1216 = vunpack.c.l.b16 %v424
    %v1217 = vunpack.c.h.b16 %v424
    %v1218 = vunpack.c.l.b16 %v425
    %v1219 = vunpack.c.h.b16 %v425
    %v1220 = vunpack.c.l.b16 %v426
    %v1221 = vunpack.c.h.b16 %v426
    %v1222 = vunpack.c.l.b16 %v427
    %v1223 = vunpack.c.h.b16 %v427
    %v1224 = vunpack.c.l.b16 %v428
    %v1225 = vunpack.c.h.b16 %v428
    %v1226 = vunpack.c.l.b16 %v429
    %v1227 = vunpack.c.h.b16 %v429
    %v1228 = vunpack.c.l.b16 %v430
    %v1229 = vunpack.c.h.b16 %v430
    %v1230 = vunpack.c.l.b16 %v431
    %v1231 = vunpack.c.h.b16 %v431
    %v1232 = vunpack.c.l.b16 %v432
    %v1233 = vunpack.c.h.b16 %v432
    %v1234 = vunpack.c.l.b16 %v433
    %v1235 = vunpack.c.h.b16 %v433
    %v1236 = vunpack.c.l.b16 %v434
    %v1237 = vunpack.c.h.b16 %v434
    %v1238 = vunpack.c.l.b16 %v435
    %v1239 = vunpack.c.h.b16 %v435
    %v1240 = vunpack.c.l.b16 %v436
    %v1241 = vunpack.c.h.b16 %v436
    %v1242 = vunpack.c.l.b16 %v437
    %v1243 = vunpack.c.h.b16 %v437
    %v1244 = vunpack.c.l.b16 %v438
    %v1245 = vunpack.c.h.b16 %v438
    %v1246 = vunpack.c.l.b16 %v439
    %v1247 = vunpack.c.h.b16 %v439
    %v1248 = vunpack.c.l.b16 %v440
    %v1249 = vunpack.c.h.b16 %v440
    %v1250 = vunpack.c.l.b16 %v441
    %v1251 = vunpack.c.h.b16 %v441
    %v1252 = vunpack.c.l.b16 %v442
    %v1253 = vunpack.c.h.b16 %v442
    %v1254 = vunpack.c.l.b16 %v443
    %v1255 = vunpack.c.h.b16 %v443
    %v1256 = vunpack.c.l.b16 %v444
    %v1257 = vunpack.c.h.b16 %v444
    %v1258 = vunpack.c.l.b16 %v445
    %v1259 = vunpack.c.h.b16 %v445
    %v1260 = vunpack.c.l.b16 %v446
    %v1261 = vunpack.c.h.b16 %v446
    %v1262 = vunpack.c.l.b16 %v447
    %v1263 = vunpack.c.h.b16 %v447
    %v1264 = vunpack.c.l.b16 %v448
    %v1265 = vunpack.c.h.b16 %v448
    %v1266 = vunpack.c.l.b16 %v449
    %v1267 = vunpack.c.h.b16 %v449
    %v1268 = vunpack.c.l.b16 %v450
    %v1269 = vunpack.c.h.b16 %v450
    %v1270 = vunpack.c.l.b16 %v451
    %v1271 = vunpack.c.h.b16 %v451
    %v1272 = vpack.c.b16 %v736, %v732
    %v1273 = vpack.c.b16 %v737, %v733
    %v1274 = vpack.c.b16 %v738, %v734
    %v1275 = vpack.c.b16 %v739, %v735
    %v1276 = vpack.c.b16 %v744, %v740
    %v1277 = vpack.c.b16 %v745, %v741
    %v1278 = vpack.c.b16 %v746, %v742
    %v1279 = vpack.c.b16 %v747, %v743
    %v1280 = vpack.c.b16 %v752, %v748
    %v1281 = vpack.c.b16 %v753, %v749
    %v1282 = vpack.c.b16 %v754, %v750
    %v1283 = vpack.c.b16 %v755, %v751
    %v1284 = vpack.c.b16 %v760, %v756
    %v1285 = vpack.c.b16 %v761, %v757
    %v1286 = vpack.c.b16 %v762, %v758
    %v1287 = vpack.c.b16 %v763, %v759
    %v1288 = vpack.c.b16 %v768, %v764
    %v1289 = vpack.c.b16 %v769, %v765
    %v1290 = vpack.c.b16 %v770, %v766
    %v1291 = vpack.c.b16 %v771, %v767
    %v1292 = vpack.c.b16 %v776, %v772
    %v1293 = vpack.c.b16 %v777, %v773
    %v1294 = vpack.c.b16 %v778, %v774
    %v1295 = vpack.c.b16 %v779, %v775
    %v1296 = vpack.c.b16 %v784, %v780
    %v1297 = vpack.c.b16 %v785, %v781
    %v1298 = vpack.c.b16 %v786, %v782
    %v1299 = vpack.c.b16 %v787, %v783
    %v1300 = vpack.c.b16 %v792, %v788
    %v1301 = vpack.c.b16 %v793, %v789
    %v1302 = vpack.c.b16 %v794, %v790
    %v1303 = vpack.c.b16 %v795, %v791
    %v1304 = vpack.c.b16 %v800, %v796
    %v1305 = vpack.c.b16 %v801, %v797
    %v1306 = vpack.c.b16 %v802, %v798
    %v1307 = vpack.c.b16 %v803, %v799
    %v1308 = vpack.c.b16 %v808, %v804
    %v1309 = vpack.c.b16 %v809, %v805
    %v1310 = vpack.c.b16 %v810, %v806
    %v1311 = vpack.c.b16 %v811, %v807
    %v1312 = vpack.c.b16 %v816, %v812
    %v1313 = vpack.c.b16 %v817, %v813
    %v1314 = vpack.c.b16 %v818, %v814
    %v1315 = vpack.c.b16 %v819, %v815
    %v1316 = vpack.c.b16 %v824, %v820
    %v1317 = vpack.c.b16 %v825, %v821
    %v1318 = vpack.c.b16 %v826, %v822
    %v1319 = vpack.c.b16 %v827, %v823
    %v1320 = vpack.c.b16 %v832, %v828
    %v1321 = vpack.c.b16 %v833, %v829
    %v1322 = vpack.c.b16 %v834, %v830
    %v1323 = vpack.c.b16 %v835, %v831
    %v1324 = vpack.c.b16 %v840, %v836
    %v1325 = vpack.c.b16 %v841, %v837
    %v1326 = vpack.c.b16 %v842, %v838
    %v1327 = vpack.c.b16 %v843, %v839
    %v1328 = vpack.c.b16 %v848, %v844
    %v1329 = vpack.c.b16 %v849, %v845
    %v1330 = vpack.c.b16 %v850, %v846
    %v1331 = vpack.c.b16 %v851, %v847
    %v1332 = vpack.c.b16 %v856, %v852
    %v1333 = vpack.c.b16 %v857, %v853
    %v1334 = vpack.c.b16 %v858, %v854
    %v1335 = vpack.c.b16 %v859, %v855
    %v1336 = vpack.c.b16 %v864, %v860
    %v1337 = vpack.c.b16 %v865, %v861
    %v1338 = vpack.c.b16 %v866, %v862
    %v1339 = vpack.c.b16 %v867, %v863
    %v1340 = vpack.c.b16 %v872, %v868
    %v1341 = vpack.c.b16 %v873, %v869
    %v1342 = vpack.c.b16 %v874, %v870
    %v1343 = vpack.c.b16 %v875, %v871
    %v1344 = vpack.c.b16 %v880, %v876
    %v1345 = vpack.c.b16 %v881, %v877
    %v1346 = vpack.c.b16 %v882, %v878
    %v1347 = vpack.c.b16 %v883, %v879
    %v1348 = vpack.c.b16 %v888, %v884
    %v1349 = vpack.c.b16 %v889, %v885
    %v1350 = vpack.c.b16 %v890, %v886
    %v1351 = vpack.c.b16 %v891, %v887
    %v1352 = vpack.c.b16 %v896, %v892
    %v1353 = vpack.c.b16 %v897, %v893
    %v1354 = vpack.c.b16 %v898, %v894
    %v1355 = vpack.c.b16 %v899, %v895
    %v1356 = vpack.c.b16 %v904, %v900
    %v1357 = vpack.c.b16 %v905, %v901
    %v1358 = vpack.c.b16 %v906, %v902
    %v1359 = vpack.c.b16 %v907, %v903
    %v1360 = vpack.c.b16 %v912, %v908
    %v1361 = vpack.c.b16 %v913, %v909
    %v1362 = vpack.c.b16 %v914, %v910
    %v1363 = vpack.c.b16 %v915, %v911
    %v1364 = vpack.c.b16 %v920, %v916
    %v1365 = vpack.c.b16 %v921, %v917
    %v1366 = vpack.c.b16 %v922, %v918
    %v1367 = vpack.c.b16 %v923, %v919
    %v1368 = vpack.c.b16 %v928, %v924
    %v1369 = vpack.c.b16 %v929, %v925
    %v1370 = vpack.c.b16 %v930, %v926
    %v1371 = vpack.c.b16 %v931, %v927
    %v1372 = vpack.c.b16 %v936, %v932
    %v1373 = vpack.c.b16 %v937, %v933
    %v1374 = vpack.c.b16 %v938, %v934
    %v1375 = vpack.c.b16 %v939, %v935
    %v1376 = vpack.c.b16 %v944, %v940
    %v1377 = vpack.c.b16 %v945, %v941
    %v1378 = vpack.c.b16 %v946, %v942
    %v1379 = vpack.c.b16 %v947, %v943
    %v1380 = vpack.c.b16 %v952, %v948
    %v1381 = vpack.c.b16 %v953, %v949
    %v1382 = vpack.c.b16 %v954, %v950
    %v1383 = vpack.c.b16 %v955, %v951
    %v1384 = vpack.c.b16 %v960, %v956
    %v1385 = vpack.c.b16 %v961, %v957
    %v1386 = vpack.c.b16 %v962, %v958
    %v1387 = vpack.c.b16 %v963, %v959
    %v1388 = vpack.c.b16 %v968, %v964
    %v1389 = vpack.c.b16 %v969, %v965
    %v1390 = vpack.c.b16 %v970, %v966
    %v1391 = vpack.c.b16 %v971, %v967
    %v1392 = vpack.c.b16 %v976, %v972
    %v1393 = vpack.c.b16 %v977, %v973
    %v1394 = vpack.c.b16 %v978, %v974
    %v1395 = vpack.c.b16 %v979, %v975
    %v1396 = vpack.c.b16 %v984, %v980
    %v1397 = vpack.c.b16 %v985, %v981
    %v1398 = vpack.c.b16 %v986, %v982
    %v1399 = vpack.c.b16 %v987, %v983
    %v1400 = vpack.c.b16 %v992, %v988
    %v1401 = vpack.c.b16 %v993, %v989
    %v1402 = vpack.c.b16 %v994, %v990
    %v1403 = vpack.c.b16 %v995, %v991
    %v1404 = vpack.c.b16 %v1000, %v996
    %v1405 = vpack.c.b16 %v1001, %v997
    %v1406 = vpack.c.b16 %v1002, %v998
    %v1407 = vpack.c.b16 %v1003, %v999
    %v1408 = vpack.c.b16 %v1008, %v1004
    %v1409 = vpack.c.b16 %v1009, %v1005
    %v1410 = vpack.c.b16 %v1010, %v1006
    %v1411 = vpack.c.b16 %v1011, %v1007
    %v1412 = vpack.c.b16 %v1016, %v1012
    %v1413 = vpack.c.b16 %v1017, %v1013
    %v1414 = vpack.c.b16 %v1018, %v1014
    %v1415 = vpack.c.b16 %v1019, %v1015
    %v1416 = vpack.c.b16 %v1024, %v1020
    %v1417 = vpack.c.b16 %v1025, %v1021
    %v1418 = vpack.c.b16 %v1026, %v1022
    %v1419 = vpack.c.b16 %v1027, %v1023
    %v1420 = vpack.c.b16 %v1032, %v1028
    %v1421 = vpack.c.b16 %v1033, %v1029
    %v1422 = vpack.c.b16 %v1034, %v1030
    %v1423 = vpack.c.b16 %v1035, %v1031
    %v1424 = vpack.c.b16 %v1040, %v1036
    %v1425 = vpack.c.b16 %v1041, %v1037
    %v1426 = vpack.c.b16 %v1042, %v1038
    %v1427 = vpack.c.b16 %v1043, %v1039
    %v1428 = vpack.c.b16 %v1048, %v1044
    %v1429 = vpack.c.b16 %v1049, %v1045
    %v1430 = vpack.c.b16 %v1050, %v1046
    %v1431 = vpack.c.b16 %v1051, %v1047
    %v1432 = vpack.c.b16 %v1056, %v1052
    %v1433 = vpack.c.b16 %v1057, %v1053
    %v1434 = vpack.c.b16 %v1058, %v1054
    %v1435 = vpack.c.b16 %v1059, %v1055
    %v1436 = vpack.c.b16 %v1064, %v1060
    %v1437 = vpack.c.b16 %v1065, %v1061
    %v1438 = vpack.c.b16 %v1066, %v1062
    %v1439 = vpack.c.b16 %v1067, %v1063
    %v1440 = vpack.c.b16 %v1072, %v1068
    %v1441 = vpack.c.b16 %v1073, %v1069
    %v1442 = vpack.c.b16 %v1074, %v1070
    %v1443 = vpack.c.b16 %v1075, %v1071
    %v1444 = vpack.c.b16 %v1080, %v1076
    %v1445 = vpack.c.b16 %v1081, %v1077
    %v1446 = vpack.c.b16 %v1082, %v1078
    %v1447 = vpack.c.b16 %v1083, %v1079
    %v1448 = vpack.c.b16 %v1088, %v1084
    %v1449 = vpack.c.b16 %v1089, %v1085
    %v1450 = vpack.c.b16 %v1090, %v1086
    %v1451 = vpack.c.b16 %v1091, %v1087
    %v1452 = vpack.c.b16 %v1096, %v1092
    %v1453 = vpack.c.b16 %v1097, %v1093
    %v1454 = vpack.c.b16 %v1098, %v1094
    %v1455 = vpack.c.b16 %v1099, %v1095
    %v1456 = vpack.c.b16 %v1104, %v1100
    %v1457 = vpack.c.b16 %v1105, %v1101
    %v1458 = vpack.c.b16 %v1106, %v1102
    %v1459 = vpack.c.b16 %v1107, %v1103
    %v1460 = vpack.c.b16 %v1112, %v1108
    %v1461 = vpack.c.b16 %v1113, %v1109
    %v1462 = vpack.c.b16 %v1114, %v1110
    %v1463 = vpack.c.b16 %v1115, %v1111
    %v1464 = vpack.c.b16 %v1120, %v1116
    %v1465 = vpack.c.b16 %v1121, %v1117
    %v1466 = vpack.c.b16 %v1122, %v1118
    %v1467 = vpack.c.b16 %v1123, %v1119
    %v1468 = vpack.c.b16 %v1128, %v1124
    %v1469 = vpack.c.b16 %v1129, %v1125
    %v1470 = vpack.c.b16 %v1130, %v1126
    %v1471 = vpack.c.b16 %v1131, %v1127
    %v1472 = vpack.c.b16 %v1136, %v1132
    %v1473 = vpack.c.b16 %v1137, %v1133
    %v1474 = vpack.c.b16 %v1138, %v1134
    %v1475 = vpack.c.b16 %v1139, %v1135
    %v1476 = vpack.c.b16 %v1144, %v1140
    %v1477 = vpack.c.b16 %v1145, %v1141
    %v1478 = vpack.c.b16 %v1146, %v1142
    %v1479 = vpack.c.b16 %v1147, %v1143
    %v1480 = vpack.c.b16 %v1152, %v1148
    %v1481 = vpack.c.b16 %v1153, %v1149
    %v1482 = vpack.c.b16 %v1154, %v1150
    %v1483 = vpack.c.b16 %v1155, %v1151
    %v1484 = vpack.c.b16 %v1160, %v1156
    %v1485 = vpack.c.b16 %v1161, %v1157
    %v1486 = vpack.c.b16 %v1162, %v1158
    %v1487 = vpack.c.b16 %v1163, %v1159
    %v1488 = vpack.c.b16 %v1168, %v1164
    %v1489 = vpack.c.b16 %v1169, %v1165
    %v1490 = vpack.c.b16 %v1170, %v1166
    %v1491 = vpack.c.b16 %v1171, %v1167
    %v1492 = vpack.c.b16 %v1176, %v1172
    %v1493 = vpack.c.b16 %v1177, %v1173
    %v1494 = vpack.c.b16 %v1178, %v1174
    %v1495 = vpack.c.b16 %v1179, %v1175
    %v1496 = vpack.c.b16 %v1184, %v1180
    %v1497 = vpack.c.b16 %v1185, %v1181
    %v1498 = vpack.c.b16 %v1186, %v1182
    %v1499 = vpack.c.b16 %v1187, %v1183
    %v1500 = vpack.c.b16 %v1192, %v1188
    %v1501 = vpack.c.b16 %v1193, %v1189
    %v1502 = vpack.c.b16 %v1194, %v1190
    %v1503 = vpack.c.b16 %v1195, %v1191
    %v1504 = vpack.c.b16 %v1200, %v1196
    %v1505 = vpack.c.b16 %v1201, %v1197
    %v1506 = vpack.c.b16 %v1202, %v1198
    %v1507 = vpack.c.b16 %v1203, %v1199
    %v1508 = vpack.c.b16 %v1208, %v1204
    %v1509 = vpack.c.b16 %v1209, %v1205
    %v1510 = vpack.c.b16 %v1210, %v1206
    %v1511 = vpack.c.b16 %v1211, %v1207
    %v1512 = vpack.c.b16 %v1216, %v1212
    %v1513 = vpack.c.b16 %v1217, %v1213
    %v1514 = vpack.c.b16 %v1218, %v1214
    %v1515 = vpack.c.b16 %v1219, %v1215
    %v1516 = vpack.c.b16 %v1224, %v1220
    %v1517 = vpack.c.b16 %v1225, %v1221
    %v1518 = vpack.c.b16 %v1226, %v1222
    %v1519 = vpack.c.b16 %v1227, %v1223
    %v1520 = vpack.c.b16 %v1232, %v1228
    %v1521 = vpack.c.b16 %v1233, %v1229
    %v1522 = vpack.c.b16 %v1234, %v1230
    %v1523 = vpack.c.b16 %v1235, %v1231
    %v1524 = vpack.c.b16 %v1240, %v1236
    %v1525 = vpack.c.b16 %v1241, %v1237
    %v1526 = vpack.c.b16 %v1242, %v1238
    %v1527 = vpack.c.b16 %v1243, %v1239
    %v1528 = vpack.c.b16 %v1248, %v1244
    %v1529 = vpack.c.b16 %v1249, %v1245
    %v1530 = vpack.c.b16 %v1250, %v1246
    %v1531 = vpack.c.b16 %v1251, %v1247
    %v1532 = vpack.c.b16 %v1256, %v1252
    %v1533 = vpack.c.b16 %v1257, %v1253
    %v1534 = vpack.c.b16 %v1258, %v1254
    %v1535 = vpack.c.b16 %v1259, %v1255
    %v1536 = vpack.c.b16 %v1264, %v1260
    %v1537 = vpack.c.b16 %v1265, %v1261
    %v1538 = vpack.c.b16 %v1266, %v1262
    %v1539 = vpack.c.b16 %v1267, %v1263
    %v1540 = vpack.c.b16 %v1268, %v1268
    %v1541 = vpack.c.b16 %v1269, %v1269
    %v1542 = vpack.c.b16 %v1270, %v1270
    %v1543 = vpack.c.b16 %v1271, %v1271
    %vm1812 = vcmask 457728
    %v1814 = vsel %vm1812, %v181, 0
    %vm1816 = vcmask 1043456
    %v1818 = vsel %vm1816, %v1540, 0
    %v1821 = vsel %vm1816, %v1541, 0
    %v1824 = vsel %vm1816, %v1542, 0
    %v1827 = vsel %vm1816, %v1543, 0
    %1829 = vmatpush.bf16.msra.mxu0 %v1300
    %1830 = vmatpush.bf16.msra.mxu0 %v1296
    %1831 = vmatpush.bf16.msra.mxu0 %v1292
    %1832 = vmatpush.bf16.msra.mxu0 %v1288
    %1833 = vmatpush.bf16.msra.mxu0 %v1284
    %1834 = vmatpush.bf16.msra.mxu0 %v1280
    %1835 = vmatpush.bf16.msra.mxu0 %v1276
    %1836 = vmatpush.bf16.msra.mxu0 %v1272
    %1837 = vmatmul.bf16.gmra.mxu0 %v173
    %v1838 = vpop.f32.mrf.mxu0
    %v1839 = vadd.f32 %v454, %v1838
    %v1840 = vpop.f32.mrf.mxu0
    %1841 = vdwg.mxu0
    %1842 = vmatpush.bf16.msra.mxu0 %v1332
    %1843 = vmatpush.bf16.msra.mxu0 %v1328
    %1844 = vmatpush.bf16.msra.mxu0 %v1324
    %1845 = vmatpush.bf16.msra.mxu0 %v1320
    %1846 = vmatpush.bf16.msra.mxu0 %v1316
    %1847 = vmatpush.bf16.msra.mxu0 %v1312
    %1848 = vmatpush.bf16.msra.mxu0 %v1308
    %1849 = vmatpush.bf16.msra.mxu0 %v1304
    %1850 = vmatmul.bf16.gmra.mxu0 %v174
    %v1851 = vpop.f32.mrf.mxu0
    %v1852 = vadd.f32 %v1839, %v1851
    %v1853 = vpop.f32.mrf.mxu0
    %1854 = vdwg.mxu0
    %1855 = vmatpush.bf16.msra.mxu0 %v1364
    %1856 = vmatpush.bf16.msra.mxu0 %v1360
    %1857 = vmatpush.bf16.msra.mxu0 %v1356
    %1858 = vmatpush.bf16.msra.mxu0 %v1352
    %1859 = vmatpush.bf16.msra.mxu0 %v1348
    %1860 = vmatpush.bf16.msra.mxu0 %v1344
    %1861 = vmatpush.bf16.msra.mxu0 %v1340
    %1862 = vmatpush.bf16.msra.mxu0 %v1336
    %1863 = vmatmul.bf16.gmra.mxu0 %v175
    %v1864 = vpop.f32.mrf.mxu0
    %v1865 = vadd.f32 %v1852, %v1864
    %v1866 = vpop.f32.mrf.mxu0
    %1867 = vdwg.mxu0
    %1868 = vmatpush.bf16.msra.mxu0 %v1396
    %1869 = vmatpush.bf16.msra.mxu0 %v1392
    %1870 = vmatpush.bf16.msra.mxu0 %v1388
    %1871 = vmatpush.bf16.msra.mxu0 %v1384
    %1872 = vmatpush.bf16.msra.mxu0 %v1380
    %1873 = vmatpush.bf16.msra.mxu0 %v1376
    %1874 = vmatpush.bf16.msra.mxu0 %v1372
    %1875 = vmatpush.bf16.msra.mxu0 %v1368
    %1876 = vmatmul.bf16.gmra.mxu0 %v176
    %v1877 = vpop.f32.mrf.mxu0
    %v1878 = vadd.f32 %v1865, %v1877
    %v1879 = vpop.f32.mrf.mxu0
    %1880 = vdwg.mxu0
    %1881 = vmatpush.bf16.msra.mxu0 %v1428
    %1882 = vmatpush.bf16.msra.mxu0 %v1424
    %1883 = vmatpush.bf16.msra.mxu0 %v1420
    %1884 = vmatpush.bf16.msra.mxu0 %v1416
    %1885 = vmatpush.bf16.msra.mxu0 %v1412
    %1886 = vmatpush.bf16.msra.mxu0 %v1408
    %1887 = vmatpush.bf16.msra.mxu0 %v1404
    %1888 = vmatpush.bf16.msra.mxu0 %v1400
    %1889 = vmatmul.bf16.gmra.mxu0 %v177
    %v1890 = vpop.f32.mrf.mxu0
    %v1891 = vadd.f32 %v1878, %v1890
    %v1892 = vpop.f32.mrf.mxu0
    %1893 = vdwg.mxu0
    %1894 = vmatpush.bf16.msra.mxu0 %v1460
    %1895 = vmatpush.bf16.msra.mxu0 %v1456
    %1896 = vmatpush.bf16.msra.mxu0 %v1452
    %1897 = vmatpush.bf16.msra.mxu0 %v1448
    %1898 = vmatpush.bf16.msra.mxu0 %v1444
    %1899 = vmatpush.bf16.msra.mxu0 %v1440
    %1900 = vmatpush.bf16.msra.mxu0 %v1436
    %1901 = vmatpush.bf16.msra.mxu0 %v1432
    %1902 = vmatmul.bf16.gmra.mxu0 %v178
    %v1903 = vpop.f32.mrf.mxu0
    %v1904 = vadd.f32 %v1891, %v1903
    %v1905 = vpop.f32.mrf.mxu0
    %1906 = vdwg.mxu0
    %1907 = vmatpush.bf16.msra.mxu0 %v1492
    %1908 = vmatpush.bf16.msra.mxu0 %v1488
    %1909 = vmatpush.bf16.msra.mxu0 %v1484
    %1910 = vmatpush.bf16.msra.mxu0 %v1480
    %1911 = vmatpush.bf16.msra.mxu0 %v1476
    %1912 = vmatpush.bf16.msra.mxu0 %v1472
    %1913 = vmatpush.bf16.msra.mxu0 %v1468
    %1914 = vmatpush.bf16.msra.mxu0 %v1464
    %1915 = vmatmul.bf16.gmra.mxu0 %v179
    %v1916 = vpop.f32.mrf.mxu0
    %v1917 = vadd.f32 %v1904, %v1916
    %v1918 = vpop.f32.mrf.mxu0
    %1919 = vdwg.mxu0
    %1920 = vmatpush.bf16.msra.mxu0 %v1524
    %1921 = vmatpush.bf16.msra.mxu0 %v1520
    %1922 = vmatpush.bf16.msra.mxu0 %v1516
    %1923 = vmatpush.bf16.msra.mxu0 %v1512
    %1924 = vmatpush.bf16.msra.mxu0 %v1508
    %1925 = vmatpush.bf16.msra.mxu0 %v1504
    %1926 = vmatpush.bf16.msra.mxu0 %v1500
    %1927 = vmatpush.bf16.msra.mxu0 %v1496
    %1928 = vmatmul.bf16.gmra.mxu0 %v180
    %v1929 = vpop.f32.mrf.mxu0
    %v1930 = vadd.f32 %v1917, %v1929
    %v1931 = vpop.f32.mrf.mxu0
    %1932 = vdwg.mxu0
    %1933 = vmatpush.bf16.msra.mxu0 0
    %1934 = vmatpush.bf16.msra.mxu0 0
    %1935 = vmatpush.bf16.msra.mxu0 0
    %1936 = vmatpush.bf16.msra.mxu0 0
    %1937 = vmatpush.bf16.msra.mxu0 %v1818
    %1938 = vmatpush.bf16.msra.mxu0 %v1536
    %1939 = vmatpush.bf16.msra.mxu0 %v1532
    %1940 = vmatpush.bf16.msra.mxu0 %v1528
    %1941 = vmatmul.bf16.gmra.mxu0 %v1814
    %v1942 = vpop.f32.mrf.mxu0
    %v1943 = vadd.f32 %v1930, %v1942
    %v1944 = vpop.f32.mrf.mxu0
    %1945 = vdwg.mxu0
    %1946 = vmatpush.bf16.msra.mxu0 %v1301
    %1947 = vmatpush.bf16.msra.mxu0 %v1297
    %1948 = vmatpush.bf16.msra.mxu0 %v1293
    %1949 = vmatpush.bf16.msra.mxu0 %v1289
    %1950 = vmatpush.bf16.msra.mxu0 %v1285
    %1951 = vmatpush.bf16.msra.mxu0 %v1281
    %1952 = vmatpush.bf16.msra.mxu0 %v1277
    %1953 = vmatpush.bf16.msra.mxu0 %v1273
    %1954 = vmatmul.bf16.gmra.mxu0 %v173
    %v1955 = vpop.f32.mrf.mxu0
    %v1956 = vadd.f32 %v455, %v1955
    %v1957 = vpop.f32.mrf.mxu0
    %1958 = vdwg.mxu0
    %1959 = vmatpush.bf16.msra.mxu0 %v1333
    %1960 = vmatpush.bf16.msra.mxu0 %v1329
    %1961 = vmatpush.bf16.msra.mxu0 %v1325
    %1962 = vmatpush.bf16.msra.mxu0 %v1321
    %1963 = vmatpush.bf16.msra.mxu0 %v1317
    %1964 = vmatpush.bf16.msra.mxu0 %v1313
    %1965 = vmatpush.bf16.msra.mxu0 %v1309
    %1966 = vmatpush.bf16.msra.mxu0 %v1305
    %1967 = vmatmul.bf16.gmra.mxu0 %v174
    %v1968 = vpop.f32.mrf.mxu0
    %v1969 = vadd.f32 %v1956, %v1968
    %v1970 = vpop.f32.mrf.mxu0
    %1971 = vdwg.mxu0
    %1972 = vmatpush.bf16.msra.mxu0 %v1365
    %1973 = vmatpush.bf16.msra.mxu0 %v1361
    %1974 = vmatpush.bf16.msra.mxu0 %v1357
    %1975 = vmatpush.bf16.msra.mxu0 %v1353
    %1976 = vmatpush.bf16.msra.mxu0 %v1349
    %1977 = vmatpush.bf16.msra.mxu0 %v1345
    %1978 = vmatpush.bf16.msra.mxu0 %v1341
    %1979 = vmatpush.bf16.msra.mxu0 %v1337
    %1980 = vmatmul.bf16.gmra.mxu0 %v175
    %v1981 = vpop.f32.mrf.mxu0
    %v1982 = vadd.f32 %v1969, %v1981
    %v1983 = vpop.f32.mrf.mxu0
    %1984 = vdwg.mxu0
    %1985 = vmatpush.bf16.msra.mxu0 %v1397
    %1986 = vmatpush.bf16.msra.mxu0 %v1393
    %1987 = vmatpush.bf16.msra.mxu0 %v1389
    %1988 = vmatpush.bf16.msra.mxu0 %v1385
    %1989 = vmatpush.bf16.msra.mxu0 %v1381
    %1990 = vmatpush.bf16.msra.mxu0 %v1377
    %1991 = vmatpush.bf16.msra.mxu0 %v1373
    %1992 = vmatpush.bf16.msra.mxu0 %v1369
    %1993 = vmatmul.bf16.gmra.mxu0 %v176
    %v1994 = vpop.f32.mrf.mxu0
    %v1995 = vadd.f32 %v1982, %v1994
    %v1996 = vpop.f32.mrf.mxu0
    %1997 = vdwg.mxu0
    %1998 = vmatpush.bf16.msra.mxu0 %v1429
    %1999 = vmatpush.bf16.msra.mxu0 %v1425
    %2000 = vmatpush.bf16.msra.mxu0 %v1421
    %2001 = vmatpush.bf16.msra.mxu0 %v1417
    %2002 = vmatpush.bf16.msra.mxu0 %v1413
    %2003 = vmatpush.bf16.msra.mxu0 %v1409
    %2004 = vmatpush.bf16.msra.mxu0 %v1405
    %2005 = vmatpush.bf16.msra.mxu0 %v1401
    %2006 = vmatmul.bf16.gmra.mxu0 %v177
    %v2007 = vpop.f32.mrf.mxu0
    %v2008 = vadd.f32 %v1995, %v2007
    %v2009 = vpop.f32.mrf.mxu0
    %2010 = vdwg.mxu0
    %2011 = vmatpush.bf16.msra.mxu0 %v1461
    %2012 = vmatpush.bf16.msra.mxu0 %v1457
    %2013 = vmatpush.bf16.msra.mxu0 %v1453
    %2014 = vmatpush.bf16.msra.mxu0 %v1449
    %2015 = vmatpush.bf16.msra.mxu0 %v1445
    %2016 = vmatpush.bf16.msra.mxu0 %v1441
    %2017 = vmatpush.bf16.msra.mxu0 %v1437
    %2018 = vmatpush.bf16.msra.mxu0 %v1433
    %2019 = vmatmul.bf16.gmra.mxu0 %v178
    %v2020 = vpop.f32.mrf.mxu0
    %v2021 = vadd.f32 %v2008, %v2020
    %v2022 = vpop.f32.mrf.mxu0
    %2023 = vdwg.mxu0
    %2024 = vmatpush.bf16.msra.mxu0 %v1493
    %2025 = vmatpush.bf16.msra.mxu0 %v1489
    %2026 = vmatpush.bf16.msra.mxu0 %v1485
    %2027 = vmatpush.bf16.msra.mxu0 %v1481
    %2028 = vmatpush.bf16.msra.mxu0 %v1477
    %2029 = vmatpush.bf16.msra.mxu0 %v1473
    %2030 = vmatpush.bf16.msra.mxu0 %v1469
    %2031 = vmatpush.bf16.msra.mxu0 %v1465
    %2032 = vmatmul.bf16.gmra.mxu0 %v179
    %v2033 = vpop.f32.mrf.mxu0
    %v2034 = vadd.f32 %v2021, %v2033
    %v2035 = vpop.f32.mrf.mxu0
    %2036 = vdwg.mxu0
    %2037 = vmatpush.bf16.msra.mxu0 %v1525
    %2038 = vmatpush.bf16.msra.mxu0 %v1521
    %2039 = vmatpush.bf16.msra.mxu0 %v1517
    %2040 = vmatpush.bf16.msra.mxu0 %v1513
    %2041 = vmatpush.bf16.msra.mxu0 %v1509
    %2042 = vmatpush.bf16.msra.mxu0 %v1505
    %2043 = vmatpush.bf16.msra.mxu0 %v1501
    %2044 = vmatpush.bf16.msra.mxu0 %v1497
    %2045 = vmatmul.bf16.gmra.mxu0 %v180
    %v2046 = vpop.f32.mrf.mxu0
    %v2047 = vadd.f32 %v2034, %v2046
    %v2048 = vpop.f32.mrf.mxu0
    %2049 = vdwg.mxu0
    %2050 = vmatpush.bf16.msra.mxu0 0
    %2051 = vmatpush.bf16.msra.mxu0 0
    %2052 = vmatpush.bf16.msra.mxu0 0
    %2053 = vmatpush.bf16.msra.mxu0 0
    %2054 = vmatpush.bf16.msra.mxu0 %v1821
    %2055 = vmatpush.bf16.msra.mxu0 %v1537
    %2056 = vmatpush.bf16.msra.mxu0 %v1533
    %2057 = vmatpush.bf16.msra.mxu0 %v1529
    %2058 = vmatmul.bf16.gmra.mxu0 %v1814
    %v2059 = vpop.f32.mrf.mxu0
    %v2060 = vadd.f32 %v2047, %v2059
    %v2061 = vpop.f32.mrf.mxu0
    %2062 = vdwg.mxu0
    %2063 = vmatpush.bf16.msra.mxu0 %v1302
    %2064 = vmatpush.bf16.msra.mxu0 %v1298
    %2065 = vmatpush.bf16.msra.mxu0 %v1294
    %2066 = vmatpush.bf16.msra.mxu0 %v1290
    %2067 = vmatpush.bf16.msra.mxu0 %v1286
    %2068 = vmatpush.bf16.msra.mxu0 %v1282
    %2069 = vmatpush.bf16.msra.mxu0 %v1278
    %2070 = vmatpush.bf16.msra.mxu0 %v1274
    %2071 = vmatmul.bf16.gmra.mxu0 %v173
    %v2072 = vpop.f32.mrf.mxu0
    %v2073 = vadd.f32 %v456, %v2072
    %v2074 = vpop.f32.mrf.mxu0
    %2075 = vdwg.mxu0
    %2076 = vmatpush.bf16.msra.mxu0 %v1334
    %2077 = vmatpush.bf16.msra.mxu0 %v1330
    %2078 = vmatpush.bf16.msra.mxu0 %v1326
    %2079 = vmatpush.bf16.msra.mxu0 %v1322
    %2080 = vmatpush.bf16.msra.mxu0 %v1318
    %2081 = vmatpush.bf16.msra.mxu0 %v1314
    %2082 = vmatpush.bf16.msra.mxu0 %v1310
    %2083 = vmatpush.bf16.msra.mxu0 %v1306
    %2084 = vmatmul.bf16.gmra.mxu0 %v174
    %v2085 = vpop.f32.mrf.mxu0
    %v2086 = vadd.f32 %v2073, %v2085
    %v2087 = vpop.f32.mrf.mxu0
    %2088 = vdwg.mxu0
    %2089 = vmatpush.bf16.msra.mxu0 %v1366
    %2090 = vmatpush.bf16.msra.mxu0 %v1362
    %2091 = vmatpush.bf16.msra.mxu0 %v1358
    %2092 = vmatpush.bf16.msra.mxu0 %v1354
    %2093 = vmatpush.bf16.msra.mxu0 %v1350
    %2094 = vmatpush.bf16.msra.mxu0 %v1346
    %2095 = vmatpush.bf16.msra.mxu0 %v1342
    %2096 = vmatpush.bf16.msra.mxu0 %v1338
    %2097 = vmatmul.bf16.gmra.mxu0 %v175
    %v2098 = vpop.f32.mrf.mxu0
    %v2099 = vadd.f32 %v2086, %v2098
    %v2100 = vpop.f32.mrf.mxu0
    %2101 = vdwg.mxu0
    %2102 = vmatpush.bf16.msra.mxu0 %v1398
    %2103 = vmatpush.bf16.msra.mxu0 %v1394
    %2104 = vmatpush.bf16.msra.mxu0 %v1390
    %2105 = vmatpush.bf16.msra.mxu0 %v1386
    %2106 = vmatpush.bf16.msra.mxu0 %v1382
    %2107 = vmatpush.bf16.msra.mxu0 %v1378
    %2108 = vmatpush.bf16.msra.mxu0 %v1374
    %2109 = vmatpush.bf16.msra.mxu0 %v1370
    %2110 = vmatmul.bf16.gmra.mxu0 %v176
    %v2111 = vpop.f32.mrf.mxu0
    %v2112 = vadd.f32 %v2099, %v2111
    %v2113 = vpop.f32.mrf.mxu0
    %2114 = vdwg.mxu0
    %2115 = vmatpush.bf16.msra.mxu0 %v1430
    %2116 = vmatpush.bf16.msra.mxu0 %v1426
    %2117 = vmatpush.bf16.msra.mxu0 %v1422
    %2118 = vmatpush.bf16.msra.mxu0 %v1418
    %2119 = vmatpush.bf16.msra.mxu0 %v1414
    %2120 = vmatpush.bf16.msra.mxu0 %v1410
    %2121 = vmatpush.bf16.msra.mxu0 %v1406
    %2122 = vmatpush.bf16.msra.mxu0 %v1402
    %2123 = vmatmul.bf16.gmra.mxu0 %v177
    %v2124 = vpop.f32.mrf.mxu0
    %v2125 = vadd.f32 %v2112, %v2124
    %v2126 = vpop.f32.mrf.mxu0
    %2127 = vdwg.mxu0
    %2128 = vmatpush.bf16.msra.mxu0 %v1462
    %2129 = vmatpush.bf16.msra.mxu0 %v1458
    %2130 = vmatpush.bf16.msra.mxu0 %v1454
    %2131 = vmatpush.bf16.msra.mxu0 %v1450
    %2132 = vmatpush.bf16.msra.mxu0 %v1446
    %2133 = vmatpush.bf16.msra.mxu0 %v1442
    %2134 = vmatpush.bf16.msra.mxu0 %v1438
    %2135 = vmatpush.bf16.msra.mxu0 %v1434
    %2136 = vmatmul.bf16.gmra.mxu0 %v178
    %v2137 = vpop.f32.mrf.mxu0
    %v2138 = vadd.f32 %v2125, %v2137
    %v2139 = vpop.f32.mrf.mxu0
    %2140 = vdwg.mxu0
    %2141 = vmatpush.bf16.msra.mxu0 %v1494
    %2142 = vmatpush.bf16.msra.mxu0 %v1490
    %2143 = vmatpush.bf16.msra.mxu0 %v1486
    %2144 = vmatpush.bf16.msra.mxu0 %v1482
    %2145 = vmatpush.bf16.msra.mxu0 %v1478
    %2146 = vmatpush.bf16.msra.mxu0 %v1474
    %2147 = vmatpush.bf16.msra.mxu0 %v1470
    %2148 = vmatpush.bf16.msra.mxu0 %v1466
    %2149 = vmatmul.bf16.gmra.mxu0 %v179
    %v2150 = vpop.f32.mrf.mxu0
    %v2151 = vadd.f32 %v2138, %v2150
    %v2152 = vpop.f32.mrf.mxu0
    %2153 = vdwg.mxu0
    %2154 = vmatpush.bf16.msra.mxu0 %v1526
    %2155 = vmatpush.bf16.msra.mxu0 %v1522
    %2156 = vmatpush.bf16.msra.mxu0 %v1518
    %2157 = vmatpush.bf16.msra.mxu0 %v1514
    %2158 = vmatpush.bf16.msra.mxu0 %v1510
    %2159 = vmatpush.bf16.msra.mxu0 %v1506
    %2160 = vmatpush.bf16.msra.mxu0 %v1502
    %2161 = vmatpush.bf16.msra.mxu0 %v1498
    %2162 = vmatmul.bf16.gmra.mxu0 %v180
    %v2163 = vpop.f32.mrf.mxu0
    %v2164 = vadd.f32 %v2151, %v2163
    %v2165 = vpop.f32.mrf.mxu0
    %2166 = vdwg.mxu0
    %2167 = vmatpush.bf16.msra.mxu0 0
    %2168 = vmatpush.bf16.msra.mxu0 0
    %2169 = vmatpush.bf16.msra.mxu0 0
    %2170 = vmatpush.bf16.msra.mxu0 0
    %2171 = vmatpush.bf16.msra.mxu0 %v1824
    %2172 = vmatpush.bf16.msra.mxu0 %v1538
    %2173 = vmatpush.bf16.msra.mxu0 %v1534
    %2174 = vmatpush.bf16.msra.mxu0 %v1530
    %2175 = vmatmul.bf16.gmra.mxu0 %v1814
    %v2176 = vpop.f32.mrf.mxu0
    %v2177 = vadd.f32 %v2164, %v2176
    %v2178 = vpop.f32.mrf.mxu0
    %2179 = vdwg.mxu0
    %2180 = vmatpush.bf16.msra.mxu0 %v1303
    %2181 = vmatpush.bf16.msra.mxu0 %v1299
    %2182 = vmatpush.bf16.msra.mxu0 %v1295
    %2183 = vmatpush.bf16.msra.mxu0 %v1291
    %2184 = vmatpush.bf16.msra.mxu0 %v1287
    %2185 = vmatpush.bf16.msra.mxu0 %v1283
    %2186 = vmatpush.bf16.msra.mxu0 %v1279
    %2187 = vmatpush.bf16.msra.mxu0 %v1275
    %2188 = vmatmul.bf16.gmra.mxu0 %v173
    %v2189 = vpop.f32.mrf.mxu0
    %v2190 = vadd.f32 %v457, %v2189
    %v2191 = vpop.f32.mrf.mxu0
    %2192 = vdwg.mxu0
    %2193 = vmatpush.bf16.msra.mxu0 %v1335
    %2194 = vmatpush.bf16.msra.mxu0 %v1331
    %2195 = vmatpush.bf16.msra.mxu0 %v1327
    %2196 = vmatpush.bf16.msra.mxu0 %v1323
    %2197 = vmatpush.bf16.msra.mxu0 %v1319
    %2198 = vmatpush.bf16.msra.mxu0 %v1315
    %2199 = vmatpush.bf16.msra.mxu0 %v1311
    %2200 = vmatpush.bf16.msra.mxu0 %v1307
    %2201 = vmatmul.bf16.gmra.mxu0 %v174
    %v2202 = vpop.f32.mrf.mxu0
    %v2203 = vadd.f32 %v2190, %v2202
    %v2204 = vpop.f32.mrf.mxu0
    %2205 = vdwg.mxu0
    %2206 = vmatpush.bf16.msra.mxu0 %v1367
    %2207 = vmatpush.bf16.msra.mxu0 %v1363
    %2208 = vmatpush.bf16.msra.mxu0 %v1359
    %2209 = vmatpush.bf16.msra.mxu0 %v1355
    %2210 = vmatpush.bf16.msra.mxu0 %v1351
    %2211 = vmatpush.bf16.msra.mxu0 %v1347
    %2212 = vmatpush.bf16.msra.mxu0 %v1343
    %2213 = vmatpush.bf16.msra.mxu0 %v1339
    %2214 = vmatmul.bf16.gmra.mxu0 %v175
    %v2215 = vpop.f32.mrf.mxu0
    %v2216 = vadd.f32 %v2203, %v2215
    %v2217 = vpop.f32.mrf.mxu0
    %2218 = vdwg.mxu0
    %2219 = vmatpush.bf16.msra.mxu0 %v1399
    %2220 = vmatpush.bf16.msra.mxu0 %v1395
    %2221 = vmatpush.bf16.msra.mxu0 %v1391
    %2222 = vmatpush.bf16.msra.mxu0 %v1387
    %2223 = vmatpush.bf16.msra.mxu0 %v1383
    %2224 = vmatpush.bf16.msra.mxu0 %v1379
    %2225 = vmatpush.bf16.msra.mxu0 %v1375
    %2226 = vmatpush.bf16.msra.mxu0 %v1371
    %2227 = vmatmul.bf16.gmra.mxu0 %v176
    %v2228 = vpop.f32.mrf.mxu0
    %v2229 = vadd.f32 %v2216, %v2228
    %v2230 = vpop.f32.mrf.mxu0
    %2231 = vdwg.mxu0
    %2232 = vmatpush.bf16.msra.mxu0 %v1431
    %2233 = vmatpush.bf16.msra.mxu0 %v1427
    %2234 = vmatpush.bf16.msra.mxu0 %v1423
    %2235 = vmatpush.bf16.msra.mxu0 %v1419
    %2236 = vmatpush.bf16.msra.mxu0 %v1415
    %2237 = vmatpush.bf16.msra.mxu0 %v1411
    %2238 = vmatpush.bf16.msra.mxu0 %v1407
    %2239 = vmatpush.bf16.msra.mxu0 %v1403
    %2240 = vmatmul.bf16.gmra.mxu0 %v177
    %v2241 = vpop.f32.mrf.mxu0
    %v2242 = vadd.f32 %v2229, %v2241
    %v2243 = vpop.f32.mrf.mxu0
    %2244 = vdwg.mxu0
    %2245 = vmatpush.bf16.msra.mxu0 %v1463
    %2246 = vmatpush.bf16.msra.mxu0 %v1459
    %2247 = vmatpush.bf16.msra.mxu0 %v1455
    %2248 = vmatpush.bf16.msra.mxu0 %v1451
    %2249 = vmatpush.bf16.msra.mxu0 %v1447
    %2250 = vmatpush.bf16.msra.mxu0 %v1443
    %2251 = vmatpush.bf16.msra.mxu0 %v1439
    %2252 = vmatpush.bf16.msra.mxu0 %v1435
    %2253 = vmatmul.bf16.gmra.mxu0 %v178
    %v2254 = vpop.f32.mrf.mxu0
    %v2255 = vadd.f32 %v2242, %v2254
    %v2256 = vpop.f32.mrf.mxu0
    %2257 = vdwg.mxu0
    %2258 = vmatpush.bf16.msra.mxu0 %v1495
    %2259 = vmatpush.bf16.msra.mxu0 %v1491
    %2260 = vmatpush.bf16.msra.mxu0 %v1487
    %2261 = vmatpush.bf16.msra.mxu0 %v1483
    %2262 = vmatpush.bf16.msra.mxu0 %v1479
    %2263 = vmatpush.bf16.msra.mxu0 %v1475
    %2264 = vmatpush.bf16.msra.mxu0 %v1471
    %2265 = vmatpush.bf16.msra.mxu0 %v1467
    %2266 = vmatmul.bf16.gmra.mxu0 %v179
    %v2267 = vpop.f32.mrf.mxu0
    %v2268 = vadd.f32 %v2255, %v2267
    %v2269 = vpop.f32.mrf.mxu0
    %2270 = vdwg.mxu0
    %2271 = vmatpush.bf16.msra.mxu0 %v1527
    %2272 = vmatpush.bf16.msra.mxu0 %v1523
    %2273 = vmatpush.bf16.msra.mxu0 %v1519
    %2274 = vmatpush.bf16.msra.mxu0 %v1515
    %2275 = vmatpush.bf16.msra.mxu0 %v1511
    %2276 = vmatpush.bf16.msra.mxu0 %v1507
    %2277 = vmatpush.bf16.msra.mxu0 %v1503
    %2278 = vmatpush.bf16.msra.mxu0 %v1499
    %2279 = vmatmul.bf16.gmra.mxu0 %v180
    %v2280 = vpop.f32.mrf.mxu0
    %v2281 = vadd.f32 %v2268, %v2280
    %v2282 = vpop.f32.mrf.mxu0
    %2283 = vdwg.mxu0
    %2284 = vmatpush.bf16.msra.mxu0 0
    %2285 = vmatpush.bf16.msra.mxu0 0
    %2286 = vmatpush.bf16.msra.mxu0 0
    %2287 = vmatpush.bf16.msra.mxu0 0
    %2288 = vmatpush.bf16.msra.mxu0 %v1827
    %2289 = vmatpush.bf16.msra.mxu0 %v1539
    %2290 = vmatpush.bf16.msra.mxu0 %v1535
    %2291 = vmatpush.bf16.msra.mxu0 %v1531
    %2292 = vmatmul.bf16.gmra.mxu0 %v1814
    %v2293 = vpop.f32.mrf.mxu0
    %v2294 = vadd.f32 %v2281, %v2293
    %v2295 = vpop.f32.mrf.mxu0
    %2296 = vdwg.mxu0
    %v2297 = vmax.f32 %v1943, 0.0
    %v2298 = vmax.f32 %v2060, 0.0
    %v2299 = vmax.f32 %v2177, 0.0
    %v2300 = vmax.f32 %v2294, 0.0
    %v2301 = vpack.c.bf16 %v2297, %v2297
    %v2302 = vpack.c.bf16 %v2298, %v2298
    %v2303 = vpack.c.bf16 %v2299, %v2299
    %v2304 = vpack.c.bf16 %v2300, %v2300
    %v2305 = vld [vmem:[#allocation8] sm:$0xf]
    %v2306 = vld [vmem:[#allocation8 + $0x4] sm:$0xf]
    %v2307 = vld [vmem:[#allocation8 + $0x8] sm:$0xf]
    %v2308 = vld [vmem:[#allocation8 + $0xc] sm:$0xf]
    %v2309 = vld [vmem:[#allocation8 + $0x10] sm:$0xf]
    %v2310 = vld [vmem:[#allocation8 + $0x14] sm:$0xf]
    %v2311 = vld [vmem:[#allocation8 + $0x18] sm:$0xf]
    %v2312 = vld [vmem:[#allocation8 + $0x1c] sm:$0xf]
    %v2313 = vld [vmem:[#allocation8 + $0x20] sm:$0xf]
    %v2314 = vld [vmem:[#allocation8 + $0x24] sm:$0xf]
    %v2315 = vld [vmem:[#allocation8 + $0x28] sm:$0xf]
    %v2316 = vld [vmem:[#allocation8 + $0x2c] sm:$0xf]
    %v2317 = vld [vmem:[#allocation8 + $0x30] sm:$0xf]
    %v2318 = vld [vmem:[#allocation8 + $0x34] sm:$0xf]
    %v2319 = vld [vmem:[#allocation8 + $0x38] sm:$0xf]
    %v2320 = vld [vmem:[#allocation8 + $0x3c] sm:$0xf]
    %v2321 = vld [vmem:[#allocation8 + $0x40] sm:$0xf]
    %v2322 = vld [vmem:[#allocation8 + $0x44] sm:$0xf]
    %v2323 = vld [vmem:[#allocation8 + $0x48] sm:$0xf]
    %v2324 = vld [vmem:[#allocation8 + $0x4c] sm:$0xf]
    %v2325 = vld [vmem:[#allocation8 + $0x50] sm:$0xf]
    %v2326 = vld [vmem:[#allocation8 + $0x54] sm:$0xf]
    %v2327 = vld [vmem:[#allocation8 + $0x58] sm:$0xf]
    %v2328 = vld [vmem:[#allocation8 + $0x5c] sm:$0xf]
    %v2329 = vld [vmem:[#allocation8 + $0x60] sm:$0xf]
    %v2330 = vld [vmem:[#allocation8 + $0x64] sm:$0xf]
    %v2331 = vld [vmem:[#allocation8 + $0x68] sm:$0xf]
    %v2332 = vld [vmem:[#allocation8 + $0x6c] sm:$0xf]
    %v2333 = vld [vmem:[#allocation8 + $0x70] sm:$0xf]
    %v2334 = vld [vmem:[#allocation8 + $0x74] sm:$0xf]
    %v2335 = vld [vmem:[#allocation8 + $0x78] sm:$0xf]
    %v2336 = vld [vmem:[#allocation8 + $0x7c] sm:$0xf]
    %v2337 = vld [vmem:[#allocation8 + $0x80] sm:$0xf]
    %v2338 = vld [vmem:[#allocation8 + $0x84] sm:$0xf]
    %v2339 = vld [vmem:[#allocation8 + $0x88] sm:$0xf]
    %v2340 = vld [vmem:[#allocation8 + $0x8c] sm:$0xf]
    %v2341 = vld [vmem:[#allocation8 + $0x90] sm:$0xf]
    %v2342 = vld [vmem:[#allocation8 + $0x94] sm:$0xf]
    %v2343 = vld [vmem:[#allocation8 + $0x98] sm:$0xf]
    %v2344 = vld [vmem:[#allocation8 + $0x9c] sm:$0xf]
    %v2345 = vld [vmem:[#allocation8 + $0xa0] sm:$0xf]
    %v2346 = vld [vmem:[#allocation8 + $0xa4] sm:$0xf]
    %v2347 = vld [vmem:[#allocation8 + $0xa8] sm:$0xf]
    %v2348 = vld [vmem:[#allocation8 + $0xac] sm:$0xf]
    %v2349 = vld [vmem:[#allocation8 + $0xb0] sm:$0xf]
    %v2350 = vld [vmem:[#allocation8 + $0xb4] sm:$0xf]
    %v2351 = vld [vmem:[#allocation8 + $0xb8] sm:$0xf]
    %v2352 = vld [vmem:[#allocation8 + $0xbc] sm:$0xf]
    %v2353 = vld [vmem:[#allocation8 + $0xc0] sm:$0xf]
    %v2354 = vld [vmem:[#allocation8 + $0xc4] sm:$0xf]
    %v2355 = vld [vmem:[#allocation8 + $0xc8] sm:$0xf]
    %v2356 = vld [vmem:[#allocation8 + $0xcc] sm:$0xf]
    %v2357 = vld [vmem:[#allocation8 + $0xd0] sm:$0xf]
    %v2358 = vld [vmem:[#allocation8 + $0xd4] sm:$0xf]
    %v2359 = vld [vmem:[#allocation8 + $0xd8] sm:$0xf]
    %v2360 = vld [vmem:[#allocation8 + $0xdc] sm:$0xf]
    %v2361 = vld [vmem:[#allocation8 + $0xe0] sm:$0xf]
    %v2362 = vld [vmem:[#allocation8 + $0xe4] sm:$0xf]
    %v2363 = vld [vmem:[#allocation8 + $0xe8] sm:$0xf]
    %v2364 = vld [vmem:[#allocation8 + $0xec] sm:$0xf]
    %v2365 = vld [vmem:[#allocation8 + $0xf0] sm:$0xf]
    %v2366 = vld [vmem:[#allocation8 + $0xf4] sm:$0xf]
    %v2367 = vld [vmem:[#allocation8 + $0xf8] sm:$0xf]
    %v2368 = vld [vmem:[#allocation8 + $0xfc] sm:$0xf]
    %v2369 = vld [vmem:[#allocation10] sm:$0x1]
    %v2371 = vperm.slane %v2369, 0
    %v2437 = vunpack.c.l.b16 %v2305
    %v2438 = vunpack.c.l.b16 %v2306
    %v2439 = vunpack.c.l.b16 %v2307
    %v2440 = vunpack.c.l.b16 %v2308
    %v2441 = vunpack.c.l.b16 %v2309
    %v2442 = vunpack.c.l.b16 %v2310
    %v2443 = vunpack.c.l.b16 %v2311
    %v2444 = vunpack.c.l.b16 %v2312
    %v2445 = vunpack.c.l.b16 %v2313
    %v2446 = vunpack.c.l.b16 %v2314
    %v2447 = vunpack.c.l.b16 %v2315
    %v2448 = vunpack.c.l.b16 %v2316
    %v2449 = vunpack.c.l.b16 %v2317
    %v2450 = vunpack.c.l.b16 %v2318
    %v2451 = vunpack.c.l.b16 %v2319
    %v2452 = vunpack.c.l.b16 %v2320
    %v2453 = vunpack.c.l.b16 %v2321
    %v2454 = vunpack.c.l.b16 %v2322
    %v2455 = vunpack.c.l.b16 %v2323
    %v2456 = vunpack.c.l.b16 %v2324
    %v2457 = vunpack.c.l.b16 %v2325
    %v2458 = vunpack.c.l.b16 %v2326
    %v2459 = vunpack.c.l.b16 %v2327
    %v2460 = vunpack.c.l.b16 %v2328
    %v2461 = vunpack.c.l.b16 %v2329
    %v2462 = vunpack.c.l.b16 %v2330
    %v2463 = vunpack.c.l.b16 %v2331
    %v2464 = vunpack.c.l.b16 %v2332
    %v2465 = vunpack.c.l.b16 %v2333
    %v2466 = vunpack.c.l.b16 %v2334
    %v2467 = vunpack.c.l.b16 %v2335
    %v2468 = vunpack.c.l.b16 %v2336
    %v2469 = vunpack.c.l.b16 %v2337
    %v2470 = vunpack.c.l.b16 %v2338
    %v2471 = vunpack.c.l.b16 %v2339
    %v2472 = vunpack.c.l.b16 %v2340
    %v2473 = vunpack.c.l.b16 %v2341
    %v2474 = vunpack.c.l.b16 %v2342
    %v2475 = vunpack.c.l.b16 %v2343
    %v2476 = vunpack.c.l.b16 %v2344
    %v2477 = vunpack.c.l.b16 %v2345
    %v2478 = vunpack.c.l.b16 %v2346
    %v2479 = vunpack.c.l.b16 %v2347
    %v2480 = vunpack.c.l.b16 %v2348
    %v2481 = vunpack.c.l.b16 %v2349
    %v2482 = vunpack.c.l.b16 %v2350
    %v2483 = vunpack.c.l.b16 %v2351
    %v2484 = vunpack.c.l.b16 %v2352
    %v2485 = vunpack.c.l.b16 %v2353
    %v2486 = vunpack.c.l.b16 %v2354
    %v2487 = vunpack.c.l.b16 %v2355
    %v2488 = vunpack.c.l.b16 %v2356
    %v2489 = vunpack.c.l.b16 %v2357
    %v2490 = vunpack.c.l.b16 %v2358
    %v2491 = vunpack.c.l.b16 %v2359
    %v2492 = vunpack.c.l.b16 %v2360
    %v2493 = vunpack.c.l.b16 %v2361
    %v2494 = vunpack.c.l.b16 %v2362
    %v2495 = vunpack.c.l.b16 %v2363
    %v2496 = vunpack.c.l.b16 %v2364
    %v2497 = vunpack.c.l.b16 %v2365
    %v2498 = vunpack.c.l.b16 %v2366
    %v2499 = vunpack.c.l.b16 %v2367
    %v2500 = vunpack.c.l.b16 %v2368
    %v2501 = vpack.c.b16 %v2438, %v2437
    %v2502 = vpack.c.b16 %v2440, %v2439
    %v2503 = vpack.c.b16 %v2442, %v2441
    %v2504 = vpack.c.b16 %v2444, %v2443
    %v2505 = vpack.c.b16 %v2446, %v2445
    %v2506 = vpack.c.b16 %v2448, %v2447
    %v2507 = vpack.c.b16 %v2450, %v2449
    %v2508 = vpack.c.b16 %v2452, %v2451
    %v2509 = vpack.c.b16 %v2454, %v2453
    %v2510 = vpack.c.b16 %v2456, %v2455
    %v2511 = vpack.c.b16 %v2458, %v2457
    %v2512 = vpack.c.b16 %v2460, %v2459
    %v2513 = vpack.c.b16 %v2462, %v2461
    %v2514 = vpack.c.b16 %v2464, %v2463
    %v2515 = vpack.c.b16 %v2466, %v2465
    %v2516 = vpack.c.b16 %v2468, %v2467
    %v2517 = vpack.c.b16 %v2470, %v2469
    %v2518 = vpack.c.b16 %v2472, %v2471
    %v2519 = vpack.c.b16 %v2474, %v2473
    %v2520 = vpack.c.b16 %v2476, %v2475
    %v2521 = vpack.c.b16 %v2478, %v2477
    %v2522 = vpack.c.b16 %v2480, %v2479
    %v2523 = vpack.c.b16 %v2482, %v2481
    %v2524 = vpack.c.b16 %v2484, %v2483
    %v2525 = vpack.c.b16 %v2486, %v2485
    %v2526 = vpack.c.b16 %v2488, %v2487
    %v2527 = vpack.c.b16 %v2490, %v2489
    %v2528 = vpack.c.b16 %v2492, %v2491
    %v2529 = vpack.c.b16 %v2494, %v2493
    %v2530 = vpack.c.b16 %v2496, %v2495
    %v2531 = vpack.c.b16 %v2498, %v2497
    %v2532 = vpack.c.b16 %v2500, %v2499
    %2565 = vmatpush.bf16.msra.mxu0 %v2508
    %2566 = vmatpush.bf16.msra.mxu0 %v2507
    %2567 = vmatpush.bf16.msra.mxu0 %v2506
    %2568 = vmatpush.bf16.msra.mxu0 %v2505
    %2569 = vmatpush.bf16.msra.mxu0 %v2504
    %2570 = vmatpush.bf16.msra.mxu0 %v2503
    %2571 = vmatpush.bf16.msra.mxu0 %v2502
    %2572 = vmatpush.bf16.msra.mxu0 %v2501
    %2573 = vmatmul.bf16.gmra.mxu0 %v2301
    %v2574 = vpop.f32.mrf.mxu0
    %v2575 = vadd.f32 %v2371, %v2574
    %v2576 = vpop.f32.mrf.mxu0
    %2577 = vdwg.mxu0
    %2578 = vmatpush.bf16.msra.mxu0 %v2516
    %2579 = vmatpush.bf16.msra.mxu0 %v2515
    %2580 = vmatpush.bf16.msra.mxu0 %v2514
    %2581 = vmatpush.bf16.msra.mxu0 %v2513
    %2582 = vmatpush.bf16.msra.mxu0 %v2512
    %2583 = vmatpush.bf16.msra.mxu0 %v2511
    %2584 = vmatpush.bf16.msra.mxu0 %v2510
    %2585 = vmatpush.bf16.msra.mxu0 %v2509
    %2586 = vmatmul.bf16.gmra.mxu0 %v2302
    %v2587 = vpop.f32.mrf.mxu0
    %v2588 = vadd.f32 %v2575, %v2587
    %v2589 = vpop.f32.mrf.mxu0
    %2590 = vdwg.mxu0
    %2591 = vmatpush.bf16.msra.mxu0 %v2524
    %2592 = vmatpush.bf16.msra.mxu0 %v2523
    %2593 = vmatpush.bf16.msra.mxu0 %v2522
    %2594 = vmatpush.bf16.msra.mxu0 %v2521
    %2595 = vmatpush.bf16.msra.mxu0 %v2520
    %2596 = vmatpush.bf16.msra.mxu0 %v2519
    %2597 = vmatpush.bf16.msra.mxu0 %v2518
    %2598 = vmatpush.bf16.msra.mxu0 %v2517
    %2599 = vmatmul.bf16.gmra.mxu0 %v2303
    %v2600 = vpop.f32.mrf.mxu0
    %v2601 = vadd.f32 %v2588, %v2600
    %v2602 = vpop.f32.mrf.mxu0
    %2603 = vdwg.mxu0
    %2604 = vmatpush.bf16.msra.mxu0 %v2532
    %2605 = vmatpush.bf16.msra.mxu0 %v2531
    %2606 = vmatpush.bf16.msra.mxu0 %v2530
    %2607 = vmatpush.bf16.msra.mxu0 %v2529
    %2608 = vmatpush.bf16.msra.mxu0 %v2528
    %2609 = vmatpush.bf16.msra.mxu0 %v2527
    %2610 = vmatpush.bf16.msra.mxu0 %v2526
    %2611 = vmatpush.bf16.msra.mxu0 %v2525
    %2612 = vmatmul.bf16.gmra.mxu0 %v2304
    %v2613 = vpop.f32.mrf.mxu0
    %v2614 = vadd.f32 %v2601, %v2613
    %v2615 = vpop.f32.mrf.mxu0
    %2616 = vdwg.mxu0
    %v2617 = vpack.c.bf16 %v2614, %v2614
    %v2618 = vld [vmem:[#allocation11] sm:$0xff]
    %v2619 = vld [vmem:[#allocation11 + $0x8] sm:$0xff]
    %v2620 = vld [vmem:[#allocation11 + $0x10] sm:$0xff]
    %v2621 = vld [vmem:[#allocation11 + $0x18] sm:$0xff]
    %v2622 = vld [vmem:[#allocation11 + $0x20] sm:$0xff]
    %v2623 = vld [vmem:[#allocation11 + $0x28] sm:$0xff]
    %v2624 = vld [vmem:[#allocation11 + $0x30] sm:$0xff]
    %v2625 = vld [vmem:[#allocation11 + $0x38] sm:$0xff]
    %v2626 = vld [vmem:[#allocation11 + $0x40] sm:$0xff]
    %v2627 = vld [vmem:[#allocation11 + $0x48] sm:$0xff]
    %v2628 = vld [vmem:[#allocation11 + $0x50] sm:$0xff]
    %v2629 = vld [vmem:[#allocation11 + $0x58] sm:$0xff]
    %v2630 = vld [vmem:[#allocation11 + $0x60] sm:$0xff]
    %v2631 = vld [vmem:[#allocation11 + $0x68] sm:$0xff]
    %v2632 = vld [vmem:[#allocation11 + $0x70] sm:$0xff]
    %v2633 = vld [vmem:[#allocation11 + $0x78] sm:$0xff]
    %v2634 = vld [vmem:[#allocation11 + $0x80] sm:$0xff]
    %v2635 = vld [vmem:[#allocation11 + $0x88] sm:$0xff]
    %v2636 = vld [vmem:[#allocation11 + $0x90] sm:$0xff]
    %v2637 = vld [vmem:[#allocation11 + $0x98] sm:$0xff]
    %v2638 = vld [vmem:[#allocation11 + $0xa0] sm:$0xff]
    %v2639 = vld [vmem:[#allocation11 + $0xa8] sm:$0xff]
    %v2640 = vld [vmem:[#allocation11 + $0xb0] sm:$0xff]
    %v2641 = vld [vmem:[#allocation11 + $0xb8] sm:$0xff]
    %v2642 = vld [vmem:[#allocation11 + $0xc0] sm:$0xff]
    %v2643 = vld [vmem:[#allocation11 + $0xc8] sm:$0xff]
    %v2644 = vld [vmem:[#allocation11 + $0xd0] sm:$0xff]
    %v2645 = vld [vmem:[#allocation11 + $0xd8] sm:$0xff]
    %v2646 = vld [vmem:[#allocation11 + $0xe0] sm:$0xff]
    %v2647 = vld [vmem:[#allocation11 + $0xe8] sm:$0xff]
    %v2648 = vld [vmem:[#allocation11 + $0xf0] sm:$0xff]
    %v2649 = vld [vmem:[#allocation11 + $0xf8] sm:$0xff]
    %v2650 = vld [vmem:[#allocation13] sm:$0xf]
    %v2652 = vperm.slane %v2650, 0
    %v2653 = vperm.slane %v2650, 1
    %v2654 = vperm.slane %v2650, 2
    %v2655 = vperm.slane %v2650, 3
    %v2692 = vunpack.c.l.b16 %v2618
    %v2693 = vunpack.c.h.b16 %v2618
    %v2694 = vunpack.c.l.b16 %v2619
    %v2695 = vunpack.c.h.b16 %v2619
    %v2696 = vunpack.c.l.b16 %v2620
    %v2697 = vunpack.c.h.b16 %v2620
    %v2698 = vunpack.c.l.b16 %v2621
    %v2699 = vunpack.c.h.b16 %v2621
    %v2700 = vunpack.c.l.b16 %v2622
    %v2701 = vunpack.c.h.b16 %v2622
    %v2702 = vunpack.c.l.b16 %v2623
    %v2703 = vunpack.c.h.b16 %v2623
    %v2704 = vunpack.c.l.b16 %v2624
    %v2705 = vunpack.c.h.b16 %v2624
    %v2706 = vunpack.c.l.b16 %v2625
    %v2707 = vunpack.c.h.b16 %v2625
    %v2708 = vunpack.c.l.b16 %v2626
    %v2709 = vunpack.c.h.b16 %v2626
    %v2710 = vunpack.c.l.b16 %v2627
    %v2711 = vunpack.c.h.b16 %v2627
    %v2712 = vunpack.c.l.b16 %v2628
    %v2713 = vunpack.c.h.b16 %v2628
    %v2714 = vunpack.c.l.b16 %v2629
    %v2715 = vunpack.c.h.b16 %v2629
    %v2716 = vunpack.c.l.b16 %v2630
    %v2717 = vunpack.c.h.b16 %v2630
    %v2718 = vunpack.c.l.b16 %v2631
    %v2719 = vunpack.c.h.b16 %v2631
    %v2720 = vunpack.c.l.b16 %v2632
    %v2721 = vunpack.c.h.b16 %v2632
    %v2722 = vunpack.c.l.b16 %v2633
    %v2723 = vunpack.c.h.b16 %v2633
    %v2724 = vunpack.c.l.b16 %v2634
    %v2725 = vunpack.c.h.b16 %v2634
    %v2726 = vunpack.c.l.b16 %v2635
    %v2727 = vunpack.c.h.b16 %v2635
    %v2728 = vunpack.c.l.b16 %v2636
    %v2729 = vunpack.c.h.b16 %v2636
    %v2730 = vunpack.c.l.b16 %v2637
    %v2731 = vunpack.c.h.b16 %v2637
    %v2732 = vunpack.c.l.b16 %v2638
    %v2733 = vunpack.c.h.b16 %v2638
    %v2734 = vunpack.c.l.b16 %v2639
    %v2735 = vunpack.c.h.b16 %v2639
    %v2736 = vunpack.c.l.b16 %v2640
    %v2737 = vunpack.c.h.b16 %v2640
    %v2738 = vunpack.c.l.b16 %v2641
    %v2739 = vunpack.c.h.b16 %v2641
    %v2740 = vunpack.c.l.b16 %v2642
    %v2741 = vunpack.c.h.b16 %v2642
    %v2742 = vunpack.c.l.b16 %v2643
    %v2743 = vunpack.c.h.b16 %v2643
    %v2744 = vunpack.c.l.b16 %v2644
    %v2745 = vunpack.c.h.b16 %v2644
    %v2746 = vunpack.c.l.b16 %v2645
    %v2747 = vunpack.c.h.b16 %v2645
    %v2748 = vunpack.c.l.b16 %v2646
    %v2749 = vunpack.c.h.b16 %v2646
    %v2750 = vunpack.c.l.b16 %v2647
    %v2751 = vunpack.c.h.b16 %v2647
    %v2752 = vunpack.c.l.b16 %v2648
    %v2753 = vunpack.c.h.b16 %v2648
    %v2754 = vunpack.c.l.b16 %v2649
    %v2755 = vunpack.c.h.b16 %v2649
    %v2756 = vpack.c.b16 %v2696, %v2692
    %v2757 = vpack.c.b16 %v2697, %v2693
    %v2758 = vpack.c.b16 %v2698, %v2694
    %v2759 = vpack.c.b16 %v2699, %v2695
    %v2760 = vpack.c.b16 %v2704, %v2700
    %v2761 = vpack.c.b16 %v2705, %v2701
    %v2762 = vpack.c.b16 %v2706, %v2702
    %v2763 = vpack.c.b16 %v2707, %v2703
    %v2764 = vpack.c.b16 %v2712, %v2708
    %v2765 = vpack.c.b16 %v2713, %v2709
    %v2766 = vpack.c.b16 %v2714, %v2710
    %v2767 = vpack.c.b16 %v2715, %v2711
    %v2768 = vpack.c.b16 %v2720, %v2716
    %v2769 = vpack.c.b16 %v2721, %v2717
    %v2770 = vpack.c.b16 %v2722, %v2718
    %v2771 = vpack.c.b16 %v2723, %v2719
    %v2772 = vpack.c.b16 %v2728, %v2724
    %v2773 = vpack.c.b16 %v2729, %v2725
    %v2774 = vpack.c.b16 %v2730, %v2726
    %v2775 = vpack.c.b16 %v2731, %v2727
    %v2776 = vpack.c.b16 %v2736, %v2732
    %v2777 = vpack.c.b16 %v2737, %v2733
    %v2778 = vpack.c.b16 %v2738, %v2734
    %v2779 = vpack.c.b16 %v2739, %v2735
    %v2780 = vpack.c.b16 %v2744, %v2740
    %v2781 = vpack.c.b16 %v2745, %v2741
    %v2782 = vpack.c.b16 %v2746, %v2742
    %v2783 = vpack.c.b16 %v2747, %v2743
    %v2784 = vpack.c.b16 %v2752, %v2748
    %v2785 = vpack.c.b16 %v2753, %v2749
    %v2786 = vpack.c.b16 %v2754, %v2750
    %v2787 = vpack.c.b16 %v2755, %v2751
    %2820 = vmatpush.bf16.msra.mxu0 %v2784
    %2821 = vmatpush.bf16.msra.mxu0 %v2780
    %2822 = vmatpush.bf16.msra.mxu0 %v2776
    %2823 = vmatpush.bf16.msra.mxu0 %v2772
    %2824 = vmatpush.bf16.msra.mxu0 %v2768
    %2825 = vmatpush.bf16.msra.mxu0 %v2764
    %2826 = vmatpush.bf16.msra.mxu0 %v2760
    %2827 = vmatpush.bf16.msra.mxu0 %v2756
    %2828 = vmatmul.bf16.gmra.mxu0 %v2617
    %v2829 = vpop.f32.mrf.mxu0
    %v2830 = vadd.f32 %v2652, %v2829
    %v2831 = vpop.f32.mrf.mxu0
    %2832 = vdwg.mxu0
    %2833 = vmatpush.bf16.msra.mxu0 %v2785
    %2834 = vmatpush.bf16.msra.mxu0 %v2781
    %2835 = vmatpush.bf16.msra.mxu0 %v2777
    %2836 = vmatpush.bf16.msra.mxu0 %v2773
    %2837 = vmatpush.bf16.msra.mxu0 %v2769
    %2838 = vmatpush.bf16.msra.mxu0 %v2765
    %2839 = vmatpush.bf16.msra.mxu0 %v2761
    %2840 = vmatpush.bf16.msra.mxu0 %v2757
    %2841 = vmatmul.bf16.gmra.mxu0 %v2617
    %v2842 = vpop.f32.mrf.mxu0
    %v2843 = vadd.f32 %v2653, %v2842
    %v2844 = vpop.f32.mrf.mxu0
    %2845 = vdwg.mxu0
    %2846 = vmatpush.bf16.msra.mxu0 %v2786
    %2847 = vmatpush.bf16.msra.mxu0 %v2782
    %2848 = vmatpush.bf16.msra.mxu0 %v2778
    %2849 = vmatpush.bf16.msra.mxu0 %v2774
    %2850 = vmatpush.bf16.msra.mxu0 %v2770
    %2851 = vmatpush.bf16.msra.mxu0 %v2766
    %2852 = vmatpush.bf16.msra.mxu0 %v2762
    %2853 = vmatpush.bf16.msra.mxu0 %v2758
    %2854 = vmatmul.bf16.gmra.mxu0 %v2617
    %v2855 = vpop.f32.mrf.mxu0
    %v2856 = vadd.f32 %v2654, %v2855
    %v2857 = vpop.f32.mrf.mxu0
    %2858 = vdwg.mxu0
    %2859 = vmatpush.bf16.msra.mxu0 %v2787
    %2860 = vmatpush.bf16.msra.mxu0 %v2783
    %2861 = vmatpush.bf16.msra.mxu0 %v2779
    %2862 = vmatpush.bf16.msra.mxu0 %v2775
    %2863 = vmatpush.bf16.msra.mxu0 %v2771
    %2864 = vmatpush.bf16.msra.mxu0 %v2767
    %2865 = vmatpush.bf16.msra.mxu0 %v2763
    %2866 = vmatpush.bf16.msra.mxu0 %v2759
    %2867 = vmatmul.bf16.gmra.mxu0 %v2617
    %v2868 = vpop.f32.mrf.mxu0
    %v2869 = vadd.f32 %v2655, %v2868
    %v2870 = vpop.f32.mrf.mxu0
    %2871 = vdwg.mxu0
    %v2872 = vmax.f32 %v2830, 0.0
    %v2873 = vmax.f32 %v2843, 0.0
    %v2874 = vmax.f32 %v2856, 0.0
    %v2875 = vmax.f32 %v2869, 0.0
    %v2876 = vpack.c.bf16 %v2872, %v2872
    %v2877 = vpack.c.bf16 %v2873, %v2873
    %v2878 = vpack.c.bf16 %v2874, %v2874
    %v2879 = vpack.c.bf16 %v2875, %v2875
    %v2880 = vld [vmem:[#allocation14] sm:$0xff]
    %v2881 = vld [vmem:[#allocation14 + $0x8] sm:$0xff]
    %v2882 = vld [vmem:[#allocation14 + $0x10] sm:$0xff]
    %v2883 = vld [vmem:[#allocation14 + $0x18] sm:$0xff]
    %v2884 = vld [vmem:[#allocation14 + $0x20] sm:$0xf]
    %v2885 = vld [vmem:[#allocation14 + $0x24] sm:$0xff]
    %v2886 = vld [vmem:[#allocation14 + $0x2c] sm:$0xff]
    %v2887 = vld [vmem:[#allocation14 + $0x34] sm:$0xff]
    %v2888 = vld [vmem:[#allocation14 + $0x3c] sm:$0xff]
    %v2889 = vld [vmem:[#allocation14 + $0x44] sm:$0xf]
    %v2890 = vld [vmem:[#allocation14 + $0x48] sm:$0xff]
    %v2891 = vld [vmem:[#allocation14 + $0x50] sm:$0xff]
    %v2892 = vld [vmem:[#allocation14 + $0x58] sm:$0xff]
    %v2893 = vld [vmem:[#allocation14 + $0x60] sm:$0xff]
    %v2894 = vld [vmem:[#allocation14 + $0x68] sm:$0xf]
    %v2895 = vld [vmem:[#allocation14 + $0x6c] sm:$0xff]
    %v2896 = vld [vmem:[#allocation14 + $0x74] sm:$0xff]
    %v2897 = vld [vmem:[#allocation14 + $0x7c] sm:$0xff]
    %v2898 = vld [vmem:[#allocation14 + $0x84] sm:$0xff]
    %v2899 = vld [vmem:[#allocation14 + $0x8c] sm:$0xf]
    %v2900 = vld [vmem:[#allocation14 + $0x90] sm:$0xff]
    %v2901 = vld [vmem:[#allocation14 + $0x98] sm:$0xff]
    %v2902 = vld [vmem:[#allocation14 + $0xa0] sm:$0xff]
    %v2903 = vld [vmem:[#allocation14 + $0xa8] sm:$0xff]
    %v2904 = vld [vmem:[#allocation14 + $0xb0] sm:$0xf]
    %v2905 = vld [vmem:[#allocation14 + $0xb4] sm:$0xff]
    %v2906 = vld [vmem:[#allocation14 + $0xbc] sm:$0xff]
    %v2907 = vld [vmem:[#allocation14 + $0xc4] sm:$0xff]
    %v2908 = vld [vmem:[#allocation14 + $0xcc] sm:$0xff]
    %v2909 = vld [vmem:[#allocation14 + $0xd4] sm:$0xf]
    %v2910 = vld [vmem:[#allocation14 + $0xd8] sm:$0xff]
    %v2911 = vld [vmem:[#allocation14 + $0xe0] sm:$0xff]
    %v2912 = vld [vmem:[#allocation14 + $0xe8] sm:$0xff]
    %v2913 = vld [vmem:[#allocation14 + $0xf0] sm:$0xff]
    %v2914 = vld [vmem:[#allocation14 + $0xf8] sm:$0xf]
    %v2915 = vld [vmem:[#allocation14 + $0xfc] sm:$0xff]
    %v2916 = vld [vmem:[#allocation14 + $0x104] sm:$0xff]
    %v2917 = vld [vmem:[#allocation14 + $0x10c] sm:$0xff]
    %v2918 = vld [vmem:[#allocation14 + $0x114] sm:$0xff]
    %v2919 = vld [vmem:[#allocation14 + $0x11c] sm:$0xf]
    %v2920 = vld [vmem:[#allocation14 + $0x120] sm:$0xff]
    %v2921 = vld [vmem:[#allocation14 + $0x128] sm:$0xff]
    %v2922 = vld [vmem:[#allocation14 + $0x130] sm:$0xff]
    %v2923 = vld [vmem:[#allocation14 + $0x138] sm:$0xff]
    %v2924 = vld [vmem:[#allocation14 + $0x140] sm:$0xf]
    %v2925 = vld [vmem:[#allocation14 + $0x144] sm:$0xff]
    %v2926 = vld [vmem:[#allocation14 + $0x14c] sm:$0xff]
    %v2927 = vld [vmem:[#allocation14 + $0x154] sm:$0xff]
    %v2928 = vld [vmem:[#allocation14 + $0x15c] sm:$0xff]
    %v2929 = vld [vmem:[#allocation14 + $0x164] sm:$0xf]
    %v2930 = vld [vmem:[#allocation14 + $0x168] sm:$0xff]
    %v2931 = vld [vmem:[#allocation14 + $0x170] sm:$0xff]
    %v2932 = vld [vmem:[#allocation14 + $0x178] sm:$0xff]
    %v2933 = vld [vmem:[#allocation14 + $0x180] sm:$0xff]
    %v2934 = vld [vmem:[#allocation14 + $0x188] sm:$0xf]
    %v2935 = vld [vmem:[#allocation14 + $0x18c] sm:$0xff]
    %v2936 = vld [vmem:[#allocation14 + $0x194] sm:$0xff]
    %v2937 = vld [vmem:[#allocation14 + $0x19c] sm:$0xff]
    %v2938 = vld [vmem:[#allocation14 + $0x1a4] sm:$0xff]
    %v2939 = vld [vmem:[#allocation14 + $0x1ac] sm:$0xf]
    %v2940 = vld [vmem:[#allocation14 + $0x1b0] sm:$0xff]
    %v2941 = vld [vmem:[#allocation14 + $0x1b8] sm:$0xff]
    %v2942 = vld [vmem:[#allocation14 + $0x1c0] sm:$0xff]
    %v2943 = vld [vmem:[#allocation14 + $0x1c8] sm:$0xff]
    %v2944 = vld [vmem:[#allocation14 + $0x1d0] sm:$0xf]
    %v2945 = vld [vmem:[#allocation14 + $0x1d4] sm:$0xff]
    %v2946 = vld [vmem:[#allocation14 + $0x1dc] sm:$0xff]
    %v2947 = vld [vmem:[#allocation14 + $0x1e4] sm:$0xff]
    %v2948 = vld [vmem:[#allocation14 + $0x1ec] sm:$0xff]
    %v2949 = vld [vmem:[#allocation14 + $0x1f4] sm:$0xf]
    %v2950 = vld [vmem:[#allocation14 + $0x1f8] sm:$0xff]
    %v2951 = vld [vmem:[#allocation14 + $0x200] sm:$0xff]
    %v2952 = vld [vmem:[#allocation14 + $0x208] sm:$0xff]
    %v2953 = vld [vmem:[#allocation14 + $0x210] sm:$0xff]
    %v2954 = vld [vmem:[#allocation14 + $0x218] sm:$0xf]
    %v2955 = vld [vmem:[#allocation14 + $0x21c] sm:$0xff]
    %v2956 = vld [vmem:[#allocation14 + $0x224] sm:$0xff]
    %v2957 = vld [vmem:[#allocation14 + $0x22c] sm:$0xff]
    %v2958 = vld [vmem:[#allocation14 + $0x234] sm:$0xff]
    %v2959 = vld [vmem:[#allocation14 + $0x23c] sm:$0xf]
    %v2960 = vld [vmem:[#allocation14 + $0x240] sm:$0xff]
    %v2961 = vld [vmem:[#allocation14 + $0x248] sm:$0xff]
    %v2962 = vld [vmem:[#allocation14 + $0x250] sm:$0xff]
    %v2963 = vld [vmem:[#allocation14 + $0x258] sm:$0xff]
    %v2964 = vld [vmem:[#allocation14 + $0x260] sm:$0xf]
    %v2965 = vld [vmem:[#allocation14 + $0x264] sm:$0xff]
    %v2966 = vld [vmem:[#allocation14 + $0x26c] sm:$0xff]
    %v2967 = vld [vmem:[#allocation14 + $0x274] sm:$0xff]
    %v2968 = vld [vmem:[#allocation14 + $0x27c] sm:$0xff]
    %v2969 = vld [vmem:[#allocation14 + $0x284] sm:$0xf]
    %v2970 = vld [vmem:[#allocation14 + $0x288] sm:$0xff]
    %v2971 = vld [vmem:[#allocation14 + $0x290] sm:$0xff]
    %v2972 = vld [vmem:[#allocation14 + $0x298] sm:$0xff]
    %v2973 = vld [vmem:[#allocation14 + $0x2a0] sm:$0xff]
    %v2974 = vld [vmem:[#allocation14 + $0x2a8] sm:$0xf]
    %v2975 = vld [vmem:[#allocation14 + $0x2ac] sm:$0xff]
    %v2976 = vld [vmem:[#allocation14 + $0x2b4] sm:$0xff]
    %v2977 = vld [vmem:[#allocation14 + $0x2bc] sm:$0xff]
    %v2978 = vld [vmem:[#allocation14 + $0x2c4] sm:$0xff]
    %v2979 = vld [vmem:[#allocation14 + $0x2cc] sm:$0xf]
    %v2980 = vld [vmem:[#allocation14 + $0x2d0] sm:$0xff]
    %v2981 = vld [vmem:[#allocation14 + $0x2d8] sm:$0xff]
    %v2982 = vld [vmem:[#allocation14 + $0x2e0] sm:$0xff]
    %v2983 = vld [vmem:[#allocation14 + $0x2e8] sm:$0xff]
    %v2984 = vld [vmem:[#allocation14 + $0x2f0] sm:$0xf]
    %v2985 = vld [vmem:[#allocation14 + $0x2f4] sm:$0xff]
    %v2986 = vld [vmem:[#allocation14 + $0x2fc] sm:$0xff]
    %v2987 = vld [vmem:[#allocation14 + $0x304] sm:$0xff]
    %v2988 = vld [vmem:[#allocation14 + $0x30c] sm:$0xff]
    %v2989 = vld [vmem:[#allocation14 + $0x314] sm:$0xf]
    %v2990 = vld [vmem:[#allocation14 + $0x318] sm:$0xff]
    %v2991 = vld [vmem:[#allocation14 + $0x320] sm:$0xff]
    %v2992 = vld [vmem:[#allocation14 + $0x328] sm:$0xff]
    %v2993 = vld [vmem:[#allocation14 + $0x330] sm:$0xff]
    %v2994 = vld [vmem:[#allocation14 + $0x338] sm:$0xf]
    %v2995 = vld [vmem:[#allocation14 + $0x33c] sm:$0xff]
    %v2996 = vld [vmem:[#allocation14 + $0x344] sm:$0xff]
    %v2997 = vld [vmem:[#allocation14 + $0x34c] sm:$0xff]
    %v2998 = vld [vmem:[#allocation14 + $0x354] sm:$0xff]
    %v2999 = vld [vmem:[#allocation14 + $0x35c] sm:$0xf]
    %v3000 = vld [vmem:[#allocation14 + $0x360] sm:$0xff]
    %v3001 = vld [vmem:[#allocation14 + $0x368] sm:$0xff]
    %v3002 = vld [vmem:[#allocation14 + $0x370] sm:$0xff]
    %v3003 = vld [vmem:[#allocation14 + $0x378] sm:$0xff]
    %v3004 = vld [vmem:[#allocation14 + $0x380] sm:$0xf]
    %v3005 = vld [vmem:[#allocation14 + $0x384] sm:$0xff]
    %v3006 = vld [vmem:[#allocation14 + $0x38c] sm:$0xff]
    %v3007 = vld [vmem:[#allocation14 + $0x394] sm:$0xff]
    %v3008 = vld [vmem:[#allocation14 + $0x39c] sm:$0xff]
    %v3009 = vld [vmem:[#allocation14 + $0x3a4] sm:$0xf]
    %v3010 = vld [vmem:[#allocation14 + $0x3a8] sm:$0xff]
    %v3011 = vld [vmem:[#allocation14 + $0x3b0] sm:$0xff]
    %v3012 = vld [vmem:[#allocation14 + $0x3b8] sm:$0xff]
    %v3013 = vld [vmem:[#allocation14 + $0x3c0] sm:$0xff]
    %v3014 = vld [vmem:[#allocation14 + $0x3c8] sm:$0xf]
    %v3015 = vld [vmem:[#allocation14 + $0x3cc] sm:$0xff]
    %v3016 = vld [vmem:[#allocation14 + $0x3d4] sm:$0xff]
    %v3017 = vld [vmem:[#allocation14 + $0x3dc] sm:$0xff]
    %v3018 = vld [vmem:[#allocation14 + $0x3e4] sm:$0xff]
    %v3019 = vld [vmem:[#allocation14 + $0x3ec] sm:$0xf]
    %v3020 = vld [vmem:[#allocation14 + $0x3f0] sm:$0xff]
    %v3021 = vld [vmem:[#allocation14 + $0x3f8] sm:$0xff]
    %v3022 = vld [vmem:[#allocation14 + $0x400] sm:$0xff]
    %v3023 = vld [vmem:[#allocation14 + $0x408] sm:$0xff]
    %v3024 = vld [vmem:[#allocation14 + $0x410] sm:$0xf]
    %v3025 = vld [vmem:[#allocation14 + $0x414] sm:$0xff]
    %v3026 = vld [vmem:[#allocation14 + $0x41c] sm:$0xff]
    %v3027 = vld [vmem:[#allocation14 + $0x424] sm:$0xff]
    %v3028 = vld [vmem:[#allocation14 + $0x42c] sm:$0xff]
    %v3029 = vld [vmem:[#allocation14 + $0x434] sm:$0xf]
    %v3030 = vld [vmem:[#allocation14 + $0x438] sm:$0xff]
    %v3031 = vld [vmem:[#allocation14 + $0x440] sm:$0xff]
    %v3032 = vld [vmem:[#allocation14 + $0x448] sm:$0xff]
    %v3033 = vld [vmem:[#allocation14 + $0x450] sm:$0xff]
    %v3034 = vld [vmem:[#allocation14 + $0x458] sm:$0xf]
    %v3035 = vld [vmem:[#allocation14 + $0x45c] sm:$0xff]
    %v3036 = vld [vmem:[#allocation14 + $0x464] sm:$0xff]
    %v3037 = vld [vmem:[#allocation14 + $0x46c] sm:$0xff]
    %v3038 = vld [vmem:[#allocation14 + $0x474] sm:$0xff]
    %v3039 = vld [vmem:[#allocation14 + $0x47c] sm:$0xf]
    %v3040 = vld [vmem:[#allocation14 + $0x480] sm:$0xff]
    %v3041 = vld [vmem:[#allocation14 + $0x488] sm:$0xff]
    %v3042 = vld [vmem:[#allocation14 + $0x490] sm:$0xff]
    %v3043 = vld [vmem:[#allocation14 + $0x498] sm:$0xff]
    %v3044 = vld [vmem:[#allocation14 + $0x4a0] sm:$0xf]
    %v3045 = vld [vmem:[#allocation14 + $0x4a4] sm:$0xff]
    %v3046 = vld [vmem:[#allocation14 + $0x4ac] sm:$0xff]
    %v3047 = vld [vmem:[#allocation14 + $0x4b4] sm:$0xff]
    %v3048 = vld [vmem:[#allocation14 + $0x4bc] sm:$0xff]
    %v3049 = vld [vmem:[#allocation14 + $0x4c4] sm:$0xf]
    %v3050 = vld [vmem:[#allocation14 + $0x4c8] sm:$0xff]
    %v3051 = vld [vmem:[#allocation14 + $0x4d0] sm:$0xff]
    %v3052 = vld [vmem:[#allocation14 + $0x4d8] sm:$0xff]
    %v3053 = vld [vmem:[#allocation14 + $0x4e0] sm:$0xff]
    %v3054 = vld [vmem:[#allocation14 + $0x4e8] sm:$0xf]
    %v3055 = vld [vmem:[#allocation14 + $0x4ec] sm:$0xff]
    %v3056 = vld [vmem:[#allocation14 + $0x4f4] sm:$0xff]
    %v3057 = vld [vmem:[#allocation14 + $0x4fc] sm:$0xff]
    %v3058 = vld [vmem:[#allocation14 + $0x504] sm:$0xff]
    %v3059 = vld [vmem:[#allocation14 + $0x50c] sm:$0xf]
    %v3060 = vld [vmem:[#allocation14 + $0x510] sm:$0xff]
    %v3061 = vld [vmem:[#allocation14 + $0x518] sm:$0xff]
    %v3062 = vld [vmem:[#allocation14 + $0x520] sm:$0xff]
    %v3063 = vld [vmem:[#allocation14 + $0x528] sm:$0xff]
    %v3064 = vld [vmem:[#allocation14 + $0x530] sm:$0xf]
    %v3065 = vld [vmem:[#allocation14 + $0x534] sm:$0xff]
    %v3066 = vld [vmem:[#allocation14 + $0x53c] sm:$0xff]
    %v3067 = vld [vmem:[#allocation14 + $0x544] sm:$0xff]
    %v3068 = vld [vmem:[#allocation14 + $0x54c] sm:$0xff]
    %v3069 = vld [vmem:[#allocation14 + $0x554] sm:$0xf]
    %v3070 = vld [vmem:[#allocation14 + $0x558] sm:$0xff]
    %v3071 = vld [vmem:[#allocation14 + $0x560] sm:$0xff]
    %v3072 = vld [vmem:[#allocation14 + $0x568] sm:$0xff]
    %v3073 = vld [vmem:[#allocation14 + $0x570] sm:$0xff]
    %v3074 = vld [vmem:[#allocation14 + $0x578] sm:$0xf]
    %v3075 = vld [vmem:[#allocation14 + $0x57c] sm:$0xff]
    %v3076 = vld [vmem:[#allocation14 + $0x584] sm:$0xff]
    %v3077 = vld [vmem:[#allocation14 + $0x58c] sm:$0xff]
    %v3078 = vld [vmem:[#allocation14 + $0x594] sm:$0xff]
    %v3079 = vld [vmem:[#allocation14 + $0x59c] sm:$0xf]
    %v3080 = vld [vmem:[#allocation14 + $0x5a0] sm:$0xff]
    %v3081 = vld [vmem:[#allocation14 + $0x5a8] sm:$0xff]
    %v3082 = vld [vmem:[#allocation14 + $0x5b0] sm:$0xff]
    %v3083 = vld [vmem:[#allocation14 + $0x5b8] sm:$0xff]
    %v3084 = vld [vmem:[#allocation14 + $0x5c0] sm:$0xf]
    %v3085 = vld [vmem:[#allocation14 + $0x5c4] sm:$0xff]
    %v3086 = vld [vmem:[#allocation14 + $0x5cc] sm:$0xff]
    %v3087 = vld [vmem:[#allocation14 + $0x5d4] sm:$0xff]
    %v3088 = vld [vmem:[#allocation14 + $0x5dc] sm:$0xff]
    %v3089 = vld [vmem:[#allocation14 + $0x5e4] sm:$0xf]
    %v3090 = vld [vmem:[#allocation14 + $0x5e8] sm:$0xff]
    %v3091 = vld [vmem:[#allocation14 + $0x5f0] sm:$0xff]
    %v3092 = vld [vmem:[#allocation14 + $0x5f8] sm:$0xff]
    %v3093 = vld [vmem:[#allocation14 + $0x600] sm:$0xff]
    %v3094 = vld [vmem:[#allocation14 + $0x608] sm:$0xf]
    %v3095 = vld [vmem:[#allocation14 + $0x60c] sm:$0xff]
    %v3096 = vld [vmem:[#allocation14 + $0x614] sm:$0xff]
    %v3097 = vld [vmem:[#allocation14 + $0x61c] sm:$0xff]
    %v3098 = vld [vmem:[#allocation14 + $0x624] sm:$0xff]
    %v3099 = vld [vmem:[#allocation14 + $0x62c] sm:$0xf]
    %v3100 = vld [vmem:[#allocation14 + $0x630] sm:$0xff]
    %v3101 = vld [vmem:[#allocation14 + $0x638] sm:$0xff]
    %v3102 = vld [vmem:[#allocation14 + $0x640] sm:$0xff]
    %v3103 = vld [vmem:[#allocation14 + $0x648] sm:$0xff]
    %v3104 = vld [vmem:[#allocation14 + $0x650] sm:$0xf]
    %v3105 = vld [vmem:[#allocation14 + $0x654] sm:$0xff]
    %v3106 = vld [vmem:[#allocation14 + $0x65c] sm:$0xff]
    %v3107 = vld [vmem:[#allocation14 + $0x664] sm:$0xff]
    %v3108 = vld [vmem:[#allocation14 + $0x66c] sm:$0xff]
    %v3109 = vld [vmem:[#allocation14 + $0x674] sm:$0xf]
    %v3110 = vld [vmem:[#allocation14 + $0x678] sm:$0xff]
    %v3111 = vld [vmem:[#allocation14 + $0x680] sm:$0xff]
    %v3112 = vld [vmem:[#allocation14 + $0x688] sm:$0xff]
    %v3113 = vld [vmem:[#allocation14 + $0x690] sm:$0xff]
    %v3114 = vld [vmem:[#allocation14 + $0x698] sm:$0xf]
    %v3115 = vld [vmem:[#allocation14 + $0x69c] sm:$0xff]
    %v3116 = vld [vmem:[#allocation14 + $0x6a4] sm:$0xff]
    %v3117 = vld [vmem:[#allocation14 + $0x6ac] sm:$0xff]
    %v3118 = vld [vmem:[#allocation14 + $0x6b4] sm:$0xff]
    %v3119 = vld [vmem:[#allocation14 + $0x6bc] sm:$0xf]
    %v3120 = vld [vmem:[#allocation14 + $0x6c0] sm:$0xff]
    %v3121 = vld [vmem:[#allocation14 + $0x6c8] sm:$0xff]
    %v3122 = vld [vmem:[#allocation14 + $0x6d0] sm:$0xff]
    %v3123 = vld [vmem:[#allocation14 + $0x6d8] sm:$0xff]
    %v3124 = vld [vmem:[#allocation14 + $0x6e0] sm:$0xf]
    %v3125 = vld [vmem:[#allocation14 + $0x6e4] sm:$0xff]
    %v3126 = vld [vmem:[#allocation14 + $0x6ec] sm:$0xff]
    %v3127 = vld [vmem:[#allocation14 + $0x6f4] sm:$0xff]
    %v3128 = vld [vmem:[#allocation14 + $0x6fc] sm:$0xff]
    %v3129 = vld [vmem:[#allocation14 + $0x704] sm:$0xf]
    %v3130 = vld [vmem:[#allocation14 + $0x708] sm:$0xff]
    %v3131 = vld [vmem:[#allocation14 + $0x710] sm:$0xff]
    %v3132 = vld [vmem:[#allocation14 + $0x718] sm:$0xff]
    %v3133 = vld [vmem:[#allocation14 + $0x720] sm:$0xff]
    %v3134 = vld [vmem:[#allocation14 + $0x728] sm:$0xf]
    %v3135 = vld [vmem:[#allocation14 + $0x72c] sm:$0xff]
    %v3136 = vld [vmem:[#allocation14 + $0x734] sm:$0xff]
    %v3137 = vld [vmem:[#allocation14 + $0x73c] sm:$0xff]
    %v3138 = vld [vmem:[#allocation14 + $0x744] sm:$0xff]
    %v3139 = vld [vmem:[#allocation14 + $0x74c] sm:$0xf]
    %v3140 = vld [vmem:[#allocation14 + $0x750] sm:$0xff]
    %v3141 = vld [vmem:[#allocation14 + $0x758] sm:$0xff]
    %v3142 = vld [vmem:[#allocation14 + $0x760] sm:$0xff]
    %v3143 = vld [vmem:[#allocation14 + $0x768] sm:$0xff]
    %v3144 = vld [vmem:[#allocation14 + $0x770] sm:$0xf]
    %v3145 = vld [vmem:[#allocation14 + $0x774] sm:$0xff]
    %v3146 = vld [vmem:[#allocation14 + $0x77c] sm:$0xff]
    %v3147 = vld [vmem:[#allocation14 + $0x784] sm:$0xff]
    %v3148 = vld [vmem:[#allocation14 + $0x78c] sm:$0xff]
    %v3149 = vld [vmem:[#allocation14 + $0x794] sm:$0xf]
    %v3150 = vld [vmem:[#allocation14 + $0x798] sm:$0xff]
    %v3151 = vld [vmem:[#allocation14 + $0x7a0] sm:$0xff]
    %v3152 = vld [vmem:[#allocation14 + $0x7a8] sm:$0xff]
    %v3153 = vld [vmem:[#allocation14 + $0x7b0] sm:$0xff]
    %v3154 = vld [vmem:[#allocation14 + $0x7b8] sm:$0xf]
    %v3155 = vld [vmem:[#allocation14 + $0x7bc] sm:$0xff]
    %v3156 = vld [vmem:[#allocation14 + $0x7c4] sm:$0xff]
    %v3157 = vld [vmem:[#allocation14 + $0x7cc] sm:$0xff]
    %v3158 = vld [vmem:[#allocation14 + $0x7d4] sm:$0xff]
    %v3159 = vld [vmem:[#allocation14 + $0x7dc] sm:$0xf]
    %v3160 = vld [vmem:[#allocation14 + $0x7e0] sm:$0xff]
    %v3161 = vld [vmem:[#allocation14 + $0x7e8] sm:$0xff]
    %v3162 = vld [vmem:[#allocation14 + $0x7f0] sm:$0xff]
    %v3163 = vld [vmem:[#allocation14 + $0x7f8] sm:$0xff]
    %v3164 = vld [vmem:[#allocation14 + $0x800] sm:$0xf]
    %v3165 = vld [vmem:[#allocation14 + $0x804] sm:$0xff]
    %v3166 = vld [vmem:[#allocation14 + $0x80c] sm:$0xff]
    %v3167 = vld [vmem:[#allocation14 + $0x814] sm:$0xff]
    %v3168 = vld [vmem:[#allocation14 + $0x81c] sm:$0xff]
    %v3169 = vld [vmem:[#allocation14 + $0x824] sm:$0xf]
    %v3170 = vld [vmem:[#allocation14 + $0x828] sm:$0xff]
    %v3171 = vld [vmem:[#allocation14 + $0x830] sm:$0xff]
    %v3172 = vld [vmem:[#allocation14 + $0x838] sm:$0xff]
    %v3173 = vld [vmem:[#allocation14 + $0x840] sm:$0xff]
    %v3174 = vld [vmem:[#allocation14 + $0x848] sm:$0xf]
    %v3175 = vld [vmem:[#allocation14 + $0x84c] sm:$0xff]
    %v3176 = vld [vmem:[#allocation14 + $0x854] sm:$0xff]
    %v3177 = vld [vmem:[#allocation14 + $0x85c] sm:$0xff]
    %v3178 = vld [vmem:[#allocation14 + $0x864] sm:$0xff]
    %v3179 = vld [vmem:[#allocation14 + $0x86c] sm:$0xf]
    %v3180 = vld [vmem:[#allocation14 + $0x870] sm:$0xff]
    %v3181 = vld [vmem:[#allocation14 + $0x878] sm:$0xff]
    %v3182 = vld [vmem:[#allocation14 + $0x880] sm:$0xff]
    %v3183 = vld [vmem:[#allocation14 + $0x888] sm:$0xff]
    %v3184 = vld [vmem:[#allocation14 + $0x890] sm:$0xf]
    %v3185 = vld [vmem:[#allocation14 + $0x894] sm:$0xff]
    %v3186 = vld [vmem:[#allocation14 + $0x89c] sm:$0xff]
    %v3187 = vld [vmem:[#allocation14 + $0x8a4] sm:$0xff]
    %v3188 = vld [vmem:[#allocation14 + $0x8ac] sm:$0xff]
    %v3189 = vld [vmem:[#allocation14 + $0x8b4] sm:$0xf]
    %v3190 = vld [vmem:[#allocation14 + $0x8b8] sm:$0xff]
    %v3191 = vld [vmem:[#allocation14 + $0x8c0] sm:$0xff]
    %v3192 = vld [vmem:[#allocation14 + $0x8c8] sm:$0xff]
    %v3193 = vld [vmem:[#allocation14 + $0x8d0] sm:$0xff]
    %v3194 = vld [vmem:[#allocation14 + $0x8d8] sm:$0xf]
    %v3195 = vld [vmem:[#allocation14 + $0x8dc] sm:$0xff]
    %v3196 = vld [vmem:[#allocation14 + $0x8e4] sm:$0xff]
    %v3197 = vld [vmem:[#allocation14 + $0x8ec] sm:$0xff]
    %v3198 = vld [vmem:[#allocation14 + $0x8f4] sm:$0xff]
    %v3199 = vld [vmem:[#allocation14 + $0x8fc] sm:$0xf]
    %v3200 = vld [vmem:[#allocation16] sm:$0xff]
    %v3201 = vld [vmem:[#allocation16 + $0x8] sm:$0x1]
    %v3204 = vperm.slane %v3200, 0
    %v3205 = vperm.slane %v3200, 1
    %v3206 = vperm.slane %v3200, 2
    %v3207 = vperm.slane %v3200, 3
    %v3208 = vperm.slane %v3200, 4
    %v3209 = vperm.slane %v3200, 5
    %v3210 = vperm.slane %v3200, 6
    %v3211 = vperm.slane %v3200, 7
    %v3212 = vperm.slane %v3201, 0
    %v3542 = vunpack.c.l.b16 %v2880
    %v3543 = vunpack.c.h.b16 %v2880
    %v3544 = vunpack.c.l.b16 %v2881
    %v3545 = vunpack.c.h.b16 %v2881
    %v3546 = vunpack.c.l.b16 %v2882
    %v3547 = vunpack.c.h.b16 %v2882
    %v3548 = vunpack.c.l.b16 %v2883
    %v3549 = vunpack.c.h.b16 %v2883
    %v3550 = vunpack.c.l.b16 %v2884
    %v3551 = vunpack.c.l.b16 %v2885
    %v3552 = vunpack.c.h.b16 %v2885
    %v3553 = vunpack.c.l.b16 %v2886
    %v3554 = vunpack.c.h.b16 %v2886
    %v3555 = vunpack.c.l.b16 %v2887
    %v3556 = vunpack.c.h.b16 %v2887
    %v3557 = vunpack.c.l.b16 %v2888
    %v3558 = vunpack.c.h.b16 %v2888
    %v3559 = vunpack.c.l.b16 %v2889
    %v3560 = vunpack.c.l.b16 %v2890
    %v3561 = vunpack.c.h.b16 %v2890
    %v3562 = vunpack.c.l.b16 %v2891
    %v3563 = vunpack.c.h.b16 %v2891
    %v3564 = vunpack.c.l.b16 %v2892
    %v3565 = vunpack.c.h.b16 %v2892
    %v3566 = vunpack.c.l.b16 %v2893
    %v3567 = vunpack.c.h.b16 %v2893
    %v3568 = vunpack.c.l.b16 %v2894
    %v3569 = vunpack.c.l.b16 %v2895
    %v3570 = vunpack.c.h.b16 %v2895
    %v3571 = vunpack.c.l.b16 %v2896
    %v3572 = vunpack.c.h.b16 %v2896
    %v3573 = vunpack.c.l.b16 %v2897
    %v3574 = vunpack.c.h.b16 %v2897
    %v3575 = vunpack.c.l.b16 %v2898
    %v3576 = vunpack.c.h.b16 %v2898
    %v3577 = vunpack.c.l.b16 %v2899
    %v3578 = vunpack.c.l.b16 %v2900
    %v3579 = vunpack.c.h.b16 %v2900
    %v3580 = vunpack.c.l.b16 %v2901
    %v3581 = vunpack.c.h.b16 %v2901
    %v3582 = vunpack.c.l.b16 %v2902
    %v3583 = vunpack.c.h.b16 %v2902
    %v3584 = vunpack.c.l.b16 %v2903
    %v3585 = vunpack.c.h.b16 %v2903
    %v3586 = vunpack.c.l.b16 %v2904
    %v3587 = vunpack.c.l.b16 %v2905
    %v3588 = vunpack.c.h.b16 %v2905
    %v3589 = vunpack.c.l.b16 %v2906
    %v3590 = vunpack.c.h.b16 %v2906
    %v3591 = vunpack.c.l.b16 %v2907
    %v3592 = vunpack.c.h.b16 %v2907
    %v3593 = vunpack.c.l.b16 %v2908
    %v3594 = vunpack.c.h.b16 %v2908
    %v3595 = vunpack.c.l.b16 %v2909
    %v3596 = vunpack.c.l.b16 %v2910
    %v3597 = vunpack.c.h.b16 %v2910
    %v3598 = vunpack.c.l.b16 %v2911
    %v3599 = vunpack.c.h.b16 %v2911
    %v3600 = vunpack.c.l.b16 %v2912
    %v3601 = vunpack.c.h.b16 %v2912
    %v3602 = vunpack.c.l.b16 %v2913
    %v3603 = vunpack.c.h.b16 %v2913
    %v3604 = vunpack.c.l.b16 %v2914
    %v3605 = vunpack.c.l.b16 %v2915
    %v3606 = vunpack.c.h.b16 %v2915
    %v3607 = vunpack.c.l.b16 %v2916
    %v3608 = vunpack.c.h.b16 %v2916
    %v3609 = vunpack.c.l.b16 %v2917
    %v3610 = vunpack.c.h.b16 %v2917
    %v3611 = vunpack.c.l.b16 %v2918
    %v3612 = vunpack.c.h.b16 %v2918
    %v3613 = vunpack.c.l.b16 %v2919
    %v3614 = vunpack.c.l.b16 %v2920
    %v3615 = vunpack.c.h.b16 %v2920
    %v3616 = vunpack.c.l.b16 %v2921
    %v3617 = vunpack.c.h.b16 %v2921
    %v3618 = vunpack.c.l.b16 %v2922
    %v3619 = vunpack.c.h.b16 %v2922
    %v3620 = vunpack.c.l.b16 %v2923
    %v3621 = vunpack.c.h.b16 %v2923
    %v3622 = vunpack.c.l.b16 %v2924
    %v3623 = vunpack.c.l.b16 %v2925
    %v3624 = vunpack.c.h.b16 %v2925
    %v3625 = vunpack.c.l.b16 %v2926
    %v3626 = vunpack.c.h.b16 %v2926
    %v3627 = vunpack.c.l.b16 %v2927
    %v3628 = vunpack.c.h.b16 %v2927
    %v3629 = vunpack.c.l.b16 %v2928
    %v3630 = vunpack.c.h.b16 %v2928
    %v3631 = vunpack.c.l.b16 %v2929
    %v3632 = vunpack.c.l.b16 %v2930
    %v3633 = vunpack.c.h.b16 %v2930
    %v3634 = vunpack.c.l.b16 %v2931
    %v3635 = vunpack.c.h.b16 %v2931
    %v3636 = vunpack.c.l.b16 %v2932
    %v3637 = vunpack.c.h.b16 %v2932
    %v3638 = vunpack.c.l.b16 %v2933
    %v3639 = vunpack.c.h.b16 %v2933
    %v3640 = vunpack.c.l.b16 %v2934
    %v3641 = vunpack.c.l.b16 %v2935
    %v3642 = vunpack.c.h.b16 %v2935
    %v3643 = vunpack.c.l.b16 %v2936
    %v3644 = vunpack.c.h.b16 %v2936
    %v3645 = vunpack.c.l.b16 %v2937
    %v3646 = vunpack.c.h.b16 %v2937
    %v3647 = vunpack.c.l.b16 %v2938
    %v3648 = vunpack.c.h.b16 %v2938
    %v3649 = vunpack.c.l.b16 %v2939
    %v3650 = vunpack.c.l.b16 %v2940
    %v3651 = vunpack.c.h.b16 %v2940
    %v3652 = vunpack.c.l.b16 %v2941
    %v3653 = vunpack.c.h.b16 %v2941
    %v3654 = vunpack.c.l.b16 %v2942
    %v3655 = vunpack.c.h.b16 %v2942
    %v3656 = vunpack.c.l.b16 %v2943
    %v3657 = vunpack.c.h.b16 %v2943
    %v3658 = vunpack.c.l.b16 %v2944
    %v3659 = vunpack.c.l.b16 %v2945
    %v3660 = vunpack.c.h.b16 %v2945
    %v3661 = vunpack.c.l.b16 %v2946
    %v3662 = vunpack.c.h.b16 %v2946
    %v3663 = vunpack.c.l.b16 %v2947
    %v3664 = vunpack.c.h.b16 %v2947
    %v3665 = vunpack.c.l.b16 %v2948
    %v3666 = vunpack.c.h.b16 %v2948
    %v3667 = vunpack.c.l.b16 %v2949
    %v3668 = vunpack.c.l.b16 %v2950
    %v3669 = vunpack.c.h.b16 %v2950
    %v3670 = vunpack.c.l.b16 %v2951
    %v3671 = vunpack.c.h.b16 %v2951
    %v3672 = vunpack.c.l.b16 %v2952
    %v3673 = vunpack.c.h.b16 %v2952
    %v3674 = vunpack.c.l.b16 %v2953
    %v3675 = vunpack.c.h.b16 %v2953
    %v3676 = vunpack.c.l.b16 %v2954
    %v3677 = vunpack.c.l.b16 %v2955
    %v3678 = vunpack.c.h.b16 %v2955
    %v3679 = vunpack.c.l.b16 %v2956
    %v3680 = vunpack.c.h.b16 %v2956
    %v3681 = vunpack.c.l.b16 %v2957
    %v3682 = vunpack.c.h.b16 %v2957
    %v3683 = vunpack.c.l.b16 %v2958
    %v3684 = vunpack.c.h.b16 %v2958
    %v3685 = vunpack.c.l.b16 %v2959
    %v3686 = vunpack.c.l.b16 %v2960
    %v3687 = vunpack.c.h.b16 %v2960
    %v3688 = vunpack.c.l.b16 %v2961
    %v3689 = vunpack.c.h.b16 %v2961
    %v3690 = vunpack.c.l.b16 %v2962
    %v3691 = vunpack.c.h.b16 %v2962
    %v3692 = vunpack.c.l.b16 %v2963
    %v3693 = vunpack.c.h.b16 %v2963
    %v3694 = vunpack.c.l.b16 %v2964
    %v3695 = vunpack.c.l.b16 %v2965
    %v3696 = vunpack.c.h.b16 %v2965
    %v3697 = vunpack.c.l.b16 %v2966
    %v3698 = vunpack.c.h.b16 %v2966
    %v3699 = vunpack.c.l.b16 %v2967
    %v3700 = vunpack.c.h.b16 %v2967
    %v3701 = vunpack.c.l.b16 %v2968
    %v3702 = vunpack.c.h.b16 %v2968
    %v3703 = vunpack.c.l.b16 %v2969
    %v3704 = vunpack.c.l.b16 %v2970
    %v3705 = vunpack.c.h.b16 %v2970
    %v3706 = vunpack.c.l.b16 %v2971
    %v3707 = vunpack.c.h.b16 %v2971
    %v3708 = vunpack.c.l.b16 %v2972
    %v3709 = vunpack.c.h.b16 %v2972
    %v3710 = vunpack.c.l.b16 %v2973
    %v3711 = vunpack.c.h.b16 %v2973
    %v3712 = vunpack.c.l.b16 %v2974
    %v3713 = vunpack.c.l.b16 %v2975
    %v3714 = vunpack.c.h.b16 %v2975
    %v3715 = vunpack.c.l.b16 %v2976
    %v3716 = vunpack.c.h.b16 %v2976
    %v3717 = vunpack.c.l.b16 %v2977
    %v3718 = vunpack.c.h.b16 %v2977
    %v3719 = vunpack.c.l.b16 %v2978
    %v3720 = vunpack.c.h.b16 %v2978
    %v3721 = vunpack.c.l.b16 %v2979
    %v3722 = vunpack.c.l.b16 %v2980
    %v3723 = vunpack.c.h.b16 %v2980
    %v3724 = vunpack.c.l.b16 %v2981
    %v3725 = vunpack.c.h.b16 %v2981
    %v3726 = vunpack.c.l.b16 %v2982
    %v3727 = vunpack.c.h.b16 %v2982
    %v3728 = vunpack.c.l.b16 %v2983
    %v3729 = vunpack.c.h.b16 %v2983
    %v3730 = vunpack.c.l.b16 %v2984
    %v3731 = vunpack.c.l.b16 %v2985
    %v3732 = vunpack.c.h.b16 %v2985
    %v3733 = vunpack.c.l.b16 %v2986
    %v3734 = vunpack.c.h.b16 %v2986
    %v3735 = vunpack.c.l.b16 %v2987
    %v3736 = vunpack.c.h.b16 %v2987
    %v3737 = vunpack.c.l.b16 %v2988
    %v3738 = vunpack.c.h.b16 %v2988
    %v3739 = vunpack.c.l.b16 %v2989
    %v3740 = vunpack.c.l.b16 %v2990
    %v3741 = vunpack.c.h.b16 %v2990
    %v3742 = vunpack.c.l.b16 %v2991
    %v3743 = vunpack.c.h.b16 %v2991
    %v3744 = vunpack.c.l.b16 %v2992
    %v3745 = vunpack.c.h.b16 %v2992
    %v3746 = vunpack.c.l.b16 %v2993
    %v3747 = vunpack.c.h.b16 %v2993
    %v3748 = vunpack.c.l.b16 %v2994
    %v3749 = vunpack.c.l.b16 %v2995
    %v3750 = vunpack.c.h.b16 %v2995
    %v3751 = vunpack.c.l.b16 %v2996
    %v3752 = vunpack.c.h.b16 %v2996
    %v3753 = vunpack.c.l.b16 %v2997
    %v3754 = vunpack.c.h.b16 %v2997
    %v3755 = vunpack.c.l.b16 %v2998
    %v3756 = vunpack.c.h.b16 %v2998
    %v3757 = vunpack.c.l.b16 %v2999
    %v3758 = vunpack.c.l.b16 %v3000
    %v3759 = vunpack.c.h.b16 %v3000
    %v3760 = vunpack.c.l.b16 %v3001
    %v3761 = vunpack.c.h.b16 %v3001
    %v3762 = vunpack.c.l.b16 %v3002
    %v3763 = vunpack.c.h.b16 %v3002
    %v3764 = vunpack.c.l.b16 %v3003
    %v3765 = vunpack.c.h.b16 %v3003
    %v3766 = vunpack.c.l.b16 %v3004
    %v3767 = vunpack.c.l.b16 %v3005
    %v3768 = vunpack.c.h.b16 %v3005
    %v3769 = vunpack.c.l.b16 %v3006
    %v3770 = vunpack.c.h.b16 %v3006
    %v3771 = vunpack.c.l.b16 %v3007
    %v3772 = vunpack.c.h.b16 %v3007
    %v3773 = vunpack.c.l.b16 %v3008
    %v3774 = vunpack.c.h.b16 %v3008
    %v3775 = vunpack.c.l.b16 %v3009
    %v3776 = vunpack.c.l.b16 %v3010
    %v3777 = vunpack.c.h.b16 %v3010
    %v3778 = vunpack.c.l.b16 %v3011
    %v3779 = vunpack.c.h.b16 %v3011
    %v3780 = vunpack.c.l.b16 %v3012
    %v3781 = vunpack.c.h.b16 %v3012
    %v3782 = vunpack.c.l.b16 %v3013
    %v3783 = vunpack.c.h.b16 %v3013
    %v3784 = vunpack.c.l.b16 %v3014
    %v3785 = vunpack.c.l.b16 %v3015
    %v3786 = vunpack.c.h.b16 %v3015
    %v3787 = vunpack.c.l.b16 %v3016
    %v3788 = vunpack.c.h.b16 %v3016
    %v3789 = vunpack.c.l.b16 %v3017
    %v3790 = vunpack.c.h.b16 %v3017
    %v3791 = vunpack.c.l.b16 %v3018
    %v3792 = vunpack.c.h.b16 %v3018
    %v3793 = vunpack.c.l.b16 %v3019
    %v3794 = vunpack.c.l.b16 %v3020
    %v3795 = vunpack.c.h.b16 %v3020
    %v3796 = vunpack.c.l.b16 %v3021
    %v3797 = vunpack.c.h.b16 %v3021
    %v3798 = vunpack.c.l.b16 %v3022
    %v3799 = vunpack.c.h.b16 %v3022
    %v3800 = vunpack.c.l.b16 %v3023
    %v3801 = vunpack.c.h.b16 %v3023
    %v3802 = vunpack.c.l.b16 %v3024
    %v3803 = vunpack.c.l.b16 %v3025
    %v3804 = vunpack.c.h.b16 %v3025
    %v3805 = vunpack.c.l.b16 %v3026
    %v3806 = vunpack.c.h.b16 %v3026
    %v3807 = vunpack.c.l.b16 %v3027
    %v3808 = vunpack.c.h.b16 %v3027
    %v3809 = vunpack.c.l.b16 %v3028
    %v3810 = vunpack.c.h.b16 %v3028
    %v3811 = vunpack.c.l.b16 %v3029
    %v3812 = vunpack.c.l.b16 %v3030
    %v3813 = vunpack.c.h.b16 %v3030
    %v3814 = vunpack.c.l.b16 %v3031
    %v3815 = vunpack.c.h.b16 %v3031
    %v3816 = vunpack.c.l.b16 %v3032
    %v3817 = vunpack.c.h.b16 %v3032
    %v3818 = vunpack.c.l.b16 %v3033
    %v3819 = vunpack.c.h.b16 %v3033
    %v3820 = vunpack.c.l.b16 %v3034
    %v3821 = vunpack.c.l.b16 %v3035
    %v3822 = vunpack.c.h.b16 %v3035
    %v3823 = vunpack.c.l.b16 %v3036
    %v3824 = vunpack.c.h.b16 %v3036
    %v3825 = vunpack.c.l.b16 %v3037
    %v3826 = vunpack.c.h.b16 %v3037
    %v3827 = vunpack.c.l.b16 %v3038
    %v3828 = vunpack.c.h.b16 %v3038
    %v3829 = vunpack.c.l.b16 %v3039
    %v3830 = vunpack.c.l.b16 %v3040
    %v3831 = vunpack.c.h.b16 %v3040
    %v3832 = vunpack.c.l.b16 %v3041
    %v3833 = vunpack.c.h.b16 %v3041
    %v3834 = vunpack.c.l.b16 %v3042
    %v3835 = vunpack.c.h.b16 %v3042
    %v3836 = vunpack.c.l.b16 %v3043
    %v3837 = vunpack.c.h.b16 %v3043
    %v3838 = vunpack.c.l.b16 %v3044
    %v3839 = vunpack.c.l.b16 %v3045
    %v3840 = vunpack.c.h.b16 %v3045
    %v3841 = vunpack.c.l.b16 %v3046
    %v3842 = vunpack.c.h.b16 %v3046
    %v3843 = vunpack.c.l.b16 %v3047
    %v3844 = vunpack.c.h.b16 %v3047
    %v3845 = vunpack.c.l.b16 %v3048
    %v3846 = vunpack.c.h.b16 %v3048
    %v3847 = vunpack.c.l.b16 %v3049
    %v3848 = vunpack.c.l.b16 %v3050
    %v3849 = vunpack.c.h.b16 %v3050
    %v3850 = vunpack.c.l.b16 %v3051
    %v3851 = vunpack.c.h.b16 %v3051
    %v3852 = vunpack.c.l.b16 %v3052
    %v3853 = vunpack.c.h.b16 %v3052
    %v3854 = vunpack.c.l.b16 %v3053
    %v3855 = vunpack.c.h.b16 %v3053
    %v3856 = vunpack.c.l.b16 %v3054
    %v3857 = vunpack.c.l.b16 %v3055
    %v3858 = vunpack.c.h.b16 %v3055
    %v3859 = vunpack.c.l.b16 %v3056
    %v3860 = vunpack.c.h.b16 %v3056
    %v3861 = vunpack.c.l.b16 %v3057
    %v3862 = vunpack.c.h.b16 %v3057
    %v3863 = vunpack.c.l.b16 %v3058
    %v3864 = vunpack.c.h.b16 %v3058
    %v3865 = vunpack.c.l.b16 %v3059
    %v3866 = vunpack.c.l.b16 %v3060
    %v3867 = vunpack.c.h.b16 %v3060
    %v3868 = vunpack.c.l.b16 %v3061
    %v3869 = vunpack.c.h.b16 %v3061
    %v3870 = vunpack.c.l.b16 %v3062
    %v3871 = vunpack.c.h.b16 %v3062
    %v3872 = vunpack.c.l.b16 %v3063
    %v3873 = vunpack.c.h.b16 %v3063
    %v3874 = vunpack.c.l.b16 %v3064
    %v3875 = vunpack.c.l.b16 %v3065
    %v3876 = vunpack.c.h.b16 %v3065
    %v3877 = vunpack.c.l.b16 %v3066
    %v3878 = vunpack.c.h.b16 %v3066
    %v3879 = vunpack.c.l.b16 %v3067
    %v3880 = vunpack.c.h.b16 %v3067
    %v3881 = vunpack.c.l.b16 %v3068
    %v3882 = vunpack.c.h.b16 %v3068
    %v3883 = vunpack.c.l.b16 %v3069
    %v3884 = vunpack.c.l.b16 %v3070
    %v3885 = vunpack.c.h.b16 %v3070
    %v3886 = vunpack.c.l.b16 %v3071
    %v3887 = vunpack.c.h.b16 %v3071
    %v3888 = vunpack.c.l.b16 %v3072
    %v3889 = vunpack.c.h.b16 %v3072
    %v3890 = vunpack.c.l.b16 %v3073
    %v3891 = vunpack.c.h.b16 %v3073
    %v3892 = vunpack.c.l.b16 %v3074
    %v3893 = vunpack.c.l.b16 %v3075
    %v3894 = vunpack.c.h.b16 %v3075
    %v3895 = vunpack.c.l.b16 %v3076
    %v3896 = vunpack.c.h.b16 %v3076
    %v3897 = vunpack.c.l.b16 %v3077
    %v3898 = vunpack.c.h.b16 %v3077
    %v3899 = vunpack.c.l.b16 %v3078
    %v3900 = vunpack.c.h.b16 %v3078
    %v3901 = vunpack.c.l.b16 %v3079
    %v3902 = vunpack.c.l.b16 %v3080
    %v3903 = vunpack.c.h.b16 %v3080
    %v3904 = vunpack.c.l.b16 %v3081
    %v3905 = vunpack.c.h.b16 %v3081
    %v3906 = vunpack.c.l.b16 %v3082
    %v3907 = vunpack.c.h.b16 %v3082
    %v3908 = vunpack.c.l.b16 %v3083
    %v3909 = vunpack.c.h.b16 %v3083
    %v3910 = vunpack.c.l.b16 %v3084
    %v3911 = vunpack.c.l.b16 %v3085
    %v3912 = vunpack.c.h.b16 %v3085
    %v3913 = vunpack.c.l.b16 %v3086
    %v3914 = vunpack.c.h.b16 %v3086
    %v3915 = vunpack.c.l.b16 %v3087
    %v3916 = vunpack.c.h.b16 %v3087
    %v3917 = vunpack.c.l.b16 %v3088
    %v3918 = vunpack.c.h.b16 %v3088
    %v3919 = vunpack.c.l.b16 %v3089
    %v3920 = vunpack.c.l.b16 %v3090
    %v3921 = vunpack.c.h.b16 %v3090
    %v3922 = vunpack.c.l.b16 %v3091
    %v3923 = vunpack.c.h.b16 %v3091
    %v3924 = vunpack.c.l.b16 %v3092
    %v3925 = vunpack.c.h.b16 %v3092
    %v3926 = vunpack.c.l.b16 %v3093
    %v3927 = vunpack.c.h.b16 %v3093
    %v3928 = vunpack.c.l.b16 %v3094
    %v3929 = vunpack.c.l.b16 %v3095
    %v3930 = vunpack.c.h.b16 %v3095
    %v3931 = vunpack.c.l.b16 %v3096
    %v3932 = vunpack.c.h.b16 %v3096
    %v3933 = vunpack.c.l.b16 %v3097
    %v3934 = vunpack.c.h.b16 %v3097
    %v3935 = vunpack.c.l.b16 %v3098
    %v3936 = vunpack.c.h.b16 %v3098
    %v3937 = vunpack.c.l.b16 %v3099
    %v3938 = vunpack.c.l.b16 %v3100
    %v3939 = vunpack.c.h.b16 %v3100
    %v3940 = vunpack.c.l.b16 %v3101
    %v3941 = vunpack.c.h.b16 %v3101
    %v3942 = vunpack.c.l.b16 %v3102
    %v3943 = vunpack.c.h.b16 %v3102
    %v3944 = vunpack.c.l.b16 %v3103
    %v3945 = vunpack.c.h.b16 %v3103
    %v3946 = vunpack.c.l.b16 %v3104
    %v3947 = vunpack.c.l.b16 %v3105
    %v3948 = vunpack.c.h.b16 %v3105
    %v3949 = vunpack.c.l.b16 %v3106
    %v3950 = vunpack.c.h.b16 %v3106
    %v3951 = vunpack.c.l.b16 %v3107
    %v3952 = vunpack.c.h.b16 %v3107
    %v3953 = vunpack.c.l.b16 %v3108
    %v3954 = vunpack.c.h.b16 %v3108
    %v3955 = vunpack.c.l.b16 %v3109
    %v3956 = vunpack.c.l.b16 %v3110
    %v3957 = vunpack.c.h.b16 %v3110
    %v3958 = vunpack.c.l.b16 %v3111
    %v3959 = vunpack.c.h.b16 %v3111
    %v3960 = vunpack.c.l.b16 %v3112
    %v3961 = vunpack.c.h.b16 %v3112
    %v3962 = vunpack.c.l.b16 %v3113
    %v3963 = vunpack.c.h.b16 %v3113
    %v3964 = vunpack.c.l.b16 %v3114
    %v3965 = vunpack.c.l.b16 %v3115
    %v3966 = vunpack.c.h.b16 %v3115
    %v3967 = vunpack.c.l.b16 %v3116
    %v3968 = vunpack.c.h.b16 %v3116
    %v3969 = vunpack.c.l.b16 %v3117
    %v3970 = vunpack.c.h.b16 %v3117
    %v3971 = vunpack.c.l.b16 %v3118
    %v3972 = vunpack.c.h.b16 %v3118
    %v3973 = vunpack.c.l.b16 %v3119
    %v3974 = vunpack.c.l.b16 %v3120
    %v3975 = vunpack.c.h.b16 %v3120
    %v3976 = vunpack.c.l.b16 %v3121
    %v3977 = vunpack.c.h.b16 %v3121
    %v3978 = vunpack.c.l.b16 %v3122
    %v3979 = vunpack.c.h.b16 %v3122
    %v3980 = vunpack.c.l.b16 %v3123
    %v3981 = vunpack.c.h.b16 %v3123
    %v3982 = vunpack.c.l.b16 %v3124
    %v3983 = vunpack.c.l.b16 %v3125
    %v3984 = vunpack.c.h.b16 %v3125
    %v3985 = vunpack.c.l.b16 %v3126
    %v3986 = vunpack.c.h.b16 %v3126
    %v3987 = vunpack.c.l.b16 %v3127
    %v3988 = vunpack.c.h.b16 %v3127
    %v3989 = vunpack.c.l.b16 %v3128
    %v3990 = vunpack.c.h.b16 %v3128
    %v3991 = vunpack.c.l.b16 %v3129
    %v3992 = vunpack.c.l.b16 %v3130
    %v3993 = vunpack.c.h.b16 %v3130
    %v3994 = vunpack.c.l.b16 %v3131
    %v3995 = vunpack.c.h.b16 %v3131
    %v3996 = vunpack.c.l.b16 %v3132
    %v3997 = vunpack.c.h.b16 %v3132
    %v3998 = vunpack.c.l.b16 %v3133
    %v3999 = vunpack.c.h.b16 %v3133
    %v4000 = vunpack.c.l.b16 %v3134
    %v4001 = vunpack.c.l.b16 %v3135
    %v4002 = vunpack.c.h.b16 %v3135
    %v4003 = vunpack.c.l.b16 %v3136
    %v4004 = vunpack.c.h.b16 %v3136
    %v4005 = vunpack.c.l.b16 %v3137
    %v4006 = vunpack.c.h.b16 %v3137
    %v4007 = vunpack.c.l.b16 %v3138
    %v4008 = vunpack.c.h.b16 %v3138
    %v4009 = vunpack.c.l.b16 %v3139
    %v4010 = vunpack.c.l.b16 %v3140
    %v4011 = vunpack.c.h.b16 %v3140
    %v4012 = vunpack.c.l.b16 %v3141
    %v4013 = vunpack.c.h.b16 %v3141
    %v4014 = vunpack.c.l.b16 %v3142
    %v4015 = vunpack.c.h.b16 %v3142
    %v4016 = vunpack.c.l.b16 %v3143
    %v4017 = vunpack.c.h.b16 %v3143
    %v4018 = vunpack.c.l.b16 %v3144
    %v4019 = vunpack.c.l.b16 %v3145
    %v4020 = vunpack.c.h.b16 %v3145
    %v4021 = vunpack.c.l.b16 %v3146
    %v4022 = vunpack.c.h.b16 %v3146
    %v4023 = vunpack.c.l.b16 %v3147
    %v4024 = vunpack.c.h.b16 %v3147
    %v4025 = vunpack.c.l.b16 %v3148
    %v4026 = vunpack.c.h.b16 %v3148
    %v4027 = vunpack.c.l.b16 %v3149
    %v4028 = vunpack.c.l.b16 %v3150
    %v4029 = vunpack.c.h.b16 %v3150
    %v4030 = vunpack.c.l.b16 %v3151
    %v4031 = vunpack.c.h.b16 %v3151
    %v4032 = vunpack.c.l.b16 %v3152
    %v4033 = vunpack.c.h.b16 %v3152
    %v4034 = vunpack.c.l.b16 %v3153
    %v4035 = vunpack.c.h.b16 %v3153
    %v4036 = vunpack.c.l.b16 %v3154
    %v4037 = vunpack.c.l.b16 %v3155
    %v4038 = vunpack.c.h.b16 %v3155
    %v4039 = vunpack.c.l.b16 %v3156
    %v4040 = vunpack.c.h.b16 %v3156
    %v4041 = vunpack.c.l.b16 %v3157
    %v4042 = vunpack.c.h.b16 %v3157
    %v4043 = vunpack.c.l.b16 %v3158
    %v4044 = vunpack.c.h.b16 %v3158
    %v4045 = vunpack.c.l.b16 %v3159
    %v4046 = vunpack.c.l.b16 %v3160
    %v4047 = vunpack.c.h.b16 %v3160
    %v4048 = vunpack.c.l.b16 %v3161
    %v4049 = vunpack.c.h.b16 %v3161
    %v4050 = vunpack.c.l.b16 %v3162
    %v4051 = vunpack.c.h.b16 %v3162
    %v4052 = vunpack.c.l.b16 %v3163
    %v4053 = vunpack.c.h.b16 %v3163
    %v4054 = vunpack.c.l.b16 %v3164
    %v4055 = vunpack.c.l.b16 %v3165
    %v4056 = vunpack.c.h.b16 %v3165
    %v4057 = vunpack.c.l.b16 %v3166
    %v4058 = vunpack.c.h.b16 %v3166
    %v4059 = vunpack.c.l.b16 %v3167
    %v4060 = vunpack.c.h.b16 %v3167
    %v4061 = vunpack.c.l.b16 %v3168
    %v4062 = vunpack.c.h.b16 %v3168
    %v4063 = vunpack.c.l.b16 %v3169
    %v4064 = vunpack.c.l.b16 %v3170
    %v4065 = vunpack.c.h.b16 %v3170
    %v4066 = vunpack.c.l.b16 %v3171
    %v4067 = vunpack.c.h.b16 %v3171
    %v4068 = vunpack.c.l.b16 %v3172
    %v4069 = vunpack.c.h.b16 %v3172
    %v4070 = vunpack.c.l.b16 %v3173
    %v4071 = vunpack.c.h.b16 %v3173
    %v4072 = vunpack.c.l.b16 %v3174
    %v4073 = vunpack.c.l.b16 %v3175
    %v4074 = vunpack.c.h.b16 %v3175
    %v4075 = vunpack.c.l.b16 %v3176
    %v4076 = vunpack.c.h.b16 %v3176
    %v4077 = vunpack.c.l.b16 %v3177
    %v4078 = vunpack.c.h.b16 %v3177
    %v4079 = vunpack.c.l.b16 %v3178
    %v4080 = vunpack.c.h.b16 %v3178
    %v4081 = vunpack.c.l.b16 %v3179
    %v4082 = vunpack.c.l.b16 %v3180
    %v4083 = vunpack.c.h.b16 %v3180
    %v4084 = vunpack.c.l.b16 %v3181
    %v4085 = vunpack.c.h.b16 %v3181
    %v4086 = vunpack.c.l.b16 %v3182
    %v4087 = vunpack.c.h.b16 %v3182
    %v4088 = vunpack.c.l.b16 %v3183
    %v4089 = vunpack.c.h.b16 %v3183
    %v4090 = vunpack.c.l.b16 %v3184
    %v4091 = vunpack.c.l.b16 %v3185
    %v4092 = vunpack.c.h.b16 %v3185
    %v4093 = vunpack.c.l.b16 %v3186
    %v4094 = vunpack.c.h.b16 %v3186
    %v4095 = vunpack.c.l.b16 %v3187
    %v4096 = vunpack.c.h.b16 %v3187
    %v4097 = vunpack.c.l.b16 %v3188
    %v4098 = vunpack.c.h.b16 %v3188
    %v4099 = vunpack.c.l.b16 %v3189
    %v4100 = vunpack.c.l.b16 %v3190
    %v4101 = vunpack.c.h.b16 %v3190
    %v4102 = vunpack.c.l.b16 %v3191
    %v4103 = vunpack.c.h.b16 %v3191
    %v4104 = vunpack.c.l.b16 %v3192
    %v4105 = vunpack.c.h.b16 %v3192
    %v4106 = vunpack.c.l.b16 %v3193
    %v4107 = vunpack.c.h.b16 %v3193
    %v4108 = vunpack.c.l.b16 %v3194
    %v4109 = vunpack.c.l.b16 %v3195
    %v4110 = vunpack.c.h.b16 %v3195
    %v4111 = vunpack.c.l.b16 %v3196
    %v4112 = vunpack.c.h.b16 %v3196
    %v4113 = vunpack.c.l.b16 %v3197
    %v4114 = vunpack.c.h.b16 %v3197
    %v4115 = vunpack.c.l.b16 %v3198
    %v4116 = vunpack.c.h.b16 %v3198
    %v4117 = vunpack.c.l.b16 %v3199
    %v4118 = vpack.c.b16 %v3551, %v3542
    %v4119 = vpack.c.b16 %v3552, %v3543
    %v4120 = vpack.c.b16 %v3553, %v3544
    %v4121 = vpack.c.b16 %v3554, %v3545
    %v4122 = vpack.c.b16 %v3555, %v3546
    %v4123 = vpack.c.b16 %v3556, %v3547
    %v4124 = vpack.c.b16 %v3557, %v3548
    %v4125 = vpack.c.b16 %v3558, %v3549
    %v4126 = vpack.c.b16 %v3559, %v3550
    %v4127 = vpack.c.b16 %v3569, %v3560
    %v4128 = vpack.c.b16 %v3570, %v3561
    %v4129 = vpack.c.b16 %v3571, %v3562
    %v4130 = vpack.c.b16 %v3572, %v3563
    %v4131 = vpack.c.b16 %v3573, %v3564
    %v4132 = vpack.c.b16 %v3574, %v3565
    %v4133 = vpack.c.b16 %v3575, %v3566
    %v4134 = vpack.c.b16 %v3576, %v3567
    %v4135 = vpack.c.b16 %v3577, %v3568
    %v4136 = vpack.c.b16 %v3587, %v3578
    %v4137 = vpack.c.b16 %v3588, %v3579
    %v4138 = vpack.c.b16 %v3589, %v3580
    %v4139 = vpack.c.b16 %v3590, %v3581
    %v4140 = vpack.c.b16 %v3591, %v3582
    %v4141 = vpack.c.b16 %v3592, %v3583
    %v4142 = vpack.c.b16 %v3593, %v3584
    %v4143 = vpack.c.b16 %v3594, %v3585
    %v4144 = vpack.c.b16 %v3595, %v3586
    %v4145 = vpack.c.b16 %v3605, %v3596
    %v4146 = vpack.c.b16 %v3606, %v3597
    %v4147 = vpack.c.b16 %v3607, %v3598
    %v4148 = vpack.c.b16 %v3608, %v3599
    %v4149 = vpack.c.b16 %v3609, %v3600
    %v4150 = vpack.c.b16 %v3610, %v3601
    %v4151 = vpack.c.b16 %v3611, %v3602
    %v4152 = vpack.c.b16 %v3612, %v3603
    %v4153 = vpack.c.b16 %v3613, %v3604
    %v4154 = vpack.c.b16 %v3623, %v3614
    %v4155 = vpack.c.b16 %v3624, %v3615
    %v4156 = vpack.c.b16 %v3625, %v3616
    %v4157 = vpack.c.b16 %v3626, %v3617
    %v4158 = vpack.c.b16 %v3627, %v3618
    %v4159 = vpack.c.b16 %v3628, %v3619
    %v4160 = vpack.c.b16 %v3629, %v3620
    %v4161 = vpack.c.b16 %v3630, %v3621
    %v4162 = vpack.c.b16 %v3631, %v3622
    %v4163 = vpack.c.b16 %v3641, %v3632
    %v4164 = vpack.c.b16 %v3642, %v3633
    %v4165 = vpack.c.b16 %v3643, %v3634
    %v4166 = vpack.c.b16 %v3644, %v3635
    %v4167 = vpack.c.b16 %v3645, %v3636
    %v4168 = vpack.c.b16 %v3646, %v3637
    %v4169 = vpack.c.b16 %v3647, %v3638
    %v4170 = vpack.c.b16 %v3648, %v3639
    %v4171 = vpack.c.b16 %v3649, %v3640
    %v4172 = vpack.c.b16 %v3659, %v3650
    %v4173 = vpack.c.b16 %v3660, %v3651
    %v4174 = vpack.c.b16 %v3661, %v3652
    %v4175 = vpack.c.b16 %v3662, %v3653
    %v4176 = vpack.c.b16 %v3663, %v3654
    %v4177 = vpack.c.b16 %v3664, %v3655
    %v4178 = vpack.c.b16 %v3665, %v3656
    %v4179 = vpack.c.b16 %v3666, %v3657
    %v4180 = vpack.c.b16 %v3667, %v3658
    %v4181 = vpack.c.b16 %v3677, %v3668
    %v4182 = vpack.c.b16 %v3678, %v3669
    %v4183 = vpack.c.b16 %v3679, %v3670
    %v4184 = vpack.c.b16 %v3680, %v3671
    %v4185 = vpack.c.b16 %v3681, %v3672
    %v4186 = vpack.c.b16 %v3682, %v3673
    %v4187 = vpack.c.b16 %v3683, %v3674
    %v4188 = vpack.c.b16 %v3684, %v3675
    %v4189 = vpack.c.b16 %v3685, %v3676
    %v4190 = vpack.c.b16 %v3695, %v3686
    %v4191 = vpack.c.b16 %v3696, %v3687
    %v4192 = vpack.c.b16 %v3697, %v3688
    %v4193 = vpack.c.b16 %v3698, %v3689
    %v4194 = vpack.c.b16 %v3699, %v3690
    %v4195 = vpack.c.b16 %v3700, %v3691
    %v4196 = vpack.c.b16 %v3701, %v3692
    %v4197 = vpack.c.b16 %v3702, %v3693
    %v4198 = vpack.c.b16 %v3703, %v3694
    %v4199 = vpack.c.b16 %v3713, %v3704
    %v4200 = vpack.c.b16 %v3714, %v3705
    %v4201 = vpack.c.b16 %v3715, %v3706
    %v4202 = vpack.c.b16 %v3716, %v3707
    %v4203 = vpack.c.b16 %v3717, %v3708
    %v4204 = vpack.c.b16 %v3718, %v3709
    %v4205 = vpack.c.b16 %v3719, %v3710
    %v4206 = vpack.c.b16 %v3720, %v3711
    %v4207 = vpack.c.b16 %v3721, %v3712
    %v4208 = vpack.c.b16 %v3731, %v3722
    %v4209 = vpack.c.b16 %v3732, %v3723
    %v4210 = vpack.c.b16 %v3733, %v3724
    %v4211 = vpack.c.b16 %v3734, %v3725
    %v4212 = vpack.c.b16 %v3735, %v3726
    %v4213 = vpack.c.b16 %v3736, %v3727
    %v4214 = vpack.c.b16 %v3737, %v3728
    %v4215 = vpack.c.b16 %v3738, %v3729
    %v4216 = vpack.c.b16 %v3739, %v3730
    %v4217 = vpack.c.b16 %v3749, %v3740
    %v4218 = vpack.c.b16 %v3750, %v3741
    %v4219 = vpack.c.b16 %v3751, %v3742
    %v4220 = vpack.c.b16 %v3752, %v3743
    %v4221 = vpack.c.b16 %v3753, %v3744
    %v4222 = vpack.c.b16 %v3754, %v3745
    %v4223 = vpack.c.b16 %v3755, %v3746
    %v4224 = vpack.c.b16 %v3756, %v3747
    %v4225 = vpack.c.b16 %v3757, %v3748
    %v4226 = vpack.c.b16 %v3767, %v3758
    %v4227 = vpack.c.b16 %v3768, %v3759
    %v4228 = vpack.c.b16 %v3769, %v3760
    %v4229 = vpack.c.b16 %v3770, %v3761
    %v4230 = vpack.c.b16 %v3771, %v3762
    %v4231 = vpack.c.b16 %v3772, %v3763
    %v4232 = vpack.c.b16 %v3773, %v3764
    %v4233 = vpack.c.b16 %v3774, %v3765
    %v4234 = vpack.c.b16 %v3775, %v3766
    %v4235 = vpack.c.b16 %v3785, %v3776
    %v4236 = vpack.c.b16 %v3786, %v3777
    %v4237 = vpack.c.b16 %v3787, %v3778
    %v4238 = vpack.c.b16 %v3788, %v3779
    %v4239 = vpack.c.b16 %v3789, %v3780
    %v4240 = vpack.c.b16 %v3790, %v3781
    %v4241 = vpack.c.b16 %v3791, %v3782
    %v4242 = vpack.c.b16 %v3792, %v3783
    %v4243 = vpack.c.b16 %v3793, %v3784
    %v4244 = vpack.c.b16 %v3803, %v3794
    %v4245 = vpack.c.b16 %v3804, %v3795
    %v4246 = vpack.c.b16 %v3805, %v3796
    %v4247 = vpack.c.b16 %v3806, %v3797
    %v4248 = vpack.c.b16 %v3807, %v3798
    %v4249 = vpack.c.b16 %v3808, %v3799
    %v4250 = vpack.c.b16 %v3809, %v3800
    %v4251 = vpack.c.b16 %v3810, %v3801
    %v4252 = vpack.c.b16 %v3811, %v3802
    %v4253 = vpack.c.b16 %v3821, %v3812
    %v4254 = vpack.c.b16 %v3822, %v3813
    %v4255 = vpack.c.b16 %v3823, %v3814
    %v4256 = vpack.c.b16 %v3824, %v3815
    %v4257 = vpack.c.b16 %v3825, %v3816
    %v4258 = vpack.c.b16 %v3826, %v3817
    %v4259 = vpack.c.b16 %v3827, %v3818
    %v4260 = vpack.c.b16 %v3828, %v3819
    %v4261 = vpack.c.b16 %v3829, %v3820
    %v4262 = vpack.c.b16 %v3839, %v3830
    %v4263 = vpack.c.b16 %v3840, %v3831
    %v4264 = vpack.c.b16 %v3841, %v3832
    %v4265 = vpack.c.b16 %v3842, %v3833
    %v4266 = vpack.c.b16 %v3843, %v3834
    %v4267 = vpack.c.b16 %v3844, %v3835
    %v4268 = vpack.c.b16 %v3845, %v3836
    %v4269 = vpack.c.b16 %v3846, %v3837
    %v4270 = vpack.c.b16 %v3847, %v3838
    %v4271 = vpack.c.b16 %v3857, %v3848
    %v4272 = vpack.c.b16 %v3858, %v3849
    %v4273 = vpack.c.b16 %v3859, %v3850
    %v4274 = vpack.c.b16 %v3860, %v3851
    %v4275 = vpack.c.b16 %v3861, %v3852
    %v4276 = vpack.c.b16 %v3862, %v3853
    %v4277 = vpack.c.b16 %v3863, %v3854
    %v4278 = vpack.c.b16 %v3864, %v3855
    %v4279 = vpack.c.b16 %v3865, %v3856
    %v4280 = vpack.c.b16 %v3875, %v3866
    %v4281 = vpack.c.b16 %v3876, %v3867
    %v4282 = vpack.c.b16 %v3877, %v3868
    %v4283 = vpack.c.b16 %v3878, %v3869
    %v4284 = vpack.c.b16 %v3879, %v3870
    %v4285 = vpack.c.b16 %v3880, %v3871
    %v4286 = vpack.c.b16 %v3881, %v3872
    %v4287 = vpack.c.b16 %v3882, %v3873
    %v4288 = vpack.c.b16 %v3883, %v3874
    %v4289 = vpack.c.b16 %v3893, %v3884
    %v4290 = vpack.c.b16 %v3894, %v3885
    %v4291 = vpack.c.b16 %v3895, %v3886
    %v4292 = vpack.c.b16 %v3896, %v3887
    %v4293 = vpack.c.b16 %v3897, %v3888
    %v4294 = vpack.c.b16 %v3898, %v3889
    %v4295 = vpack.c.b16 %v3899, %v3890
    %v4296 = vpack.c.b16 %v3900, %v3891
    %v4297 = vpack.c.b16 %v3901, %v3892
    %v4298 = vpack.c.b16 %v3911, %v3902
    %v4299 = vpack.c.b16 %v3912, %v3903
    %v4300 = vpack.c.b16 %v3913, %v3904
    %v4301 = vpack.c.b16 %v3914, %v3905
    %v4302 = vpack.c.b16 %v3915, %v3906
    %v4303 = vpack.c.b16 %v3916, %v3907
    %v4304 = vpack.c.b16 %v3917, %v3908
    %v4305 = vpack.c.b16 %v3918, %v3909
    %v4306 = vpack.c.b16 %v3919, %v3910
    %v4307 = vpack.c.b16 %v3929, %v3920
    %v4308 = vpack.c.b16 %v3930, %v3921
    %v4309 = vpack.c.b16 %v3931, %v3922
    %v4310 = vpack.c.b16 %v3932, %v3923
    %v4311 = vpack.c.b16 %v3933, %v3924
    %v4312 = vpack.c.b16 %v3934, %v3925
    %v4313 = vpack.c.b16 %v3935, %v3926
    %v4314 = vpack.c.b16 %v3936, %v3927
    %v4315 = vpack.c.b16 %v3937, %v3928
    %v4316 = vpack.c.b16 %v3947, %v3938
    %v4317 = vpack.c.b16 %v3948, %v3939
    %v4318 = vpack.c.b16 %v3949, %v3940
    %v4319 = vpack.c.b16 %v3950, %v3941
    %v4320 = vpack.c.b16 %v3951, %v3942
    %v4321 = vpack.c.b16 %v3952, %v3943
    %v4322 = vpack.c.b16 %v3953, %v3944
    %v4323 = vpack.c.b16 %v3954, %v3945
    %v4324 = vpack.c.b16 %v3955, %v3946
    %v4325 = vpack.c.b16 %v3965, %v3956
    %v4326 = vpack.c.b16 %v3966, %v3957
    %v4327 = vpack.c.b16 %v3967, %v3958
    %v4328 = vpack.c.b16 %v3968, %v3959
    %v4329 = vpack.c.b16 %v3969, %v3960
    %v4330 = vpack.c.b16 %v3970, %v3961
    %v4331 = vpack.c.b16 %v3971, %v3962
    %v4332 = vpack.c.b16 %v3972, %v3963
    %v4333 = vpack.c.b16 %v3973, %v3964
    %v4334 = vpack.c.b16 %v3983, %v3974
    %v4335 = vpack.c.b16 %v3984, %v3975
    %v4336 = vpack.c.b16 %v3985, %v3976
    %v4337 = vpack.c.b16 %v3986, %v3977
    %v4338 = vpack.c.b16 %v3987, %v3978
    %v4339 = vpack.c.b16 %v3988, %v3979
    %v4340 = vpack.c.b16 %v3989, %v3980
    %v4341 = vpack.c.b16 %v3990, %v3981
    %v4342 = vpack.c.b16 %v3991, %v3982
    %v4343 = vpack.c.b16 %v4001, %v3992
    %v4344 = vpack.c.b16 %v4002, %v3993
    %v4345 = vpack.c.b16 %v4003, %v3994
    %v4346 = vpack.c.b16 %v4004, %v3995
    %v4347 = vpack.c.b16 %v4005, %v3996
    %v4348 = vpack.c.b16 %v4006, %v3997
    %v4349 = vpack.c.b16 %v4007, %v3998
    %v4350 = vpack.c.b16 %v4008, %v3999
    %v4351 = vpack.c.b16 %v4009, %v4000
    %v4352 = vpack.c.b16 %v4019, %v4010
    %v4353 = vpack.c.b16 %v4020, %v4011
    %v4354 = vpack.c.b16 %v4021, %v4012
    %v4355 = vpack.c.b16 %v4022, %v4013
    %v4356 = vpack.c.b16 %v4023, %v4014
    %v4357 = vpack.c.b16 %v4024, %v4015
    %v4358 = vpack.c.b16 %v4025, %v4016
    %v4359 = vpack.c.b16 %v4026, %v4017
    %v4360 = vpack.c.b16 %v4027, %v4018
    %v4361 = vpack.c.b16 %v4037, %v4028
    %v4362 = vpack.c.b16 %v4038, %v4029
    %v4363 = vpack.c.b16 %v4039, %v4030
    %v4364 = vpack.c.b16 %v4040, %v4031
    %v4365 = vpack.c.b16 %v4041, %v4032
    %v4366 = vpack.c.b16 %v4042, %v4033
    %v4367 = vpack.c.b16 %v4043, %v4034
    %v4368 = vpack.c.b16 %v4044, %v4035
    %v4369 = vpack.c.b16 %v4045, %v4036
    %v4370 = vpack.c.b16 %v4055, %v4046
    %v4371 = vpack.c.b16 %v4056, %v4047
    %v4372 = vpack.c.b16 %v4057, %v4048
    %v4373 = vpack.c.b16 %v4058, %v4049
    %v4374 = vpack.c.b16 %v4059, %v4050
    %v4375 = vpack.c.b16 %v4060, %v4051
    %v4376 = vpack.c.b16 %v4061, %v4052
    %v4377 = vpack.c.b16 %v4062, %v4053
    %v4378 = vpack.c.b16 %v4063, %v4054
    %v4379 = vpack.c.b16 %v4073, %v4064
    %v4380 = vpack.c.b16 %v4074, %v4065
    %v4381 = vpack.c.b16 %v4075, %v4066
    %v4382 = vpack.c.b16 %v4076, %v4067
    %v4383 = vpack.c.b16 %v4077, %v4068
    %v4384 = vpack.c.b16 %v4078, %v4069
    %v4385 = vpack.c.b16 %v4079, %v4070
    %v4386 = vpack.c.b16 %v4080, %v4071
    %v4387 = vpack.c.b16 %v4081, %v4072
    %v4388 = vpack.c.b16 %v4091, %v4082
    %v4389 = vpack.c.b16 %v4092, %v4083
    %v4390 = vpack.c.b16 %v4093, %v4084
    %v4391 = vpack.c.b16 %v4094, %v4085
    %v4392 = vpack.c.b16 %v4095, %v4086
    %v4393 = vpack.c.b16 %v4096, %v4087
    %v4394 = vpack.c.b16 %v4097, %v4088
    %v4395 = vpack.c.b16 %v4098, %v4089
    %v4396 = vpack.c.b16 %v4099, %v4090
    %v4397 = vpack.c.b16 %v4109, %v4100
    %v4398 = vpack.c.b16 %v4110, %v4101
    %v4399 = vpack.c.b16 %v4111, %v4102
    %v4400 = vpack.c.b16 %v4112, %v4103
    %v4401 = vpack.c.b16 %v4113, %v4104
    %v4402 = vpack.c.b16 %v4114, %v4105
    %v4403 = vpack.c.b16 %v4115, %v4106
    %v4404 = vpack.c.b16 %v4116, %v4107
    %v4405 = vpack.c.b16 %v4117, %v4108
    %4694 = vmatpush.bf16.msra.mxu0 %v4181
    %4695 = vmatpush.bf16.msra.mxu0 %v4172
    %4696 = vmatpush.bf16.msra.mxu0 %v4163
    %4697 = vmatpush.bf16.msra.mxu0 %v4154
    %4698 = vmatpush.bf16.msra.mxu0 %v4145
    %4699 = vmatpush.bf16.msra.mxu0 %v4136
    %4700 = vmatpush.bf16.msra.mxu0 %v4127
    %4701 = vmatpush.bf16.msra.mxu0 %v4118
    %4702 = vmatmul.bf16.gmra.mxu0 %v2876
    %v4703 = vpop.f32.mrf.mxu0
    %v4704 = vadd.f32 %v3204, %v4703
    %v4705 = vpop.f32.mrf.mxu0
    %4706 = vdwg.mxu0
    %4707 = vmatpush.bf16.msra.mxu0 %v4253
    %4708 = vmatpush.bf16.msra.mxu0 %v4244
    %4709 = vmatpush.bf16.msra.mxu0 %v4235
    %4710 = vmatpush.bf16.msra.mxu0 %v4226
    %4711 = vmatpush.bf16.msra.mxu0 %v4217
    %4712 = vmatpush.bf16.msra.mxu0 %v4208
    %4713 = vmatpush.bf16.msra.mxu0 %v4199
    %4714 = vmatpush.bf16.msra.mxu0 %v4190
    %4715 = vmatmul.bf16.gmra.mxu0 %v2877
    %v4716 = vpop.f32.mrf.mxu0
    %v4717 = vadd.f32 %v4704, %v4716
    %v4718 = vpop.f32.mrf.mxu0
    %4719 = vdwg.mxu0
    %4720 = vmatpush.bf16.msra.mxu0 %v4325
    %4721 = vmatpush.bf16.msra.mxu0 %v4316
    %4722 = vmatpush.bf16.msra.mxu0 %v4307
    %4723 = vmatpush.bf16.msra.mxu0 %v4298
    %4724 = vmatpush.bf16.msra.mxu0 %v4289
    %4725 = vmatpush.bf16.msra.mxu0 %v4280
    %4726 = vmatpush.bf16.msra.mxu0 %v4271
    %4727 = vmatpush.bf16.msra.mxu0 %v4262
    %4728 = vmatmul.bf16.gmra.mxu0 %v2878
    %v4729 = vpop.f32.mrf.mxu0
    %v4730 = vadd.f32 %v4717, %v4729
    %v4731 = vpop.f32.mrf.mxu0
    %4732 = vdwg.mxu0
    %4733 = vmatpush.bf16.msra.mxu0 %v4397
    %4734 = vmatpush.bf16.msra.mxu0 %v4388
    %4735 = vmatpush.bf16.msra.mxu0 %v4379
    %4736 = vmatpush.bf16.msra.mxu0 %v4370
    %4737 = vmatpush.bf16.msra.mxu0 %v4361
    %4738 = vmatpush.bf16.msra.mxu0 %v4352
    %4739 = vmatpush.bf16.msra.mxu0 %v4343
    %4740 = vmatpush.bf16.msra.mxu0 %v4334
    %4741 = vmatmul.bf16.gmra.mxu0 %v2879
    %v4742 = vpop.f32.mrf.mxu0
    %v4743 = vadd.f32 %v4730, %v4742
    %v4744 = vpop.f32.mrf.mxu0
    %4745 = vdwg.mxu0
    %4746 = vmatpush.bf16.msra.mxu0 %v4182
    %4747 = vmatpush.bf16.msra.mxu0 %v4173
    %4748 = vmatpush.bf16.msra.mxu0 %v4164
    %4749 = vmatpush.bf16.msra.mxu0 %v4155
    %4750 = vmatpush.bf16.msra.mxu0 %v4146
    %4751 = vmatpush.bf16.msra.mxu0 %v4137
    %4752 = vmatpush.bf16.msra.mxu0 %v4128
    %4753 = vmatpush.bf16.msra.mxu0 %v4119
    %4754 = vmatmul.bf16.gmra.mxu0 %v2876
    %v4755 = vpop.f32.mrf.mxu0
    %v4756 = vadd.f32 %v3205, %v4755
    %v4757 = vpop.f32.mrf.mxu0
    %4758 = vdwg.mxu0
    %4759 = vmatpush.bf16.msra.mxu0 %v4254
    %4760 = vmatpush.bf16.msra.mxu0 %v4245
    %4761 = vmatpush.bf16.msra.mxu0 %v4236
    %4762 = vmatpush.bf16.msra.mxu0 %v4227
    %4763 = vmatpush.bf16.msra.mxu0 %v4218
    %4764 = vmatpush.bf16.msra.mxu0 %v4209
    %4765 = vmatpush.bf16.msra.mxu0 %v4200
    %4766 = vmatpush.bf16.msra.mxu0 %v4191
    %4767 = vmatmul.bf16.gmra.mxu0 %v2877
    %v4768 = vpop.f32.mrf.mxu0
    %v4769 = vadd.f32 %v4756, %v4768
    %v4770 = vpop.f32.mrf.mxu0
    %4771 = vdwg.mxu0
    %4772 = vmatpush.bf16.msra.mxu0 %v4326
    %4773 = vmatpush.bf16.msra.mxu0 %v4317
    %4774 = vmatpush.bf16.msra.mxu0 %v4308
    %4775 = vmatpush.bf16.msra.mxu0 %v4299
    %4776 = vmatpush.bf16.msra.mxu0 %v4290
    %4777 = vmatpush.bf16.msra.mxu0 %v4281
    %4778 = vmatpush.bf16.msra.mxu0 %v4272
    %4779 = vmatpush.bf16.msra.mxu0 %v4263
    %4780 = vmatmul.bf16.gmra.mxu0 %v2878
    %v4781 = vpop.f32.mrf.mxu0
    %v4782 = vadd.f32 %v4769, %v4781
    %v4783 = vpop.f32.mrf.mxu0
    %4784 = vdwg.mxu0
    %4785 = vmatpush.bf16.msra.mxu0 %v4398
    %4786 = vmatpush.bf16.msra.mxu0 %v4389
    %4787 = vmatpush.bf16.msra.mxu0 %v4380
    %4788 = vmatpush.bf16.msra.mxu0 %v4371
    %4789 = vmatpush.bf16.msra.mxu0 %v4362
    %4790 = vmatpush.bf16.msra.mxu0 %v4353
    %4791 = vmatpush.bf16.msra.mxu0 %v4344
    %4792 = vmatpush.bf16.msra.mxu0 %v4335
    %4793 = vmatmul.bf16.gmra.mxu0 %v2879
    %v4794 = vpop.f32.mrf.mxu0
    %v4795 = vadd.f32 %v4782, %v4794
    %v4796 = vpop.f32.mrf.mxu0
    %4797 = vdwg.mxu0
    %4798 = vmatpush.bf16.msra.mxu0 %v4183
    %4799 = vmatpush.bf16.msra.mxu0 %v4174
    %4800 = vmatpush.bf16.msra.mxu0 %v4165
    %4801 = vmatpush.bf16.msra.mxu0 %v4156
    %4802 = vmatpush.bf16.msra.mxu0 %v4147
    %4803 = vmatpush.bf16.msra.mxu0 %v4138
    %4804 = vmatpush.bf16.msra.mxu0 %v4129
    %4805 = vmatpush.bf16.msra.mxu0 %v4120
    %4806 = vmatmul.bf16.gmra.mxu0 %v2876
    %v4807 = vpop.f32.mrf.mxu0
    %v4808 = vadd.f32 %v3206, %v4807
    %v4809 = vpop.f32.mrf.mxu0
    %4810 = vdwg.mxu0
    %4811 = vmatpush.bf16.msra.mxu0 %v4255
    %4812 = vmatpush.bf16.msra.mxu0 %v4246
    %4813 = vmatpush.bf16.msra.mxu0 %v4237
    %4814 = vmatpush.bf16.msra.mxu0 %v4228
    %4815 = vmatpush.bf16.msra.mxu0 %v4219
    %4816 = vmatpush.bf16.msra.mxu0 %v4210
    %4817 = vmatpush.bf16.msra.mxu0 %v4201
    %4818 = vmatpush.bf16.msra.mxu0 %v4192
    %4819 = vmatmul.bf16.gmra.mxu0 %v2877
    %v4820 = vpop.f32.mrf.mxu0
    %v4821 = vadd.f32 %v4808, %v4820
    %v4822 = vpop.f32.mrf.mxu0
    %4823 = vdwg.mxu0
    %4824 = vmatpush.bf16.msra.mxu0 %v4327
    %4825 = vmatpush.bf16.msra.mxu0 %v4318
    %4826 = vmatpush.bf16.msra.mxu0 %v4309
    %4827 = vmatpush.bf16.msra.mxu0 %v4300
    %4828 = vmatpush.bf16.msra.mxu0 %v4291
    %4829 = vmatpush.bf16.msra.mxu0 %v4282
    %4830 = vmatpush.bf16.msra.mxu0 %v4273
    %4831 = vmatpush.bf16.msra.mxu0 %v4264
    %4832 = vmatmul.bf16.gmra.mxu0 %v2878
    %v4833 = vpop.f32.mrf.mxu0
    %v4834 = vadd.f32 %v4821, %v4833
    %v4835 = vpop.f32.mrf.mxu0
    %4836 = vdwg.mxu0
    %4837 = vmatpush.bf16.msra.mxu0 %v4399
    %4838 = vmatpush.bf16.msra.mxu0 %v4390
    %4839 = vmatpush.bf16.msra.mxu0 %v4381
    %4840 = vmatpush.bf16.msra.mxu0 %v4372
    %4841 = vmatpush.bf16.msra.mxu0 %v4363
    %4842 = vmatpush.bf16.msra.mxu0 %v4354
    %4843 = vmatpush.bf16.msra.mxu0 %v4345
    %4844 = vmatpush.bf16.msra.mxu0 %v4336
    %4845 = vmatmul.bf16.gmra.mxu0 %v2879
    %v4846 = vpop.f32.mrf.mxu0
    %v4847 = vadd.f32 %v4834, %v4846
    %v4848 = vpop.f32.mrf.mxu0
    %4849 = vdwg.mxu0
    %4850 = vmatpush.bf16.msra.mxu0 %v4184
    %4851 = vmatpush.bf16.msra.mxu0 %v4175
    %4852 = vmatpush.bf16.msra.mxu0 %v4166
    %4853 = vmatpush.bf16.msra.mxu0 %v4157
    %4854 = vmatpush.bf16.msra.mxu0 %v4148
    %4855 = vmatpush.bf16.msra.mxu0 %v4139
    %4856 = vmatpush.bf16.msra.mxu0 %v4130
    %4857 = vmatpush.bf16.msra.mxu0 %v4121
    %4858 = vmatmul.bf16.gmra.mxu0 %v2876
    %v4859 = vpop.f32.mrf.mxu0
    %v4860 = vadd.f32 %v3207, %v4859
    %v4861 = vpop.f32.mrf.mxu0
    %4862 = vdwg.mxu0
    %4863 = vmatpush.bf16.msra.mxu0 %v4256
    %4864 = vmatpush.bf16.msra.mxu0 %v4247
    %4865 = vmatpush.bf16.msra.mxu0 %v4238
    %4866 = vmatpush.bf16.msra.mxu0 %v4229
    %4867 = vmatpush.bf16.msra.mxu0 %v4220
    %4868 = vmatpush.bf16.msra.mxu0 %v4211
    %4869 = vmatpush.bf16.msra.mxu0 %v4202
    %4870 = vmatpush.bf16.msra.mxu0 %v4193
    %4871 = vmatmul.bf16.gmra.mxu0 %v2877
    %v4872 = vpop.f32.mrf.mxu0
    %v4873 = vadd.f32 %v4860, %v4872
    %v4874 = vpop.f32.mrf.mxu0
    %4875 = vdwg.mxu0
    %4876 = vmatpush.bf16.msra.mxu0 %v4328
    %4877 = vmatpush.bf16.msra.mxu0 %v4319
    %4878 = vmatpush.bf16.msra.mxu0 %v4310
    %4879 = vmatpush.bf16.msra.mxu0 %v4301
    %4880 = vmatpush.bf16.msra.mxu0 %v4292
    %4881 = vmatpush.bf16.msra.mxu0 %v4283
    %4882 = vmatpush.bf16.msra.mxu0 %v4274
    %4883 = vmatpush.bf16.msra.mxu0 %v4265
    %4884 = vmatmul.bf16.gmra.mxu0 %v2878
    %v4885 = vpop.f32.mrf.mxu0
    %v4886 = vadd.f32 %v4873, %v4885
    %v4887 = vpop.f32.mrf.mxu0
    %4888 = vdwg.mxu0
    %4889 = vmatpush.bf16.msra.mxu0 %v4400
    %4890 = vmatpush.bf16.msra.mxu0 %v4391
    %4891 = vmatpush.bf16.msra.mxu0 %v4382
    %4892 = vmatpush.bf16.msra.mxu0 %v4373
    %4893 = vmatpush.bf16.msra.mxu0 %v4364
    %4894 = vmatpush.bf16.msra.mxu0 %v4355
    %4895 = vmatpush.bf16.msra.mxu0 %v4346
    %4896 = vmatpush.bf16.msra.mxu0 %v4337
    %4897 = vmatmul.bf16.gmra.mxu0 %v2879
    %v4898 = vpop.f32.mrf.mxu0
    %v4899 = vadd.f32 %v4886, %v4898
    %v4900 = vpop.f32.mrf.mxu0
    %4901 = vdwg.mxu0
    %4902 = vmatpush.bf16.msra.mxu0 %v4185
    %4903 = vmatpush.bf16.msra.mxu0 %v4176
    %4904 = vmatpush.bf16.msra.mxu0 %v4167
    %4905 = vmatpush.bf16.msra.mxu0 %v4158
    %4906 = vmatpush.bf16.msra.mxu0 %v4149
    %4907 = vmatpush.bf16.msra.mxu0 %v4140
    %4908 = vmatpush.bf16.msra.mxu0 %v4131
    %4909 = vmatpush.bf16.msra.mxu0 %v4122
    %4910 = vmatmul.bf16.gmra.mxu0 %v2876
    %v4911 = vpop.f32.mrf.mxu0
    %v4912 = vadd.f32 %v3208, %v4911
    %v4913 = vpop.f32.mrf.mxu0
    %4914 = vdwg.mxu0
    %4915 = vmatpush.bf16.msra.mxu0 %v4257
    %4916 = vmatpush.bf16.msra.mxu0 %v4248
    %4917 = vmatpush.bf16.msra.mxu0 %v4239
    %4918 = vmatpush.bf16.msra.mxu0 %v4230
    %4919 = vmatpush.bf16.msra.mxu0 %v4221
    %4920 = vmatpush.bf16.msra.mxu0 %v4212
    %4921 = vmatpush.bf16.msra.mxu0 %v4203
    %4922 = vmatpush.bf16.msra.mxu0 %v4194
    %4923 = vmatmul.bf16.gmra.mxu0 %v2877
    %v4924 = vpop.f32.mrf.mxu0
    %v4925 = vadd.f32 %v4912, %v4924
    %v4926 = vpop.f32.mrf.mxu0
    %4927 = vdwg.mxu0
    %4928 = vmatpush.bf16.msra.mxu0 %v4329
    %4929 = vmatpush.bf16.msra.mxu0 %v4320
    %4930 = vmatpush.bf16.msra.mxu0 %v4311
    %4931 = vmatpush.bf16.msra.mxu0 %v4302
    %4932 = vmatpush.bf16.msra.mxu0 %v4293
    %4933 = vmatpush.bf16.msra.mxu0 %v4284
    %4934 = vmatpush.bf16.msra.mxu0 %v4275
    %4935 = vmatpush.bf16.msra.mxu0 %v4266
    %4936 = vmatmul.bf16.gmra.mxu0 %v2878
    %v4937 = vpop.f32.mrf.mxu0
    %v4938 = vadd.f32 %v4925, %v4937
    %v4939 = vpop.f32.mrf.mxu0
    %4940 = vdwg.mxu0
    %4941 = vmatpush.bf16.msra.mxu0 %v4401
    %4942 = vmatpush.bf16.msra.mxu0 %v4392
    %4943 = vmatpush.bf16.msra.mxu0 %v4383
    %4944 = vmatpush.bf16.msra.mxu0 %v4374
    %4945 = vmatpush.bf16.msra.mxu0 %v4365
    %4946 = vmatpush.bf16.msra.mxu0 %v4356
    %4947 = vmatpush.bf16.msra.mxu0 %v4347
    %4948 = vmatpush.bf16.msra.mxu0 %v4338
    %4949 = vmatmul.bf16.gmra.mxu0 %v2879
    %v4950 = vpop.f32.mrf.mxu0
    %v4951 = vadd.f32 %v4938, %v4950
    %v4952 = vpop.f32.mrf.mxu0
    %4953 = vdwg.mxu0
    %4954 = vmatpush.bf16.msra.mxu0 %v4186
    %4955 = vmatpush.bf16.msra.mxu0 %v4177
    %4956 = vmatpush.bf16.msra.mxu0 %v4168
    %4957 = vmatpush.bf16.msra.mxu0 %v4159
    %4958 = vmatpush.bf16.msra.mxu0 %v4150
    %4959 = vmatpush.bf16.msra.mxu0 %v4141
    %4960 = vmatpush.bf16.msra.mxu0 %v4132
    %4961 = vmatpush.bf16.msra.mxu0 %v4123
    %4962 = vmatmul.bf16.gmra.mxu0 %v2876
    %v4963 = vpop.f32.mrf.mxu0
    %v4964 = vadd.f32 %v3209, %v4963
    %v4965 = vpop.f32.mrf.mxu0
    %4966 = vdwg.mxu0
    %4967 = vmatpush.bf16.msra.mxu0 %v4258
    %4968 = vmatpush.bf16.msra.mxu0 %v4249
    %4969 = vmatpush.bf16.msra.mxu0 %v4240
    %4970 = vmatpush.bf16.msra.mxu0 %v4231
    %4971 = vmatpush.bf16.msra.mxu0 %v4222
    %4972 = vmatpush.bf16.msra.mxu0 %v4213
    %4973 = vmatpush.bf16.msra.mxu0 %v4204
    %4974 = vmatpush.bf16.msra.mxu0 %v4195
    %4975 = vmatmul.bf16.gmra.mxu0 %v2877
    %v4976 = vpop.f32.mrf.mxu0
    %v4977 = vadd.f32 %v4964, %v4976
    %v4978 = vpop.f32.mrf.mxu0
    %4979 = vdwg.mxu0
    %4980 = vmatpush.bf16.msra.mxu0 %v4330
    %4981 = vmatpush.bf16.msra.mxu0 %v4321
    %4982 = vmatpush.bf16.msra.mxu0 %v4312
    %4983 = vmatpush.bf16.msra.mxu0 %v4303
    %4984 = vmatpush.bf16.msra.mxu0 %v4294
    %4985 = vmatpush.bf16.msra.mxu0 %v4285
    %4986 = vmatpush.bf16.msra.mxu0 %v4276
    %4987 = vmatpush.bf16.msra.mxu0 %v4267
    %4988 = vmatmul.bf16.gmra.mxu0 %v2878
    %v4989 = vpop.f32.mrf.mxu0
    %v4990 = vadd.f32 %v4977, %v4989
    %v4991 = vpop.f32.mrf.mxu0
    %4992 = vdwg.mxu0
    %4993 = vmatpush.bf16.msra.mxu0 %v4402
    %4994 = vmatpush.bf16.msra.mxu0 %v4393
    %4995 = vmatpush.bf16.msra.mxu0 %v4384
    %4996 = vmatpush.bf16.msra.mxu0 %v4375
    %4997 = vmatpush.bf16.msra.mxu0 %v4366
    %4998 = vmatpush.bf16.msra.mxu0 %v4357
    %4999 = vmatpush.bf16.msra.mxu0 %v4348
    %5000 = vmatpush.bf16.msra.mxu0 %v4339
    %5001 = vmatmul.bf16.gmra.mxu0 %v2879
    %v5002 = vpop.f32.mrf.mxu0
    %v5003 = vadd.f32 %v4990, %v5002
    %v5004 = vpop.f32.mrf.mxu0
    %5005 = vdwg.mxu0
    %5006 = vmatpush.bf16.msra.mxu0 %v4187
    %5007 = vmatpush.bf16.msra.mxu0 %v4178
    %5008 = vmatpush.bf16.msra.mxu0 %v4169
    %5009 = vmatpush.bf16.msra.mxu0 %v4160
    %5010 = vmatpush.bf16.msra.mxu0 %v4151
    %5011 = vmatpush.bf16.msra.mxu0 %v4142
    %5012 = vmatpush.bf16.msra.mxu0 %v4133
    %5013 = vmatpush.bf16.msra.mxu0 %v4124
    %5014 = vmatmul.bf16.gmra.mxu0 %v2876
    %v5015 = vpop.f32.mrf.mxu0
    %v5016 = vadd.f32 %v3210, %v5015
    %v5017 = vpop.f32.mrf.mxu0
    %5018 = vdwg.mxu0
    %5019 = vmatpush.bf16.msra.mxu0 %v4259
    %5020 = vmatpush.bf16.msra.mxu0 %v4250
    %5021 = vmatpush.bf16.msra.mxu0 %v4241
    %5022 = vmatpush.bf16.msra.mxu0 %v4232
    %5023 = vmatpush.bf16.msra.mxu0 %v4223
    %5024 = vmatpush.bf16.msra.mxu0 %v4214
    %5025 = vmatpush.bf16.msra.mxu0 %v4205
    %5026 = vmatpush.bf16.msra.mxu0 %v4196
    %5027 = vmatmul.bf16.gmra.mxu0 %v2877
    %v5028 = vpop.f32.mrf.mxu0
    %v5029 = vadd.f32 %v5016, %v5028
    %v5030 = vpop.f32.mrf.mxu0
    %5031 = vdwg.mxu0
    %5032 = vmatpush.bf16.msra.mxu0 %v4331
    %5033 = vmatpush.bf16.msra.mxu0 %v4322
    %5034 = vmatpush.bf16.msra.mxu0 %v4313
    %5035 = vmatpush.bf16.msra.mxu0 %v4304
    %5036 = vmatpush.bf16.msra.mxu0 %v4295
    %5037 = vmatpush.bf16.msra.mxu0 %v4286
    %5038 = vmatpush.bf16.msra.mxu0 %v4277
    %5039 = vmatpush.bf16.msra.mxu0 %v4268
    %5040 = vmatmul.bf16.gmra.mxu0 %v2878
    %v5041 = vpop.f32.mrf.mxu0
    %v5042 = vadd.f32 %v5029, %v5041
    %v5043 = vpop.f32.mrf.mxu0
    %5044 = vdwg.mxu0
    %5045 = vmatpush.bf16.msra.mxu0 %v4403
    %5046 = vmatpush.bf16.msra.mxu0 %v4394
    %5047 = vmatpush.bf16.msra.mxu0 %v4385
    %5048 = vmatpush.bf16.msra.mxu0 %v4376
    %5049 = vmatpush.bf16.msra.mxu0 %v4367
    %5050 = vmatpush.bf16.msra.mxu0 %v4358
    %5051 = vmatpush.bf16.msra.mxu0 %v4349
    %5052 = vmatpush.bf16.msra.mxu0 %v4340
    %5053 = vmatmul.bf16.gmra.mxu0 %v2879
    %v5054 = vpop.f32.mrf.mxu0
    %v5055 = vadd.f32 %v5042, %v5054
    %v5056 = vpop.f32.mrf.mxu0
    %5057 = vdwg.mxu0
    %5058 = vmatpush.bf16.msra.mxu0 %v4188
    %5059 = vmatpush.bf16.msra.mxu0 %v4179
    %5060 = vmatpush.bf16.msra.mxu0 %v4170
    %5061 = vmatpush.bf16.msra.mxu0 %v4161
    %5062 = vmatpush.bf16.msra.mxu0 %v4152
    %5063 = vmatpush.bf16.msra.mxu0 %v4143
    %5064 = vmatpush.bf16.msra.mxu0 %v4134
    %5065 = vmatpush.bf16.msra.mxu0 %v4125
    %5066 = vmatmul.bf16.gmra.mxu0 %v2876
    %v5067 = vpop.f32.mrf.mxu0
    %v5068 = vadd.f32 %v3211, %v5067
    %v5069 = vpop.f32.mrf.mxu0
    %5070 = vdwg.mxu0
    %5071 = vmatpush.bf16.msra.mxu0 %v4260
    %5072 = vmatpush.bf16.msra.mxu0 %v4251
    %5073 = vmatpush.bf16.msra.mxu0 %v4242
    %5074 = vmatpush.bf16.msra.mxu0 %v4233
    %5075 = vmatpush.bf16.msra.mxu0 %v4224
    %5076 = vmatpush.bf16.msra.mxu0 %v4215
    %5077 = vmatpush.bf16.msra.mxu0 %v4206
    %5078 = vmatpush.bf16.msra.mxu0 %v4197
    %5079 = vmatmul.bf16.gmra.mxu0 %v2877
    %v5080 = vpop.f32.mrf.mxu0
    %v5081 = vadd.f32 %v5068, %v5080
    %v5082 = vpop.f32.mrf.mxu0
    %5083 = vdwg.mxu0
    %5084 = vmatpush.bf16.msra.mxu0 %v4332
    %5085 = vmatpush.bf16.msra.mxu0 %v4323
    %5086 = vmatpush.bf16.msra.mxu0 %v4314
    %5087 = vmatpush.bf16.msra.mxu0 %v4305
    %5088 = vmatpush.bf16.msra.mxu0 %v4296
    %5089 = vmatpush.bf16.msra.mxu0 %v4287
    %5090 = vmatpush.bf16.msra.mxu0 %v4278
    %5091 = vmatpush.bf16.msra.mxu0 %v4269
    %5092 = vmatmul.bf16.gmra.mxu0 %v2878
    %v5093 = vpop.f32.mrf.mxu0
    %v5094 = vadd.f32 %v5081, %v5093
    %v5095 = vpop.f32.mrf.mxu0
    %5096 = vdwg.mxu0
    %5097 = vmatpush.bf16.msra.mxu0 %v4404
    %5098 = vmatpush.bf16.msra.mxu0 %v4395
    %5099 = vmatpush.bf16.msra.mxu0 %v4386
    %5100 = vmatpush.bf16.msra.mxu0 %v4377
    %5101 = vmatpush.bf16.msra.mxu0 %v4368
    %5102 = vmatpush.bf16.msra.mxu0 %v4359
    %5103 = vmatpush.bf16.msra.mxu0 %v4350
    %5104 = vmatpush.bf16.msra.mxu0 %v4341
    %5105 = vmatmul.bf16.gmra.mxu0 %v2879
    %v5106 = vpop.f32.mrf.mxu0
    %v5107 = vadd.f32 %v5094, %v5106
    %v5108 = vpop.f32.mrf.mxu0
    %5109 = vdwg.mxu0
    %5110 = vmatpush.bf16.msra.mxu0 %v4189
    %5111 = vmatpush.bf16.msra.mxu0 %v4180
    %5112 = vmatpush.bf16.msra.mxu0 %v4171
    %5113 = vmatpush.bf16.msra.mxu0 %v4162
    %5114 = vmatpush.bf16.msra.mxu0 %v4153
    %5115 = vmatpush.bf16.msra.mxu0 %v4144
    %5116 = vmatpush.bf16.msra.mxu0 %v4135
    %5117 = vmatpush.bf16.msra.mxu0 %v4126
    %5118 = vmatmul.bf16.gmra.mxu0 %v2876
    %v5119 = vpop.f32.mrf.mxu0
    %v5120 = vadd.f32 %v3212, %v5119
    %v5121 = vpop.f32.mrf.mxu0
    %5122 = vdwg.mxu0
    %5123 = vmatpush.bf16.msra.mxu0 %v4261
    %5124 = vmatpush.bf16.msra.mxu0 %v4252
    %5125 = vmatpush.bf16.msra.mxu0 %v4243
    %5126 = vmatpush.bf16.msra.mxu0 %v4234
    %5127 = vmatpush.bf16.msra.mxu0 %v4225
    %5128 = vmatpush.bf16.msra.mxu0 %v4216
    %5129 = vmatpush.bf16.msra.mxu0 %v4207
    %5130 = vmatpush.bf16.msra.mxu0 %v4198
    %5131 = vmatmul.bf16.gmra.mxu0 %v2877
    %v5132 = vpop.f32.mrf.mxu0
    %v5133 = vadd.f32 %v5120, %v5132
    %v5134 = vpop.f32.mrf.mxu0
    %5135 = vdwg.mxu0
    %5136 = vmatpush.bf16.msra.mxu0 %v4333
    %5137 = vmatpush.bf16.msra.mxu0 %v4324
    %5138 = vmatpush.bf16.msra.mxu0 %v4315
    %5139 = vmatpush.bf16.msra.mxu0 %v4306
    %5140 = vmatpush.bf16.msra.mxu0 %v4297
    %5141 = vmatpush.bf16.msra.mxu0 %v4288
    %5142 = vmatpush.bf16.msra.mxu0 %v4279
    %5143 = vmatpush.bf16.msra.mxu0 %v4270
    %5144 = vmatmul.bf16.gmra.mxu0 %v2878
    %v5145 = vpop.f32.mrf.mxu0
    %v5146 = vadd.f32 %v5133, %v5145
    %v5147 = vpop.f32.mrf.mxu0
    %5148 = vdwg.mxu0
    %5149 = vmatpush.bf16.msra.mxu0 %v4405
    %5150 = vmatpush.bf16.msra.mxu0 %v4396
    %5151 = vmatpush.bf16.msra.mxu0 %v4387
    %5152 = vmatpush.bf16.msra.mxu0 %v4378
    %5153 = vmatpush.bf16.msra.mxu0 %v4369
    %5154 = vmatpush.bf16.msra.mxu0 %v4360
    %5155 = vmatpush.bf16.msra.mxu0 %v4351
    %5156 = vmatpush.bf16.msra.mxu0 %v4342
    %5157 = vmatmul.bf16.gmra.mxu0 %v2879
    %v5158 = vpop.f32.mrf.mxu0
    %v5159 = vadd.f32 %v5146, %v5158
    %v5160 = vpop.f32.mrf.mxu0
    %5161 = vdwg.mxu0
    %v5162 = vxor.u32 %v4743, 2147483648
    %v5163 = vxor.u32 %v4795, 2147483648
    %v5164 = vxor.u32 %v4847, 2147483648
    %v5165 = vxor.u32 %v4899, 2147483648
    %v5166 = vxor.u32 %v4951, 2147483648
    %v5167 = vxor.u32 %v5003, 2147483648
    %v5168 = vxor.u32 %v5055, 2147483648
    %v5169 = vxor.u32 %v5107, 2147483648
    %v5170 = vxor.u32 %v5159, 2147483648
    %v5171 = vmul.f32 %v5162, 1.442695
    %v5172 = vpow.pop %v5171
    %v5173 = vmul.f32 %v5163, 1.442695
    %v5174 = vpow.pop %v5173
    %v5175 = vmul.f32 %v5164, 1.442695
    %v5176 = vpow.pop %v5175
    %v5177 = vmul.f32 %v5165, 1.442695
    %v5178 = vpow.pop %v5177
    %v5179 = vmul.f32 %v5166, 1.442695
    %v5180 = vpow.pop %v5179
    %v5181 = vmul.f32 %v5167, 1.442695
    %v5182 = vpow.pop %v5181
    %v5183 = vmul.f32 %v5168, 1.442695
    %v5184 = vpow.pop %v5183
    %v5185 = vmul.f32 %v5169, 1.442695
    %v5186 = vpow.pop %v5185
    %v5187 = vmul.f32 %v5170, 1.442695
    %v5188 = vpow.pop %v5187
    %v5189 = vadd.f32 %v5172, 1.0
    %v5190 = vadd.f32 %v5174, 1.0
    %v5191 = vadd.f32 %v5176, 1.0
    %v5192 = vadd.f32 %v5178, 1.0
    %v5193 = vadd.f32 %v5180, 1.0
    %v5194 = vadd.f32 %v5182, 1.0
    %v5195 = vadd.f32 %v5184, 1.0
    %v5196 = vadd.f32 %v5186, 1.0
    %v5197 = vadd.f32 %v5188, 1.0
    %v5198 = vrcp.pop %v5189
    %v5199 = vmul.f32 %v5189, %v5198
    %v5200 = vsub.f32 1.0, %v5199
    %v5201 = vmul.f32 %v5198, %v5200
    %v5202 = vadd.f32 %v5198, %v5201
    %vm5203 = vweird.f32 %v5189
    %vm5204 = vweird.f32 %v5198
    %vm5205 = vmor %vm5203, %vm5204
    %v5206 = vsel %vm5205, %v5198, %v5202
    %v5207 = vand.u32 2147483647, %v5189
    %vm5208 = vcmp.eq.f32.partialorder %v5207, 8.507059e+37
    %v5209 = vand.u32 %v5189, 2147483648
    %v5210 = vor.u32 1.1754944e-38, %v5209
    %v5211 = vsel %vm5208, %v5210, %v5206
    %v5212 = vmul.f32 1.0, %v5211
    %v5213 = vrcp.pop %v5190
    %v5214 = vmul.f32 %v5190, %v5213
    %v5215 = vsub.f32 1.0, %v5214
    %v5216 = vmul.f32 %v5213, %v5215
    %v5217 = vadd.f32 %v5213, %v5216
    %vm5218 = vweird.f32 %v5190
    %vm5219 = vweird.f32 %v5213
    %vm5220 = vmor %vm5218, %vm5219
    %v5221 = vsel %vm5220, %v5213, %v5217
    %v5222 = vand.u32 2147483647, %v5190
    %vm5223 = vcmp.eq.f32.partialorder %v5222, 8.507059e+37
    %v5224 = vand.u32 %v5190, 2147483648
    %v5225 = vor.u32 1.1754944e-38, %v5224
    %v5226 = vsel %vm5223, %v5225, %v5221
    %v5227 = vmul.f32 1.0, %v5226
    %v5228 = vrcp.pop %v5191
    %v5229 = vmul.f32 %v5191, %v5228
    %v5230 = vsub.f32 1.0, %v5229
    %v5231 = vmul.f32 %v5228, %v5230
    %v5232 = vadd.f32 %v5228, %v5231
    %vm5233 = vweird.f32 %v5191
    %vm5234 = vweird.f32 %v5228
    %vm5235 = vmor %vm5233, %vm5234
    %v5236 = vsel %vm5235, %v5228, %v5232
    %v5237 = vand.u32 2147483647, %v5191
    %vm5238 = vcmp.eq.f32.partialorder %v5237, 8.507059e+37
    %v5239 = vand.u32 %v5191, 2147483648
    %v5240 = vor.u32 1.1754944e-38, %v5239
    %v5241 = vsel %vm5238, %v5240, %v5236
    %v5242 = vmul.f32 1.0, %v5241
    %v5243 = vrcp.pop %v5192
    %v5244 = vmul.f32 %v5192, %v5243
    %v5245 = vsub.f32 1.0, %v5244
    %v5246 = vmul.f32 %v5243, %v5245
    %v5247 = vadd.f32 %v5243, %v5246
    %vm5248 = vweird.f32 %v5192
    %vm5249 = vweird.f32 %v5243
    %vm5250 = vmor %vm5248, %vm5249
    %v5251 = vsel %vm5250, %v5243, %v5247
    %v5252 = vand.u32 2147483647, %v5192
    %vm5253 = vcmp.eq.f32.partialorder %v5252, 8.507059e+37
    %v5254 = vand.u32 %v5192, 2147483648
    %v5255 = vor.u32 1.1754944e-38, %v5254
    %v5256 = vsel %vm5253, %v5255, %v5251
    %v5257 = vmul.f32 1.0, %v5256
    %v5258 = vrcp.pop %v5193
    %v5259 = vmul.f32 %v5193, %v5258
    %v5260 = vsub.f32 1.0, %v5259
    %v5261 = vmul.f32 %v5258, %v5260
    %v5262 = vadd.f32 %v5258, %v5261
    %vm5263 = vweird.f32 %v5193
    %vm5264 = vweird.f32 %v5258
    %vm5265 = vmor %vm5263, %vm5264
    %v5266 = vsel %vm5265, %v5258, %v5262
    %v5267 = vand.u32 2147483647, %v5193
    %vm5268 = vcmp.eq.f32.partialorder %v5267, 8.507059e+37
    %v5269 = vand.u32 %v5193, 2147483648
    %v5270 = vor.u32 1.1754944e-38, %v5269
    %v5271 = vsel %vm5268, %v5270, %v5266
    %v5272 = vmul.f32 1.0, %v5271
    %v5273 = vrcp.pop %v5194
    %v5274 = vmul.f32 %v5194, %v5273
    %v5275 = vsub.f32 1.0, %v5274
    %v5276 = vmul.f32 %v5273, %v5275
    %v5277 = vadd.f32 %v5273, %v5276
    %vm5278 = vweird.f32 %v5194
    %vm5279 = vweird.f32 %v5273
    %vm5280 = vmor %vm5278, %vm5279
    %v5281 = vsel %vm5280, %v5273, %v5277
    %v5282 = vand.u32 2147483647, %v5194
    %vm5283 = vcmp.eq.f32.partialorder %v5282, 8.507059e+37
    %v5284 = vand.u32 %v5194, 2147483648
    %v5285 = vor.u32 1.1754944e-38, %v5284
    %v5286 = vsel %vm5283, %v5285, %v5281
    %v5287 = vmul.f32 1.0, %v5286
    %v5288 = vrcp.pop %v5195
    %v5289 = vmul.f32 %v5195, %v5288
    %v5290 = vsub.f32 1.0, %v5289
    %v5291 = vmul.f32 %v5288, %v5290
    %v5292 = vadd.f32 %v5288, %v5291
    %vm5293 = vweird.f32 %v5195
    %vm5294 = vweird.f32 %v5288
    %vm5295 = vmor %vm5293, %vm5294
    %v5296 = vsel %vm5295, %v5288, %v5292
    %v5297 = vand.u32 2147483647, %v5195
    %vm5298 = vcmp.eq.f32.partialorder %v5297, 8.507059e+37
    %v5299 = vand.u32 %v5195, 2147483648
    %v5300 = vor.u32 1.1754944e-38, %v5299
    %v5301 = vsel %vm5298, %v5300, %v5296
    %v5302 = vmul.f32 1.0, %v5301
    %v5303 = vrcp.pop %v5196
    %v5304 = vmul.f32 %v5196, %v5303
    %v5305 = vsub.f32 1.0, %v5304
    %v5306 = vmul.f32 %v5303, %v5305
    %v5307 = vadd.f32 %v5303, %v5306
    %vm5308 = vweird.f32 %v5196
    %vm5309 = vweird.f32 %v5303
    %vm5310 = vmor %vm5308, %vm5309
    %v5311 = vsel %vm5310, %v5303, %v5307
    %v5312 = vand.u32 2147483647, %v5196
    %vm5313 = vcmp.eq.f32.partialorder %v5312, 8.507059e+37
    %v5314 = vand.u32 %v5196, 2147483648
    %v5315 = vor.u32 1.1754944e-38, %v5314
    %v5316 = vsel %vm5313, %v5315, %v5311
    %v5317 = vmul.f32 1.0, %v5316
    %v5318 = vrcp.pop %v5197
    %v5319 = vmul.f32 %v5197, %v5318
    %v5320 = vsub.f32 1.0, %v5319
    %v5321 = vmul.f32 %v5318, %v5320
    %v5322 = vadd.f32 %v5318, %v5321
    %vm5323 = vweird.f32 %v5197
    %vm5324 = vweird.f32 %v5318
    %vm5325 = vmor %vm5323, %vm5324
    %v5326 = vsel %vm5325, %v5318, %v5322
    %v5327 = vand.u32 2147483647, %v5197
    %vm5328 = vcmp.eq.f32.partialorder %v5327, 8.507059e+37
    %v5329 = vand.u32 %v5197, 2147483648
    %v5330 = vor.u32 1.1754944e-38, %v5329
    %v5331 = vsel %vm5328, %v5330, %v5326
    %v5332 = vmul.f32 1.0, %v5331
    %v5333 = vpack.c.bf16 %v5227, %v5212
    %v5334 = vpack.c.bf16 %v5257, %v5242
    %v5335 = vpack.c.bf16 %v5287, %v5272
    %v5336 = vpack.c.bf16 %v5317, %v5302
    %v5337 = vpack.c.bf16 %v5332, %v5332
    %5338 = vst [vmem:[#allocation17] sm:$0xff] %v5333
    %5339 = vst [vmem:[#allocation17 + $0x8] sm:$0xff] %v5334
    %5340 = vst [vmem:[#allocation17 + $0x10] sm:$0xff] %v5335
    %5341 = vst [vmem:[#allocation17 + $0x18] sm:$0xff] %v5336
    %5342 = vst [vmem:[#allocation17 + $0x20] sm:$0xf] %v5337
    // Predicated region
    $region74: #{tpu_custom_call.1} parent=1 // pred_check
      _
    $region75: #{tpu_custom_call.1} parent=1 // pred_check_branch
      %5344 = sbr.rel (0) target = $region77
    $region76: #{tpu_custom_call.1} parent=1 // pred_region
      %5346 = vsyncadd [#allocation4], 0
      %s5348 = sshll.u32 [#allocation17], 4
      %s5349 = int_to_ptr.vmem [resolvable:$true] %s5348
      %s5350 = sshll.u32 %s9, 4
      %s5351 = int_to_ptr.hbm [resolvable:$true] %s5350
      %5353 = dma.vmem_to_hbm [thread:$0]  %s5349, 576, %s5351, [#allocation4]
    $region77: #{tpu_custom_call.1} parent=1 // pred_fallthru
      _
    // Predicated region
    $region78: #{tpu_custom_call.1} parent=1 // pred_check
      _
    $region79: #{tpu_custom_call.1} parent=1 // pred_check_branch
      %5355 = sbr.rel (0) target = $region81
    $region80: #{tpu_custom_call.1} parent=1 // pred_region
      %5357 = dma.done [#allocation4], 576
    $region81: #{tpu_custom_call.1} parent=1 // pred_fallthru
      _
    %5358 = vsyncpa [#allocation3], 1
    %5359 = vsyncpa [#allocation6], 1
    %5360 = vsyncpa [#allocation9], 1
    %5361 = vsyncpa [#allocation12], 1
    %5362 = vsyncpa [#allocation15], 1
    %5363 = vsyncpa [#allocation4], 1

// kernel: tpu_custom_call.1
$region0: #{tpu_custom_call.1}
  #allocation0 [shape = 'u32[]', space=smem, size = 0x4, offset = 0x4, fixed_abs, tag = 'smem constant byte address 0x4 - core index']
  #allocation1 [shape = 'u32[72,128]{1,0:T(1,128)}', space=vmem, size = 0x9000, scoped, tag = 'internal scratch']
  %s0 = inlined_call_operand.hbm [shape: f32[8,1080], index: 0, kind: input, shape index: {}]
  %s1 = inlined_call_operand.hbm [shape: bf16[1080,512], index: 1, kind: input, shape index: {}]
  %s2 = inlined_call_operand.hbm [shape: f32[1,512], index: 2, kind: input, shape index: {}]
  %s3 = inlined_call_operand.hbm [shape: bf16[512,128], index: 3, kind: input, shape index: {}]
  %s4 = inlined_call_operand.hbm [shape: f32[1,128], index: 4, kind: input, shape index: {}]
  %s5 = inlined_call_operand.hbm [shape: bf16[128,512], index: 5, kind: input, shape index: {}]
  %s6 = inlined_call_operand.hbm [shape: f32[1,512], index: 6, kind: input, shape index: {}]
  %s7 = inlined_call_operand.hbm [shape: bf16[512,1152], index: 7, kind: input, shape index: {}]
  %s8 = inlined_call_operand.hbm [shape: f32[1,1152], index: 8, kind: input, shape index: {}]
  %s9 = inlined_call_operand.hbm [shape: bf16[8,1152], index: 9, kind: output, shape index: {}]
  %s10 = sld [smem:[#allocation0]]
  $region82: #{tpu_custom_call.1} parent=0
    _
  %s12 = ssub.s32 1, %s10
  %s13 = scalar_select 0, %s12, %s10
  $region1: #{tpu_custom_call.1} parent=0
    #allocation2 [shape = 'u8[36864]{0}', space=vmem, size = 0x9000, scoped, tag = 'input window, operand 0, single buffered']
    #allocation3 [shape = 's32[1]{0}', space=sflag, size = 0x4, scoped, tag = 'scoped memory for tpu_custom_call.1']
    #allocation4 [shape = 's32[1]{0}', space=sflag, size = 0x4, scoped, tag = 'scoped memory for tpu_custom_call.1']
    #allocation5 [shape = 'u8[1105920]{0}', space=vmem, size = 0x10e000, scoped, tag = 'input window, operand 1, single buffered']
    #allocation6 [shape = 's32[1]{0}', space=sflag, size = 0x4, scoped, tag = 'scoped memory for tpu_custom_call.1']
    #allocation7 [shape = 'u8[2048]{0}', space=vmem, size = 0x800, scoped, tag = 'input window, operand 2, single buffered']
    #allocation8 [shape = 'u8[131072]{0}', space=vmem, size = 0x20000, scoped, tag = 'input window, operand 3, single buffered']
    #allocation9 [shape = 's32[1]{0}', space=sflag, size = 0x4, scoped, tag = 'scoped memory for tpu_custom_call.1']
    #allocation10 [shape = 'u8[512]{0}', space=vmem, size = 0x400, scoped, tag = 'input window, operand 4, single buffered']
    #allocation11 [shape = 'u8[131072]{0}', space=vmem, size = 0x20000, scoped, tag = 'input window, operand 5, single buffered']
    #allocation12 [shape = 's32[1]{0}', space=sflag, size = 0x4, scoped, tag = 'scoped memory for tpu_custom_call.1']
    #allocation13 [shape = 'u8[2048]{0}', space=vmem, size = 0x800, scoped, tag = 'input window, operand 6, single buffered']
    #allocation14 [shape = 'u8[1179648]{0}', space=vmem, size = 0x120000, scoped, tag = 'input window, operand 7, single buffered']
    #allocation15 [shape = 's32[1]{0}', space=sflag, size = 0x4, scoped, tag = 'scoped memory for tpu_custom_call.1']
    #allocation16 [shape = 'u8[4608]{0}', space=vmem, size = 0x1400, scoped, tag = 'input window, operand 8, single buffered']
    #allocation17 [shape = 'u8[18432]{0}', space=vmem, size = 0x4800, scoped, tag = 'output window, operand 0, single buffered']
    %14 = vsyncpa [#allocation3], 0
    %15 = vsyncpa [#allocation6], 0
    %16 = vsyncpa [#allocation9], 0
    %17 = vsyncpa [#allocation12], 0
    %18 = vsyncpa [#allocation15], 0
    %19 = vsyncpa [#allocation4], 0
    // Predicated region
    $region2: #{tpu_custom_call.1} parent=1 // pred_check
      _
    $region3: #{tpu_custom_call.1} parent=1 // pred_check_branch
      %21 = sbr.rel (0) target = $region5
    $region4: #{tpu_custom_call.1} parent=1 // pred_region
      %23 = vsyncadd [#allocation3], 0
      %s25 = sshll.u32 %s0, 4
      %s26 = int_to_ptr.hbm [resolvable:$true] %s25
      %s27 = sshll.u32 [#allocation2], 4
      %s28 = int_to_ptr.vmem [resolvable:$true] %s27
      %30 = dma.hbm_to_vmem [thread:$0]  %s26, 1152, %s28, [#allocation3]
    $region5: #{tpu_custom_call.1} parent=1 // pred_fallthru
      _
    // Predicated region
    $region6: #{tpu_custom_call.1} parent=1 // pred_check
      _
    $region7: #{tpu_custom_call.1} parent=1 // pred_check_branch
      %32 = sbr.rel (0) target = $region9
    $region8: #{tpu_custom_call.1} parent=1 // pred_region
      %34 = vsyncadd [#allocation6], 0
      %s35 = sshll.u32 %s1, 4
      %s36 = int_to_ptr.hbm [resolvable:$true] %s35
      %s37 = sshll.u32 [#allocation5], 4
      %s38 = int_to_ptr.vmem [resolvable:$true] %s37
      %43 = dma.hbm_to_vmem [thread:$0]  %s36, 34560, %s38, [#allocation6], 256, 256, 16
    $region9: #{tpu_custom_call.1} parent=1 // pred_fallthru
      _
    // Predicated region
    $region10: #{tpu_custom_call.1} parent=1 // pred_check
      _
    $region11: #{tpu_custom_call.1} parent=1 // pred_check_branch
      %45 = sbr.rel (0) target = $region13
    $region12: #{tpu_custom_call.1} parent=1 // pred_region
      %47 = vsyncadd [#allocation6], 0
      %s49 = sshll.u32 %s2, 4
      %s50 = int_to_ptr.hbm [resolvable:$true] %s49
      %s51 = sshll.u32 [#allocation7], 4
      %s52 = int_to_ptr.vmem [resolvable:$true] %s51
      %54 = dma.hbm_to_vmem [thread:$0]  %s50, 64, %s52, [#allocation6]
    $region13: #{tpu_custom_call.1} parent=1 // pred_fallthru
      _
    // Predicated region
    $region14: #{tpu_custom_call.1} parent=1 // pred_check
      _
    $region15: #{tpu_custom_call.1} parent=1 // pred_check_branch
      %56 = sbr.rel (0) target = $region17
    $region16: #{tpu_custom_call.1} parent=1 // pred_region
      %58 = vsyncadd [#allocation9], 0
      %s59 = sshll.u32 %s3, 4
      %s60 = int_to_ptr.hbm [resolvable:$true] %s59
      %s61 = sshll.u32 [#allocation8], 4
      %s62 = int_to_ptr.vmem [resolvable:$true] %s61
      %67 = dma.hbm_to_vmem [thread:$0]  %s60, 4096, %s62, [#allocation9], 64, 64, 4
    $region17: #{tpu_custom_call.1} parent=1 // pred_fallthru
      _
    // Predicated region
    $region18: #{tpu_custom_call.1} parent=1 // pred_check
      _
    $region19: #{tpu_custom_call.1} parent=1 // pred_check_branch
      %69 = sbr.rel (0) target = $region21
    $region20: #{tpu_custom_call.1} parent=1 // pred_region
      %71 = vsyncadd [#allocation9], 0
      %s73 = sshll.u32 %s4, 4
      %s74 = int_to_ptr.hbm [resolvable:$true] %s73
      %s75 = sshll.u32 [#allocation10], 4
      %s76 = int_to_ptr.vmem [resolvable:$true] %s75
      %78 = dma.hbm_to_vmem [thread:$0]  %s74, 16, %s76, [#allocation9]
    $region21: #{tpu_custom_call.1} parent=1 // pred_fallthru
      _
    // Predicated region
    $region22: #{tpu_custom_call.1} parent=1 // pred_check
      _
    $region23: #{tpu_custom_call.1} parent=1 // pred_check_branch
      %80 = sbr.rel (0) target = $region25
    $region24: #{tpu_custom_call.1} parent=1 // pred_region
      %82 = vsyncadd [#allocation12], 0
      %s83 = sshll.u32 %s5, 4
      %s84 = int_to_ptr.hbm [resolvable:$true] %s83
      %s85 = sshll.u32 [#allocation11], 4
      %s86 = int_to_ptr.vmem [resolvable:$true] %s85
      %91 = dma.hbm_to_vmem [thread:$0]  %s84, 4096, %s86, [#allocation12], 256, 256, 16
    $region25: #{tpu_custom_call.1} parent=1 // pred_fallthru
      _
    // Predicated region
    $region26: #{tpu_custom_call.1} parent=1 // pred_check
      _
    $region27: #{tpu_custom_call.1} parent=1 // pred_check_branch
      %93 = sbr.rel (0) target = $region29
    $region28: #{tpu_custom_call.1} parent=1 // pred_region
      %95 = vsyncadd [#allocation12], 0
      %s97 = sshll.u32 %s6, 4
      %s98 = int_to_ptr.hbm [resolvable:$true] %s97
      %s99 = sshll.u32 [#allocation13], 4
      %s100 = int_to_ptr.vmem [resolvable:$true] %s99
      %102 = dma.hbm_to_vmem [thread:$0]  %s98, 64, %s100, [#allocation12]
    $region29: #{tpu_custom_call.1} parent=1 // pred_fallthru
      _
    // Predicated region
    $region30: #{tpu_custom_call.1} parent=1 // pred_check
      _
    $region31: #{tpu_custom_call.1} parent=1 // pred_check_branch
      %104 = sbr.rel (0) target = $region33
    $region32: #{tpu_custom_call.1} parent=1 // pred_region
      %106 = vsyncadd [#allocation15], 0
      %s107 = sshll.u32 %s7, 4
      %s108 = int_to_ptr.hbm [resolvable:$true] %s107
      %s109 = sshll.u32 [#allocation14], 4
      %s110 = int_to_ptr.vmem [resolvable:$true] %s109
      %115 = dma.hbm_to_vmem [thread:$0]  %s108, 36864, %s110, [#allocation15], 576, 576, 36
    $region33: #{tpu_custom_call.1} parent=1 // pred_fallthru
      _
    // Predicated region
    $region34: #{tpu_custom_call.1} parent=1 // pred_check
      _
    $region35: #{tpu_custom_call.1} parent=1 // pred_check_branch
      %117 = sbr.rel (0) target = $region37
    $region36: #{tpu_custom_call.1} parent=1 // pred_region
      %119 = vsyncadd [#allocation15], 0
      %s121 = sshll.u32 %s8, 4
      %s122 = int_to_ptr.hbm [resolvable:$true] %s121
      %s123 = sshll.u32 [#allocation16], 4
      %s124 = int_to_ptr.vmem [resolvable:$true] %s123
      %126 = dma.hbm_to_vmem [thread:$0]  %s122, 144, %s124, [#allocation15]
    $region37: #{tpu_custom_call.1} parent=1 // pred_fallthru
      _
    // Predicated region
    $region38: #{tpu_custom_call.1} parent=1 // pred_check
      _
    $region39: #{tpu_custom_call.1} parent=1 // pred_check_branch
      %128 = sbr.rel (0) target = $region41
    $region40: #{tpu_custom_call.1} parent=1 // pred_region
      %130 = dma.done [#allocation3], 1152
    $region41: #{tpu_custom_call.1} parent=1 // pred_fallthru
      _
    // Predicated region
    $region42: #{tpu_custom_call.1} parent=1 // pred_check
      _
    $region43: #{tpu_custom_call.1} parent=1 // pred_check_branch
      %132 = sbr.rel (0) target = $region45
    $region44: #{tpu_custom_call.1} parent=1 // pred_region
      %134 = dma.done [#allocation6], 34560
    $region45: #{tpu_custom_call.1} parent=1 // pred_fallthru
      _
    // Predicated region
    $region46: #{tpu_custom_call.1} parent=1 // pred_check
      _
    $region47: #{tpu_custom_call.1} parent=1 // pred_check_branch
      %136 = sbr.rel (0) target = $region49
    $region48: #{tpu_custom_call.1} parent=1 // pred_region
      %138 = dma.done [#allocation6], 64
    $region49: #{tpu_custom_call.1} parent=1 // pred_fallthru
      _
    // Predicated region
    $region50: #{tpu_custom_call.1} parent=1 // pred_check
      _
    $region51: #{tpu_custom_call.1} parent=1 // pred_check_branch
      %140 = sbr.rel (0) target = $region53
    $region52: #{tpu_custom_call.1} parent=1 // pred_region
      %142 = dma.done [#allocation9], 4096
    $region53: #{tpu_custom_call.1} parent=1 // pred_fallthru
      _
    // Predicated region
    $region54: #{tpu_custom_call.1} parent=1 // pred_check
      _
    $region55: #{tpu_custom_call.1} parent=1 // pred_check_branch
      %144 = sbr.rel (0) target = $region57
    $region56: #{tpu_custom_call.1} parent=1 // pred_region
      %146 = dma.done [#allocation9], 16
    $region57: #{tpu_custom_call.1} parent=1 // pred_fallthru
      _
    // Predicated region
    $region58: #{tpu_custom_call.1} parent=1 // pred_check
      _
    $region59: #{tpu_custom_call.1} parent=1 // pred_check_branch
      %148 = sbr.rel (0) target = $region61
    $region60: #{tpu_custom_call.1} parent=1 // pred_region
      %150 = dma.done [#allocation12], 4096
    $region61: #{tpu_custom_call.1} parent=1 // pred_fallthru
      _
    // Predicated region
    $region62: #{tpu_custom_call.1} parent=1 // pred_check
      _
    $region63: #{tpu_custom_call.1} parent=1 // pred_check_branch
      %152 = sbr.rel (0) target = $region65
    $region64: #{tpu_custom_call.1} parent=1 // pred_region
      %154 = dma.done [#allocation12], 64
    $region65: #{tpu_custom_call.1} parent=1 // pred_fallthru
      _
    // Predicated region
    $region66: #{tpu_custom_call.1} parent=1 // pred_check
      _
    $region67: #{tpu_custom_call.1} parent=1 // pred_check_branch
      %156 = sbr.rel (0) target = $region69
    $region68: #{tpu_custom_call.1} parent=1 // pred_region
      %158 = dma.done [#allocation15], 36864
    $region69: #{tpu_custom_call.1} parent=1 // pred_fallthru
      _
    // Predicated region
    $region70: #{tpu_custom_call.1} parent=1 // pred_check
      _
    $region71: #{tpu_custom_call.1} parent=1 // pred_check_branch
      %160 = sbr.rel (0) target = $region73
    $region72: #{tpu_custom_call.1} parent=1 // pred_region
      %162 = dma.done [#allocation15], 144
    $region73: #{tpu_custom_call.1} parent=1 // pred_fallthru
      _
    %v164 = vld [vmem:[#allocation2] sm:$0xff]
    %v165 = vld [vmem:[#allocation2 + $0x8] sm:$0xff]
    %v166 = vld [vmem:[#allocation2 + $0x10] sm:$0xff]
    %v167 = vld [vmem:[#allocation2 + $0x18] sm:$0xff]
    %v168 = vld [vmem:[#allocation2 + $0x20] sm:$0xff]
    %v169 = vld [vmem:[#allocation2 + $0x28] sm:$0xff]
    %v170 = vld [vmem:[#allocation2 + $0x30] sm:$0xff]
    %v171 = vld [vmem:[#allocation2 + $0x38] sm:$0xff]
    %v172 = vld [vmem:[#allocation2 + $0x40] sm:$0xff]
    %v173 = vpack.c.bf16 %v164, %v164
    %v174 = vpack.c.bf16 %v165, %v165
    %v175 = vpack.c.bf16 %v166, %v166
    %v176 = vpack.c.bf16 %v167, %v167
    %v177 = vpack.c.bf16 %v168, %v168
    %v178 = vpack.c.bf16 %v169, %v169
    %v179 = vpack.c.bf16 %v170, %v170
    %v180 = vpack.c.bf16 %v171, %v171
    %v181 = vpack.c.bf16 %v172, %v172
    %v182 = vld [vmem:[#allocation5] sm:$0xff]
    %v183 = vld [vmem:[#allocation5 + $0x8] sm:$0xff]
    %v184 = vld [vmem:[#allocation5 + $0x10] sm:$0xff]
    %v185 = vld [vmem:[#allocation5 + $0x18] sm:$0xff]
    %v186 = vld [vmem:[#allocation5 + $0x20] sm:$0xff]
    %v187 = vld [vmem:[#allocation5 + $0x28] sm:$0xff]
    %v188 = vld [vmem:[#allocation5 + $0x30] sm:$0xff]
    %v189 = vld [vmem:[#allocation5 + $0x38] sm:$0xff]
    %v190 = vld [vmem:[#allocation5 + $0x40] sm:$0xff]
    %v191 = vld [vmem:[#allocation5 + $0x48] sm:$0xff]
    %v192 = vld [vmem:[#allocation5 + $0x50] sm:$0xff]
    %v193 = vld [vmem:[#allocation5 + $0x58] sm:$0xff]
    %v194 = vld [vmem:[#allocation5 + $0x60] sm:$0xff]
    %v195 = vld [vmem:[#allocation5 + $0x68] sm:$0xff]
    %v196 = vld [vmem:[#allocation5 + $0x70] sm:$0xff]
    %v197 = vld [vmem:[#allocation5 + $0x78] sm:$0xff]
    %v198 = vld [vmem:[#allocation5 + $0x80] sm:$0xff]
    %v199 = vld [vmem:[#allocation5 + $0x88] sm:$0xff]
    %v200 = vld [vmem:[#allocation5 + $0x90] sm:$0xff]
    %v201 = vld [vmem:[#allocation5 + $0x98] sm:$0xff]
    %v202 = vld [vmem:[#allocation5 + $0xa0] sm:$0xff]
    %v203 = vld [vmem:[#allocation5 + $0xa8] sm:$0xff]
    %v204 = vld [vmem:[#allocation5 + $0xb0] sm:$0xff]
    %v205 = vld [vmem:[#allocation5 + $0xb8] sm:$0xff]
    %v206 = vld [vmem:[#allocation5 + $0xc0] sm:$0xff]
    %v207 = vld [vmem:[#allocation5 + $0xc8] sm:$0xff]
    %v208 = vld [vmem:[#allocation5 + $0xd0] sm:$0xff]
    %v209 = vld [vmem:[#allocation5 + $0xd8] sm:$0xff]
    %v210 = vld [vmem:[#allocation5 + $0xe0] sm:$0xff]
    %v211 = vld [vmem:[#allocation5 + $0xe8] sm:$0xff]
    %v212 = vld [vmem:[#allocation5 + $0xf0] sm:$0xff]
    %v213 = vld [vmem:[#allocation5 + $0xf8] sm:$0xff]
    %v214 = vld [vmem:[#allocation5 + $0x100] sm:$0xff]
    %v215 = vld [vmem:[#allocation5 + $0x108] sm:$0xff]
    %v216 = vld [vmem:[#allocation5 + $0x110] sm:$0xff]
    %v217 = vld [vmem:[#allocation5 + $0x118] sm:$0xff]
    %v218 = vld [vmem:[#allocation5 + $0x120] sm:$0xff]
    %v219 = vld [vmem:[#allocation5 + $0x128] sm:$0xff]
    %v220 = vld [vmem:[#allocation5 + $0x130] sm:$0xff]
    %v221 = vld [vmem:[#allocation5 + $0x138] sm:$0xff]
    %v222 = vld [vmem:[#allocation5 + $0x140] sm:$0xff]
    %v223 = vld [vmem:[#allocation5 + $0x148] sm:$0xff]
    %v224 = vld [vmem:[#allocation5 + $0x150] sm:$0xff]
    %v225 = vld [vmem:[#allocation5 + $0x158] sm:$0xff]
    %v226 = vld [vmem:[#allocation5 + $0x160] sm:$0xff]
    %v227 = vld [vmem:[#allocation5 + $0x168] sm:$0xff]
    %v228 = vld [vmem:[#allocation5 + $0x170] sm:$0xff]
    %v229 = vld [vmem:[#allocation5 + $0x178] sm:$0xff]
    %v230 = vld [vmem:[#allocation5 + $0x180] sm:$0xff]
    %v231 = vld [vmem:[#allocation5 + $0x188] sm:$0xff]
    %v232 = vld [vmem:[#allocation5 + $0x190] sm:$0xff]
    %v233 = vld [vmem:[#allocation5 + $0x198] sm:$0xff]
    %v234 = vld [vmem:[#allocation5 + $0x1a0] sm:$0xff]
    %v235 = vld [vmem:[#allocation5 + $0x1a8] sm:$0xff]
    %v236 = vld [vmem:[#allocation5 + $0x1b0] sm:$0xff]
    %v237 = vld [vmem:[#allocation5 + $0x1b8] sm:$0xff]
    %v238 = vld [vmem:[#allocation5 + $0x1c0] sm:$0xff]
    %v239 = vld [vmem:[#allocation5 + $0x1c8] sm:$0xff]
    %v240 = vld [vmem:[#allocation5 + $0x1d0] sm:$0xff]
    %v241 = vld [vmem:[#allocation5 + $0x1d8] sm:$0xff]
    %v242 = vld [vmem:[#allocation5 + $0x1e0] sm:$0xff]
    %v243 = vld [vmem:[#allocation5 + $0x1e8] sm:$0xff]
    %v244 = vld [vmem:[#allocation5 + $0x1f0] sm:$0xff]
    %v245 = vld [vmem:[#allocation5 + $0x1f8] sm:$0xff]
    %v246 = vld [vmem:[#allocation5 + $0x200] sm:$0xff]
    %v247 = vld [vmem:[#allocation5 + $0x208] sm:$0xff]
    %v248 = vld [vmem:[#allocation5 + $0x210] sm:$0xff]
    %v249 = vld [vmem:[#allocation5 + $0x218] sm:$0xff]
    %v250 = vld [vmem:[#allocation5 + $0x220] sm:$0xff]
    %v251 = vld [vmem:[#allocation5 + $0x228] sm:$0xff]
    %v252 = vld [vmem:[#allocation5 + $0x230] sm:$0xff]
    %v253 = vld [vmem:[#allocation5 + $0x238] sm:$0xff]
    %v254 = vld [vmem:[#allocation5 + $0x240] sm:$0xff]
    %v255 = vld [vmem:[#allocation5 + $0x248] sm:$0xff]
    %v256 = vld [vmem:[#allocation5 + $0x250] sm:$0xff]
    %v257 = vld [vmem:[#allocation5 + $0x258] sm:$0xff]
    %v258 = vld [vmem:[#allocation5 + $0x260] sm:$0xff]
    %v259 = vld [vmem:[#allocation5 + $0x268] sm:$0xff]
    %v260 = vld [vmem:[#allocation5 + $0x270] sm:$0xff]
    %v261 = vld [vmem:[#allocation5 + $0x278] sm:$0xff]
    %v262 = vld [vmem:[#allocation5 + $0x280] sm:$0xff]
    %v263 = vld [vmem:[#allocation5 + $0x288] sm:$0xff]
    %v264 = vld [vmem:[#allocation5 + $0x290] sm:$0xff]
    %v265 = vld [vmem:[#allocation5 + $0x298] sm:$0xff]
    %v266 = vld [vmem:[#allocation5 + $0x2a0] sm:$0xff]
    %v267 = vld [vmem:[#allocation5 + $0x2a8] sm:$0xff]
    %v268 = vld [vmem:[#allocation5 + $0x2b0] sm:$0xff]
    %v269 = vld [vmem:[#allocation5 + $0x2b8] sm:$0xff]
    %v270 = vld [vmem:[#allocation5 + $0x2c0] sm:$0xff]
    %v271 = vld [vmem:[#allocation5 + $0x2c8] sm:$0xff]
    %v272 = vld [vmem:[#allocation5 + $0x2d0] sm:$0xff]
    %v273 = vld [vmem:[#allocation5 + $0x2d8] sm:$0xff]
    %v274 = vld [vmem:[#allocation5 + $0x2e0] sm:$0xff]
    %v275 = vld [vmem:[#allocation5 + $0x2e8] sm:$0xff]
    %v276 = vld [vmem:[#allocation5 + $0x2f0] sm:$0xff]
    %v277 = vld [vmem:[#allocation5 + $0x2f8] sm:$0xff]
    %v278 = vld [vmem:[#allocation5 + $0x300] sm:$0xff]
    %v279 = vld [vmem:[#allocation5 + $0x308] sm:$0xff]
    %v280 = vld [vmem:[#allocation5 + $0x310] sm:$0xff]
    %v281 = vld [vmem:[#allocation5 + $0x318] sm:$0xff]
    %v282 = vld [vmem:[#allocation5 + $0x320] sm:$0xff]
    %v283 = vld [vmem:[#allocation5 + $0x328] sm:$0xff]
    %v284 = vld [vmem:[#allocation5 + $0x330] sm:$0xff]
    %v285 = vld [vmem:[#allocation5 + $0x338] sm:$0xff]
    %v286 = vld [vmem:[#allocation5 + $0x340] sm:$0xff]
    %v287 = vld [vmem:[#allocation5 + $0x348] sm:$0xff]
    %v288 = vld [vmem:[#allocation5 + $0x350] sm:$0xff]
    %v289 = vld [vmem:[#allocation5 + $0x358] sm:$0xff]
    %v290 = vld [vmem:[#allocation5 + $0x360] sm:$0xff]
    %v291 = vld [vmem:[#allocation5 + $0x368] sm:$0xff]
    %v292 = vld [vmem:[#allocation5 + $0x370] sm:$0xff]
    %v293 = vld [vmem:[#allocation5 + $0x378] sm:$0xff]
    %v294 = vld [vmem:[#allocation5 + $0x380] sm:$0xff]
    %v295 = vld [vmem:[#allocation5 + $0x388] sm:$0xff]
    %v296 = vld [vmem:[#allocation5 + $0x390] sm:$0xff]
    %v297 = vld [vmem:[#allocation5 + $0x398] sm:$0xff]
    %v298 = vld [vmem:[#allocation5 + $0x3a0] sm:$0xff]
    %v299 = vld [vmem:[#allocation5 + $0x3a8] sm:$0xff]
    %v300 = vld [vmem:[#allocation5 + $0x3b0] sm:$0xff]
    %v301 = vld [vmem:[#allocation5 + $0x3b8] sm:$0xff]
    %v302 = vld [vmem:[#allocation5 + $0x3c0] sm:$0xff]
    %v303 = vld [vmem:[#allocation5 + $0x3c8] sm:$0xff]
    %v304 = vld [vmem:[#allocation5 + $0x3d0] sm:$0xff]
    %v305 = vld [vmem:[#allocation5 + $0x3d8] sm:$0xff]
    %v306 = vld [vmem:[#allocation5 + $0x3e0] sm:$0xff]
    %v307 = vld [vmem:[#allocation5 + $0x3e8] sm:$0xff]
    %v308 = vld [vmem:[#allocation5 + $0x3f0] sm:$0xff]
    %v309 = vld [vmem:[#allocation5 + $0x3f8] sm:$0xff]
    %v310 = vld [vmem:[#allocation5 + $0x400] sm:$0xff]
    %v311 = vld [vmem:[#allocation5 + $0x408] sm:$0xff]
    %v312 = vld [vmem:[#allocation5 + $0x410] sm:$0xff]
    %v313 = vld [vmem:[#allocation5 + $0x418] sm:$0xff]
    %v314 = vld [vmem:[#allocation5 + $0x420] sm:$0xff]
    %v315 = vld [vmem:[#allocation5 + $0x428] sm:$0xff]
    %v316 = vld [vmem:[#allocation5 + $0x430] sm:$0xff]
    %v317 = vld [vmem:[#allocation5 + $0x438] sm:$0xff]
    %v318 = vld [vmem:[#allocation5 + $0x440] sm:$0xff]
    %v319 = vld [vmem:[#allocation5 + $0x448] sm:$0xff]
    %v320 = vld [vmem:[#allocation5 + $0x450] sm:$0xff]
    %v321 = vld [vmem:[#allocation5 + $0x458] sm:$0xff]
    %v322 = vld [vmem:[#allocation5 + $0x460] sm:$0xff]
    %v323 = vld [vmem:[#allocation5 + $0x468] sm:$0xff]
    %v324 = vld [vmem:[#allocation5 + $0x470] sm:$0xff]
    %v325 = vld [vmem:[#allocation5 + $0x478] sm:$0xff]
    %v326 = vld [vmem:[#allocation5 + $0x480] sm:$0xff]
    %v327 = vld [vmem:[#allocation5 + $0x488] sm:$0xff]
    %v328 = vld [vmem:[#allocation5 + $0x490] sm:$0xff]
    %v329 = vld [vmem:[#allocation5 + $0x498] sm:$0xff]
    %v330 = vld [vmem:[#allocation5 + $0x4a0] sm:$0xff]
    %v331 = vld [vmem:[#allocation5 + $0x4a8] sm:$0xff]
    %v332 = vld [vmem:[#allocation5 + $0x4b0] sm:$0xff]
    %v333 = vld [vmem:[#allocation5 + $0x4b8] sm:$0xff]
    %v334 = vld [vmem:[#allocation5 + $0x4c0] sm:$0xff]
    %v335 = vld [vmem:[#allocation5 + $0x4c8] sm:$0xff]
    %v336 = vld [vmem:[#allocation5 + $0x4d0] sm:$0xff]
    %v337 = vld [vmem:[#allocation5 + $0x4d8] sm:$0xff]
    %v338 = vld [vmem:[#allocation5 + $0x4e0] sm:$0xff]
    %v339 = vld [vmem:[#allocation5 + $0x4e8] sm:$0xff]
    %v340 = vld [vmem:[#allocation5 + $0x4f0] sm:$0xff]
    %v341 = vld [vmem:[#allocation5 + $0x4f8] sm:$0xff]
    %v342 = vld [vmem:[#allocation5 + $0x500] sm:$0xff]
    %v343 = vld [vmem:[#allocation5 + $0x508] sm:$0xff]
    %v344 = vld [vmem:[#allocation5 + $0x510] sm:$0xff]
    %v345 = vld [vmem:[#allocation5 + $0x518] sm:$0xff]
    %v346 = vld [vmem:[#allocation5 + $0x520] sm:$0xff]
    %v347 = vld [vmem:[#allocation5 + $0x528] sm:$0xff]
    %v348 = vld [vmem:[#allocation5 + $0x530] sm:$0xff]
    %v349 = vld [vmem:[#allocation5 + $0x538] sm:$0xff]
    %v350 = vld [vmem:[#allocation5 + $0x540] sm:$0xff]
    %v351 = vld [vmem:[#allocation5 + $0x548] sm:$0xff]
    %v352 = vld [vmem:[#allocation5 + $0x550] sm:$0xff]
    %v353 = vld [vmem:[#allocation5 + $0x558] sm:$0xff]
    %v354 = vld [vmem:[#allocation5 + $0x560] sm:$0xff]
    %v355 = vld [vmem:[#allocation5 + $0x568] sm:$0xff]
    %v356 = vld [vmem:[#allocation5 + $0x570] sm:$0xff]
    %v357 = vld [vmem:[#allocation5 + $0x578] sm:$0xff]
    %v358 = vld [vmem:[#allocation5 + $0x580] sm:$0xff]
    %v359 = vld [vmem:[#allocation5 + $0x588] sm:$0xff]
    %v360 = vld [vmem:[#allocation5 + $0x590] sm:$0xff]
    %v361 = vld [vmem:[#allocation5 + $0x598] sm:$0xff]
    %v362 = vld [vmem:[#allocation5 + $0x5a0] sm:$0xff]
    %v363 = vld [vmem:[#allocation5 + $0x5a8] sm:$0xff]
    %v364 = vld [vmem:[#allocation5 + $0x5b0] sm:$0xff]
    %v365 = vld [vmem:[#allocation5 + $0x5b8] sm:$0xff]
    %v366 = vld [vmem:[#allocation5 + $0x5c0] sm:$0xff]
    %v367 = vld [vmem:[#allocation5 + $0x5c8] sm:$0xff]
    %v368 = vld [vmem:[#allocation5 + $0x5d0] sm:$0xff]
    %v369 = vld [vmem:[#allocation5 + $0x5d8] sm:$0xff]
    %v370 = vld [vmem:[#allocation5 + $0x5e0] sm:$0xff]
    %v371 = vld [vmem:[#allocation5 + $0x5e8] sm:$0xff]
    %v372 = vld [vmem:[#allocation5 + $0x5f0] sm:$0xff]
    %v373 = vld [vmem:[#allocation5 + $0x5f8] sm:$0xff]
    %v374 = vld [vmem:[#allocation5 + $0x600] sm:$0xff]
    %v375 = vld [vmem:[#allocation5 + $0x608] sm:$0xff]
    %v376 = vld [vmem:[#allocation5 + $0x610] sm:$0xff]
    %v377 = vld [vmem:[#allocation5 + $0x618] sm:$0xff]
    %v378 = vld [vmem:[#allocation5 + $0x620] sm:$0xff]
    %v379 = vld [vmem:[#allocation5 + $0x628] sm:$0xff]
    %v380 = vld [vmem:[#allocation5 + $0x630] sm:$0xff]
    %v381 = vld [vmem:[#allocation5 + $0x638] sm:$0xff]
    %v382 = vld [vmem:[#allocation5 + $0x640] sm:$0xff]
    %v383 = vld [vmem:[#allocation5 + $0x648] sm:$0xff]
    %v384 = vld [vmem:[#allocation5 + $0x650] sm:$0xff]
    %v385 = vld [vmem:[#allocation5 + $0x658] sm:$0xff]
    %v386 = vld [vmem:[#allocation5 + $0x660] sm:$0xff]
    %v387 = vld [vmem:[#allocation5 + $0x668] sm:$0xff]
    %v388 = vld [vmem:[#allocation5 + $0x670] sm:$0xff]
    %v389 = vld [vmem:[#allocation5 + $0x678] sm:$0xff]
    %v390 = vld [vmem:[#allocation5 + $0x680] sm:$0xff]
    %v391 = vld [vmem:[#allocation5 + $0x688] sm:$0xff]
    %v392 = vld [vmem:[#allocation5 + $0x690] sm:$0xff]
    %v393 = vld [vmem:[#allocation5 + $0x698] sm:$0xff]
    %v394 = vld [vmem:[#allocation5 + $0x6a0] sm:$0xff]
    %v395 = vld [vmem:[#allocation5 + $0x6a8] sm:$0xff]
    %v396 = vld [vmem:[#allocation5 + $0x6b0] sm:$0xff]
    %v397 = vld [vmem:[#allocation5 + $0x6b8] sm:$0xff]
    %v398 = vld [vmem:[#allocation5 + $0x6c0] sm:$0xff]
    %v399 = vld [vmem:[#allocation5 + $0x6c8] sm:$0xff]
    %v400 = vld [vmem:[#allocation5 + $0x6d0] sm:$0xff]
    %v401 = vld [vmem:[#allocation5 + $0x6d8] sm:$0xff]
    %v402 = vld [vmem:[#allocation5 + $0x6e0] sm:$0xff]
    %v403 = vld [vmem:[#allocation5 + $0x6e8] sm:$0xff]
    %v404 = vld [vmem:[#allocation5 + $0x6f0] sm:$0xff]
    %v405 = vld [vmem:[#allocation5 + $0x6f8] sm:$0xff]
    %v406 = vld [vmem:[#allocation5 + $0x700] sm:$0xff]
    %v407 = vld [vmem:[#allocation5 + $0x708] sm:$0xff]
    %v408 = vld [vmem:[#allocation5 + $0x710] sm:$0xff]
    %v409 = vld [vmem:[#allocation5 + $0x718] sm:$0xff]
    %v410 = vld [vmem:[#allocation5 + $0x720] sm:$0xff]
    %v411 = vld [vmem:[#allocation5 + $0x728] sm:$0xff]
    %v412 = vld [vmem:[#allocation5 + $0x730] sm:$0xff]
    %v413 = vld [vmem:[#allocation5 + $0x738] sm:$0xff]
    %v414 = vld [vmem:[#allocation5 + $0x740] sm:$0xff]
    %v415 = vld [vmem:[#allocation5 + $0x748] sm:$0xff]
    %v416 = vld [vmem:[#allocation5 + $0x750] sm:$0xff]
    %v417 = vld [vmem:[#allocation5 + $0x758] sm:$0xff]
    %v418 = vld [vmem:[#allocation5 + $0x760] sm:$0xff]
    %v419 = vld [vmem:[#allocation5 + $0x768] sm:$0xff]
    %v420 = vld [vmem:[#allocation5 + $0x770] sm:$0xff]
    %v421 = vld [vmem:[#allocation5 + $0x778] sm:$0xff]
    %v422 = vld [vmem:[#allocation5 + $0x780] sm:$0xff]
    %v423 = vld [vmem:[#allocation5 + $0x788] sm:$0xff]
    %v424 = vld [vmem:[#allocation5 + $0x790] sm:$0xff]
    %v425 = vld [vmem:[#allocation5 + $0x798] sm:$0xff]
    %v426 = vld [vmem:[#allocation5 + $0x7a0] sm:$0xff]
    %v427 = vld [vmem:[#allocation5 + $0x7a8] sm:$0xff]
    %v428 = vld [vmem:[#allocation5 + $0x7b0] sm:$0xff]
    %v429 = vld [vmem:[#allocation5 + $0x7b8] sm:$0xff]
    %v430 = vld [vmem:[#allocation5 + $0x7c0] sm:$0xff]
    %v431 = vld [vmem:[#allocation5 + $0x7c8] sm:$0xff]
    %v432 = vld [vmem:[#allocation5 + $0x7d0] sm:$0xff]
    %v433 = vld [vmem:[#allocation5 + $0x7d8] sm:$0xff]
    %v434 = vld [vmem:[#allocation5 + $0x7e0] sm:$0xff]
    %v435 = vld [vmem:[#allocation5 + $0x7e8] sm:$0xff]
    %v436 = vld [vmem:[#allocation5 + $0x7f0] sm:$0xff]
    %v437 = vld [vmem:[#allocation5 + $0x7f8] sm:$0xff]
    %v438 = vld [vmem:[#allocation5 + $0x800] sm:$0xff]
    %v439 = vld [vmem:[#allocation5 + $0x808] sm:$0xff]
    %v440 = vld [vmem:[#allocation5 + $0x810] sm:$0xff]
    %v441 = vld [vmem:[#allocation5 + $0x818] sm:$0xff]
    %v442 = vld [vmem:[#allocation5 + $0x820] sm:$0xff]
    %v443 = vld [vmem:[#allocation5 + $0x828] sm:$0xff]
    %v444 = vld [vmem:[#allocation5 + $0x830] sm:$0xff]
    %v445 = vld [vmem:[#allocation5 + $0x838] sm:$0xff]
    %v446 = vld [vmem:[#allocation5 + $0x840] sm:$0xff]
    %v447 = vld [vmem:[#allocation5 + $0x848] sm:$0xff]
    %v448 = vld [vmem:[#allocation5 + $0x850] sm:$0xff]
    %v449 = vld [vmem:[#allocation5 + $0x858] sm:$0xff]
    %v450 = vld [vmem:[#allocation5 + $0x860] sm:$0xff]
    %v451 = vld [vmem:[#allocation5 + $0x868] sm:$0xff]
    %v452 = vld [vmem:[#allocation7] sm:$0xf]
    %v454 = vperm.slane %v452, 0
    %v455 = vperm.slane %v452, 1
    %v456 = vperm.slane %v452, 2
    %v457 = vperm.slane %v452, 3
    %v732 = vunpack.c.l.b16 %v182
    %v733 = vunpack.c.h.b16 %v182
    %v734 = vunpack.c.l.b16 %v183
    %v735 = vunpack.c.h.b16 %v183
    %v736 = vunpack.c.l.b16 %v184
    %v737 = vunpack.c.h.b16 %v184
    %v738 = vunpack.c.l.b16 %v185
    %v739 = vunpack.c.h.b16 %v185
    %v740 = vunpack.c.l.b16 %v186
    %v741 = vunpack.c.h.b16 %v186
    %v742 = vunpack.c.l.b16 %v187
    %v743 = vunpack.c.h.b16 %v187
    %v744 = vunpack.c.l.b16 %v188
    %v745 = vunpack.c.h.b16 %v188
    %v746 = vunpack.c.l.b16 %v189
    %v747 = vunpack.c.h.b16 %v189
    %v748 = vunpack.c.l.b16 %v190
    %v749 = vunpack.c.h.b16 %v190
    %v750 = vunpack.c.l.b16 %v191
    %v751 = vunpack.c.h.b16 %v191
    %v752 = vunpack.c.l.b16 %v192
    %v753 = vunpack.c.h.b16 %v192
    %v754 = vunpack.c.l.b16 %v193
    %v755 = vunpack.c.h.b16 %v193
    %v756 = vunpack.c.l.b16 %v194
    %v757 = vunpack.c.h.b16 %v194
    %v758 = vunpack.c.l.b16 %v195
    %v759 = vunpack.c.h.b16 %v195
    %v760 = vunpack.c.l.b16 %v196
    %v761 = vunpack.c.h.b16 %v196
    %v762 = vunpack.c.l.b16 %v197
    %v763 = vunpack.c.h.b16 %v197
    %v764 = vunpack.c.l.b16 %v198
    %v765 = vunpack.c.h.b16 %v198
    %v766 = vunpack.c.l.b16 %v199
    %v767 = vunpack.c.h.b16 %v199
    %v768 = vunpack.c.l.b16 %v200
    %v769 = vunpack.c.h.b16 %v200
    %v770 = vunpack.c.l.b16 %v201
    %v771 = vunpack.c.h.b16 %v201
    %v772 = vunpack.c.l.b16 %v202
    %v773 = vunpack.c.h.b16 %v202
    %v774 = vunpack.c.l.b16 %v203
    %v775 = vunpack.c.h.b16 %v203
    %v776 = vunpack.c.l.b16 %v204
    %v777 = vunpack.c.h.b16 %v204
    %v778 = vunpack.c.l.b16 %v205
    %v779 = vunpack.c.h.b16 %v205
    %v780 = vunpack.c.l.b16 %v206
    %v781 = vunpack.c.h.b16 %v206
    %v782 = vunpack.c.l.b16 %v207
    %v783 = vunpack.c.h.b16 %v207
    %v784 = vunpack.c.l.b16 %v208
    %v785 = vunpack.c.h.b16 %v208
    %v786 = vunpack.c.l.b16 %v209
    %v787 = vunpack.c.h.b16 %v209
    %v788 = vunpack.c.l.b16 %v210
    %v789 = vunpack.c.h.b16 %v210
    %v790 = vunpack.c.l.b16 %v211
    %v791 = vunpack.c.h.b16 %v211
    %v792 = vunpack.c.l.b16 %v212
    %v793 = vunpack.c.h.b16 %v212
    %v794 = vunpack.c.l.b16 %v213
    %v795 = vunpack.c.h.b16 %v213
    %v796 = vunpack.c.l.b16 %v214
    %v797 = vunpack.c.h.b16 %v214
    %v798 = vunpack.c.l.b16 %v215
    %v799 = vunpack.c.h.b16 %v215
    %v800 = vunpack.c.l.b16 %v216
    %v801 = vunpack.c.h.b16 %v216
    %v802 = vunpack.c.l.b16 %v217
    %v803 = vunpack.c.h.b16 %v217
    %v804 = vunpack.c.l.b16 %v218
    %v805 = vunpack.c.h.b16 %v218
    %v806 = vunpack.c.l.b16 %v219
    %v807 = vunpack.c.h.b16 %v219
    %v808 = vunpack.c.l.b16 %v220
    %v809 = vunpack.c.h.b16 %v220
    %v810 = vunpack.c.l.b16 %v221
    %v811 = vunpack.c.h.b16 %v221
    %v812 = vunpack.c.l.b16 %v222
    %v813 = vunpack.c.h.b16 %v222
    %v814 = vunpack.c.l.b16 %v223
    %v815 = vunpack.c.h.b16 %v223
    %v816 = vunpack.c.l.b16 %v224
    %v817 = vunpack.c.h.b16 %v224
    %v818 = vunpack.c.l.b16 %v225
    %v819 = vunpack.c.h.b16 %v225
    %v820 = vunpack.c.l.b16 %v226
    %v821 = vunpack.c.h.b16 %v226
    %v822 = vunpack.c.l.b16 %v227
    %v823 = vunpack.c.h.b16 %v227
    %v824 = vunpack.c.l.b16 %v228
    %v825 = vunpack.c.h.b16 %v228
    %v826 = vunpack.c.l.b16 %v229
    %v827 = vunpack.c.h.b16 %v229
    %v828 = vunpack.c.l.b16 %v230
    %v829 = vunpack.c.h.b16 %v230
    %v830 = vunpack.c.l.b16 %v231
    %v831 = vunpack.c.h.b16 %v231
    %v832 = vunpack.c.l.b16 %v232
    %v833 = vunpack.c.h.b16 %v232
    %v834 = vunpack.c.l.b16 %v233
    %v835 = vunpack.c.h.b16 %v233
    %v836 = vunpack.c.l.b16 %v234
    %v837 = vunpack.c.h.b16 %v234
    %v838 = vunpack.c.l.b16 %v235
    %v839 = vunpack.c.h.b16 %v235
    %v840 = vunpack.c.l.b16 %v236
    %v841 = vunpack.c.h.b16 %v236
    %v842 = vunpack.c.l.b16 %v237
    %v843 = vunpack.c.h.b16 %v237
    %v844 = vunpack.c.l.b16 %v238
    %v845 = vunpack.c.h.b16 %v238
    %v846 = vunpack.c.l.b16 %v239
    %v847 = vunpack.c.h.b16 %v239
    %v848 = vunpack.c.l.b16 %v240
    %v849 = vunpack.c.h.b16 %v240
    %v850 = vunpack.c.l.b16 %v241
    %v851 = vunpack.c.h.b16 %v241
    %v852 = vunpack.c.l.b16 %v242
    %v853 = vunpack.c.h.b16 %v242
    %v854 = vunpack.c.l.b16 %v243
    %v855 = vunpack.c.h.b16 %v243
    %v856 = vunpack.c.l.b16 %v244
    %v857 = vunpack.c.h.b16 %v244
    %v858 = vunpack.c.l.b16 %v245
    %v859 = vunpack.c.h.b16 %v245
    %v860 = vunpack.c.l.b16 %v246
    %v861 = vunpack.c.h.b16 %v246
    %v862 = vunpack.c.l.b16 %v247
    %v863 = vunpack.c.h.b16 %v247
    %v864 = vunpack.c.l.b16 %v248
    %v865 = vunpack.c.h.b16 %v248
    %v866 = vunpack.c.l.b16 %v249
    %v867 = vunpack.c.h.b16 %v249
    %v868 = vunpack.c.l.b16 %v250
    %v869 = vunpack.c.h.b16 %v250
    %v870 = vunpack.c.l.b16 %v251
    %v871 = vunpack.c.h.b16 %v251
    %v872 = vunpack.c.l.b16 %v252
    %v873 = vunpack.c.h.b16 %v252
    %v874 = vunpack.c.l.b16 %v253
    %v875 = vunpack.c.h.b16 %v253
    %v876 = vunpack.c.l.b16 %v254
    %v877 = vunpack.c.h.b16 %v254
    %v878 = vunpack.c.l.b16 %v255
    %v879 = vunpack.c.h.b16 %v255
    %v880 = vunpack.c.l.b16 %v256
    %v881 = vunpack.c.h.b16 %v256
    %v882 = vunpack.c.l.b16 %v257
    %v883 = vunpack.c.h.b16 %v257
    %v884 = vunpack.c.l.b16 %v258
    %v885 = vunpack.c.h.b16 %v258
    %v886 = vunpack.c.l.b16 %v259
    %v887 = vunpack.c.h.b16 %v259
    %v888 = vunpack.c.l.b16 %v260
    %v889 = vunpack.c.h.b16 %v260
    %v890 = vunpack.c.l.b16 %v261
    %v891 = vunpack.c.h.b16 %v261
    %v892 = vunpack.c.l.b16 %v262
    %v893 = vunpack.c.h.b16 %v262
    %v894 = vunpack.c.l.b16 %v263
    %v895 = vunpack.c.h.b16 %v263
    %v896 = vunpack.c.l.b16 %v264
    %v897 = vunpack.c.h.b16 %v264
    %v898 = vunpack.c.l.b16 %v265
    %v899 = vunpack.c.h.b16 %v265
    %v900 = vunpack.c.l.b16 %v266
    %v901 = vunpack.c.h.b16 %v266
    %v902 = vunpack.c.l.b16 %v267
    %v903 = vunpack.c.h.b16 %v267
    %v904 = vunpack.c.l.b16 %v268
    %v905 = vunpack.c.h.b16 %v268
    %v906 = vunpack.c.l.b16 %v269
    %v907 = vunpack.c.h.b16 %v269
    %v908 = vunpack.c.l.b16 %v270
    %v909 = vunpack.c.h.b16 %v270
    %v910 = vunpack.c.l.b16 %v271
    %v911 = vunpack.c.h.b16 %v271
    %v912 = vunpack.c.l.b16 %v272
    %v913 = vunpack.c.h.b16 %v272
    %v914 = vunpack.c.l.b16 %v273
    %v915 = vunpack.c.h.b16 %v273
    %v916 = vunpack.c.l.b16 %v274
    %v917 = vunpack.c.h.b16 %v274
    %v918 = vunpack.c.l.b16 %v275
    %v919 = vunpack.c.h.b16 %v275
    %v920 = vunpack.c.l.b16 %v276
    %v921 = vunpack.c.h.b16 %v276
    %v922 = vunpack.c.l.b16 %v277
    %v923 = vunpack.c.h.b16 %v277
    %v924 = vunpack.c.l.b16 %v278
    %v925 = vunpack.c.h.b16 %v278
    %v926 = vunpack.c.l.b16 %v279
    %v927 = vunpack.c.h.b16 %v279
    %v928 = vunpack.c.l.b16 %v280
    %v929 = vunpack.c.h.b16 %v280
    %v930 = vunpack.c.l.b16 %v281
    %v931 = vunpack.c.h.b16 %v281
    %v932 = vunpack.c.l.b16 %v282
    %v933 = vunpack.c.h.b16 %v282
    %v934 = vunpack.c.l.b16 %v283
    %v935 = vunpack.c.h.b16 %v283
    %v936 = vunpack.c.l.b16 %v284
    %v937 = vunpack.c.h.b16 %v284
    %v938 = vunpack.c.l.b16 %v285
    %v939 = vunpack.c.h.b16 %v285
    %v940 = vunpack.c.l.b16 %v286
    %v941 = vunpack.c.h.b16 %v286
    %v942 = vunpack.c.l.b16 %v287
    %v943 = vunpack.c.h.b16 %v287
    %v944 = vunpack.c.l.b16 %v288
    %v945 = vunpack.c.h.b16 %v288
    %v946 = vunpack.c.l.b16 %v289
    %v947 = vunpack.c.h.b16 %v289
    %v948 = vunpack.c.l.b16 %v290
    %v949 = vunpack.c.h.b16 %v290
    %v950 = vunpack.c.l.b16 %v291
    %v951 = vunpack.c.h.b16 %v291
    %v952 = vunpack.c.l.b16 %v292
    %v953 = vunpack.c.h.b16 %v292
    %v954 = vunpack.c.l.b16 %v293
    %v955 = vunpack.c.h.b16 %v293
    %v956 = vunpack.c.l.b16 %v294
    %v957 = vunpack.c.h.b16 %v294
    %v958 = vunpack.c.l.b16 %v295
    %v959 = vunpack.c.h.b16 %v295
    %v960 = vunpack.c.l.b16 %v296
    %v961 = vunpack.c.h.b16 %v296
    %v962 = vunpack.c.l.b16 %v297
    %v963 = vunpack.c.h.b16 %v297
    %v964 = vunpack.c.l.b16 %v298
    %v965 = vunpack.c.h.b16 %v298
    %v966 = vunpack.c.l.b16 %v299
    %v967 = vunpack.c.h.b16 %v299
    %v968 = vunpack.c.l.b16 %v300
    %v969 = vunpack.c.h.b16 %v300
    %v970 = vunpack.c.l.b16 %v301
    %v971 = vunpack.c.h.b16 %v301
    %v972 = vunpack.c.l.b16 %v302
    %v973 = vunpack.c.h.b16 %v302
    %v974 = vunpack.c.l.b16 %v303
    %v975 = vunpack.c.h.b16 %v303
    %v976 = vunpack.c.l.b16 %v304
    %v977 = vunpack.c.h.b16 %v304
    %v978 = vunpack.c.l.b16 %v305
    %v979 = vunpack.c.h.b16 %v305
    %v980 = vunpack.c.l.b16 %v306
    %v981 = vunpack.c.h.b16 %v306
    %v982 = vunpack.c.l.b16 %v307
    %v983 = vunpack.c.h.b16 %v307
    %v984 = vunpack.c.l.b16 %v308
    %v985 = vunpack.c.h.b16 %v308
    %v986 = vunpack.c.l.b16 %v309
    %v987 = vunpack.c.h.b16 %v309
    %v988 = vunpack.c.l.b16 %v310
    %v989 = vunpack.c.h.b16 %v310
    %v990 = vunpack.c.l.b16 %v311
    %v991 = vunpack.c.h.b16 %v311
    %v992 = vunpack.c.l.b16 %v312
    %v993 = vunpack.c.h.b16 %v312
    %v994 = vunpack.c.l.b16 %v313
    %v995 = vunpack.c.h.b16 %v313
    %v996 = vunpack.c.l.b16 %v314
    %v997 = vunpack.c.h.b16 %v314
    %v998 = vunpack.c.l.b16 %v315
    %v999 = vunpack.c.h.b16 %v315
    %v1000 = vunpack.c.l.b16 %v316
    %v1001 = vunpack.c.h.b16 %v316
    %v1002 = vunpack.c.l.b16 %v317
    %v1003 = vunpack.c.h.b16 %v317
    %v1004 = vunpack.c.l.b16 %v318
    %v1005 = vunpack.c.h.b16 %v318
    %v1006 = vunpack.c.l.b16 %v319
    %v1007 = vunpack.c.h.b16 %v319
    %v1008 = vunpack.c.l.b16 %v320
    %v1009 = vunpack.c.h.b16 %v320
    %v1010 = vunpack.c.l.b16 %v321
    %v1011 = vunpack.c.h.b16 %v321
    %v1012 = vunpack.c.l.b16 %v322
    %v1013 = vunpack.c.h.b16 %v322
    %v1014 = vunpack.c.l.b16 %v323
    %v1015 = vunpack.c.h.b16 %v323
    %v1016 = vunpack.c.l.b16 %v324
    %v1017 = vunpack.c.h.b16 %v324
    %v1018 = vunpack.c.l.b16 %v325
    %v1019 = vunpack.c.h.b16 %v325
    %v1020 = vunpack.c.l.b16 %v326
    %v1021 = vunpack.c.h.b16 %v326
    %v1022 = vunpack.c.l.b16 %v327
    %v1023 = vunpack.c.h.b16 %v327
    %v1024 = vunpack.c.l.b16 %v328
    %v1025 = vunpack.c.h.b16 %v328
    %v1026 = vunpack.c.l.b16 %v329
    %v1027 = vunpack.c.h.b16 %v329
    %v1028 = vunpack.c.l.b16 %v330
    %v1029 = vunpack.c.h.b16 %v330
    %v1030 = vunpack.c.l.b16 %v331
    %v1031 = vunpack.c.h.b16 %v331
    %v1032 = vunpack.c.l.b16 %v332
    %v1033 = vunpack.c.h.b16 %v332
    %v1034 = vunpack.c.l.b16 %v333
    %v1035 = vunpack.c.h.b16 %v333
    %v1036 = vunpack.c.l.b16 %v334
    %v1037 = vunpack.c.h.b16 %v334
    %v1038 = vunpack.c.l.b16 %v335
    %v1039 = vunpack.c.h.b16 %v335
    %v1040 = vunpack.c.l.b16 %v336
    %v1041 = vunpack.c.h.b16 %v336
    %v1042 = vunpack.c.l.b16 %v337
    %v1043 = vunpack.c.h.b16 %v337
    %v1044 = vunpack.c.l.b16 %v338
    %v1045 = vunpack.c.h.b16 %v338
    %v1046 = vunpack.c.l.b16 %v339
    %v1047 = vunpack.c.h.b16 %v339
    %v1048 = vunpack.c.l.b16 %v340
    %v1049 = vunpack.c.h.b16 %v340
    %v1050 = vunpack.c.l.b16 %v341
    %v1051 = vunpack.c.h.b16 %v341
    %v1052 = vunpack.c.l.b16 %v342
    %v1053 = vunpack.c.h.b16 %v342
    %v1054 = vunpack.c.l.b16 %v343
    %v1055 = vunpack.c.h.b16 %v343
    %v1056 = vunpack.c.l.b16 %v344
    %v1057 = vunpack.c.h.b16 %v344
    %v1058 = vunpack.c.l.b16 %v345
    %v1059 = vunpack.c.h.b16 %v345
    %v1060 = vunpack.c.l.b16 %v346
    %v1061 = vunpack.c.h.b16 %v346
    %v1062 = vunpack.c.l.b16 %v347
    %v1063 = vunpack.c.h.b16 %v347
    %v1064 = vunpack.c.l.b16 %v348
    %v1065 = vunpack.c.h.b16 %v348
    %v1066 = vunpack.c.l.b16 %v349
    %v1067 = vunpack.c.h.b16 %v349
    %v1068 = vunpack.c.l.b16 %v350
    %v1069 = vunpack.c.h.b16 %v350
    %v1070 = vunpack.c.l.b16 %v351
    %v1071 = vunpack.c.h.b16 %v351
    %v1072 = vunpack.c.l.b16 %v352
    %v1073 = vunpack.c.h.b16 %v352
    %v1074 = vunpack.c.l.b16 %v353
    %v1075 = vunpack.c.h.b16 %v353
    %v1076 = vunpack.c.l.b16 %v354
    %v1077 = vunpack.c.h.b16 %v354
    %v1078 = vunpack.c.l.b16 %v355
    %v1079 = vunpack.c.h.b16 %v355
    %v1080 = vunpack.c.l.b16 %v356
    %v1081 = vunpack.c.h.b16 %v356
    %v1082 = vunpack.c.l.b16 %v357
    %v1083 = vunpack.c.h.b16 %v357
    %v1084 = vunpack.c.l.b16 %v358
    %v1085 = vunpack.c.h.b16 %v358
    %v1086 = vunpack.c.l.b16 %v359
    %v1087 = vunpack.c.h.b16 %v359
    %v1088 = vunpack.c.l.b16 %v360
    %v1089 = vunpack.c.h.b16 %v360
    %v1090 = vunpack.c.l.b16 %v361
    %v1091 = vunpack.c.h.b16 %v361
    %v1092 = vunpack.c.l.b16 %v362
    %v1093 = vunpack.c.h.b16 %v362
    %v1094 = vunpack.c.l.b16 %v363
    %v1095 = vunpack.c.h.b16 %v363
    %v1096 = vunpack.c.l.b16 %v364
    %v1097 = vunpack.c.h.b16 %v364
    %v1098 = vunpack.c.l.b16 %v365
    %v1099 = vunpack.c.h.b16 %v365
    %v1100 = vunpack.c.l.b16 %v366
    %v1101 = vunpack.c.h.b16 %v366
    %v1102 = vunpack.c.l.b16 %v367
    %v1103 = vunpack.c.h.b16 %v367
    %v1104 = vunpack.c.l.b16 %v368
    %v1105 = vunpack.c.h.b16 %v368
    %v1106 = vunpack.c.l.b16 %v369
    %v1107 = vunpack.c.h.b16 %v369
    %v1108 = vunpack.c.l.b16 %v370
    %v1109 = vunpack.c.h.b16 %v370
    %v1110 = vunpack.c.l.b16 %v371
    %v1111 = vunpack.c.h.b16 %v371
    %v1112 = vunpack.c.l.b16 %v372
    %v1113 = vunpack.c.h.b16 %v372
    %v1114 = vunpack.c.l.b16 %v373
    %v1115 = vunpack.c.h.b16 %v373
    %v1116 = vunpack.c.l.b16 %v374
    %v1117 = vunpack.c.h.b16 %v374
    %v1118 = vunpack.c.l.b16 %v375
    %v1119 = vunpack.c.h.b16 %v375
    %v1120 = vunpack.c.l.b16 %v376
    %v1121 = vunpack.c.h.b16 %v376
    %v1122 = vunpack.c.l.b16 %v377
    %v1123 = vunpack.c.h.b16 %v377
    %v1124 = vunpack.c.l.b16 %v378
    %v1125 = vunpack.c.h.b16 %v378
    %v1126 = vunpack.c.l.b16 %v379
    %v1127 = vunpack.c.h.b16 %v379
    %v1128 = vunpack.c.l.b16 %v380
    %v1129 = vunpack.c.h.b16 %v380
    %v1130 = vunpack.c.l.b16 %v381
    %v1131 = vunpack.c.h.b16 %v381
    %v1132 = vunpack.c.l.b16 %v382
    %v1133 = vunpack.c.h.b16 %v382
    %v1134 = vunpack.c.l.b16 %v383
    %v1135 = vunpack.c.h.b16 %v383
    %v1136 = vunpack.c.l.b16 %v384
    %v1137 = vunpack.c.h.b16 %v384
    %v1138 = vunpack.c.l.b16 %v385
    %v1139 = vunpack.c.h.b16 %v385
    %v1140 = vunpack.c.l.b16 %v386
    %v1141 = vunpack.c.h.b16 %v386
    %v1142 = vunpack.c.l.b16 %v387
    %v1143 = vunpack.c.h.b16 %v387
    %v1144 = vunpack.c.l.b16 %v388
    %v1145 = vunpack.c.h.b16 %v388
    %v1146 = vunpack.c.l.b16 %v389
    %v1147 = vunpack.c.h.b16 %v389
    %v1148 = vunpack.c.l.b16 %v390
    %v1149 = vunpack.c.h.b16 %v390
    %v1150 = vunpack.c.l.b16 %v391
    %v1151 = vunpack.c.h.b16 %v391
    %v1152 = vunpack.c.l.b16 %v392
    %v1153 = vunpack.c.h.b16 %v392
    %v1154 = vunpack.c.l.b16 %v393
    %v1155 = vunpack.c.h.b16 %v393
    %v1156 = vunpack.c.l.b16 %v394
    %v1157 = vunpack.c.h.b16 %v394
    %v1158 = vunpack.c.l.b16 %v395
    %v1159 = vunpack.c.h.b16 %v395
    %v1160 = vunpack.c.l.b16 %v396
    %v1161 = vunpack.c.h.b16 %v396
    %v1162 = vunpack.c.l.b16 %v397
    %v1163 = vunpack.c.h.b16 %v397
    %v1164 = vunpack.c.l.b16 %v398
    %v1165 = vunpack.c.h.b16 %v398
    %v1166 = vunpack.c.l.b16 %v399
    %v1167 = vunpack.c.h.b16 %v399
    %v1168 = vunpack.c.l.b16 %v400
    %v1169 = vunpack.c.h.b16 %v400
    %v1170 = vunpack.c.l.b16 %v401
    %v1171 = vunpack.c.h.b16 %v401
    %v1172 = vunpack.c.l.b16 %v402
    %v1173 = vunpack.c.h.b16 %v402
    %v1174 = vunpack.c.l.b16 %v403
    %v1175 = vunpack.c.h.b16 %v403
    %v1176 = vunpack.c.l.b16 %v404
    %v1177 = vunpack.c.h.b16 %v404
    %v1178 = vunpack.c.l.b16 %v405
    %v1179 = vunpack.c.h.b16 %v405
    %v1180 = vunpack.c.l.b16 %v406
    %v1181 = vunpack.c.h.b16 %v406
    %v1182 = vunpack.c.l.b16 %v407
    %v1183 = vunpack.c.h.b16 %v407
    %v1184 = vunpack.c.l.b16 %v408
    %v1185 = vunpack.c.h.b16 %v408
    %v1186 = vunpack.c.l.b16 %v409
    %v1187 = vunpack.c.h.b16 %v409
    %v1188 = vunpack.c.l.b16 %v410
    %v1189 = vunpack.c.h.b16 %v410
    %v1190 = vunpack.c.l.b16 %v411
    %v1191 = vunpack.c.h.b16 %v411
    %v1192 = vunpack.c.l.b16 %v412
    %v1193 = vunpack.c.h.b16 %v412
    %v1194 = vunpack.c.l.b16 %v413
    %v1195 = vunpack.c.h.b16 %v413
    %v1196 = vunpack.c.l.b16 %v414
    %v1197 = vunpack.c.h.b16 %v414
    %v1198 = vunpack.c.l.b16 %v415
    %v1199 = vunpack.c.h.b16 %v415
    %v1200 = vunpack.c.l.b16 %v416
    %v1201 = vunpack.c.h.b16 %v416
    %v1202 = vunpack.c.l.b16 %v417
    %v1203 = vunpack.c.h.b16 %v417
    %v1204 = vunpack.c.l.b16 %v418
    %v1205 = vunpack.c.h.b16 %v418
    %v1206 = vunpack.c.l.b16 %v419
    %v1207 = vunpack.c.h.b16 %v419
    %v1208 = vunpack.c.l.b16 %v420
    %v1209 = vunpack.c.h.b16 %v420
    %v1210 = vunpack.c.l.b16 %v421
    %v1211 = vunpack.c.h.b16 %v421
    %v1212 = vunpack.c.l.b16 %v422
    %v1213 = vunpack.c.h.b16 %v422
    %v1214 = vunpack.c.l.b16 %v423
    %v1215 = vunpack.c.h.b16 %v423
    %v1216 = vunpack.c.l.b16 %v424
    %v1217 = vunpack.c.h.b16 %v424
    %v1218 = vunpack.c.l.b16 %v425
    %v1219 = vunpack.c.h.b16 %v425
    %v1220 = vunpack.c.l.b16 %v426
    %v1221 = vunpack.c.h.b16 %v426
    %v1222 = vunpack.c.l.b16 %v427
    %v1223 = vunpack.c.h.b16 %v427
    %v1224 = vunpack.c.l.b16 %v428
    %v1225 = vunpack.c.h.b16 %v428
    %v1226 = vunpack.c.l.b16 %v429
    %v1227 = vunpack.c.h.b16 %v429
    %v1228 = vunpack.c.l.b16 %v430
    %v1229 = vunpack.c.h.b16 %v430
    %v1230 = vunpack.c.l.b16 %v431
    %v1231 = vunpack.c.h.b16 %v431
    %v1232 = vunpack.c.l.b16 %v432
    %v1233 = vunpack.c.h.b16 %v432
    %v1234 = vunpack.c.l.b16 %v433
    %v1235 = vunpack.c.h.b16 %v433
    %v1236 = vunpack.c.l.b16 %v434
    %v1237 = vunpack.c.h.b16 %v434
    %v1238 = vunpack.c.l.b16 %v435
    %v1239 = vunpack.c.h.b16 %v435
    %v1240 = vunpack.c.l.b16 %v436
    %v1241 = vunpack.c.h.b16 %v436
    %v1242 = vunpack.c.l.b16 %v437
    %v1243 = vunpack.c.h.b16 %v437
    %v1244 = vunpack.c.l.b16 %v438
    %v1245 = vunpack.c.h.b16 %v438
    %v1246 = vunpack.c.l.b16 %v439
    %v1247 = vunpack.c.h.b16 %v439
    %v1248 = vunpack.c.l.b16 %v440
    %v1249 = vunpack.c.h.b16 %v440
    %v1250 = vunpack.c.l.b16 %v441
    %v1251 = vunpack.c.h.b16 %v441
    %v1252 = vunpack.c.l.b16 %v442
    %v1253 = vunpack.c.h.b16 %v442
    %v1254 = vunpack.c.l.b16 %v443
    %v1255 = vunpack.c.h.b16 %v443
    %v1256 = vunpack.c.l.b16 %v444
    %v1257 = vunpack.c.h.b16 %v444
    %v1258 = vunpack.c.l.b16 %v445
    %v1259 = vunpack.c.h.b16 %v445
    %v1260 = vunpack.c.l.b16 %v446
    %v1261 = vunpack.c.h.b16 %v446
    %v1262 = vunpack.c.l.b16 %v447
    %v1263 = vunpack.c.h.b16 %v447
    %v1264 = vunpack.c.l.b16 %v448
    %v1265 = vunpack.c.h.b16 %v448
    %v1266 = vunpack.c.l.b16 %v449
    %v1267 = vunpack.c.h.b16 %v449
    %v1268 = vunpack.c.l.b16 %v450
    %v1269 = vunpack.c.h.b16 %v450
    %v1270 = vunpack.c.l.b16 %v451
    %v1271 = vunpack.c.h.b16 %v451
    %v1272 = vpack.c.b16 %v736, %v732
    %v1273 = vpack.c.b16 %v737, %v733
    %v1274 = vpack.c.b16 %v738, %v734
    %v1275 = vpack.c.b16 %v739, %v735
    %v1276 = vpack.c.b16 %v744, %v740
    %v1277 = vpack.c.b16 %v745, %v741
    %v1278 = vpack.c.b16 %v746, %v742
    %v1279 = vpack.c.b16 %v747, %v743
    %v1280 = vpack.c.b16 %v752, %v748
    %v1281 = vpack.c.b16 %v753, %v749
    %v1282 = vpack.c.b16 %v754, %v750
    %v1283 = vpack.c.b16 %v755, %v751
    %v1284 = vpack.c.b16 %v760, %v756
    %v1285 = vpack.c.b16 %v761, %v757
    %v1286 = vpack.c.b16 %v762, %v758
    %v1287 = vpack.c.b16 %v763, %v759
    %v1288 = vpack.c.b16 %v768, %v764
    %v1289 = vpack.c.b16 %v769, %v765
    %v1290 = vpack.c.b16 %v770, %v766
    %v1291 = vpack.c.b16 %v771, %v767
    %v1292 = vpack.c.b16 %v776, %v772
    %v1293 = vpack.c.b16 %v777, %v773
    %v1294 = vpack.c.b16 %v778, %v774
    %v1295 = vpack.c.b16 %v779, %v775
    %v1296 = vpack.c.b16 %v784, %v780
    %v1297 = vpack.c.b16 %v785, %v781
    %v1298 = vpack.c.b16 %v786, %v782
    %v1299 = vpack.c.b16 %v787, %v783
    %v1300 = vpack.c.b16 %v792, %v788
    %v1301 = vpack.c.b16 %v793, %v789
    %v1302 = vpack.c.b16 %v794, %v790
    %v1303 = vpack.c.b16 %v795, %v791
    %v1304 = vpack.c.b16 %v800, %v796
    %v1305 = vpack.c.b16 %v801, %v797
    %v1306 = vpack.c.b16 %v802, %v798
    %v1307 = vpack.c.b16 %v803, %v799
    %v1308 = vpack.c.b16 %v808, %v804
    %v1309 = vpack.c.b16 %v809, %v805
    %v1310 = vpack.c.b16 %v810, %v806
    %v1311 = vpack.c.b16 %v811, %v807
    %v1312 = vpack.c.b16 %v816, %v812
    %v1313 = vpack.c.b16 %v817, %v813
    %v1314 = vpack.c.b16 %v818, %v814
    %v1315 = vpack.c.b16 %v819, %v815
    %v1316 = vpack.c.b16 %v824, %v820
    %v1317 = vpack.c.b16 %v825, %v821
    %v1318 = vpack.c.b16 %v826, %v822
    %v1319 = vpack.c.b16 %v827, %v823
    %v1320 = vpack.c.b16 %v832, %v828
    %v1321 = vpack.c.b16 %v833, %v829
    %v1322 = vpack.c.b16 %v834, %v830
    %v1323 = vpack.c.b16 %v835, %v831
    %v1324 = vpack.c.b16 %v840, %v836
    %v1325 = vpack.c.b16 %v841, %v837
    %v1326 = vpack.c.b16 %v842, %v838
    %v1327 = vpack.c.b16 %v843, %v839
    %v1328 = vpack.c.b16 %v848, %v844
    %v1329 = vpack.c.b16 %v849, %v845
    %v1330 = vpack.c.b16 %v850, %v846
    %v1331 = vpack.c.b16 %v851, %v847
    %v1332 = vpack.c.b16 %v856, %v852
    %v1333 = vpack.c.b16 %v857, %v853
    %v1334 = vpack.c.b16 %v858, %v854
    %v1335 = vpack.c.b16 %v859, %v855
    %v1336 = vpack.c.b16 %v864, %v860
    %v1337 = vpack.c.b16 %v865, %v861
    %v1338 = vpack.c.b16 %v866, %v862
    %v1339 = vpack.c.b16 %v867, %v863
    %v1340 = vpack.c.b16 %v872, %v868
    %v1341 = vpack.c.b16 %v873, %v869
    %v1342 = vpack.c.b16 %v874, %v870
    %v1343 = vpack.c.b16 %v875, %v871
    %v1344 = vpack.c.b16 %v880, %v876
    %v1345 = vpack.c.b16 %v881, %v877
    %v1346 = vpack.c.b16 %v882, %v878
    %v1347 = vpack.c.b16 %v883, %v879
    %v1348 = vpack.c.b16 %v888, %v884
    %v1349 = vpack.c.b16 %v889, %v885
    %v1350 = vpack.c.b16 %v890, %v886
    %v1351 = vpack.c.b16 %v891, %v887
    %v1352 = vpack.c.b16 %v896, %v892
    %v1353 = vpack.c.b16 %v897, %v893
    %v1354 = vpack.c.b16 %v898, %v894
    %v1355 = vpack.c.b16 %v899, %v895
    %v1356 = vpack.c.b16 %v904, %v900
    %v1357 = vpack.c.b16 %v905, %v901
    %v1358 = vpack.c.b16 %v906, %v902
    %v1359 = vpack.c.b16 %v907, %v903
    %v1360 = vpack.c.b16 %v912, %v908
    %v1361 = vpack.c.b16 %v913, %v909
    %v1362 = vpack.c.b16 %v914, %v910
    %v1363 = vpack.c.b16 %v915, %v911
    %v1364 = vpack.c.b16 %v920, %v916
    %v1365 = vpack.c.b16 %v921, %v917
    %v1366 = vpack.c.b16 %v922, %v918
    %v1367 = vpack.c.b16 %v923, %v919
    %v1368 = vpack.c.b16 %v928, %v924
    %v1369 = vpack.c.b16 %v929, %v925
    %v1370 = vpack.c.b16 %v930, %v926
    %v1371 = vpack.c.b16 %v931, %v927
    %v1372 = vpack.c.b16 %v936, %v932
    %v1373 = vpack.c.b16 %v937, %v933
    %v1374 = vpack.c.b16 %v938, %v934
    %v1375 = vpack.c.b16 %v939, %v935
    %v1376 = vpack.c.b16 %v944, %v940
    %v1377 = vpack.c.b16 %v945, %v941
    %v1378 = vpack.c.b16 %v946, %v942
    %v1379 = vpack.c.b16 %v947, %v943
    %v1380 = vpack.c.b16 %v952, %v948
    %v1381 = vpack.c.b16 %v953, %v949
    %v1382 = vpack.c.b16 %v954, %v950
    %v1383 = vpack.c.b16 %v955, %v951
    %v1384 = vpack.c.b16 %v960, %v956
    %v1385 = vpack.c.b16 %v961, %v957
    %v1386 = vpack.c.b16 %v962, %v958
    %v1387 = vpack.c.b16 %v963, %v959
    %v1388 = vpack.c.b16 %v968, %v964
    %v1389 = vpack.c.b16 %v969, %v965
    %v1390 = vpack.c.b16 %v970, %v966
    %v1391 = vpack.c.b16 %v971, %v967
    %v1392 = vpack.c.b16 %v976, %v972
    %v1393 = vpack.c.b16 %v977, %v973
    %v1394 = vpack.c.b16 %v978, %v974
    %v1395 = vpack.c.b16 %v979, %v975
    %v1396 = vpack.c.b16 %v984, %v980
    %v1397 = vpack.c.b16 %v985, %v981
    %v1398 = vpack.c.b16 %v986, %v982
    %v1399 = vpack.c.b16 %v987, %v983
    %v1400 = vpack.c.b16 %v992, %v988
    %v1401 = vpack.c.b16 %v993, %v989
    %v1402 = vpack.c.b16 %v994, %v990
    %v1403 = vpack.c.b16 %v995, %v991
    %v1404 = vpack.c.b16 %v1000, %v996
    %v1405 = vpack.c.b16 %v1001, %v997
    %v1406 = vpack.c.b16 %v1002, %v998
    %v1407 = vpack.c.b16 %v1003, %v999
    %v1408 = vpack.c.b16 %v1008, %v1004
    %v1409 = vpack.c.b16 %v1009, %v1005
    %v1410 = vpack.c.b16 %v1010, %v1006
    %v1411 = vpack.c.b16 %v1011, %v1007
    %v1412 = vpack.c.b16 %v1016, %v1012
    %v1413 = vpack.c.b16 %v1017, %v1013
    %v1414 = vpack.c.b16 %v1018, %v1014
    %v1415 = vpack.c.b16 %v1019, %v1015
    %v1416 = vpack.c.b16 %v1024, %v1020
    %v1417 = vpack.c.b16 %v1025, %v1021
    %v1418 = vpack.c.b16 %v1026, %v1022
    %v1419 = vpack.c.b16 %v1027, %v1023
    %v1420 = vpack.c.b16 %v1032, %v1028
    %v1421 = vpack.c.b16 %v1033, %v1029
    %v1422 = vpack.c.b16 %v1034, %v1030
    %v1423 = vpack.c.b16 %v1035, %v1031
    %v1424 = vpack.c.b16 %v1040, %v1036
    %v1425 = vpack.c.b16 %v1041, %v1037
    %v1426 = vpack.c.b16 %v1042, %v1038
    %v1427 = vpack.c.b16 %v1043, %v1039
    %v1428 = vpack.c.b16 %v1048, %v1044
    %v1429 = vpack.c.b16 %v1049, %v1045
    %v1430 = vpack.c.b16 %v1050, %v1046
    %v1431 = vpack.c.b16 %v1051, %v1047
    %v1432 = vpack.c.b16 %v1056, %v1052
    %v1433 = vpack.c.b16 %v1057, %v1053
    %v1434 = vpack.c.b16 %v1058, %v1054
    %v1435 = vpack.c.b16 %v1059, %v1055
    %v1436 = vpack.c.b16 %v1064, %v1060
    %v1437 = vpack.c.b16 %v1065, %v1061
    %v1438 = vpack.c.b16 %v1066, %v1062
    %v1439 = vpack.c.b16 %v1067, %v1063
    %v1440 = vpack.c.b16 %v1072, %v1068
    %v1441 = vpack.c.b16 %v1073, %v1069
    %v1442 = vpack.c.b16 %v1074, %v1070
    %v1443 = vpack.c.b16 %v1075, %v1071
    %v1444 = vpack.c.b16 %v1080, %v1076
    %v1445 = vpack.c.b16 %v1081, %v1077
    %v1446 = vpack.c.b16 %v1082, %v1078
    %v1447 = vpack.c.b16 %v1083, %v1079
    %v1448 = vpack.c.b16 %v1088, %v1084
    %v1449 = vpack.c.b16 %v1089, %v1085
    %v1450 = vpack.c.b16 %v1090, %v1086
    %v1451 = vpack.c.b16 %v1091, %v1087
    %v1452 = vpack.c.b16 %v1096, %v1092
    %v1453 = vpack.c.b16 %v1097, %v1093
    %v1454 = vpack.c.b16 %v1098, %v1094
    %v1455 = vpack.c.b16 %v1099, %v1095
    %v1456 = vpack.c.b16 %v1104, %v1100
    %v1457 = vpack.c.b16 %v1105, %v1101
    %v1458 = vpack.c.b16 %v1106, %v1102
    %v1459 = vpack.c.b16 %v1107, %v1103
    %v1460 = vpack.c.b16 %v1112, %v1108
    %v1461 = vpack.c.b16 %v1113, %v1109
    %v1462 = vpack.c.b16 %v1114, %v1110
    %v1463 = vpack.c.b16 %v1115, %v1111
    %v1464 = vpack.c.b16 %v1120, %v1116
    %v1465 = vpack.c.b16 %v1121, %v1117
    %v1466 = vpack.c.b16 %v1122, %v1118
    %v1467 = vpack.c.b16 %v1123, %v1119
    %v1468 = vpack.c.b16 %v1128, %v1124
    %v1469 = vpack.c.b16 %v1129, %v1125
    %v1470 = vpack.c.b16 %v1130, %v1126
    %v1471 = vpack.c.b16 %v1131, %v1127
    %v1472 = vpack.c.b16 %v1136, %v1132
    %v1473 = vpack.c.b16 %v1137, %v1133
    %v1474 = vpack.c.b16 %v1138, %v1134
    %v1475 = vpack.c.b16 %v1139, %v1135
    %v1476 = vpack.c.b16 %v1144, %v1140
    %v1477 = vpack.c.b16 %v1145, %v1141
    %v1478 = vpack.c.b16 %v1146, %v1142
    %v1479 = vpack.c.b16 %v1147, %v1143
    %v1480 = vpack.c.b16 %v1152, %v1148
    %v1481 = vpack.c.b16 %v1153, %v1149
    %v1482 = vpack.c.b16 %v1154, %v1150
    %v1483 = vpack.c.b16 %v1155, %v1151
    %v1484 = vpack.c.b16 %v1160, %v1156
    %v1485 = vpack.c.b16 %v1161, %v1157
    %v1486 = vpack.c.b16 %v1162, %v1158
    %v1487 = vpack.c.b16 %v1163, %v1159
    %v1488 = vpack.c.b16 %v1168, %v1164
    %v1489 = vpack.c.b16 %v1169, %v1165
    %v1490 = vpack.c.b16 %v1170, %v1166
    %v1491 = vpack.c.b16 %v1171, %v1167
    %v1492 = vpack.c.b16 %v1176, %v1172
    %v1493 = vpack.c.b16 %v1177, %v1173
    %v1494 = vpack.c.b16 %v1178, %v1174
    %v1495 = vpack.c.b16 %v1179, %v1175
    %v1496 = vpack.c.b16 %v1184, %v1180
    %v1497 = vpack.c.b16 %v1185, %v1181
    %v1498 = vpack.c.b16 %v1186, %v1182
    %v1499 = vpack.c.b16 %v1187, %v1183
    %v1500 = vpack.c.b16 %v1192, %v1188
    %v1501 = vpack.c.b16 %v1193, %v1189
    %v1502 = vpack.c.b16 %v1194, %v1190
    %v1503 = vpack.c.b16 %v1195, %v1191
    %v1504 = vpack.c.b16 %v1200, %v1196
    %v1505 = vpack.c.b16 %v1201, %v1197
    %v1506 = vpack.c.b16 %v1202, %v1198
    %v1507 = vpack.c.b16 %v1203, %v1199
    %v1508 = vpack.c.b16 %v1208, %v1204
    %v1509 = vpack.c.b16 %v1209, %v1205
    %v1510 = vpack.c.b16 %v1210, %v1206
    %v1511 = vpack.c.b16 %v1211, %v1207
    %v1512 = vpack.c.b16 %v1216, %v1212
    %v1513 = vpack.c.b16 %v1217, %v1213
    %v1514 = vpack.c.b16 %v1218, %v1214
    %v1515 = vpack.c.b16 %v1219, %v1215
    %v1516 = vpack.c.b16 %v1224, %v1220
    %v1517 = vpack.c.b16 %v1225, %v1221
    %v1518 = vpack.c.b16 %v1226, %v1222
    %v1519 = vpack.c.b16 %v1227, %v1223
    %v1520 = vpack.c.b16 %v1232, %v1228
    %v1521 = vpack.c.b16 %v1233, %v1229
    %v1522 = vpack.c.b16 %v1234, %v1230
    %v1523 = vpack.c.b16 %v1235, %v1231
    %v1524 = vpack.c.b16 %v1240, %v1236
    %v1525 = vpack.c.b16 %v1241, %v1237
    %v1526 = vpack.c.b16 %v1242, %v1238
    %v1527 = vpack.c.b16 %v1243, %v1239
    %v1528 = vpack.c.b16 %v1248, %v1244
    %v1529 = vpack.c.b16 %v1249, %v1245
    %v1530 = vpack.c.b16 %v1250, %v1246
    %v1531 = vpack.c.b16 %v1251, %v1247
    %v1532 = vpack.c.b16 %v1256, %v1252
    %v1533 = vpack.c.b16 %v1257, %v1253
    %v1534 = vpack.c.b16 %v1258, %v1254
    %v1535 = vpack.c.b16 %v1259, %v1255
    %v1536 = vpack.c.b16 %v1264, %v1260
    %v1537 = vpack.c.b16 %v1265, %v1261
    %v1538 = vpack.c.b16 %v1266, %v1262
    %v1539 = vpack.c.b16 %v1267, %v1263
    %v1540 = vpack.c.b16 %v1268, %v1268
    %v1541 = vpack.c.b16 %v1269, %v1269
    %v1542 = vpack.c.b16 %v1270, %v1270
    %v1543 = vpack.c.b16 %v1271, %v1271
    %vm1812 = vcmask 457728
    %v1814 = vsel %vm1812, %v181, 0
    %vm1816 = vcmask 1043456
    %v1818 = vsel %vm1816, %v1540, 0
    %v1821 = vsel %vm1816, %v1541, 0
    %v1824 = vsel %vm1816, %v1542, 0
    %v1827 = vsel %vm1816, %v1543, 0
    %1829 = vmatpush.bf16.msra.mxu0 %v1300
    %1830 = vmatpush.bf16.msra.mxu0 %v1296
    %1831 = vmatpush.bf16.msra.mxu0 %v1292
    %1832 = vmatpush.bf16.msra.mxu0 %v1288
    %1833 = vmatpush.bf16.msra.mxu0 %v1284
    %1834 = vmatpush.bf16.msra.mxu0 %v1280
    %1835 = vmatpush.bf16.msra.mxu0 %v1276
    %1836 = vmatpush.bf16.msra.mxu0 %v1272
    %1837 = vmatmul.bf16.gmra.mxu0 %v173
    %v1838 = vpop.f32.mrf.mxu0
    %v1839 = vadd.f32 %v454, %v1838
    %v1840 = vpop.f32.mrf.mxu0
    %1841 = vdwg.mxu0
    %1842 = vmatpush.bf16.msra.mxu0 %v1332
    %1843 = vmatpush.bf16.msra.mxu0 %v1328
    %1844 = vmatpush.bf16.msra.mxu0 %v1324
    %1845 = vmatpush.bf16.msra.mxu0 %v1320
    %1846 = vmatpush.bf16.msra.mxu0 %v1316
    %1847 = vmatpush.bf16.msra.mxu0 %v1312
    %1848 = vmatpush.bf16.msra.mxu0 %v1308
    %1849 = vmatpush.bf16.msra.mxu0 %v1304
    %1850 = vmatmul.bf16.gmra.mxu0 %v174
    %v1851 = vpop.f32.mrf.mxu0
    %v1852 = vadd.f32 %v1839, %v1851
    %v1853 = vpop.f32.mrf.mxu0
    %1854 = vdwg.mxu0
    %1855 = vmatpush.bf16.msra.mxu0 %v1364
    %1856 = vmatpush.bf16.msra.mxu0 %v1360
    %1857 = vmatpush.bf16.msra.mxu0 %v1356
    %1858 = vmatpush.bf16.msra.mxu0 %v1352
    %1859 = vmatpush.bf16.msra.mxu0 %v1348
    %1860 = vmatpush.bf16.msra.mxu0 %v1344
    %1861 = vmatpush.bf16.msra.mxu0 %v1340
    %1862 = vmatpush.bf16.msra.mxu0 %v1336
    %1863 = vmatmul.bf16.gmra.mxu0 %v175
    %v1864 = vpop.f32.mrf.mxu0
    %v1865 = vadd.f32 %v1852, %v1864
    %v1866 = vpop.f32.mrf.mxu0
    %1867 = vdwg.mxu0
    %1868 = vmatpush.bf16.msra.mxu0 %v1396
    %1869 = vmatpush.bf16.msra.mxu0 %v1392
    %1870 = vmatpush.bf16.msra.mxu0 %v1388
    %1871 = vmatpush.bf16.msra.mxu0 %v1384
    %1872 = vmatpush.bf16.msra.mxu0 %v1380
    %1873 = vmatpush.bf16.msra.mxu0 %v1376
    %1874 = vmatpush.bf16.msra.mxu0 %v1372
    %1875 = vmatpush.bf16.msra.mxu0 %v1368
    %1876 = vmatmul.bf16.gmra.mxu0 %v176
    %v1877 = vpop.f32.mrf.mxu0
    %v1878 = vadd.f32 %v1865, %v1877
    %v1879 = vpop.f32.mrf.mxu0
    %1880 = vdwg.mxu0
    %1881 = vmatpush.bf16.msra.mxu0 %v1428
    %1882 = vmatpush.bf16.msra.mxu0 %v1424
    %1883 = vmatpush.bf16.msra.mxu0 %v1420
    %1884 = vmatpush.bf16.msra.mxu0 %v1416
    %1885 = vmatpush.bf16.msra.mxu0 %v1412
    %1886 = vmatpush.bf16.msra.mxu0 %v1408
    %1887 = vmatpush.bf16.msra.mxu0 %v1404
    %1888 = vmatpush.bf16.msra.mxu0 %v1400
    %1889 = vmatmul.bf16.gmra.mxu0 %v177
    %v1890 = vpop.f32.mrf.mxu0
    %v1891 = vadd.f32 %v1878, %v1890
    %v1892 = vpop.f32.mrf.mxu0
    %1893 = vdwg.mxu0
    %1894 = vmatpush.bf16.msra.mxu0 %v1460
    %1895 = vmatpush.bf16.msra.mxu0 %v1456
    %1896 = vmatpush.bf16.msra.mxu0 %v1452
    %1897 = vmatpush.bf16.msra.mxu0 %v1448
    %1898 = vmatpush.bf16.msra.mxu0 %v1444
    %1899 = vmatpush.bf16.msra.mxu0 %v1440
    %1900 = vmatpush.bf16.msra.mxu0 %v1436
    %1901 = vmatpush.bf16.msra.mxu0 %v1432
    %1902 = vmatmul.bf16.gmra.mxu0 %v178
    %v1903 = vpop.f32.mrf.mxu0
    %v1904 = vadd.f32 %v1891, %v1903
    %v1905 = vpop.f32.mrf.mxu0
    %1906 = vdwg.mxu0
    %1907 = vmatpush.bf16.msra.mxu0 %v1492
    %1908 = vmatpush.bf16.msra.mxu0 %v1488
    %1909 = vmatpush.bf16.msra.mxu0 %v1484
    %1910 = vmatpush.bf16.msra.mxu0 %v1480
    %1911 = vmatpush.bf16.msra.mxu0 %v1476
    %1912 = vmatpush.bf16.msra.mxu0 %v1472
    %1913 = vmatpush.bf16.msra.mxu0 %v1468
    %1914 = vmatpush.bf16.msra.mxu0 %v1464
    %1915 = vmatmul.bf16.gmra.mxu0 %v179
    %v1916 = vpop.f32.mrf.mxu0
    %v1917 = vadd.f32 %v1904, %v1916
    %v1918 = vpop.f32.mrf.mxu0
    %1919 = vdwg.mxu0
    %1920 = vmatpush.bf16.msra.mxu0 %v1524
    %1921 = vmatpush.bf16.msra.mxu0 %v1520
    %1922 = vmatpush.bf16.msra.mxu0 %v1516
    %1923 = vmatpush.bf16.msra.mxu0 %v1512
    %1924 = vmatpush.bf16.msra.mxu0 %v1508
    %1925 = vmatpush.bf16.msra.mxu0 %v1504
    %1926 = vmatpush.bf16.msra.mxu0 %v1500
    %1927 = vmatpush.bf16.msra.mxu0 %v1496
    %1928 = vmatmul.bf16.gmra.mxu0 %v180
    %v1929 = vpop.f32.mrf.mxu0
    %v1930 = vadd.f32 %v1917, %v1929
    %v1931 = vpop.f32.mrf.mxu0
    %1932 = vdwg.mxu0
    %1933 = vmatpush.bf16.msra.mxu0 0
    %1934 = vmatpush.bf16.msra.mxu0 0
    %1935 = vmatpush.bf16.msra.mxu0 0
    %1936 = vmatpush.bf16.msra.mxu0 0
    %1937 = vmatpush.bf16.msra.mxu0 %v1818
    %1938 = vmatpush.bf16.msra.mxu0 %v1536
    %1939 = vmatpush.bf16.msra.mxu0 %v1532
    %1940 = vmatpush.bf16.msra.mxu0 %v1528
    %1941 = vmatmul.bf16.gmra.mxu0 %v1814
    %v1942 = vpop.f32.mrf.mxu0
    %v1943 = vadd.f32 %v1930, %v1942
    %v1944 = vpop.f32.mrf.mxu0
    %1945 = vdwg.mxu0
    %1946 = vmatpush.bf16.msra.mxu0 %v1301
    %1947 = vmatpush.bf16.msra.mxu0 %v1297
    %1948 = vmatpush.bf16.msra.mxu0 %v1293
    %1949 = vmatpush.bf16.msra.mxu0 %v1289
    %1950 = vmatpush.bf16.msra.mxu0 %v1285
    %1951 = vmatpush.bf16.msra.mxu0 %v1281
    %1952 = vmatpush.bf16.msra.mxu0 %v1277
    %1953 = vmatpush.bf16.msra.mxu0 %v1273
    %1954 = vmatmul.bf16.gmra.mxu0 %v173
    %v1955 = vpop.f32.mrf.mxu0
    %v1956 = vadd.f32 %v455, %v1955
    %v1957 = vpop.f32.mrf.mxu0
    %1958 = vdwg.mxu0
    %1959 = vmatpush.bf16.msra.mxu0 %v1333
    %1960 = vmatpush.bf16.msra.mxu0 %v1329
    %1961 = vmatpush.bf16.msra.mxu0 %v1325
    %1962 = vmatpush.bf16.msra.mxu0 %v1321
    %1963 = vmatpush.bf16.msra.mxu0 %v1317
    %1964 = vmatpush.bf16.msra.mxu0 %v1313
    %1965 = vmatpush.bf16.msra.mxu0 %v1309
    %1966 = vmatpush.bf16.msra.mxu0 %v1305
    %1967 = vmatmul.bf16.gmra.mxu0 %v174
    %v1968 = vpop.f32.mrf.mxu0
    %v1969 = vadd.f32 %v1956, %v1968
    %v1970 = vpop.f32.mrf.mxu0
    %1971 = vdwg.mxu0
    %1972 = vmatpush.bf16.msra.mxu0 %v1365
    %1973 = vmatpush.bf16.msra.mxu0 %v1361
    %1974 = vmatpush.bf16.msra.mxu0 %v1357
    %1975 = vmatpush.bf16.msra.mxu0 %v1353
    %1976 = vmatpush.bf16.msra.mxu0 %v1349
    %1977 = vmatpush.bf16.msra.mxu0 %v1345
    %1978 = vmatpush.bf16.msra.mxu0 %v1341
    %1979 = vmatpush.bf16.msra.mxu0 %v1337
    %1980 = vmatmul.bf16.gmra.mxu0 %v175
    %v1981 = vpop.f32.mrf.mxu0
    %v1982 = vadd.f32 %v1969, %v1981
    %v1983 = vpop.f32.mrf.mxu0
    %1984 = vdwg.mxu0
    %1985 = vmatpush.bf16.msra.mxu0 %v1397
    %1986 = vmatpush.bf16.msra.mxu0 %v1393
    %1987 = vmatpush.bf16.msra.mxu0 %v1389
    %1988 = vmatpush.bf16.msra.mxu0 %v1385
    %1989 = vmatpush.bf16.msra.mxu0 %v1381
    %1990 = vmatpush.bf16.msra.mxu0 %v1377
    %1991 = vmatpush.bf16.msra.mxu0 %v1373
    %1992 = vmatpush.bf16.msra.mxu0 %v1369
    %1993 = vmatmul.bf16.gmra.mxu0 %v176
    %v1994 = vpop.f32.mrf.mxu0
    %v1995 = vadd.f32 %v1982, %v1994
    %v1996 = vpop.f32.mrf.mxu0
    %1997 = vdwg.mxu0
    %1998 = vmatpush.bf16.msra.mxu0 %v1429
    %1999 = vmatpush.bf16.msra.mxu0 %v1425
    %2000 = vmatpush.bf16.msra.mxu0 %v1421
    %2001 = vmatpush.bf16.msra.mxu0 %v1417
    %2002 = vmatpush.bf16.msra.mxu0 %v1413
    %2003 = vmatpush.bf16.msra.mxu0 %v1409
    %2004 = vmatpush.bf16.msra.mxu0 %v1405
    %2005 = vmatpush.bf16.msra.mxu0 %v1401
    %2006 = vmatmul.bf16.gmra.mxu0 %v177
    %v2007 = vpop.f32.mrf.mxu0
    %v2008 = vadd.f32 %v1995, %v2007
    %v2009 = vpop.f32.mrf.mxu0
    %2010 = vdwg.mxu0
    %2011 = vmatpush.bf16.msra.mxu0 %v1461
    %2012 = vmatpush.bf16.msra.mxu0 %v1457
    %2013 = vmatpush.bf16.msra.mxu0 %v1453
    %2014 = vmatpush.bf16.msra.mxu0 %v1449
    %2015 = vmatpush.bf16.msra.mxu0 %v1445
    %2016 = vmatpush.bf16.msra.mxu0 %v1441
    %2017 = vmatpush.bf16.msra.mxu0 %v1437
    %2018 = vmatpush.bf16.msra.mxu0 %v1433
    %2019 = vmatmul.bf16.gmra.mxu0 %v178
    %v2020 = vpop.f32.mrf.mxu0
    %v2021 = vadd.f32 %v2008, %v2020
    %v2022 = vpop.f32.mrf.mxu0
    %2023 = vdwg.mxu0
    %2024 = vmatpush.bf16.msra.mxu0 %v1493
    %2025 = vmatpush.bf16.msra.mxu0 %v1489
    %2026 = vmatpush.bf16.msra.mxu0 %v1485
    %2027 = vmatpush.bf16.msra.mxu0 %v1481
    %2028 = vmatpush.bf16.msra.mxu0 %v1477
    %2029 = vmatpush.bf16.msra.mxu0 %v1473
    %2030 = vmatpush.bf16.msra.mxu0 %v1469
    %2031 = vmatpush.bf16.msra.mxu0 %v1465
    %2032 = vmatmul.bf16.gmra.mxu0 %v179
    %v2033 = vpop.f32.mrf.mxu0
    %v2034 = vadd.f32 %v2021, %v2033
    %v2035 = vpop.f32.mrf.mxu0
    %2036 = vdwg.mxu0
    %2037 = vmatpush.bf16.msra.mxu0 %v1525
    %2038 = vmatpush.bf16.msra.mxu0 %v1521
    %2039 = vmatpush.bf16.msra.mxu0 %v1517
    %2040 = vmatpush.bf16.msra.mxu0 %v1513
    %2041 = vmatpush.bf16.msra.mxu0 %v1509
    %2042 = vmatpush.bf16.msra.mxu0 %v1505
    %2043 = vmatpush.bf16.msra.mxu0 %v1501
    %2044 = vmatpush.bf16.msra.mxu0 %v1497
    %2045 = vmatmul.bf16.gmra.mxu0 %v180
    %v2046 = vpop.f32.mrf.mxu0
    %v2047 = vadd.f32 %v2034, %v2046
    %v2048 = vpop.f32.mrf.mxu0
    %2049 = vdwg.mxu0
    %2050 = vmatpush.bf16.msra.mxu0 0
    %2051 = vmatpush.bf16.msra.mxu0 0
    %2052 = vmatpush.bf16.msra.mxu0 0
    %2053 = vmatpush.bf16.msra.mxu0 0
    %2054 = vmatpush.bf16.msra.mxu0 %v1821
    %2055 = vmatpush.bf16.msra.mxu0 %v1537
    %2056 = vmatpush.bf16.msra.mxu0 %v1533
    %2057 = vmatpush.bf16.msra.mxu0 %v1529
    %2058 = vmatmul.bf16.gmra.mxu0 %v1814
    %v2059 = vpop.f32.mrf.mxu0
    %v2060 = vadd.f32 %v2047, %v2059
    %v2061 = vpop.f32.mrf.mxu0
    %2062 = vdwg.mxu0
    %2063 = vmatpush.bf16.msra.mxu0 %v1302
    %2064 = vmatpush.bf16.msra.mxu0 %v1298
    %2065 = vmatpush.bf16.msra.mxu0 %v1294
    %2066 = vmatpush.bf16.msra.mxu0 %v1290
    %2067 = vmatpush.bf16.msra.mxu0 %v1286
    %2068 = vmatpush.bf16.msra.mxu0 %v1282
    %2069 = vmatpush.bf16.msra.mxu0 %v1278
    %2070 = vmatpush.bf16.msra.mxu0 %v1274
    %2071 = vmatmul.bf16.gmra.mxu0 %v173
    %v2072 = vpop.f32.mrf.mxu0
    %v2073 = vadd.f32 %v456, %v2072
    %v2074 = vpop.f32.mrf.mxu0
    %2075 = vdwg.mxu0
    %2076 = vmatpush.bf16.msra.mxu0 %v1334
    %2077 = vmatpush.bf16.msra.mxu0 %v1330
    %2078 = vmatpush.bf16.msra.mxu0 %v1326
    %2079 = vmatpush.bf16.msra.mxu0 %v1322
    %2080 = vmatpush.bf16.msra.mxu0 %v1318
    %2081 = vmatpush.bf16.msra.mxu0 %v1314
    %2082 = vmatpush.bf16.msra.mxu0 %v1310
    %2083 = vmatpush.bf16.msra.mxu0 %v1306
    %2084 = vmatmul.bf16.gmra.mxu0 %v174
    %v2085 = vpop.f32.mrf.mxu0
    %v2086 = vadd.f32 %v2073, %v2085
    %v2087 = vpop.f32.mrf.mxu0
    %2088 = vdwg.mxu0
    %2089 = vmatpush.bf16.msra.mxu0 %v1366
    %2090 = vmatpush.bf16.msra.mxu0 %v1362
    %2091 = vmatpush.bf16.msra.mxu0 %v1358
    %2092 = vmatpush.bf16.msra.mxu0 %v1354
    %2093 = vmatpush.bf16.msra.mxu0 %v1350
    %2094 = vmatpush.bf16.msra.mxu0 %v1346
    %2095 = vmatpush.bf16.msra.mxu0 %v1342
    %2096 = vmatpush.bf16.msra.mxu0 %v1338
    %2097 = vmatmul.bf16.gmra.mxu0 %v175
    %v2098 = vpop.f32.mrf.mxu0
    %v2099 = vadd.f32 %v2086, %v2098
    %v2100 = vpop.f32.mrf.mxu0
    %2101 = vdwg.mxu0
    %2102 = vmatpush.bf16.msra.mxu0 %v1398
    %2103 = vmatpush.bf16.msra.mxu0 %v1394
    %2104 = vmatpush.bf16.msra.mxu0 %v1390
    %2105 = vmatpush.bf16.msra.mxu0 %v1386
    %2106 = vmatpush.bf16.msra.mxu0 %v1382
    %2107 = vmatpush.bf16.msra.mxu0 %v1378
    %2108 = vmatpush.bf16.msra.mxu0 %v1374
    %2109 = vmatpush.bf16.msra.mxu0 %v1370
    %2110 = vmatmul.bf16.gmra.mxu0 %v176
    %v2111 = vpop.f32.mrf.mxu0
    %v2112 = vadd.f32 %v2099, %v2111
    %v2113 = vpop.f32.mrf.mxu0
    %2114 = vdwg.mxu0
    %2115 = vmatpush.bf16.msra.mxu0 %v1430
    %2116 = vmatpush.bf16.msra.mxu0 %v1426
    %2117 = vmatpush.bf16.msra.mxu0 %v1422
    %2118 = vmatpush.bf16.msra.mxu0 %v1418
    %2119 = vmatpush.bf16.msra.mxu0 %v1414
    %2120 = vmatpush.bf16.msra.mxu0 %v1410
    %2121 = vmatpush.bf16.msra.mxu0 %v1406
    %2122 = vmatpush.bf16.msra.mxu0 %v1402
    %2123 = vmatmul.bf16.gmra.mxu0 %v177
    %v2124 = vpop.f32.mrf.mxu0
    %v2125 = vadd.f32 %v2112, %v2124
    %v2126 = vpop.f32.mrf.mxu0
    %2127 = vdwg.mxu0
    %2128 = vmatpush.bf16.msra.mxu0 %v1462
    %2129 = vmatpush.bf16.msra.mxu0 %v1458
    %2130 = vmatpush.bf16.msra.mxu0 %v1454
    %2131 = vmatpush.bf16.msra.mxu0 %v1450
    %2132 = vmatpush.bf16.msra.mxu0 %v1446
    %2133 = vmatpush.bf16.msra.mxu0 %v1442
    %2134 = vmatpush.bf16.msra.mxu0 %v1438
    %2135 = vmatpush.bf16.msra.mxu0 %v1434
    %2136 = vmatmul.bf16.gmra.mxu0 %v178
    %v2137 = vpop.f32.mrf.mxu0
    %v2138 = vadd.f32 %v2125, %v2137
    %v2139 = vpop.f32.mrf.mxu0
    %2140 = vdwg.mxu0
    %2141 = vmatpush.bf16.msra.mxu0 %v1494
    %2142 = vmatpush.bf16.msra.mxu0 %v1490
    %2143 = vmatpush.bf16.msra.mxu0 %v1486
    %2144 = vmatpush.bf16.msra.mxu0 %v1482
    %2145 = vmatpush.bf16.msra.mxu0 %v1478
    %2146 = vmatpush.bf16.msra.mxu0 %v1474
    %2147 = vmatpush.bf16.msra.mxu0 %v1470
    %2148 = vmatpush.bf16.msra.mxu0 %v1466
    %2149 = vmatmul.bf16.gmra.mxu0 %v179
    %v2150 = vpop.f32.mrf.mxu0
    %v2151 = vadd.f32 %v2138, %v2150
    %v2152 = vpop.f32.mrf.mxu0
    %2153 = vdwg.mxu0
    %2154 = vmatpush.bf16.msra.mxu0 %v1526
    %2155 = vmatpush.bf16.msra.mxu0 %v1522
    %2156 = vmatpush.bf16.msra.mxu0 %v1518
    %2157 = vmatpush.bf16.msra.mxu0 %v1514
    %2158 = vmatpush.bf16.msra.mxu0 %v1510
    %2159 = vmatpush.bf16.msra.mxu0 %v1506
    %2160 = vmatpush.bf16.msra.mxu0 %v1502
    %2161 = vmatpush.bf16.msra.mxu0 %v1498
    %2162 = vmatmul.bf16.gmra.mxu0 %v180
    %v2163 = vpop.f32.mrf.mxu0
    %v2164 = vadd.f32 %v2151, %v2163
    %v2165 = vpop.f32.mrf.mxu0
    %2166 = vdwg.mxu0
    %2167 = vmatpush.bf16.msra.mxu0 0
    %2168 = vmatpush.bf16.msra.mxu0 0
    %2169 = vmatpush.bf16.msra.mxu0 0
    %2170 = vmatpush.bf16.msra.mxu0 0
    %2171 = vmatpush.bf16.msra.mxu0 %v1824
    %2172 = vmatpush.bf16.msra.mxu0 %v1538
    %2173 = vmatpush.bf16.msra.mxu0 %v1534
    %2174 = vmatpush.bf16.msra.mxu0 %v1530
    %2175 = vmatmul.bf16.gmra.mxu0 %v1814
    %v2176 = vpop.f32.mrf.mxu0
    %v2177 = vadd.f32 %v2164, %v2176
    %v2178 = vpop.f32.mrf.mxu0
    %2179 = vdwg.mxu0
    %2180 = vmatpush.bf16.msra.mxu0 %v1303
    %2181 = vmatpush.bf16.msra.mxu0 %v1299
    %2182 = vmatpush.bf16.msra.mxu0 %v1295
    %2183 = vmatpush.bf16.msra.mxu0 %v1291
    %2184 = vmatpush.bf16.msra.mxu0 %v1287
    %2185 = vmatpush.bf16.msra.mxu0 %v1283
    %2186 = vmatpush.bf16.msra.mxu0 %v1279
    %2187 = vmatpush.bf16.msra.mxu0 %v1275
    %2188 = vmatmul.bf16.gmra.mxu0 %v173
    %v2189 = vpop.f32.mrf.mxu0
    %v2190 = vadd.f32 %v457, %v2189
    %v2191 = vpop.f32.mrf.mxu0
    %2192 = vdwg.mxu0
    %2193 = vmatpush.bf16.msra.mxu0 %v1335
    %2194 = vmatpush.bf16.msra.mxu0 %v1331
    %2195 = vmatpush.bf16.msra.mxu0 %v1327
    %2196 = vmatpush.bf16.msra.mxu0 %v1323
    %2197 = vmatpush.bf16.msra.mxu0 %v1319
    %2198 = vmatpush.bf16.msra.mxu0 %v1315
    %2199 = vmatpush.bf16.msra.mxu0 %v1311
    %2200 = vmatpush.bf16.msra.mxu0 %v1307
    %2201 = vmatmul.bf16.gmra.mxu0 %v174
    %v2202 = vpop.f32.mrf.mxu0
    %v2203 = vadd.f32 %v2190, %v2202
    %v2204 = vpop.f32.mrf.mxu0
    %2205 = vdwg.mxu0
    %2206 = vmatpush.bf16.msra.mxu0 %v1367
    %2207 = vmatpush.bf16.msra.mxu0 %v1363
    %2208 = vmatpush.bf16.msra.mxu0 %v1359
    %2209 = vmatpush.bf16.msra.mxu0 %v1355
    %2210 = vmatpush.bf16.msra.mxu0 %v1351
    %2211 = vmatpush.bf16.msra.mxu0 %v1347
    %2212 = vmatpush.bf16.msra.mxu0 %v1343
    %2213 = vmatpush.bf16.msra.mxu0 %v1339
    %2214 = vmatmul.bf16.gmra.mxu0 %v175
    %v2215 = vpop.f32.mrf.mxu0
    %v2216 = vadd.f32 %v2203, %v2215
    %v2217 = vpop.f32.mrf.mxu0
    %2218 = vdwg.mxu0
    %2219 = vmatpush.bf16.msra.mxu0 %v1399
    %2220 = vmatpush.bf16.msra.mxu0 %v1395
    %2221 = vmatpush.bf16.msra.mxu0 %v1391
    %2222 = vmatpush.bf16.msra.mxu0 %v1387
    %2223 = vmatpush.bf16.msra.mxu0 %v1383
    %2224 = vmatpush.bf16.msra.mxu0 %v1379
    %2225 = vmatpush.bf16.msra.mxu0 %v1375
    %2226 = vmatpush.bf16.msra.mxu0 %v1371
    %2227 = vmatmul.bf16.gmra.mxu0 %v176
    %v2228 = vpop.f32.mrf.mxu0
    %v2229 = vadd.f32 %v2216, %v2228
    %v2230 = vpop.f32.mrf.mxu0
    %2231 = vdwg.mxu0
    %2232 = vmatpush.bf16.msra.mxu0 %v1431
    %2233 = vmatpush.bf16.msra.mxu0 %v1427
    %2234 = vmatpush.bf16.msra.mxu0 %v1423
    %2235 = vmatpush.bf16.msra.mxu0 %v1419
    %2236 = vmatpush.bf16.msra.mxu0 %v1415
    %2237 = vmatpush.bf16.msra.mxu0 %v1411
    %2238 = vmatpush.bf16.msra.mxu0 %v1407
    %2239 = vmatpush.bf16.msra.mxu0 %v1403
    %2240 = vmatmul.bf16.gmra.mxu0 %v177
    %v2241 = vpop.f32.mrf.mxu0
    %v2242 = vadd.f32 %v2229, %v2241
    %v2243 = vpop.f32.mrf.mxu0
    %2244 = vdwg.mxu0
    %2245 = vmatpush.bf16.msra.mxu0 %v1463
    %2246 = vmatpush.bf16.msra.mxu0 %v1459
    %2247 = vmatpush.bf16.msra.mxu0 %v1455
    %2248 = vmatpush.bf16.msra.mxu0 %v1451
    %2249 = vmatpush.bf16.msra.mxu0 %v1447
    %2250 = vmatpush.bf16.msra.mxu0 %v1443
    %2251 = vmatpush.bf16.msra.mxu0 %v1439
    %2252 = vmatpush.bf16.msra.mxu0 %v1435
    %2253 = vmatmul.bf16.gmra.mxu0 %v178
    %v2254 = vpop.f32.mrf.mxu0
    %v2255 = vadd.f32 %v2242, %v2254
    %v2256 = vpop.f32.mrf.mxu0
    %2257 = vdwg.mxu0
    %2258 = vmatpush.bf16.msra.mxu0 %v1495
    %2259 = vmatpush.bf16.msra.mxu0 %v1491
    %2260 = vmatpush.bf16.msra.mxu0 %v1487
    %2261 = vmatpush.bf16.msra.mxu0 %v1483
    %2262 = vmatpush.bf16.msra.mxu0 %v1479
    %2263 = vmatpush.bf16.msra.mxu0 %v1475
    %2264 = vmatpush.bf16.msra.mxu0 %v1471
    %2265 = vmatpush.bf16.msra.mxu0 %v1467
    %2266 = vmatmul.bf16.gmra.mxu0 %v179
    %v2267 = vpop.f32.mrf.mxu0
    %v2268 = vadd.f32 %v2255, %v2267
    %v2269 = vpop.f32.mrf.mxu0
    %2270 = vdwg.mxu0
    %2271 = vmatpush.bf16.msra.mxu0 %v1527
    %2272 = vmatpush.bf16.msra.mxu0 %v1523
    %2273 = vmatpush.bf16.msra.mxu0 %v1519
    %2274 = vmatpush.bf16.msra.mxu0 %v1515
    %2275 = vmatpush.bf16.msra.mxu0 %v1511
    %2276 = vmatpush.bf16.msra.mxu0 %v1507
    %2277 = vmatpush.bf16.msra.mxu0 %v1503
    %2278 = vmatpush.bf16.msra.mxu0 %v1499
    %2279 = vmatmul.bf16.gmra.mxu0 %v180
    %v2280 = vpop.f32.mrf.mxu0
    %v2281 = vadd.f32 %v2268, %v2280
    %v2282 = vpop.f32.mrf.mxu0
    %2283 = vdwg.mxu0
    %2284 = vmatpush.bf16.msra.mxu0 0
    %2285 = vmatpush.bf16.msra.mxu0 0
    %2286 = vmatpush.bf16.msra.mxu0 0
    %2287 = vmatpush.bf16.msra.mxu0 0
    %2288 = vmatpush.bf16.msra.mxu0 %v1827
    %2289 = vmatpush.bf16.msra.mxu0 %v1539
    %2290 = vmatpush.bf16.msra.mxu0 %v1535
    %2291 = vmatpush.bf16.msra.mxu0 %v1531
    %2292 = vmatmul.bf16.gmra.mxu0 %v1814
    %v2293 = vpop.f32.mrf.mxu0
    %v2294 = vadd.f32 %v2281, %v2293
    %v2295 = vpop.f32.mrf.mxu0
    %2296 = vdwg.mxu0
    %v2297 = vmax.f32 %v1943, 0.0
    %v2298 = vmax.f32 %v2060, 0.0
    %v2299 = vmax.f32 %v2177, 0.0
    %v2300 = vmax.f32 %v2294, 0.0
    %v2301 = vpack.c.bf16 %v2297, %v2297
    %v2302 = vpack.c.bf16 %v2298, %v2298
    %v2303 = vpack.c.bf16 %v2299, %v2299
    %v2304 = vpack.c.bf16 %v2300, %v2300
    %v2305 = vld [vmem:[#allocation8] sm:$0xf]
    %v2306 = vld [vmem:[#allocation8 + $0x4] sm:$0xf]
    %v2307 = vld [vmem:[#allocation8 + $0x8] sm:$0xf]
    %v2308 = vld [vmem:[#allocation8 + $0xc] sm:$0xf]
    %v2309 = vld [vmem:[#allocation8 + $0x10] sm:$0xf]
    %v2310 = vld [vmem:[#allocation8 + $0x14] sm:$0xf]
    %v2311 = vld [vmem:[#allocation8 + $0x18] sm:$0xf]
    %v2312 = vld [vmem:[#allocation8 + $0x1c] sm:$0xf]
    %v2313 = vld [vmem:[#allocation8 + $0x20] sm:$0xf]
    %v2314 = vld [vmem:[#allocation8 + $0x24] sm:$0xf]
    %v2315 = vld [vmem:[#allocation8 + $0x28] sm:$0xf]
    %v2316 = vld [vmem:[#allocation8 + $0x2c] sm:$0xf]
    %v2317 = vld [vmem:[#allocation8 + $0x30] sm:$0xf]
    %v2318 = vld [vmem:[#allocation8 + $0x34] sm:$0xf]
    %v2319 = vld [vmem:[#allocation8 + $0x38] sm:$0xf]
    %v2320 = vld [vmem:[#allocation8 + $0x3c] sm:$0xf]
    %v2321 = vld [vmem:[#allocation8 + $0x40] sm:$0xf]
    %v2322 = vld [vmem:[#allocation8 + $0x44] sm:$0xf]
    %v2323 = vld [vmem:[#allocation8 + $0x48] sm:$0xf]
    %v2324 = vld [vmem:[#allocation8 + $0x4c] sm:$0xf]
    %v2325 = vld [vmem:[#allocation8 + $0x50] sm:$0xf]
    %v2326 = vld [vmem:[#allocation8 + $0x54] sm:$0xf]
    %v2327 = vld [vmem:[#allocation8 + $0x58] sm:$0xf]
    %v2328 = vld [vmem:[#allocation8 + $0x5c] sm:$0xf]
    %v2329 = vld [vmem:[#allocation8 + $0x60] sm:$0xf]
    %v2330 = vld [vmem:[#allocation8 + $0x64] sm:$0xf]
    %v2331 = vld [vmem:[#allocation8 + $0x68] sm:$0xf]
    %v2332 = vld [vmem:[#allocation8 + $0x6c] sm:$0xf]
    %v2333 = vld [vmem:[#allocation8 + $0x70] sm:$0xf]
    %v2334 = vld [vmem:[#allocation8 + $0x74] sm:$0xf]
    %v2335 = vld [vmem:[#allocation8 + $0x78] sm:$0xf]
    %v2336 = vld [vmem:[#allocation8 + $0x7c] sm:$0xf]
    %v2337 = vld [vmem:[#allocation8 + $0x80] sm:$0xf]
    %v2338 = vld [vmem:[#allocation8 + $0x84] sm:$0xf]
    %v2339 = vld [vmem:[#allocation8 + $0x88] sm:$0xf]
    %v2340 = vld [vmem:[#allocation8 + $0x8c] sm:$0xf]
    %v2341 = vld [vmem:[#allocation8 + $0x90] sm:$0xf]
    %v2342 = vld [vmem:[#allocation8 + $0x94] sm:$0xf]
    %v2343 = vld [vmem:[#allocation8 + $0x98] sm:$0xf]
    %v2344 = vld [vmem:[#allocation8 + $0x9c] sm:$0xf]
    %v2345 = vld [vmem:[#allocation8 + $0xa0] sm:$0xf]
    %v2346 = vld [vmem:[#allocation8 + $0xa4] sm:$0xf]
    %v2347 = vld [vmem:[#allocation8 + $0xa8] sm:$0xf]
    %v2348 = vld [vmem:[#allocation8 + $0xac] sm:$0xf]
    %v2349 = vld [vmem:[#allocation8 + $0xb0] sm:$0xf]
    %v2350 = vld [vmem:[#allocation8 + $0xb4] sm:$0xf]
    %v2351 = vld [vmem:[#allocation8 + $0xb8] sm:$0xf]
    %v2352 = vld [vmem:[#allocation8 + $0xbc] sm:$0xf]
    %v2353 = vld [vmem:[#allocation8 + $0xc0] sm:$0xf]
    %v2354 = vld [vmem:[#allocation8 + $0xc4] sm:$0xf]
    %v2355 = vld [vmem:[#allocation8 + $0xc8] sm:$0xf]
    %v2356 = vld [vmem:[#allocation8 + $0xcc] sm:$0xf]
    %v2357 = vld [vmem:[#allocation8 + $0xd0] sm:$0xf]
    %v2358 = vld [vmem:[#allocation8 + $0xd4] sm:$0xf]
    %v2359 = vld [vmem:[#allocation8 + $0xd8] sm:$0xf]
    %v2360 = vld [vmem:[#allocation8 + $0xdc] sm:$0xf]
    %v2361 = vld [vmem:[#allocation8 + $0xe0] sm:$0xf]
    %v2362 = vld [vmem:[#allocation8 + $0xe4] sm:$0xf]
    %v2363 = vld [vmem:[#allocation8 + $0xe8] sm:$0xf]
    %v2364 = vld [vmem:[#allocation8 + $0xec] sm:$0xf]
    %v2365 = vld [vmem:[#allocation8 + $0xf0] sm:$0xf]
    %v2366 = vld [vmem:[#allocation8 + $0xf4] sm:$0xf]
    %v2367 = vld [vmem:[#allocation8 + $0xf8] sm:$0xf]
    %v2368 = vld [vmem:[#allocation8 + $0xfc] sm:$0xf]
    %v2369 = vld [vmem:[#allocation10] sm:$0x1]
    %v2371 = vperm.slane %v2369, 0
    %v2437 = vunpack.c.l.b16 %v2305
    %v2438 = vunpack.c.l.b16 %v2306
    %v2439 = vunpack.c.l.b16 %v2307
    %v2440 = vunpack.c.l.b16 %v2308
    %v2441 = vunpack.c.l.b16 %v2309
    %v2442 = vunpack.c.l.b16 %v2310
    %v2443 = vunpack.c.l.b16 %v2311
    %v2444 = vunpack.c.l.b16 %v2312
    %v2445 = vunpack.c.l.b16 %v2313
    %v2446 = vunpack.c.l.b16 %v2314
    %v2447 = vunpack.c.l.b16 %v2315
    %v2448 = vunpack.c.l.b16 %v2316
    %v2449 = vunpack.c.l.b16 %v2317
    %v2450 = vunpack.c.l.b16 %v2318
    %v2451 = vunpack.c.l.b16 %v2319
    %v2452 = vunpack.c.l.b16 %v2320
    %v2453 = vunpack.c.l.b16 %v2321
    %v2454 = vunpack.c.l.b16 %v2322
    %v2455 = vunpack.c.l.b16 %v2323
    %v2456 = vunpack.c.l.b16 %v2324
    %v2457 = vunpack.c.l.b16 %v2325
    %v2458 = vunpack.c.l.b16 %v2326
    %v2459 = vunpack.c.l.b16 %v2327
    %v2460 = vunpack.c.l.b16 %v2328
    %v2461 = vunpack.c.l.b16 %v2329
    %v2462 = vunpack.c.l.b16 %v2330
    %v2463 = vunpack.c.l.b16 %v2331
    %v2464 = vunpack.c.l.b16 %v2332
    %v2465 = vunpack.c.l.b16 %v2333
    %v2466 = vunpack.c.l.b16 %v2334
    %v2467 = vunpack.c.l.b16 %v2335
    %v2468 = vunpack.c.l.b16 %v2336
    %v2469 = vunpack.c.l.b16 %v2337
    %v2470 = vunpack.c.l.b16 %v2338
    %v2471 = vunpack.c.l.b16 %v2339
    %v2472 = vunpack.c.l.b16 %v2340
    %v2473 = vunpack.c.l.b16 %v2341
    %v2474 = vunpack.c.l.b16 %v2342
    %v2475 = vunpack.c.l.b16 %v2343
    %v2476 = vunpack.c.l.b16 %v2344
    %v2477 = vunpack.c.l.b16 %v2345
    %v2478 = vunpack.c.l.b16 %v2346
    %v2479 = vunpack.c.l.b16 %v2347
    %v2480 = vunpack.c.l.b16 %v2348
    %v2481 = vunpack.c.l.b16 %v2349
    %v2482 = vunpack.c.l.b16 %v2350
    %v2483 = vunpack.c.l.b16 %v2351
    %v2484 = vunpack.c.l.b16 %v2352
    %v2485 = vunpack.c.l.b16 %v2353
    %v2486 = vunpack.c.l.b16 %v2354
    %v2487 = vunpack.c.l.b16 %v2355
    %v2488 = vunpack.c.l.b16 %v2356
    %v2489 = vunpack.c.l.b16 %v2357
    %v2490 = vunpack.c.l.b16 %v2358
    %v2491 = vunpack.c.l.b16 %v2359
    %v2492 = vunpack.c.l.b16 %v2360
    %v2493 = vunpack.c.l.b16 %v2361
    %v2494 = vunpack.c.l.b16 %v2362
    %v2495 = vunpack.c.l.b16 %v2363
    %v2496 = vunpack.c.l.b16 %v2364
    %v2497 = vunpack.c.l.b16 %v2365
    %v2498 = vunpack.c.l.b16 %v2366
    %v2499 = vunpack.c.l.b16 %v2367
    %v2500 = vunpack.c.l.b16 %v2368
    %v2501 = vpack.c.b16 %v2438, %v2437
    %v2502 = vpack.c.b16 %v2440, %v2439
    %v2503 = vpack.c.b16 %v2442, %v2441
    %v2504 = vpack.c.b16 %v2444, %v2443
    %v2505 = vpack.c.b16 %v2446, %v2445
    %v2506 = vpack.c.b16 %v2448, %v2447
    %v2507 = vpack.c.b16 %v2450, %v2449
    %v2508 = vpack.c.b16 %v2452, %v2451
    %v2509 = vpack.c.b16 %v2454, %v2453
    %v2510 = vpack.c.b16 %v2456, %v2455
    %v2511 = vpack.c.b16 %v2458, %v2457
    %v2512 = vpack.c.b16 %v2460, %v2459
    %v2513 = vpack.c.b16 %v2462, %v2461
    %v2514 = vpack.c.b16 %v2464, %v2463
    %v2515 = vpack.c.b16 %v2466, %v2465
    %v2516 = vpack.c.b16 %v2468, %v2467
    %v2517 = vpack.c.b16 %v2470, %v2469
    %v2518 = vpack.c.b16 %v2472, %v2471
    %v2519 = vpack.c.b16 %v2474, %v2473
    %v2520 = vpack.c.b16 %v2476, %v2475
    %v2521 = vpack.c.b16 %v2478, %v2477
    %v2522 = vpack.c.b16 %v2480, %v2479
    %v2523 = vpack.c.b16 %v2482, %v2481
    %v2524 = vpack.c.b16 %v2484, %v2483
    %v2525 = vpack.c.b16 %v2486, %v2485
    %v2526 = vpack.c.b16 %v2488, %v2487
    %v2527 = vpack.c.b16 %v2490, %v2489
    %v2528 = vpack.c.b16 %v2492, %v2491
    %v2529 = vpack.c.b16 %v2494, %v2493
    %v2530 = vpack.c.b16 %v2496, %v2495
    %v2531 = vpack.c.b16 %v2498, %v2497
    %v2532 = vpack.c.b16 %v2500, %v2499
    %2565 = vmatpush.bf16.msra.mxu0 %v2508
    %2566 = vmatpush.bf16.msra.mxu0 %v2507
    %2567 = vmatpush.bf16.msra.mxu0 %v2506
    %2568 = vmatpush.bf16.msra.mxu0 %v2505
    %2569 = vmatpush.bf16.msra.mxu0 %v2504
    %2570 = vmatpush.bf16.msra.mxu0 %v2503
    %2571 = vmatpush.bf16.msra.mxu0 %v2502
    %2572 = vmatpush.bf16.msra.mxu0 %v2501
    %2573 = vmatmul.bf16.gmra.mxu0 %v2301
    %v2574 = vpop.f32.mrf.mxu0
    %v2575 = vadd.f32 %v2371, %v2574
    %v2576 = vpop.f32.mrf.mxu0
    %2577 = vdwg.mxu0
    %2578 = vmatpush.bf16.msra.mxu0 %v2516
    %2579 = vmatpush.bf16.msra.mxu0 %v2515
    %2580 = vmatpush.bf16.msra.mxu0 %v2514
    %2581 = vmatpush.bf16.msra.mxu0 %v2513
    %2582 = vmatpush.bf16.msra.mxu0 %v2512
    %2583 = vmatpush.bf16.msra.mxu0 %v2511
    %2584 = vmatpush.bf16.msra.mxu0 %v2510
    %2585 = vmatpush.bf16.msra.mxu0 %v2509
    %2586 = vmatmul.bf16.gmra.mxu0 %v2302
    %v2587 = vpop.f32.mrf.mxu0
    %v2588 = vadd.f32 %v2575, %v2587
    %v2589 = vpop.f32.mrf.mxu0
    %2590 = vdwg.mxu0
    %2591 = vmatpush.bf16.msra.mxu0 %v2524
    %2592 = vmatpush.bf16.msra.mxu0 %v2523
    %2593 = vmatpush.bf16.msra.mxu0 %v2522
    %2594 = vmatpush.bf16.msra.mxu0 %v2521
    %2595 = vmatpush.bf16.msra.mxu0 %v2520
    %2596 = vmatpush.bf16.msra.mxu0 %v2519
    %2597 = vmatpush.bf16.msra.mxu0 %v2518
    %2598 = vmatpush.bf16.msra.mxu0 %v2517
    %2599 = vmatmul.bf16.gmra.mxu0 %v2303
    %v2600 = vpop.f32.mrf.mxu0
    %v2601 = vadd.f32 %v2588, %v2600
    %v2602 = vpop.f32.mrf.mxu0
    %2603 = vdwg.mxu0
    %2604 = vmatpush.bf16.msra.mxu0 %v2532
    %2605 = vmatpush.bf16.msra.mxu0 %v2531
    %2606 = vmatpush.bf16.msra.mxu0 %v2530
    %2607 = vmatpush.bf16.msra.mxu0 %v2529
    %2608 = vmatpush.bf16.msra.mxu0 %v2528
    %2609 = vmatpush.bf16.msra.mxu0 %v2527
    %2610 = vmatpush.bf16.msra.mxu0 %v2526
    %2611 = vmatpush.bf16.msra.mxu0 %v2525
    %2612 = vmatmul.bf16.gmra.mxu0 %v2304
    %v2613 = vpop.f32.mrf.mxu0
    %v2614 = vadd.f32 %v2601, %v2613
    %v2615 = vpop.f32.mrf.mxu0
    %2616 = vdwg.mxu0
    %v2617 = vpack.c.bf16 %v2614, %v2614
    %v2618 = vld [vmem:[#allocation11] sm:$0xff]
    %v2619 = vld [vmem:[#allocation11 + $0x8] sm:$0xff]
    %v2620 = vld [vmem:[#allocation11 + $0x10] sm:$0xff]
    %v2621 = vld [vmem:[#allocation11 + $0x18] sm:$0xff]
    %v2622 = vld [vmem:[#allocation11 + $0x20] sm:$0xff]
    %v2623 = vld [vmem:[#allocation11 + $0x28] sm:$0xff]
    %v2624 = vld [vmem:[#allocation11 + $0x30] sm:$0xff]
    %v2625 = vld [vmem:[#allocation11 + $0x38] sm:$0xff]
    %v2626 = vld [vmem:[#allocation11 + $0x40] sm:$0xff]
    %v2627 = vld [vmem:[#allocation11 + $0x48] sm:$0xff]
    %v2628 = vld [vmem:[#allocation11 + $0x50] sm:$0xff]
    %v2629 = vld [vmem:[#allocation11 + $0x58] sm:$0xff]
    %v2630 = vld [vmem:[#allocation11 + $0x60] sm:$0xff]
    %v2631 = vld [vmem:[#allocation11 + $0x68] sm:$0xff]
    %v2632 = vld [vmem:[#allocation11 + $0x70] sm:$0xff]
    %v2633 = vld [vmem:[#allocation11 + $0x78] sm:$0xff]
    %v2634 = vld [vmem:[#allocation11 + $0x80] sm:$0xff]
    %v2635 = vld [vmem:[#allocation11 + $0x88] sm:$0xff]
    %v2636 = vld [vmem:[#allocation11 + $0x90] sm:$0xff]
    %v2637 = vld [vmem:[#allocation11 + $0x98] sm:$0xff]
    %v2638 = vld [vmem:[#allocation11 + $0xa0] sm:$0xff]
    %v2639 = vld [vmem:[#allocation11 + $0xa8] sm:$0xff]
    %v2640 = vld [vmem:[#allocation11 + $0xb0] sm:$0xff]
    %v2641 = vld [vmem:[#allocation11 + $0xb8] sm:$0xff]
    %v2642 = vld [vmem:[#allocation11 + $0xc0] sm:$0xff]
    %v2643 = vld [vmem:[#allocation11 + $0xc8] sm:$0xff]
    %v2644 = vld [vmem:[#allocation11 + $0xd0] sm:$0xff]
    %v2645 = vld [vmem:[#allocation11 + $0xd8] sm:$0xff]
    %v2646 = vld [vmem:[#allocation11 + $0xe0] sm:$0xff]
    %v2647 = vld [vmem:[#allocation11 + $0xe8] sm:$0xff]
    %v2648 = vld [vmem:[#allocation11 + $0xf0] sm:$0xff]
    %v2649 = vld [vmem:[#allocation11 + $0xf8] sm:$0xff]
    %v2650 = vld [vmem:[#allocation13] sm:$0xf]
    %v2652 = vperm.slane %v2650, 0
    %v2653 = vperm.slane %v2650, 1
    %v2654 = vperm.slane %v2650, 2
    %v2655 = vperm.slane %v2650, 3
    %v2692 = vunpack.c.l.b16 %v2618
    %v2693 = vunpack.c.h.b16 %v2618
    %v2694 = vunpack.c.l.b16 %v2619
    %v2695 = vunpack.c.h.b16 %v2619
    %v2696 = vunpack.c.l.b16 %v2620
    %v2697 = vunpack.c.h.b16 %v2620
    %v2698 = vunpack.c.l.b16 %v2621
    %v2699 = vunpack.c.h.b16 %v2621
    %v2700 = vunpack.c.l.b16 %v2622
    %v2701 = vunpack.c.h.b16 %v2622
    %v2702 = vunpack.c.l.b16 %v2623
    %v2703 = vunpack.c.h.b16 %v2623
    %v2704 = vunpack.c.l.b16 %v2624
    %v2705 = vunpack.c.h.b16 %v2624
    %v2706 = vunpack.c.l.b16 %v2625
    %v2707 = vunpack.c.h.b16 %v2625
    %v2708 = vunpack.c.l.b16 %v2626
    %v2709 = vunpack.c.h.b16 %v2626
    %v2710 = vunpack.c.l.b16 %v2627
    %v2711 = vunpack.c.h.b16 %v2627
    %v2712 = vunpack.c.l.b16 %v2628
    %v2713 = vunpack.c.h.b16 %v2628
    %v2714 = vunpack.c.l.b16 %v2629
    %v2715 = vunpack.c.h.b16 %v2629
    %v2716 = vunpack.c.l.b16 %v2630
    %v2717 = vunpack.c.h.b16 %v2630
    %v2718 = vunpack.c.l.b16 %v2631
    %v2719 = vunpack.c.h.b16 %v2631
    %v2720 = vunpack.c.l.b16 %v2632
    %v2721 = vunpack.c.h.b16 %v2632
    %v2722 = vunpack.c.l.b16 %v2633
    %v2723 = vunpack.c.h.b16 %v2633
    %v2724 = vunpack.c.l.b16 %v2634
    %v2725 = vunpack.c.h.b16 %v2634
    %v2726 = vunpack.c.l.b16 %v2635
    %v2727 = vunpack.c.h.b16 %v2635
    %v2728 = vunpack.c.l.b16 %v2636
    %v2729 = vunpack.c.h.b16 %v2636
    %v2730 = vunpack.c.l.b16 %v2637
    %v2731 = vunpack.c.h.b16 %v2637
    %v2732 = vunpack.c.l.b16 %v2638
    %v2733 = vunpack.c.h.b16 %v2638
    %v2734 = vunpack.c.l.b16 %v2639
    %v2735 = vunpack.c.h.b16 %v2639
    %v2736 = vunpack.c.l.b16 %v2640
    %v2737 = vunpack.c.h.b16 %v2640
    %v2738 = vunpack.c.l.b16 %v2641
    %v2739 = vunpack.c.h.b16 %v2641
    %v2740 = vunpack.c.l.b16 %v2642
    %v2741 = vunpack.c.h.b16 %v2642
    %v2742 = vunpack.c.l.b16 %v2643
    %v2743 = vunpack.c.h.b16 %v2643
    %v2744 = vunpack.c.l.b16 %v2644
    %v2745 = vunpack.c.h.b16 %v2644
    %v2746 = vunpack.c.l.b16 %v2645
    %v2747 = vunpack.c.h.b16 %v2645
    %v2748 = vunpack.c.l.b16 %v2646
    %v2749 = vunpack.c.h.b16 %v2646
    %v2750 = vunpack.c.l.b16 %v2647
    %v2751 = vunpack.c.h.b16 %v2647
    %v2752 = vunpack.c.l.b16 %v2648
    %v2753 = vunpack.c.h.b16 %v2648
    %v2754 = vunpack.c.l.b16 %v2649
    %v2755 = vunpack.c.h.b16 %v2649
    %v2756 = vpack.c.b16 %v2696, %v2692
    %v2757 = vpack.c.b16 %v2697, %v2693
    %v2758 = vpack.c.b16 %v2698, %v2694
    %v2759 = vpack.c.b16 %v2699, %v2695
    %v2760 = vpack.c.b16 %v2704, %v2700
    %v2761 = vpack.c.b16 %v2705, %v2701
    %v2762 = vpack.c.b16 %v2706, %v2702
    %v2763 = vpack.c.b16 %v2707, %v2703
    %v2764 = vpack.c.b16 %v2712, %v2708
    %v2765 = vpack.c.b16 %v2713, %v2709
    %v2766 = vpack.c.b16 %v2714, %v2710
    %v2767 = vpack.c.b16 %v2715, %v2711
    %v2768 = vpack.c.b16 %v2720, %v2716
    %v2769 = vpack.c.b16 %v2721, %v2717
    %v2770 = vpack.c.b16 %v2722, %v2718
    %v2771 = vpack.c.b16 %v2723, %v2719
    %v2772 = vpack.c.b16 %v2728, %v2724
    %v2773 = vpack.c.b16 %v2729, %v2725
    %v2774 = vpack.c.b16 %v2730, %v2726
    %v2775 = vpack.c.b16 %v2731, %v2727
    %v2776 = vpack.c.b16 %v2736, %v2732
    %v2777 = vpack.c.b16 %v2737, %v2733
    %v2778 = vpack.c.b16 %v2738, %v2734
    %v2779 = vpack.c.b16 %v2739, %v2735
    %v2780 = vpack.c.b16 %v2744, %v2740
    %v2781 = vpack.c.b16 %v2745, %v2741
    %v2782 = vpack.c.b16 %v2746, %v2742
    %v2783 = vpack.c.b16 %v2747, %v2743
    %v2784 = vpack.c.b16 %v2752, %v2748
    %v2785 = vpack.c.b16 %v2753, %v2749
    %v2786 = vpack.c.b16 %v2754, %v2750
    %v2787 = vpack.c.b16 %v2755, %v2751
    %2820 = vmatpush.bf16.msra.mxu0 %v2784
    %2821 = vmatpush.bf16.msra.mxu0 %v2780
    %2822 = vmatpush.bf16.msra.mxu0 %v2776
    %2823 = vmatpush.bf16.msra.mxu0 %v2772
    %2824 = vmatpush.bf16.msra.mxu0 %v2768
    %2825 = vmatpush.bf16.msra.mxu0 %v2764
    %2826 = vmatpush.bf16.msra.mxu0 %v2760
    %2827 = vmatpush.bf16.msra.mxu0 %v2756
    %2828 = vmatmul.bf16.gmra.mxu0 %v2617
    %v2829 = vpop.f32.mrf.mxu0
    %v2830 = vadd.f32 %v2652, %v2829
    %v2831 = vpop.f32.mrf.mxu0
    %2832 = vdwg.mxu0
    %2833 = vmatpush.bf16.msra.mxu0 %v2785
    %2834 = vmatpush.bf16.msra.mxu0 %v2781
    %2835 = vmatpush.bf16.msra.mxu0 %v2777
    %2836 = vmatpush.bf16.msra.mxu0 %v2773
    %2837 = vmatpush.bf16.msra.mxu0 %v2769
    %2838 = vmatpush.bf16.msra.mxu0 %v2765
    %2839 = vmatpush.bf16.msra.mxu0 %v2761
    %2840 = vmatpush.bf16.msra.mxu0 %v2757
    %2841 = vmatmul.bf16.gmra.mxu0 %v2617
    %v2842 = vpop.f32.mrf.mxu0
    %v2843 = vadd.f32 %v2653, %v2842
    %v2844 = vpop.f32.mrf.mxu0
    %2845 = vdwg.mxu0
    %2846 = vmatpush.bf16.msra.mxu0 %v2786
    %2847 = vmatpush.bf16.msra.mxu0 %v2782
    %2848 = vmatpush.bf16.msra.mxu0 %v2778
    %2849 = vmatpush.bf16.msra.mxu0 %v2774
    %2850 = vmatpush.bf16.msra.mxu0 %v2770
    %2851 = vmatpush.bf16.msra.mxu0 %v2766
    %2852 = vmatpush.bf16.msra.mxu0 %v2762
    %2853 = vmatpush.bf16.msra.mxu0 %v2758
    %2854 = vmatmul.bf16.gmra.mxu0 %v2617
    %v2855 = vpop.f32.mrf.mxu0
    %v2856 = vadd.f32 %v2654, %v2855
    %v2857 = vpop.f32.mrf.mxu0
    %2858 = vdwg.mxu0
    %2859 = vmatpush.bf16.msra.mxu0 %v2787
    %2860 = vmatpush.bf16.msra.mxu0 %v2783
    %2861 = vmatpush.bf16.msra.mxu0 %v2779
    %2862 = vmatpush.bf16.msra.mxu0 %v2775
    %2863 = vmatpush.bf16.msra.mxu0 %v2771
    %2864 = vmatpush.bf16.msra.mxu0 %v2767
    %2865 = vmatpush.bf16.msra.mxu0 %v2763
    %2866 = vmatpush.bf16.msra.mxu0 %v2759
    %2867 = vmatmul.bf16.gmra.mxu0 %v2617
    %v2868 = vpop.f32.mrf.mxu0
    %v2869 = vadd.f32 %v2655, %v2868
    %v2870 = vpop.f32.mrf.mxu0
    %2871 = vdwg.mxu0
    %v2872 = vmax.f32 %v2830, 0.0
    %v2873 = vmax.f32 %v2843, 0.0
    %v2874 = vmax.f32 %v2856, 0.0
    %v2875 = vmax.f32 %v2869, 0.0
    %v2876 = vpack.c.bf16 %v2872, %v2872
    %v2877 = vpack.c.bf16 %v2873, %v2873
    %v2878 = vpack.c.bf16 %v2874, %v2874
    %v2879 = vpack.c.bf16 %v2875, %v2875
    %v2880 = vld [vmem:[#allocation14] sm:$0xff]
    %v2881 = vld [vmem:[#allocation14 + $0x8] sm:$0xff]
    %v2882 = vld [vmem:[#allocation14 + $0x10] sm:$0xff]
    %v2883 = vld [vmem:[#allocation14 + $0x18] sm:$0xff]
    %v2884 = vld [vmem:[#allocation14 + $0x20] sm:$0xf]
    %v2885 = vld [vmem:[#allocation14 + $0x24] sm:$0xff]
    %v2886 = vld [vmem:[#allocation14 + $0x2c] sm:$0xff]
    %v2887 = vld [vmem:[#allocation14 + $0x34] sm:$0xff]
    %v2888 = vld [vmem:[#allocation14 + $0x3c] sm:$0xff]
    %v2889 = vld [vmem:[#allocation14 + $0x44] sm:$0xf]
    %v2890 = vld [vmem:[#allocation14 + $0x48] sm:$0xff]
    %v2891 = vld [vmem:[#allocation14 + $0x50] sm:$0xff]
    %v2892 = vld [vmem:[#allocation14 + $0x58] sm:$0xff]
    %v2893 = vld [vmem:[#allocation14 + $0x60] sm:$0xff]
    %v2894 = vld [vmem:[#allocation14 + $0x68] sm:$0xf]
    %v2895 = vld [vmem:[#allocation14 + $0x6c] sm:$0xff]
    %v2896 = vld [vmem:[#allocation14 + $0x74] sm:$0xff]
    %v2897 = vld [vmem:[#allocation14 + $0x7c] sm:$0xff]
    %v2898 = vld [vmem:[#allocation14 + $0x84] sm:$0xff]
    %v2899 = vld [vmem:[#allocation14 + $0x8c] sm:$0xf]
    %v2900 = vld [vmem:[#allocation14 + $0x90] sm:$0xff]
    %v2901 = vld [vmem:[#allocation14 + $0x98] sm:$0xff]
    %v2902 = vld [vmem:[#allocation14 + $0xa0] sm:$0xff]
    %v2903 = vld [vmem:[#allocation14 + $0xa8] sm:$0xff]
    %v2904 = vld [vmem:[#allocation14 + $0xb0] sm:$0xf]
    %v2905 = vld [vmem:[#allocation14 + $0xb4] sm:$0xff]
    %v2906 = vld [vmem:[#allocation14 + $0xbc] sm:$0xff]
    %v2907 = vld [vmem:[#allocation14 + $0xc4] sm:$0xff]
    %v2908 = vld [vmem:[#allocation14 + $0xcc] sm:$0xff]
    %v2909 = vld [vmem:[#allocation14 + $0xd4] sm:$0xf]
    %v2910 = vld [vmem:[#allocation14 + $0xd8] sm:$0xff]
    %v2911 = vld [vmem:[#allocation14 + $0xe0] sm:$0xff]
    %v2912 = vld [vmem:[#allocation14 + $0xe8] sm:$0xff]
    %v2913 = vld [vmem:[#allocation14 + $0xf0] sm:$0xff]
    %v2914 = vld [vmem:[#allocation14 + $0xf8] sm:$0xf]
    %v2915 = vld [vmem:[#allocation14 + $0xfc] sm:$0xff]
    %v2916 = vld [vmem:[#allocation14 + $0x104] sm:$0xff]
    %v2917 = vld [vmem:[#allocation14 + $0x10c] sm:$0xff]
    %v2918 = vld [vmem:[#allocation14 + $0x114] sm:$0xff]
    %v2919 = vld [vmem:[#allocation14 + $0x11c] sm:$0xf]
    %v2920 = vld [vmem:[#allocation14 + $0x120] sm:$0xff]
    %v2921 = vld [vmem:[#allocation14 + $0x128] sm:$0xff]
    %v2922 = vld [vmem:[#allocation14 + $0x130] sm:$0xff]
    %v2923 = vld [vmem:[#allocation14 + $0x138] sm:$0xff]
    %v2924 = vld [vmem:[#allocation14 + $0x140] sm:$0xf]
    %v2925 = vld [vmem:[#allocation14 + $0x144] sm:$0xff]
    %v2926 = vld [vmem:[#allocation14 + $0x14c] sm:$0xff]
    %v2927 = vld [vmem:[#allocation14 + $0x154] sm:$0xff]
    %v2928 = vld [vmem:[#allocation14 + $0x15c] sm:$0xff]
    %v2929 = vld [vmem:[#allocation14 + $0x164] sm:$0xf]
    %v2930 = vld [vmem:[#allocation14 + $0x168] sm:$0xff]
    %v2931 = vld [vmem:[#allocation14 + $0x170] sm:$0xff]
    %v2932 = vld [vmem:[#allocation14 + $0x178] sm:$0xff]
    %v2933 = vld [vmem:[#allocation14 + $0x180] sm:$0xff]
    %v2934 = vld [vmem:[#allocation14 + $0x188] sm:$0xf]
    %v2935 = vld [vmem:[#allocation14 + $0x18c] sm:$0xff]
    %v2936 = vld [vmem:[#allocation14 + $0x194] sm:$0xff]
    %v2937 = vld [vmem:[#allocation14 + $0x19c] sm:$0xff]
    %v2938 = vld [vmem:[#allocation14 + $0x1a4] sm:$0xff]
    %v2939 = vld [vmem:[#allocation14 + $0x1ac] sm:$0xf]
    %v2940 = vld [vmem:[#allocation14 + $0x1b0] sm:$0xff]
    %v2941 = vld [vmem:[#allocation14 + $0x1b8] sm:$0xff]
    %v2942 = vld [vmem:[#allocation14 + $0x1c0] sm:$0xff]
    %v2943 = vld [vmem:[#allocation14 + $0x1c8] sm:$0xff]
    %v2944 = vld [vmem:[#allocation14 + $0x1d0] sm:$0xf]
    %v2945 = vld [vmem:[#allocation14 + $0x1d4] sm:$0xff]
    %v2946 = vld [vmem:[#allocation14 + $0x1dc] sm:$0xff]
    %v2947 = vld [vmem:[#allocation14 + $0x1e4] sm:$0xff]
    %v2948 = vld [vmem:[#allocation14 + $0x1ec] sm:$0xff]
    %v2949 = vld [vmem:[#allocation14 + $0x1f4] sm:$0xf]
    %v2950 = vld [vmem:[#allocation14 + $0x1f8] sm:$0xff]
    %v2951 = vld [vmem:[#allocation14 + $0x200] sm:$0xff]
    %v2952 = vld [vmem:[#allocation14 + $0x208] sm:$0xff]
    %v2953 = vld [vmem:[#allocation14 + $0x210] sm:$0xff]
    %v2954 = vld [vmem:[#allocation14 + $0x218] sm:$0xf]
    %v2955 = vld [vmem:[#allocation14 + $0x21c] sm:$0xff]
    %v2956 = vld [vmem:[#allocation14 + $0x224] sm:$0xff]
    %v2957 = vld [vmem:[#allocation14 + $0x22c] sm:$0xff]
    %v2958 = vld [vmem:[#allocation14 + $0x234] sm:$0xff]
    %v2959 = vld [vmem:[#allocation14 + $0x23c] sm:$0xf]
    %v2960 = vld [vmem:[#allocation14 + $0x240] sm:$0xff]
    %v2961 = vld [vmem:[#allocation14 + $0x248] sm:$0xff]
    %v2962 = vld [vmem:[#allocation14 + $0x250] sm:$0xff]
    %v2963 = vld [vmem:[#allocation14 + $0x258] sm:$0xff]
    %v2964 = vld [vmem:[#allocation14 + $0x260] sm:$0xf]
    %v2965 = vld [vmem:[#allocation14 + $0x264] sm:$0xff]
    %v2966 = vld [vmem:[#allocation14 + $0x26c] sm:$0xff]
    %v2967 = vld [vmem:[#allocation14 + $0x274] sm:$0xff]
    %v2968 = vld [vmem:[#allocation14 + $0x27c] sm:$0xff]
    %v2969 = vld [vmem:[#allocation14 + $0x284] sm:$0xf]
    %v2970 = vld [vmem:[#allocation14 + $0x288] sm:$0xff]
    %v2971 = vld [vmem:[#allocation14 + $0x290] sm:$0xff]
    %v2972 = vld [vmem:[#allocation14 + $0x298] sm:$0xff]
    %v2973 = vld [vmem:[#allocation14 + $0x2a0] sm:$0xff]
    %v2974 = vld [vmem:[#allocation14 + $0x2a8] sm:$0xf]
    %v2975 = vld [vmem:[#allocation14 + $0x2ac] sm:$0xff]
    %v2976 = vld [vmem:[#allocation14 + $0x2b4] sm:$0xff]
    %v2977 = vld [vmem:[#allocation14 + $0x2bc] sm:$0xff]
    %v2978 = vld [vmem:[#allocation14 + $0x2c4] sm:$0xff]
    %v2979 = vld [vmem:[#allocation14 + $0x2cc] sm:$0xf]
    %v2980 = vld [vmem:[#allocation14 + $0x2d0] sm:$0xff]
    %v2981 = vld [vmem:[#allocation14 + $0x2d8] sm:$0xff]
    %v2982 = vld [vmem:[#allocation14 + $0x2e0] sm:$0xff]
    %v2983 = vld [vmem:[#allocation14 + $0x2e8] sm:$0xff]
    %v2984 = vld [vmem:[#allocation14 + $0x2f0] sm:$0xf]
    %v2985 = vld [vmem:[#allocation14 + $0x2f4] sm:$0xff]
    %v2986 = vld [vmem:[#allocation14 + $0x2fc] sm:$0xff]
    %v2987 = vld [vmem:[#allocation14 + $0x304] sm:$0xff]
    %v2988 = vld [vmem:[#allocation14 + $0x30c] sm:$0xff]
    %v2989 = vld [vmem:[#allocation14 + $0x314] sm:$0xf]
    %v2990 = vld [vmem:[#allocation14 + $0x318] sm:$0xff]
    %v2991 = vld [vmem:[#allocation14 + $0x320] sm:$0xff]
    %v2992 = vld [vmem:[#allocation14 + $0x328] sm:$0xff]
    %v2993 = vld [vmem:[#allocation14 + $0x330] sm:$0xff]
    %v2994 = vld [vmem:[#allocation14 + $0x338] sm:$0xf]
    %v2995 = vld [vmem:[#allocation14 + $0x33c] sm:$0xff]
    %v2996 = vld [vmem:[#allocation14 + $0x344] sm:$0xff]
    %v2997 = vld [vmem:[#allocation14 + $0x34c] sm:$0xff]
    %v2998 = vld [vmem:[#allocation14 + $0x354] sm:$0xff]
    %v2999 = vld [vmem:[#allocation14 + $0x35c] sm:$0xf]
    %v3000 = vld [vmem:[#allocation14 + $0x360] sm:$0xff]
    %v3001 = vld [vmem:[#allocation14 + $0x368] sm:$0xff]
    %v3002 = vld [vmem:[#allocation14 + $0x370] sm:$0xff]
    %v3003 = vld [vmem:[#allocation14 + $0x378] sm:$0xff]
    %v3004 = vld [vmem:[#allocation14 + $0x380] sm:$0xf]
    %v3005 = vld [vmem:[#allocation14 + $0x384] sm:$0xff]
    %v3006 = vld [vmem:[#allocation14 + $0x38c] sm:$0xff]
    %v3007 = vld [vmem:[#allocation14 + $0x394] sm:$0xff]
    %v3008 = vld [vmem:[#allocation14 + $0x39c] sm:$0xff]
    %v3009 = vld [vmem:[#allocation14 + $0x3a4] sm:$0xf]
    %v3010 = vld [vmem:[#allocation14 + $0x3a8] sm:$0xff]
    %v3011 = vld [vmem:[#allocation14 + $0x3b0] sm:$0xff]
    %v3012 = vld [vmem:[#allocation14 + $0x3b8] sm:$0xff]
    %v3013 = vld [vmem:[#allocation14 + $0x3c0] sm:$0xff]
    %v3014 = vld [vmem:[#allocation14 + $0x3c8] sm:$0xf]
    %v3015 = vld [vmem:[#allocation14 + $0x3cc] sm:$0xff]
    %v3016 = vld [vmem:[#allocation14 + $0x3d4] sm:$0xff]
    %v3017 = vld [vmem:[#allocation14 + $0x3dc] sm:$0xff]
    %v3018 = vld [vmem:[#allocation14 + $0x3e4] sm:$0xff]
    %v3019 = vld [vmem:[#allocation14 + $0x3ec] sm:$0xf]
    %v3020 = vld [vmem:[#allocation14 + $0x3f0] sm:$0xff]
    %v3021 = vld [vmem:[#allocation14 + $0x3f8] sm:$0xff]
    %v3022 = vld [vmem:[#allocation14 + $0x400] sm:$0xff]
    %v3023 = vld [vmem:[#allocation14 + $0x408] sm:$0xff]
    %v3024 = vld [vmem:[#allocation14 + $0x410] sm:$0xf]
    %v3025 = vld [vmem:[#allocation14 + $0x414] sm:$0xff]
    %v3026 = vld [vmem:[#allocation14 + $0x41c] sm:$0xff]
    %v3027 = vld [vmem:[#allocation14 + $0x424] sm:$0xff]
    %v3028 = vld [vmem:[#allocation14 + $0x42c] sm:$0xff]
    %v3029 = vld [vmem:[#allocation14 + $0x434] sm:$0xf]
    %v3030 = vld [vmem:[#allocation14 + $0x438] sm:$0xff]
    %v3031 = vld [vmem:[#allocation14 + $0x440] sm:$0xff]
    %v3032 = vld [vmem:[#allocation14 + $0x448] sm:$0xff]
    %v3033 = vld [vmem:[#allocation14 + $0x450] sm:$0xff]
    %v3034 = vld [vmem:[#allocation14 + $0x458] sm:$0xf]
    %v3035 = vld [vmem:[#allocation14 + $0x45c] sm:$0xff]
    %v3036 = vld [vmem:[#allocation14 + $0x464] sm:$0xff]
    %v3037 = vld [vmem:[#allocation14 + $0x46c] sm:$0xff]
    %v3038 = vld [vmem:[#allocation14 + $0x474] sm:$0xff]
    %v3039 = vld [vmem:[#allocation14 + $0x47c] sm:$0xf]
    %v3040 = vld [vmem:[#allocation14 + $0x480] sm:$0xff]
    %v3041 = vld [vmem:[#allocation14 + $0x488] sm:$0xff]
    %v3042 = vld [vmem:[#allocation14 + $0x490] sm:$0xff]
    %v3043 = vld [vmem:[#allocation14 + $0x498] sm:$0xff]
    %v3044 = vld [vmem:[#allocation14 + $0x4a0] sm:$0xf]
    %v3045 = vld [vmem:[#allocation14 + $0x4a4] sm:$0xff]
    %v3046 = vld [vmem:[#allocation14 + $0x4ac] sm:$0xff]
    %v3047 = vld [vmem:[#allocation14 + $0x4b4] sm:$0xff]
    %v3048 = vld [vmem:[#allocation14 + $0x4bc] sm:$0xff]
    %v3049 = vld [vmem:[#allocation14 + $0x4c4] sm:$0xf]
    %v3050 = vld [vmem:[#allocation14 + $0x4c8] sm:$0xff]
    %v3051 = vld [vmem:[#allocation14 + $0x4d0] sm:$0xff]
    %v3052 = vld [vmem:[#allocation14 + $0x4d8] sm:$0xff]
    %v3053 = vld [vmem:[#allocation14 + $0x4e0] sm:$0xff]
    %v3054 = vld [vmem:[#allocation14 + $0x4e8] sm:$0xf]
    %v3055 = vld [vmem:[#allocation14 + $0x4ec] sm:$0xff]
    %v3056 = vld [vmem:[#allocation14 + $0x4f4] sm:$0xff]
    %v3057 = vld [vmem:[#allocation14 + $0x4fc] sm:$0xff]
    %v3058 = vld [vmem:[#allocation14 + $0x504] sm:$0xff]
    %v3059 = vld [vmem:[#allocation14 + $0x50c] sm:$0xf]
    %v3060 = vld [vmem:[#allocation14 + $0x510] sm:$0xff]
    %v3061 = vld [vmem:[#allocation14 + $0x518] sm:$0xff]
    %v3062 = vld [vmem:[#allocation14 + $0x520] sm:$0xff]
    %v3063 = vld [vmem:[#allocation14 + $0x528] sm:$0xff]
    %v3064 = vld [vmem:[#allocation14 + $0x530] sm:$0xf]
    %v3065 = vld [vmem:[#allocation14 + $0x534] sm:$0xff]
    %v3066 = vld [vmem:[#allocation14 + $0x53c] sm:$0xff]
    %v3067 = vld [vmem:[#allocation14 + $0x544] sm:$0xff]
    %v3068 = vld [vmem:[#allocation14 + $0x54c] sm:$0xff]
    %v3069 = vld [vmem:[#allocation14 + $0x554] sm:$0xf]
    %v3070 = vld [vmem:[#allocation14 + $0x558] sm:$0xff]
    %v3071 = vld [vmem:[#allocation14 + $0x560] sm:$0xff]
    %v3072 = vld [vmem:[#allocation14 + $0x568] sm:$0xff]
    %v3073 = vld [vmem:[#allocation14 + $0x570] sm:$0xff]
    %v3074 = vld [vmem:[#allocation14 + $0x578] sm:$0xf]
    %v3075 = vld [vmem:[#allocation14 + $0x57c] sm:$0xff]
    %v3076 = vld [vmem:[#allocation14 + $0x584] sm:$0xff]
    %v3077 = vld [vmem:[#allocation14 + $0x58c] sm:$0xff]
    %v3078 = vld [vmem:[#allocation14 + $0x594] sm:$0xff]
    %v3079 = vld [vmem:[#allocation14 + $0x59c] sm:$0xf]
    %v3080 = vld [vmem:[#allocation14 + $0x5a0] sm:$0xff]
    %v3081 = vld [vmem:[#allocation14 + $0x5a8] sm:$0xff]
    %v3082 = vld [vmem:[#allocation14 + $0x5b0] sm:$0xff]
    %v3083 = vld [vmem:[#allocation14 + $0x5b8] sm:$0xff]
    %v3084 = vld [vmem:[#allocation14 + $0x5c0] sm:$0xf]
    %v3085 = vld [vmem:[#allocation14 + $0x5c4] sm:$0xff]
    %v3086 = vld [vmem:[#allocation14 + $0x5cc] sm:$0xff]
    %v3087 = vld [vmem:[#allocation14 + $0x5d4] sm:$0xff]
    %v3088 = vld [vmem:[#allocation14 + $0x5dc] sm:$0xff]
    %v3089 = vld [vmem:[#allocation14 + $0x5e4] sm:$0xf]
    %v3090 = vld [vmem:[#allocation14 + $0x5e8] sm:$0xff]
    %v3091 = vld [vmem:[#allocation14 + $0x5f0] sm:$0xff]
    %v3092 = vld [vmem:[#allocation14 + $0x5f8] sm:$0xff]
    %v3093 = vld [vmem:[#allocation14 + $0x600] sm:$0xff]
    %v3094 = vld [vmem:[#allocation14 + $0x608] sm:$0xf]
    %v3095 = vld [vmem:[#allocation14 + $0x60c] sm:$0xff]
    %v3096 = vld [vmem:[#allocation14 + $0x614] sm:$0xff]
    %v3097 = vld [vmem:[#allocation14 + $0x61c] sm:$0xff]
    %v3098 = vld [vmem:[#allocation14 + $0x624] sm:$0xff]
    %v3099 = vld [vmem:[#allocation14 + $0x62c] sm:$0xf]
    %v3100 = vld [vmem:[#allocation14 + $0x630] sm:$0xff]
    %v3101 = vld [vmem:[#allocation14 + $0x638] sm:$0xff]
    %v3102 = vld [vmem:[#allocation14 + $0x640] sm:$0xff]
    %v3103 = vld [vmem:[#allocation14 + $0x648] sm:$0xff]
    %v3104 = vld [vmem:[#allocation14 + $0x650] sm:$0xf]
    %v3105 = vld [vmem:[#allocation14 + $0x654] sm:$0xff]
    %v3106 = vld [vmem:[#allocation14 + $0x65c] sm:$0xff]
    %v3107 = vld [vmem:[#allocation14 + $0x664] sm:$0xff]
    %v3108 = vld [vmem:[#allocation14 + $0x66c] sm:$0xff]
    %v3109 = vld [vmem:[#allocation14 + $0x674] sm:$0xf]
    %v3110 = vld [vmem:[#allocation14 + $0x678] sm:$0xff]
    %v3111 = vld [vmem:[#allocation14 + $0x680] sm:$0xff]
    %v3112 = vld [vmem:[#allocation14 + $0x688] sm:$0xff]
    %v3113 = vld [vmem:[#allocation14 + $0x690] sm:$0xff]
    %v3114 = vld [vmem:[#allocation14 + $0x698] sm:$0xf]
    %v3115 = vld [vmem:[#allocation14 + $0x69c] sm:$0xff]
    %v3116 = vld [vmem:[#allocation14 + $0x6a4] sm:$0xff]
    %v3117 = vld [vmem:[#allocation14 + $0x6ac] sm:$0xff]
    %v3118 = vld [vmem:[#allocation14 + $0x6b4] sm:$0xff]
    %v3119 = vld [vmem:[#allocation14 + $0x6bc] sm:$0xf]
    %v3120 = vld [vmem:[#allocation14 + $0x6c0] sm:$0xff]
    %v3121 = vld [vmem:[#allocation14 + $0x6c8] sm:$0xff]
    %v3122 = vld [vmem:[#allocation14 + $0x6d0] sm:$0xff]
    %v3123 = vld [vmem:[#allocation14 + $0x6d8] sm:$0xff]
    %v3124 = vld [vmem:[#allocation14 + $0x6e0] sm:$0xf]
    %v3125 = vld [vmem:[#allocation14 + $0x6e4] sm:$0xff]
    %v3126 = vld [vmem:[#allocation14 + $0x6ec] sm:$0xff]
    %v3127 = vld [vmem:[#allocation14 + $0x6f4] sm:$0xff]
    %v3128 = vld [vmem:[#allocation14 + $0x6fc] sm:$0xff]
    %v3129 = vld [vmem:[#allocation14 + $0x704] sm:$0xf]
    %v3130 = vld [vmem:[#allocation14 + $0x708] sm:$0xff]
    %v3131 = vld [vmem:[#allocation14 + $0x710] sm:$0xff]
    %v3132 = vld [vmem:[#allocation14 + $0x718] sm:$0xff]
    %v3133 = vld [vmem:[#allocation14 + $0x720] sm:$0xff]
    %v3134 = vld [vmem:[#allocation14 + $0x728] sm:$0xf]
    %v3135 = vld [vmem:[#allocation14 + $0x72c] sm:$0xff]
    %v3136 = vld [vmem:[#allocation14 + $0x734] sm:$0xff]
    %v3137 = vld [vmem:[#allocation14 + $0x73c] sm:$0xff]
    %v3138 = vld [vmem:[#allocation14 + $0x744] sm:$0xff]
    %v3139 = vld [vmem:[#allocation14 + $0x74c] sm:$0xf]
    %v3140 = vld [vmem:[#allocation14 + $0x750] sm:$0xff]
    %v3141 = vld [vmem:[#allocation14 + $0x758] sm:$0xff]
    %v3142 = vld [vmem:[#allocation14 + $0x760] sm:$0xff]
    %v3143 = vld [vmem:[#allocation14 + $0x768] sm:$0xff]
    %v3144 = vld [vmem:[#allocation14 + $0x770] sm:$0xf]
    %v3145 = vld [vmem:[#allocation14 + $0x774] sm:$0xff]
    %v3146 = vld [vmem:[#allocation14 + $0x77c] sm:$0xff]
    %v3147 = vld [vmem:[#allocation14 + $0x784] sm:$0xff]
    %v3148 = vld [vmem:[#allocation14 + $0x78c] sm:$0xff]
    %v3149 = vld [vmem:[#allocation14 + $0x794] sm:$0xf]
    %v3150 = vld [vmem:[#allocation14 + $0x798] sm:$0xff]
    %v3151 = vld [vmem:[#allocation14 + $0x7a0] sm:$0xff]
    %v3152 = vld [vmem:[#allocation14 + $0x7a8] sm:$0xff]
    %v3153 = vld [vmem:[#allocation14 + $0x7b0] sm:$0xff]
    %v3154 = vld [vmem:[#allocation14 + $0x7b8] sm:$0xf]
    %v3155 = vld [vmem:[#allocation14 + $0x7bc] sm:$0xff]
    %v3156 = vld [vmem:[#allocation14 + $0x7c4] sm:$0xff]
    %v3157 = vld [vmem:[#allocation14 + $0x7cc] sm:$0xff]
    %v3158 = vld [vmem:[#allocation14 + $0x7d4] sm:$0xff]
    %v3159 = vld [vmem:[#allocation14 + $0x7dc] sm:$0xf]
    %v3160 = vld [vmem:[#allocation14 + $0x7e0] sm:$0xff]
    %v3161 = vld [vmem:[#allocation14 + $0x7e8] sm:$0xff]
    %v3162 = vld [vmem:[#allocation14 + $0x7f0] sm:$0xff]
    %v3163 = vld [vmem:[#allocation14 + $0x7f8] sm:$0xff]
    %v3164 = vld [vmem:[#allocation14 + $0x800] sm:$0xf]
    %v3165 = vld [vmem:[#allocation14 + $0x804] sm:$0xff]
    %v3166 = vld [vmem:[#allocation14 + $0x80c] sm:$0xff]
    %v3167 = vld [vmem:[#allocation14 + $0x814] sm:$0xff]
    %v3168 = vld [vmem:[#allocation14 + $0x81c] sm:$0xff]
    %v3169 = vld [vmem:[#allocation14 + $0x824] sm:$0xf]
    %v3170 = vld [vmem:[#allocation14 + $0x828] sm:$0xff]
    %v3171 = vld [vmem:[#allocation14 + $0x830] sm:$0xff]
    %v3172 = vld [vmem:[#allocation14 + $0x838] sm:$0xff]
    %v3173 = vld [vmem:[#allocation14 + $0x840] sm:$0xff]
    %v3174 = vld [vmem:[#allocation14 + $0x848] sm:$0xf]
    %v3175 = vld [vmem:[#allocation14 + $0x84c] sm:$0xff]
    %v3176 = vld [vmem:[#allocation14 + $0x854] sm:$0xff]
    %v3177 = vld [vmem:[#allocation14 + $0x85c] sm:$0xff]
    %v3178 = vld [vmem:[#allocation14 + $0x864] sm:$0xff]
    %v3179 = vld [vmem:[#allocation14 + $0x86c] sm:$0xf]
    %v3180 = vld [vmem:[#allocation14 + $0x870] sm:$0xff]
    %v3181 = vld [vmem:[#allocation14 + $0x878] sm:$0xff]
    %v3182 = vld [vmem:[#allocation14 + $0x880] sm:$0xff]
    %v3183 = vld [vmem:[#allocation14 + $0x888] sm:$0xff]
    %v3184 = vld [vmem:[#allocation14 + $0x890] sm:$0xf]
    %v3185 = vld [vmem:[#allocation14 + $0x894] sm:$0xff]
    %v3186 = vld [vmem:[#allocation14 + $0x89c] sm:$0xff]
    %v3187 = vld [vmem:[#allocation14 + $0x8a4] sm:$0xff]
    %v3188 = vld [vmem:[#allocation14 + $0x8ac] sm:$0xff]
    %v3189 = vld [vmem:[#allocation14 + $0x8b4] sm:$0xf]
    %v3190 = vld [vmem:[#allocation14 + $0x8b8] sm:$0xff]
    %v3191 = vld [vmem:[#allocation14 + $0x8c0] sm:$0xff]
    %v3192 = vld [vmem:[#allocation14 + $0x8c8] sm:$0xff]
    %v3193 = vld [vmem:[#allocation14 + $0x8d0] sm:$0xff]
    %v3194 = vld [vmem:[#allocation14 + $0x8d8] sm:$0xf]
    %v3195 = vld [vmem:[#allocation14 + $0x8dc] sm:$0xff]
    %v3196 = vld [vmem:[#allocation14 + $0x8e4] sm:$0xff]
    %v3197 = vld [vmem:[#allocation14 + $0x8ec] sm:$0xff]
    %v3198 = vld [vmem:[#allocation14 + $0x8f4] sm:$0xff]
    %v3199 = vld [vmem:[#allocation14 + $0x8fc] sm:$0xf]
    %v3200 = vld [vmem:[#allocation16] sm:$0xff]
    %v3201 = vld [vmem:[#allocation16 + $0x8] sm:$0x1]
    %v3204 = vperm.slane %v3200, 0
    %v3205 = vperm.slane %v3200, 1
    %v3206 = vperm.slane %v3200, 2
    %v3207 = vperm.slane %v3200, 3
    %v3208 = vperm.slane %v3200, 4
    %v3209 = vperm.slane %v3200, 5
    %v3210 = vperm.slane %v3200, 6
    %v3211 = vperm.slane %v3200, 7
    %v3212 = vperm.slane %v3201, 0
    %v3542 = vunpack.c.l.b16 %v2880
    %v3543 = vunpack.c.h.b16 %v2880
    %v3544 = vunpack.c.l.b16 %v2881
    %v3545 = vunpack.c.h.b16 %v2881
    %v3546 = vunpack.c.l.b16 %v2882
    %v3547 = vunpack.c.h.b16 %v2882
    %v3548 = vunpack.c.l.b16 %v2883
    %v3549 = vunpack.c.h.b16 %v2883
    %v3550 = vunpack.c.l.b16 %v2884
    %v3551 = vunpack.c.l.b16 %v2885
    %v3552 = vunpack.c.h.b16 %v2885
    %v3553 = vunpack.c.l.b16 %v2886
    %v3554 = vunpack.c.h.b16 %v2886
    %v3555 = vunpack.c.l.b16 %v2887
    %v3556 = vunpack.c.h.b16 %v2887
    %v3557 = vunpack.c.l.b16 %v2888
    %v3558 = vunpack.c.h.b16 %v2888
    %v3559 = vunpack.c.l.b16 %v2889
    %v3560 = vunpack.c.l.b16 %v2890
    %v3561 = vunpack.c.h.b16 %v2890
    %v3562 = vunpack.c.l.b16 %v2891
    %v3563 = vunpack.c.h.b16 %v2891
    %v3564 = vunpack.c.l.b16 %v2892
    %v3565 = vunpack.c.h.b16 %v2892
    %v3566 = vunpack.c.l.b16 %v2893
    %v3567 = vunpack.c.h.b16 %v2893
    %v3568 = vunpack.c.l.b16 %v2894
    %v3569 = vunpack.c.l.b16 %v2895
    %v3570 = vunpack.c.h.b16 %v2895
    %v3571 = vunpack.c.l.b16 %v2896
    %v3572 = vunpack.c.h.b16 %v2896
    %v3573 = vunpack.c.l.b16 %v2897
    %v3574 = vunpack.c.h.b16 %v2897
    %v3575 = vunpack.c.l.b16 %v2898
    %v3576 = vunpack.c.h.b16 %v2898
    %v3577 = vunpack.c.l.b16 %v2899
    %v3578 = vunpack.c.l.b16 %v2900
    %v3579 = vunpack.c.h.b16 %v2900
    %v3580 = vunpack.c.l.b16 %v2901
    %v3581 = vunpack.c.h.b16 %v2901
    %v3582 = vunpack.c.l.b16 %v2902
    %v3583 = vunpack.c.h.b16 %v2902
    %v3584 = vunpack.c.l.b16 %v2903
    %v3585 = vunpack.c.h.b16 %v2903
    %v3586 = vunpack.c.l.b16 %v2904
    %v3587 = vunpack.c.l.b16 %v2905
    %v3588 = vunpack.c.h.b16 %v2905
    %v3589 = vunpack.c.l.b16 %v2906
    %v3590 = vunpack.c.h.b16 %v2906
    %v3591 = vunpack.c.l.b16 %v2907
    %v3592 = vunpack.c.h.b16 %v2907
    %v3593 = vunpack.c.l.b16 %v2908
    %v3594 = vunpack.c.h.b16 %v2908
    %v3595 = vunpack.c.l.b16 %v2909
    %v3596 = vunpack.c.l.b16 %v2910
    %v3597 = vunpack.c.h.b16 %v2910
    %v3598 = vunpack.c.l.b16 %v2911
    %v3599 = vunpack.c.h.b16 %v2911
    %v3600 = vunpack.c.l.b16 %v2912
    %v3601 = vunpack.c.h.b16 %v2912
    %v3602 = vunpack.c.l.b16 %v2913
    %v3603 = vunpack.c.h.b16 %v2913
    %v3604 = vunpack.c.l.b16 %v2914
    %v3605 = vunpack.c.l.b16 %v2915
    %v3606 = vunpack.c.h.b16 %v2915
    %v3607 = vunpack.c.l.b16 %v2916
    %v3608 = vunpack.c.h.b16 %v2916
    %v3609 = vunpack.c.l.b16 %v2917
    %v3610 = vunpack.c.h.b16 %v2917
    %v3611 = vunpack.c.l.b16 %v2918
    %v3612 = vunpack.c.h.b16 %v2918
    %v3613 = vunpack.c.l.b16 %v2919
    %v3614 = vunpack.c.l.b16 %v2920
    %v3615 = vunpack.c.h.b16 %v2920
    %v3616 = vunpack.c.l.b16 %v2921
    %v3617 = vunpack.c.h.b16 %v2921
    %v3618 = vunpack.c.l.b16 %v2922
    %v3619 = vunpack.c.h.b16 %v2922
    %v3620 = vunpack.c.l.b16 %v2923
    %v3621 = vunpack.c.h.b16 %v2923
    %v3622 = vunpack.c.l.b16 %v2924
    %v3623 = vunpack.c.l.b16 %v2925
    %v3624 = vunpack.c.h.b16 %v2925
    %v3625 = vunpack.c.l.b16 %v2926
    %v3626 = vunpack.c.h.b16 %v2926
    %v3627 = vunpack.c.l.b16 %v2927
    %v3628 = vunpack.c.h.b16 %v2927
    %v3629 = vunpack.c.l.b16 %v2928
    %v3630 = vunpack.c.h.b16 %v2928
    %v3631 = vunpack.c.l.b16 %v2929
    %v3632 = vunpack.c.l.b16 %v2930
    %v3633 = vunpack.c.h.b16 %v2930
    %v3634 = vunpack.c.l.b16 %v2931
    %v3635 = vunpack.c.h.b16 %v2931
    %v3636 = vunpack.c.l.b16 %v2932
    %v3637 = vunpack.c.h.b16 %v2932
    %v3638 = vunpack.c.l.b16 %v2933
    %v3639 = vunpack.c.h.b16 %v2933
    %v3640 = vunpack.c.l.b16 %v2934
    %v3641 = vunpack.c.l.b16 %v2935
    %v3642 = vunpack.c.h.b16 %v2935
    %v3643 = vunpack.c.l.b16 %v2936
    %v3644 = vunpack.c.h.b16 %v2936
    %v3645 = vunpack.c.l.b16 %v2937
    %v3646 = vunpack.c.h.b16 %v2937
    %v3647 = vunpack.c.l.b16 %v2938
    %v3648 = vunpack.c.h.b16 %v2938
    %v3649 = vunpack.c.l.b16 %v2939
    %v3650 = vunpack.c.l.b16 %v2940
    %v3651 = vunpack.c.h.b16 %v2940
    %v3652 = vunpack.c.l.b16 %v2941
    %v3653 = vunpack.c.h.b16 %v2941
    %v3654 = vunpack.c.l.b16 %v2942
    %v3655 = vunpack.c.h.b16 %v2942
    %v3656 = vunpack.c.l.b16 %v2943
    %v3657 = vunpack.c.h.b16 %v2943
    %v3658 = vunpack.c.l.b16 %v2944
    %v3659 = vunpack.c.l.b16 %v2945
    %v3660 = vunpack.c.h.b16 %v2945
    %v3661 = vunpack.c.l.b16 %v2946
    %v3662 = vunpack.c.h.b16 %v2946
    %v3663 = vunpack.c.l.b16 %v2947
    %v3664 = vunpack.c.h.b16 %v2947
    %v3665 = vunpack.c.l.b16 %v2948
    %v3666 = vunpack.c.h.b16 %v2948
    %v3667 = vunpack.c.l.b16 %v2949
    %v3668 = vunpack.c.l.b16 %v2950
    %v3669 = vunpack.c.h.b16 %v2950
    %v3670 = vunpack.c.l.b16 %v2951
    %v3671 = vunpack.c.h.b16 %v2951
    %v3672 = vunpack.c.l.b16 %v2952
    %v3673 = vunpack.c.h.b16 %v2952
    %v3674 = vunpack.c.l.b16 %v2953
    %v3675 = vunpack.c.h.b16 %v2953
    %v3676 = vunpack.c.l.b16 %v2954
    %v3677 = vunpack.c.l.b16 %v2955
    %v3678 = vunpack.c.h.b16 %v2955
    %v3679 = vunpack.c.l.b16 %v2956
    %v3680 = vunpack.c.h.b16 %v2956
    %v3681 = vunpack.c.l.b16 %v2957
    %v3682 = vunpack.c.h.b16 %v2957
    %v3683 = vunpack.c.l.b16 %v2958
    %v3684 = vunpack.c.h.b16 %v2958
    %v3685 = vunpack.c.l.b16 %v2959
    %v3686 = vunpack.c.l.b16 %v2960
    %v3687 = vunpack.c.h.b16 %v2960
    %v3688 = vunpack.c.l.b16 %v2961
    %v3689 = vunpack.c.h.b16 %v2961
    %v3690 = vunpack.c.l.b16 %v2962
    %v3691 = vunpack.c.h.b16 %v2962
    %v3692 = vunpack.c.l.b16 %v2963
    %v3693 = vunpack.c.h.b16 %v2963
    %v3694 = vunpack.c.l.b16 %v2964
    %v3695 = vunpack.c.l.b16 %v2965
    %v3696 = vunpack.c.h.b16 %v2965
    %v3697 = vunpack.c.l.b16 %v2966
    %v3698 = vunpack.c.h.b16 %v2966
    %v3699 = vunpack.c.l.b16 %v2967
    %v3700 = vunpack.c.h.b16 %v2967
    %v3701 = vunpack.c.l.b16 %v2968
    %v3702 = vunpack.c.h.b16 %v2968
    %v3703 = vunpack.c.l.b16 %v2969
    %v3704 = vunpack.c.l.b16 %v2970
    %v3705 = vunpack.c.h.b16 %v2970
    %v3706 = vunpack.c.l.b16 %v2971
    %v3707 = vunpack.c.h.b16 %v2971
    %v3708 = vunpack.c.l.b16 %v2972
    %v3709 = vunpack.c.h.b16 %v2972
    %v3710 = vunpack.c.l.b16 %v2973
    %v3711 = vunpack.c.h.b16 %v2973
    %v3712 = vunpack.c.l.b16 %v2974
    %v3713 = vunpack.c.l.b16 %v2975
    %v3714 = vunpack.c.h.b16 %v2975
    %v3715 = vunpack.c.l.b16 %v2976
    %v3716 = vunpack.c.h.b16 %v2976
    %v3717 = vunpack.c.l.b16 %v2977
    %v3718 = vunpack.c.h.b16 %v2977
    %v3719 = vunpack.c.l.b16 %v2978
    %v3720 = vunpack.c.h.b16 %v2978
    %v3721 = vunpack.c.l.b16 %v2979
    %v3722 = vunpack.c.l.b16 %v2980
    %v3723 = vunpack.c.h.b16 %v2980
    %v3724 = vunpack.c.l.b16 %v2981
    %v3725 = vunpack.c.h.b16 %v2981
    %v3726 = vunpack.c.l.b16 %v2982
    %v3727 = vunpack.c.h.b16 %v2982
    %v3728 = vunpack.c.l.b16 %v2983
    %v3729 = vunpack.c.h.b16 %v2983
    %v3730 = vunpack.c.l.b16 %v2984
    %v3731 = vunpack.c.l.b16 %v2985
    %v3732 = vunpack.c.h.b16 %v2985
    %v3733 = vunpack.c.l.b16 %v2986
    %v3734 = vunpack.c.h.b16 %v2986
    %v3735 = vunpack.c.l.b16 %v2987
    %v3736 = vunpack.c.h.b16 %v2987
    %v3737 = vunpack.c.l.b16 %v2988
    %v3738 = vunpack.c.h.b16 %v2988
    %v3739 = vunpack.c.l.b16 %v2989
    %v3740 = vunpack.c.l.b16 %v2990
    %v3741 = vunpack.c.h.b16 %v2990
    %v3742 = vunpack.c.l.b16 %v2991
    %v3743 = vunpack.c.h.b16 %v2991
    %v3744 = vunpack.c.l.b16 %v2992
    %v3745 = vunpack.c.h.b16 %v2992
    %v3746 = vunpack.c.l.b16 %v2993
    %v3747 = vunpack.c.h.b16 %v2993
    %v3748 = vunpack.c.l.b16 %v2994
    %v3749 = vunpack.c.l.b16 %v2995
    %v3750 = vunpack.c.h.b16 %v2995
    %v3751 = vunpack.c.l.b16 %v2996
    %v3752 = vunpack.c.h.b16 %v2996
    %v3753 = vunpack.c.l.b16 %v2997
    %v3754 = vunpack.c.h.b16 %v2997
    %v3755 = vunpack.c.l.b16 %v2998
    %v3756 = vunpack.c.h.b16 %v2998
    %v3757 = vunpack.c.l.b16 %v2999
    %v3758 = vunpack.c.l.b16 %v3000
    %v3759 = vunpack.c.h.b16 %v3000
    %v3760 = vunpack.c.l.b16 %v3001
    %v3761 = vunpack.c.h.b16 %v3001
    %v3762 = vunpack.c.l.b16 %v3002
    %v3763 = vunpack.c.h.b16 %v3002
    %v3764 = vunpack.c.l.b16 %v3003
    %v3765 = vunpack.c.h.b16 %v3003
    %v3766 = vunpack.c.l.b16 %v3004
    %v3767 = vunpack.c.l.b16 %v3005
    %v3768 = vunpack.c.h.b16 %v3005
    %v3769 = vunpack.c.l.b16 %v3006
    %v3770 = vunpack.c.h.b16 %v3006
    %v3771 = vunpack.c.l.b16 %v3007
    %v3772 = vunpack.c.h.b16 %v3007
    %v3773 = vunpack.c.l.b16 %v3008
    %v3774 = vunpack.c.h.b16 %v3008
    %v3775 = vunpack.c.l.b16 %v3009
    %v3776 = vunpack.c.l.b16 %v3010
    %v3777 = vunpack.c.h.b16 %v3010
    %v3778 = vunpack.c.l.b16 %v3011
    %v3779 = vunpack.c.h.b16 %v3011
    %v3780 = vunpack.c.l.b16 %v3012
    %v3781 = vunpack.c.h.b16 %v3012
    %v3782 = vunpack.c.l.b16 %v3013
    %v3783 = vunpack.c.h.b16 %v3013
    %v3784 = vunpack.c.l.b16 %v3014
    %v3785 = vunpack.c.l.b16 %v3015
    %v3786 = vunpack.c.h.b16 %v3015
    %v3787 = vunpack.c.l.b16 %v3016
    %v3788 = vunpack.c.h.b16 %v3016
    %v3789 = vunpack.c.l.b16 %v3017
    %v3790 = vunpack.c.h.b16 %v3017
    %v3791 = vunpack.c.l.b16 %v3018
    %v3792 = vunpack.c.h.b16 %v3018
    %v3793 = vunpack.c.l.b16 %v3019
    %v3794 = vunpack.c.l.b16 %v3020
    %v3795 = vunpack.c.h.b16 %v3020
    %v3796 = vunpack.c.l.b16 %v3021
    %v3797 = vunpack.c.h.b16 %v3021
    %v3798 = vunpack.c.l.b16 %v3022
    %v3799 = vunpack.c.h.b16 %v3022
    %v3800 = vunpack.c.l.b16 %v3023
    %v3801 = vunpack.c.h.b16 %v3023
    %v3802 = vunpack.c.l.b16 %v3024
    %v3803 = vunpack.c.l.b16 %v3025
    %v3804 = vunpack.c.h.b16 %v3025
    %v3805 = vunpack.c.l.b16 %v3026
    %v3806 = vunpack.c.h.b16 %v3026
    %v3807 = vunpack.c.l.b16 %v3027
    %v3808 = vunpack.c.h.b16 %v3027
    %v3809 = vunpack.c.l.b16 %v3028
    %v3810 = vunpack.c.h.b16 %v3028
    %v3811 = vunpack.c.l.b16 %v3029
    %v3812 = vunpack.c.l.b16 %v3030
    %v3813 = vunpack.c.h.b16 %v3030
    %v3814 = vunpack.c.l.b16 %v3031
    %v3815 = vunpack.c.h.b16 %v3031
    %v3816 = vunpack.c.l.b16 %v3032
    %v3817 = vunpack.c.h.b16 %v3032
    %v3818 = vunpack.c.l.b16 %v3033
    %v3819 = vunpack.c.h.b16 %v3033
    %v3820 = vunpack.c.l.b16 %v3034
    %v3821 = vunpack.c.l.b16 %v3035
    %v3822 = vunpack.c.h.b16 %v3035
    %v3823 = vunpack.c.l.b16 %v3036
    %v3824 = vunpack.c.h.b16 %v3036
    %v3825 = vunpack.c.l.b16 %v3037
    %v3826 = vunpack.c.h.b16 %v3037
    %v3827 = vunpack.c.l.b16 %v3038
    %v3828 = vunpack.c.h.b16 %v3038
    %v3829 = vunpack.c.l.b16 %v3039
    %v3830 = vunpack.c.l.b16 %v3040
    %v3831 = vunpack.c.h.b16 %v3040
    %v3832 = vunpack.c.l.b16 %v3041
    %v3833 = vunpack.c.h.b16 %v3041
    %v3834 = vunpack.c.l.b16 %v3042
    %v3835 = vunpack.c.h.b16 %v3042
    %v3836 = vunpack.c.l.b16 %v3043
    %v3837 = vunpack.c.h.b16 %v3043
    %v3838 = vunpack.c.l.b16 %v3044
    %v3839 = vunpack.c.l.b16 %v3045
    %v3840 = vunpack.c.h.b16 %v3045
    %v3841 = vunpack.c.l.b16 %v3046
    %v3842 = vunpack.c.h.b16 %v3046
    %v3843 = vunpack.c.l.b16 %v3047
    %v3844 = vunpack.c.h.b16 %v3047
    %v3845 = vunpack.c.l.b16 %v3048
    %v3846 = vunpack.c.h.b16 %v3048
    %v3847 = vunpack.c.l.b16 %v3049
    %v3848 = vunpack.c.l.b16 %v3050
    %v3849 = vunpack.c.h.b16 %v3050
    %v3850 = vunpack.c.l.b16 %v3051
    %v3851 = vunpack.c.h.b16 %v3051
    %v3852 = vunpack.c.l.b16 %v3052
    %v3853 = vunpack.c.h.b16 %v3052
    %v3854 = vunpack.c.l.b16 %v3053
    %v3855 = vunpack.c.h.b16 %v3053
    %v3856 = vunpack.c.l.b16 %v3054
    %v3857 = vunpack.c.l.b16 %v3055
    %v3858 = vunpack.c.h.b16 %v3055
    %v3859 = vunpack.c.l.b16 %v3056
    %v3860 = vunpack.c.h.b16 %v3056
    %v3861 = vunpack.c.l.b16 %v3057
    %v3862 = vunpack.c.h.b16 %v3057
    %v3863 = vunpack.c.l.b16 %v3058
    %v3864 = vunpack.c.h.b16 %v3058
    %v3865 = vunpack.c.l.b16 %v3059
    %v3866 = vunpack.c.l.b16 %v3060
    %v3867 = vunpack.c.h.b16 %v3060
    %v3868 = vunpack.c.l.b16 %v3061
    %v3869 = vunpack.c.h.b16 %v3061
    %v3870 = vunpack.c.l.b16 %v3062
    %v3871 = vunpack.c.h.b16 %v3062
    %v3872 = vunpack.c.l.b16 %v3063
    %v3873 = vunpack.c.h.b16 %v3063
    %v3874 = vunpack.c.l.b16 %v3064
    %v3875 = vunpack.c.l.b16 %v3065
    %v3876 = vunpack.c.h.b16 %v3065
    %v3877 = vunpack.c.l.b16 %v3066
    %v3878 = vunpack.c.h.b16 %v3066
    %v3879 = vunpack.c.l.b16 %v3067
    %v3880 = vunpack.c.h.b16 %v3067
    %v3881 = vunpack.c.l.b16 %v3068
    %v3882 = vunpack.c.h.b16 %v3068
    %v3883 = vunpack.c.l.b16 %v3069
    %v3884 = vunpack.c.l.b16 %v3070
    %v3885 = vunpack.c.h.b16 %v3070
    %v3886 = vunpack.c.l.b16 %v3071
    %v3887 = vunpack.c.h.b16 %v3071
    %v3888 = vunpack.c.l.b16 %v3072
    %v3889 = vunpack.c.h.b16 %v3072
    %v3890 = vunpack.c.l.b16 %v3073
    %v3891 = vunpack.c.h.b16 %v3073
    %v3892 = vunpack.c.l.b16 %v3074
    %v3893 = vunpack.c.l.b16 %v3075
    %v3894 = vunpack.c.h.b16 %v3075
    %v3895 = vunpack.c.l.b16 %v3076
    %v3896 = vunpack.c.h.b16 %v3076
    %v3897 = vunpack.c.l.b16 %v3077
    %v3898 = vunpack.c.h.b16 %v3077
    %v3899 = vunpack.c.l.b16 %v3078
    %v3900 = vunpack.c.h.b16 %v3078
    %v3901 = vunpack.c.l.b16 %v3079
    %v3902 = vunpack.c.l.b16 %v3080
    %v3903 = vunpack.c.h.b16 %v3080
    %v3904 = vunpack.c.l.b16 %v3081
    %v3905 = vunpack.c.h.b16 %v3081
    %v3906 = vunpack.c.l.b16 %v3082
    %v3907 = vunpack.c.h.b16 %v3082
    %v3908 = vunpack.c.l.b16 %v3083
    %v3909 = vunpack.c.h.b16 %v3083
    %v3910 = vunpack.c.l.b16 %v3084
    %v3911 = vunpack.c.l.b16 %v3085
    %v3912 = vunpack.c.h.b16 %v3085
    %v3913 = vunpack.c.l.b16 %v3086
    %v3914 = vunpack.c.h.b16 %v3086
    %v3915 = vunpack.c.l.b16 %v3087
    %v3916 = vunpack.c.h.b16 %v3087
    %v3917 = vunpack.c.l.b16 %v3088
    %v3918 = vunpack.c.h.b16 %v3088
    %v3919 = vunpack.c.l.b16 %v3089
    %v3920 = vunpack.c.l.b16 %v3090
    %v3921 = vunpack.c.h.b16 %v3090
    %v3922 = vunpack.c.l.b16 %v3091
    %v3923 = vunpack.c.h.b16 %v3091
    %v3924 = vunpack.c.l.b16 %v3092
    %v3925 = vunpack.c.h.b16 %v3092
    %v3926 = vunpack.c.l.b16 %v3093
    %v3927 = vunpack.c.h.b16 %v3093
    %v3928 = vunpack.c.l.b16 %v3094
    %v3929 = vunpack.c.l.b16 %v3095
    %v3930 = vunpack.c.h.b16 %v3095
    %v3931 = vunpack.c.l.b16 %v3096
    %v3932 = vunpack.c.h.b16 %v3096
    %v3933 = vunpack.c.l.b16 %v3097
    %v3934 = vunpack.c.h.b16 %v3097
    %v3935 = vunpack.c.l.b16 %v3098
    %v3936 = vunpack.c.h.b16 %v3098
    %v3937 = vunpack.c.l.b16 %v3099
    %v3938 = vunpack.c.l.b16 %v3100
    %v3939 = vunpack.c.h.b16 %v3100
    %v3940 = vunpack.c.l.b16 %v3101
    %v3941 = vunpack.c.h.b16 %v3101
    %v3942 = vunpack.c.l.b16 %v3102
    %v3943 = vunpack.c.h.b16 %v3102
    %v3944 = vunpack.c.l.b16 %v3103
    %v3945 = vunpack.c.h.b16 %v3103
    %v3946 = vunpack.c.l.b16 %v3104
    %v3947 = vunpack.c.l.b16 %v3105
    %v3948 = vunpack.c.h.b16 %v3105
    %v3949 = vunpack.c.l.b16 %v3106
    %v3950 = vunpack.c.h.b16 %v3106
    %v3951 = vunpack.c.l.b16 %v3107
    %v3952 = vunpack.c.h.b16 %v3107
    %v3953 = vunpack.c.l.b16 %v3108
    %v3954 = vunpack.c.h.b16 %v3108
    %v3955 = vunpack.c.l.b16 %v3109
    %v3956 = vunpack.c.l.b16 %v3110
    %v3957 = vunpack.c.h.b16 %v3110
    %v3958 = vunpack.c.l.b16 %v3111
    %v3959 = vunpack.c.h.b16 %v3111
    %v3960 = vunpack.c.l.b16 %v3112
    %v3961 = vunpack.c.h.b16 %v3112
    %v3962 = vunpack.c.l.b16 %v3113
    %v3963 = vunpack.c.h.b16 %v3113
    %v3964 = vunpack.c.l.b16 %v3114
    %v3965 = vunpack.c.l.b16 %v3115
    %v3966 = vunpack.c.h.b16 %v3115
    %v3967 = vunpack.c.l.b16 %v3116
    %v3968 = vunpack.c.h.b16 %v3116
    %v3969 = vunpack.c.l.b16 %v3117
    %v3970 = vunpack.c.h.b16 %v3117
    %v3971 = vunpack.c.l.b16 %v3118
    %v3972 = vunpack.c.h.b16 %v3118
    %v3973 = vunpack.c.l.b16 %v3119
    %v3974 = vunpack.c.l.b16 %v3120
    %v3975 = vunpack.c.h.b16 %v3120
    %v3976 = vunpack.c.l.b16 %v3121
    %v3977 = vunpack.c.h.b16 %v3121
    %v3978 = vunpack.c.l.b16 %v3122
    %v3979 = vunpack.c.h.b16 %v3122
    %v3980 = vunpack.c.l.b16 %v3123
    %v3981 = vunpack.c.h.b16 %v3123
    %v3982 = vunpack.c.l.b16 %v3124
    %v3983 = vunpack.c.l.b16 %v3125
    %v3984 = vunpack.c.h.b16 %v3125
    %v3985 = vunpack.c.l.b16 %v3126
    %v3986 = vunpack.c.h.b16 %v3126
    %v3987 = vunpack.c.l.b16 %v3127
    %v3988 = vunpack.c.h.b16 %v3127
    %v3989 = vunpack.c.l.b16 %v3128
    %v3990 = vunpack.c.h.b16 %v3128
    %v3991 = vunpack.c.l.b16 %v3129
    %v3992 = vunpack.c.l.b16 %v3130
    %v3993 = vunpack.c.h.b16 %v3130
    %v3994 = vunpack.c.l.b16 %v3131
    %v3995 = vunpack.c.h.b16 %v3131
    %v3996 = vunpack.c.l.b16 %v3132
    %v3997 = vunpack.c.h.b16 %v3132
    %v3998 = vunpack.c.l.b16 %v3133
    %v3999 = vunpack.c.h.b16 %v3133
    %v4000 = vunpack.c.l.b16 %v3134
    %v4001 = vunpack.c.l.b16 %v3135
    %v4002 = vunpack.c.h.b16 %v3135
    %v4003 = vunpack.c.l.b16 %v3136
    %v4004 = vunpack.c.h.b16 %v3136
    %v4005 = vunpack.c.l.b16 %v3137
    %v4006 = vunpack.c.h.b16 %v3137
    %v4007 = vunpack.c.l.b16 %v3138
    %v4008 = vunpack.c.h.b16 %v3138
    %v4009 = vunpack.c.l.b16 %v3139
    %v4010 = vunpack.c.l.b16 %v3140
    %v4011 = vunpack.c.h.b16 %v3140
    %v4012 = vunpack.c.l.b16 %v3141
    %v4013 = vunpack.c.h.b16 %v3141
    %v4014 = vunpack.c.l.b16 %v3142
    %v4015 = vunpack.c.h.b16 %v3142
    %v4016 = vunpack.c.l.b16 %v3143
    %v4017 = vunpack.c.h.b16 %v3143
    %v4018 = vunpack.c.l.b16 %v3144
    %v4019 = vunpack.c.l.b16 %v3145
    %v4020 = vunpack.c.h.b16 %v3145
    %v4021 = vunpack.c.l.b16 %v3146
    %v4022 = vunpack.c.h.b16 %v3146
    %v4023 = vunpack.c.l.b16 %v3147
    %v4024 = vunpack.c.h.b16 %v3147
    %v4025 = vunpack.c.l.b16 %v3148
    %v4026 = vunpack.c.h.b16 %v3148
    %v4027 = vunpack.c.l.b16 %v3149
    %v4028 = vunpack.c.l.b16 %v3150
    %v4029 = vunpack.c.h.b16 %v3150
    %v4030 = vunpack.c.l.b16 %v3151
    %v4031 = vunpack.c.h.b16 %v3151
    %v4032 = vunpack.c.l.b16 %v3152
    %v4033 = vunpack.c.h.b16 %v3152
    %v4034 = vunpack.c.l.b16 %v3153
    %v4035 = vunpack.c.h.b16 %v3153
    %v4036 = vunpack.c.l.b16 %v3154
    %v4037 = vunpack.c.l.b16 %v3155
    %v4038 = vunpack.c.h.b16 %v3155
    %v4039 = vunpack.c.l.b16 %v3156
    %v4040 = vunpack.c.h.b16 %v3156
    %v4041 = vunpack.c.l.b16 %v3157
    %v4042 = vunpack.c.h.b16 %v3157
    %v4043 = vunpack.c.l.b16 %v3158
    %v4044 = vunpack.c.h.b16 %v3158
    %v4045 = vunpack.c.l.b16 %v3159
    %v4046 = vunpack.c.l.b16 %v3160
    %v4047 = vunpack.c.h.b16 %v3160
    %v4048 = vunpack.c.l.b16 %v3161
    %v4049 = vunpack.c.h.b16 %v3161
    %v4050 = vunpack.c.l.b16 %v3162
    %v4051 = vunpack.c.h.b16 %v3162
    %v4052 = vunpack.c.l.b16 %v3163
    %v4053 = vunpack.c.h.b16 %v3163
    %v4054 = vunpack.c.l.b16 %v3164
    %v4055 = vunpack.c.l.b16 %v3165
    %v4056 = vunpack.c.h.b16 %v3165
    %v4057 = vunpack.c.l.b16 %v3166
    %v4058 = vunpack.c.h.b16 %v3166
    %v4059 = vunpack.c.l.b16 %v3167
    %v4060 = vunpack.c.h.b16 %v3167
    %v4061 = vunpack.c.l.b16 %v3168
    %v4062 = vunpack.c.h.b16 %v3168
    %v4063 = vunpack.c.l.b16 %v3169
    %v4064 = vunpack.c.l.b16 %v3170
    %v4065 = vunpack.c.h.b16 %v3170
    %v4066 = vunpack.c.l.b16 %v3171
    %v4067 = vunpack.c.h.b16 %v3171
    %v4068 = vunpack.c.l.b16 %v3172
    %v4069 = vunpack.c.h.b16 %v3172
    %v4070 = vunpack.c.l.b16 %v3173
    %v4071 = vunpack.c.h.b16 %v3173
    %v4072 = vunpack.c.l.b16 %v3174
    %v4073 = vunpack.c.l.b16 %v3175
    %v4074 = vunpack.c.h.b16 %v3175
    %v4075 = vunpack.c.l.b16 %v3176
    %v4076 = vunpack.c.h.b16 %v3176
    %v4077 = vunpack.c.l.b16 %v3177
    %v4078 = vunpack.c.h.b16 %v3177
    %v4079 = vunpack.c.l.b16 %v3178
    %v4080 = vunpack.c.h.b16 %v3178
    %v4081 = vunpack.c.l.b16 %v3179
    %v4082 = vunpack.c.l.b16 %v3180
    %v4083 = vunpack.c.h.b16 %v3180
    %v4084 = vunpack.c.l.b16 %v3181
    %v4085 = vunpack.c.h.b16 %v3181
    %v4086 = vunpack.c.l.b16 %v3182
    %v4087 = vunpack.c.h.b16 %v3182
    %v4088 = vunpack.c.l.b16 %v3183
    %v4089 = vunpack.c.h.b16 %v3183
    %v4090 = vunpack.c.l.b16 %v3184
    %v4091 = vunpack.c.l.b16 %v3185
    %v4092 = vunpack.c.h.b16 %v3185
    %v4093 = vunpack.c.l.b16 %v3186
    %v4094 = vunpack.c.h.b16 %v3186
    %v4095 = vunpack.c.l.b16 %v3187
    %v4096 = vunpack.c.h.b16 %v3187
    %v4097 = vunpack.c.l.b16 %v3188
    %v4098 = vunpack.c.h.b16 %v3188
    %v4099 = vunpack.c.l.b16 %v3189
    %v4100 = vunpack.c.l.b16 %v3190
    %v4101 = vunpack.c.h.b16 %v3190
    %v4102 = vunpack.c.l.b16 %v3191
    %v4103 = vunpack.c.h.b16 %v3191
    %v4104 = vunpack.c.l.b16 %v3192
    %v4105 = vunpack.c.h.b16 %v3192
    %v4106 = vunpack.c.l.b16 %v3193
    %v4107 = vunpack.c.h.b16 %v3193
    %v4108 = vunpack.c.l.b16 %v3194
    %v4109 = vunpack.c.l.b16 %v3195
    %v4110 = vunpack.c.h.b16 %v3195
    %v4111 = vunpack.c.l.b16 %v3196
    %v4112 = vunpack.c.h.b16 %v3196
    %v4113 = vunpack.c.l.b16 %v3197
    %v4114 = vunpack.c.h.b16 %v3197
    %v4115 = vunpack.c.l.b16 %v3198
    %v4116 = vunpack.c.h.b16 %v3198
    %v4117 = vunpack.c.l.b16 %v3199
    %v4118 = vpack.c.b16 %v3551, %v3542
    %v4119 = vpack.c.b16 %v3552, %v3543
    %v4120 = vpack.c.b16 %v3553, %v3544
    %v4121 = vpack.c.b16 %v3554, %v3545
    %v4122 = vpack.c.b16 %v3555, %v3546
    %v4123 = vpack.c.b16 %v3556, %v3547
    %v4124 = vpack.c.b16 %v3557, %v3548
    %v4125 = vpack.c.b16 %v3558, %v3549
    %v4126 = vpack.c.b16 %v3559, %v3550
    %v4127 = vpack.c.b16 %v3569, %v3560
    %v4128 = vpack.c.b16 %v3570, %v3561
    %v4129 = vpack.c.b16 %v3571, %v3562
    %v4130 = vpack.c.b16 %v3572, %v3563
    %v4131 = vpack.c.b16 %v3573, %v3564
    %v4132 = vpack.c.b16 %v3574, %v3565
    %v4133 = vpack.c.b16 %v3575, %v3566
    %v4134 = vpack.c.b16 %v3576, %v3567
    %v4135 = vpack.c.b16 %v3577, %v3568
    %v4136 = vpack.c.b16 %v3587, %v3578
    %v4137 = vpack.c.b16 %v3588, %v3579
    %v4138 = vpack.c.b16 %v3589, %v3580
    %v4139 = vpack.c.b16 %v3590, %v3581
    %v4140 = vpack.c.b16 %v3591, %v3582
    %v4141 = vpack.c.b16 %v3592, %v3583
    %v4142 = vpack.c.b16 %v3593, %v3584
    %v4143 = vpack.c.b16 %v3594, %v3585
    %v4144 = vpack.c.b16 %v3595, %v3586
    %v4145 = vpack.c.b16 %v3605, %v3596
    %v4146 = vpack.c.b16 %v3606, %v3597
    %v4147 = vpack.c.b16 %v3607, %v3598
    %v4148 = vpack.c.b16 %v3608, %v3599
    %v4149 = vpack.c.b16 %v3609, %v3600
    %v4150 = vpack.c.b16 %v3610, %v3601
    %v4151 = vpack.c.b16 %v3611, %v3602
    %v4152 = vpack.c.b16 %v3612, %v3603
    %v4153 = vpack.c.b16 %v3613, %v3604
    %v4154 = vpack.c.b16 %v3623, %v3614
    %v4155 = vpack.c.b16 %v3624, %v3615
    %v4156 = vpack.c.b16 %v3625, %v3616
    %v4157 = vpack.c.b16 %v3626, %v3617
    %v4158 = vpack.c.b16 %v3627, %v3618
    %v4159 = vpack.c.b16 %v3628, %v3619
    %v4160 = vpack.c.b16 %v3629, %v3620
    %v4161 = vpack.c.b16 %v3630, %v3621
    %v4162 = vpack.c.b16 %v3631, %v3622
    %v4163 = vpack.c.b16 %v3641, %v3632
    %v4164 = vpack.c.b16 %v3642, %v3633
    %v4165 = vpack.c.b16 %v3643, %v3634
    %v4166 = vpack.c.b16 %v3644, %v3635
    %v4167 = vpack.c.b16 %v3645, %v3636
    %v4168 = vpack.c.b16 %v3646, %v3637
    %v4169 = vpack.c.b16 %v3647, %v3638
    %v4170 = vpack.c.b16 %v3648, %v3639
    %v4171 = vpack.c.b16 %v3649, %v3640
    %v4172 = vpack.c.b16 %v3659, %v3650
    %v4173 = vpack.c.b16 %v3660, %v3651
    %v4174 = vpack.c.b16 %v3661, %v3652
    %v4175 = vpack.c.b16 %v3662, %v3653
    %v4176 = vpack.c.b16 %v3663, %v3654
    %v4177 = vpack.c.b16 %v3664, %v3655
    %v4178 = vpack.c.b16 %v3665, %v3656
    %v4179 = vpack.c.b16 %v3666, %v3657
    %v4180 = vpack.c.b16 %v3667, %v3658
    %v4181 = vpack.c.b16 %v3677, %v3668
    %v4182 = vpack.c.b16 %v3678, %v3669
    %v4183 = vpack.c.b16 %v3679, %v3670
    %v4184 = vpack.c.b16 %v3680, %v3671
    %v4185 = vpack.c.b16 %v3681, %v3672
    %v4186 = vpack.c.b16 %v3682, %v3673
    %v4187 = vpack.c.b16 %v3683, %v3674
    %v4188 = vpack.c.b16 %v3684, %v3675
    %v4189 = vpack.c.b16 %v3685, %v3676
    %v4190 = vpack.c.b16 %v3695, %v3686
    %v4191 = vpack.c.b16 %v3696, %v3687
    %v4192 = vpack.c.b16 %v3697, %v3688
    %v4193 = vpack.c.b16 %v3698, %v3689
    %v4194 = vpack.c.b16 %v3699, %v3690
    %v4195 = vpack.c.b16 %v3700, %v3691
    %v4196 = vpack.c.b16 %v3701, %v3692
    %v4197 = vpack.c.b16 %v3702, %v3693
    %v4198 = vpack.c.b16 %v3703, %v3694
    %v4199 = vpack.c.b16 %v3713, %v3704
    %v4200 = vpack.c.b16 %v3714, %v3705
    %v4201 = vpack.c.b16 %v3715, %v3706
    %v4202 = vpack.c.b16 %v3716, %v3707
    %v4203 = vpack.c.b16 %v3717, %v3708
    %v4204 = vpack.c.b16 %v3718, %v3709
    %v4205 = vpack.c.b16 %v3719, %v3710
    %v4206 = vpack.c.b16 %v3720, %v3711
    %v4207 = vpack.c.b16 %v3721, %v3712
    %v4208 = vpack.c.b16 %v3731, %v3722
    %v4209 = vpack.c.b16 %v3732, %v3723
    %v4210 = vpack.c.b16 %v3733, %v3724
    %v4211 = vpack.c.b16 %v3734, %v3725
    %v4212 = vpack.c.b16 %v3735, %v3726
    %v4213 = vpack.c.b16 %v3736, %v3727
    %v4214 = vpack.c.b16 %v3737, %v3728
    %v4215 = vpack.c.b16 %v3738, %v3729
    %v4216 = vpack.c.b16 %v3739, %v3730
    %v4217 = vpack.c.b16 %v3749, %v3740
    %v4218 = vpack.c.b16 %v3750, %v3741
    %v4219 = vpack.c.b16 %v3751, %v3742
    %v4220 = vpack.c.b16 %v3752, %v3743
    %v4221 = vpack.c.b16 %v3753, %v3744
    %v4222 = vpack.c.b16 %v3754, %v3745
    %v4223 = vpack.c.b16 %v3755, %v3746
    %v4224 = vpack.c.b16 %v3756, %v3747
    %v4225 = vpack.c.b16 %v3757, %v3748
    %v4226 = vpack.c.b16 %v3767, %v3758
    %v4227 = vpack.c.b16 %v3768, %v3759
    %v4228 = vpack.c.b16 %v3769, %v3760
    %v4229 = vpack.c.b16 %v3770, %v3761
    %v4230 = vpack.c.b16 %v3771, %v3762
    %v4231 = vpack.c.b16 %v3772, %v3763
    %v4232 = vpack.c.b16 %v3773, %v3764
    %v4233 = vpack.c.b16 %v3774, %v3765
    %v4234 = vpack.c.b16 %v3775, %v3766
    %v4235 = vpack.c.b16 %v3785, %v3776
    %v4236 = vpack.c.b16 %v3786, %v3777
    %v4237 = vpack.c.b16 %v3787, %v3778
    %v4238 = vpack.c.b16 %v3788, %v3779
    %v4239 = vpack.c.b16 %v3789, %v3780
    %v4240 = vpack.c.b16 %v3790, %v3781
    %v4241 = vpack.c.b16 %v3791, %v3782
    %v4242 = vpack.c.b16 %v3792, %v3783
    %v4243 = vpack.c.b16 %v3793, %v3784
    %v4244 = vpack.c.b16 %v3803, %v3794
    %v4245 = vpack.c.b16 %v3804, %v3795
    %v4246 = vpack.c.b16 %v3805, %v3796
    %v4247 = vpack.c.b16 %v3806, %v3797
    %v4248 = vpack.c.b16 %v3807, %v3798
    %v4249 = vpack.c.b16 %v3808, %v3799
    %v4250 = vpack.c.b16 %v3809, %v3800
    %v4251 = vpack.c.b16 %v3810, %v3801
    %v4252 = vpack.c.b16 %v3811, %v3802
    %v4253 = vpack.c.b16 %v3821, %v3812
    %v4254 = vpack.c.b16 %v3822, %v3813
    %v4255 = vpack.c.b16 %v3823, %v3814
    %v4256 = vpack.c.b16 %v3824, %v3815
    %v4257 = vpack.c.b16 %v3825, %v3816
    %v4258 = vpack.c.b16 %v3826, %v3817
    %v4259 = vpack.c.b16 %v3827, %v3818
    %v4260 = vpack.c.b16 %v3828, %v3819
    %v4261 = vpack.c.b16 %v3829, %v3820
    %v4262 = vpack.c.b16 %v3839, %v3830
    %v4263 = vpack.c.b16 %v3840, %v3831
    %v4264 = vpack.c.b16 %v3841, %v3832
    %v4265 = vpack.c.b16 %v3842, %v3833
    %v4266 = vpack.c.b16 %v3843, %v3834
    %v4267 = vpack.c.b16 %v3844, %v3835
    %v4268 = vpack.c.b16 %v3845, %v3836
    %v4269 = vpack.c.b16 %v3846, %v3837
    %v4270 = vpack.c.b16 %v3847, %v3838
    %v4271 = vpack.c.b16 %v3857, %v3848
    %v4272 = vpack.c.b16 %v3858, %v3849
    %v4273 = vpack.c.b16 %v3859, %v3850
    %v4274 = vpack.c.b16 %v3860, %v3851
    %v4275 = vpack.c.b16 %v3861, %v3852
    %v4276 = vpack.c.b16 %v3862, %v3853
    %v4277 = vpack.c.b16 %v3863, %v3854
    %v4278 = vpack.c.b16 %v3864, %v3855
    %v4279 = vpack.c.b16 %v3865, %v3856
    %v4280 = vpack.c.b16 %v3875, %v3866
    %v4281 = vpack.c.b16 %v3876, %v3867
    %v4282 = vpack.c.b16 %v3877, %v3868
    %v4283 = vpack.c.b16 %v3878, %v3869
    %v4284 = vpack.c.b16 %v3879, %v3870
    %v4285 = vpack.c.b16 %v3880, %v3871
    %v4286 = vpack.c.b16 %v3881, %v3872
    %v4287 = vpack.c.b16 %v3882, %v3873
    %v4288 = vpack.c.b16 %v3883, %v3874
    %v4289 = vpack.c.b16 %v3893, %v3884
    %v4290 = vpack.c.b16 %v3894, %v3885
    %v4291 = vpack.c.b16 %v3895, %v3886
    %v4292 = vpack.c.b16 %v3896, %v3887
    %v4293 = vpack.c.b16 %v3897, %v3888
    %v4294 = vpack.c.b16 %v3898, %v3889
    %v4295 = vpack.c.b16 %v3899, %v3890
    %v4296 = vpack.c.b16 %v3900, %v3891
    %v4297 = vpack.c.b16 %v3901, %v3892
    %v4298 = vpack.c.b16 %v3911, %v3902
    %v4299 = vpack.c.b16 %v3912, %v3903
    %v4300 = vpack.c.b16 %v3913, %v3904
    %v4301 = vpack.c.b16 %v3914, %v3905
    %v4302 = vpack.c.b16 %v3915, %v3906
    %v4303 = vpack.c.b16 %v3916, %v3907
    %v4304 = vpack.c.b16 %v3917, %v3908
    %v4305 = vpack.c.b16 %v3918, %v3909
    %v4306 = vpack.c.b16 %v3919, %v3910
    %v4307 = vpack.c.b16 %v3929, %v3920
    %v4308 = vpack.c.b16 %v3930, %v3921
    %v4309 = vpack.c.b16 %v3931, %v3922
    %v4310 = vpack.c.b16 %v3932, %v3923
    %v4311 = vpack.c.b16 %v3933, %v3924
    %v4312 = vpack.c.b16 %v3934, %v3925
    %v4313 = vpack.c.b16 %v3935, %v3926
    %v4314 = vpack.c.b16 %v3936, %v3927
    %v4315 = vpack.c.b16 %v3937, %v3928
    %v4316 = vpack.c.b16 %v3947, %v3938
    %v4317 = vpack.c.b16 %v3948, %v3939
    %v4318 = vpack.c.b16 %v3949, %v3940
    %v4319 = vpack.c.b16 %v3950, %v3941
    %v4320 = vpack.c.b16 %v3951, %v3942
    %v4321 = vpack.c.b16 %v3952, %v3943
    %v4322 = vpack.c.b16 %v3953, %v3944
    %v4323 = vpack.c.b16 %v3954, %v3945
    %v4324 = vpack.c.b16 %v3955, %v3946
    %v4325 = vpack.c.b16 %v3965, %v3956
    %v4326 = vpack.c.b16 %v3966, %v3957
    %v4327 = vpack.c.b16 %v3967, %v3958
    %v4328 = vpack.c.b16 %v3968, %v3959
    %v4329 = vpack.c.b16 %v3969, %v3960
    %v4330 = vpack.c.b16 %v3970, %v3961
    %v4331 = vpack.c.b16 %v3971, %v3962
    %v4332 = vpack.c.b16 %v3972, %v3963
    %v4333 = vpack.c.b16 %v3973, %v3964
    %v4334 = vpack.c.b16 %v3983, %v3974
    %v4335 = vpack.c.b16 %v3984, %v3975
    %v4336 = vpack.c.b16 %v3985, %v3976
    %v4337 = vpack.c.b16 %v3986, %v3977
    %v4338 = vpack.c.b16 %v3987, %v3978
    %v4339 = vpack.c.b16 %v3988, %v3979
    %v4340 = vpack.c.b16 %v3989, %v3980
    %v4341 = vpack.c.b16 %v3990, %v3981
    %v4342 = vpack.c.b16 %v3991, %v3982
    %v4343 = vpack.c.b16 %v4001, %v3992
    %v4344 = vpack.c.b16 %v4002, %v3993
    %v4345 = vpack.c.b16 %v4003, %v3994
    %v4346 = vpack.c.b16 %v4004, %v3995
    %v4347 = vpack.c.b16 %v4005, %v3996
    %v4348 = vpack.c.b16 %v4006, %v3997
    %v4349 = vpack.c.b16 %v4007, %v3998
    %v4350 = vpack.c.b16 %v4008, %v3999
    %v4351 = vpack.c.b16 %v4009, %v4000
    %v4352 = vpack.c.b16 %v4019, %v4010
    %v4353 = vpack.c.b16 %v4020, %v4011
    %v4354 = vpack.c.b16 %v4021, %v4012
    %v4355 = vpack.c.b16 %v4022, %v4013
    %v4356 = vpack.c.b16 %v4023, %v4014
    %v4357 = vpack.c.b16 %v4024, %v4015
    %v4358 = vpack.c.b16 %v4025, %v4016
    %v4359 = vpack.c.b16 %v4026, %v4017
    %v4360 = vpack.c.b16 %v4027, %v4018
    %v4361 = vpack.c.b16 %v4037, %v4028
    %v4362 = vpack.c.b16 %v4038, %v4029
    %v4363 = vpack.c.b16 %v4039, %v4030
    %v4364 = vpack.c.b16 %v4040, %v4031
    %v4365 = vpack.c.b16 %v4041, %v4032
    %v4366 = vpack.c.b16 %v4042, %v4033
    %v4367 = vpack.c.b16 %v4043, %v4034
    %v4368 = vpack.c.b16 %v4044, %v4035
    %v4369 = vpack.c.b16 %v4045, %v4036
    %v4370 = vpack.c.b16 %v4055, %v4046
    %v4371 = vpack.c.b16 %v4056, %v4047
    %v4372 = vpack.c.b16 %v4057, %v4048
    %v4373 = vpack.c.b16 %v4058, %v4049
    %v4374 = vpack.c.b16 %v4059, %v4050
    %v4375 = vpack.c.b16 %v4060, %v4051
    %v4376 = vpack.c.b16 %v4061, %v4052
    %v4377 = vpack.c.b16 %v4062, %v4053
    %v4378 = vpack.c.b16 %v4063, %v4054
    %v4379 = vpack.c.b16 %v4073, %v4064
    %v4380 = vpack.c.b16 %v4074, %v4065
    %v4381 = vpack.c.b16 %v4075, %v4066
    %v4382 = vpack.c.b16 %v4076, %v4067
    %v4383 = vpack.c.b16 %v4077, %v4068
    %v4384 = vpack.c.b16 %v4078, %v4069
    %v4385 = vpack.c.b16 %v4079, %v4070
    %v4386 = vpack.c.b16 %v4080, %v4071
    %v4387 = vpack.c.b16 %v4081, %v4072
    %v4388 = vpack.c.b16 %v4091, %v4082
    %v4389 = vpack.c.b16 %v4092, %v4083
    %v4390 = vpack.c.b16 %v4093, %v4084
    %v4391 = vpack.c.b16 %v4094, %v4085
    %v4392 = vpack.c.b16 %v4095, %v4086
    %v4393 = vpack.c.b16 %v4096, %v4087
    %v4394 = vpack.c.b16 %v4097, %v4088
    %v4395 = vpack.c.b16 %v4098, %v4089
    %v4396 = vpack.c.b16 %v4099, %v4090
    %v4397 = vpack.c.b16 %v4109, %v4100
    %v4398 = vpack.c.b16 %v4110, %v4101
    %v4399 = vpack.c.b16 %v4111, %v4102
    %v4400 = vpack.c.b16 %v4112, %v4103
    %v4401 = vpack.c.b16 %v4113, %v4104
    %v4402 = vpack.c.b16 %v4114, %v4105
    %v4403 = vpack.c.b16 %v4115, %v4106
    %v4404 = vpack.c.b16 %v4116, %v4107
    %v4405 = vpack.c.b16 %v4117, %v4108
    %4694 = vmatpush.bf16.msra.mxu0 %v4181
    %4695 = vmatpush.bf16.msra.mxu0 %v4172
    %4696 = vmatpush.bf16.msra.mxu0 %v4163
    %4697 = vmatpush.bf16.msra.mxu0 %v4154
    %4698 = vmatpush.bf16.msra.mxu0 %v4145
    %4699 = vmatpush.bf16.msra.mxu0 %v4136
    %4700 = vmatpush.bf16.msra.mxu0 %v4127
    %4701 = vmatpush.bf16.msra.mxu0 %v4118
    %4702 = vmatmul.bf16.gmra.mxu0 %v2876
    %v4703 = vpop.f32.mrf.mxu0
    %v4704 = vadd.f32 %v3204, %v4703
    %v4705 = vpop.f32.mrf.mxu0
    %4706 = vdwg.mxu0
    %4707 = vmatpush.bf16.msra.mxu0 %v4253
    %4708 = vmatpush.bf16.msra.mxu0 %v4244
    %4709 = vmatpush.bf16.msra.mxu0 %v4235
    %4710 = vmatpush.bf16.msra.mxu0 %v4226
    %4711 = vmatpush.bf16.msra.mxu0 %v4217
    %4712 = vmatpush.bf16.msra.mxu0 %v4208
    %4713 = vmatpush.bf16.msra.mxu0 %v4199
    %4714 = vmatpush.bf16.msra.mxu0 %v4190
    %4715 = vmatmul.bf16.gmra.mxu0 %v2877
    %v4716 = vpop.f32.mrf.mxu0
    %v4717 = vadd.f32 %v4704, %v4716
    %v4718 = vpop.f32.mrf.mxu0
    %4719 = vdwg.mxu0
    %4720 = vmatpush.bf16.msra.mxu0 %v4325
    %4721 = vmatpush.bf16.msra.mxu0 %v4316
    %4722 = vmatpush.bf16.msra.mxu0 %v4307
    %4723 = vmatpush.bf16.msra.mxu0 %v4298
    %4724 = vmatpush.bf16.msra.mxu0 %v4289
    %4725 = vmatpush.bf16.msra.mxu0 %v4280
    %4726 = vmatpush.bf16.msra.mxu0 %v4271
    %4727 = vmatpush.bf16.msra.mxu0 %v4262
    %4728 = vmatmul.bf16.gmra.mxu0 %v2878
    %v4729 = vpop.f32.mrf.mxu0
    %v4730 = vadd.f32 %v4717, %v4729
    %v4731 = vpop.f32.mrf.mxu0
    %4732 = vdwg.mxu0
    %4733 = vmatpush.bf16.msra.mxu0 %v4397
    %4734 = vmatpush.bf16.msra.mxu0 %v4388
    %4735 = vmatpush.bf16.msra.mxu0 %v4379
    %4736 = vmatpush.bf16.msra.mxu0 %v4370
    %4737 = vmatpush.bf16.msra.mxu0 %v4361
    %4738 = vmatpush.bf16.msra.mxu0 %v4352
    %4739 = vmatpush.bf16.msra.mxu0 %v4343
    %4740 = vmatpush.bf16.msra.mxu0 %v4334
    %4741 = vmatmul.bf16.gmra.mxu0 %v2879
    %v4742 = vpop.f32.mrf.mxu0
    %v4743 = vadd.f32 %v4730, %v4742
    %v4744 = vpop.f32.mrf.mxu0
    %4745 = vdwg.mxu0
    %4746 = vmatpush.bf16.msra.mxu0 %v4182
    %4747 = vmatpush.bf16.msra.mxu0 %v4173
    %4748 = vmatpush.bf16.msra.mxu0 %v4164
    %4749 = vmatpush.bf16.msra.mxu0 %v4155
    %4750 = vmatpush.bf16.msra.mxu0 %v4146
    %4751 = vmatpush.bf16.msra.mxu0 %v4137
    %4752 = vmatpush.bf16.msra.mxu0 %v4128
    %4753 = vmatpush.bf16.msra.mxu0 %v4119
    %4754 = vmatmul.bf16.gmra.mxu0 %v2876
    %v4755 = vpop.f32.mrf.mxu0
    %v4756 = vadd.f32 %v3205, %v4755
    %v4757 = vpop.f32.mrf.mxu0
    %4758 = vdwg.mxu0
    %4759 = vmatpush.bf16.msra.mxu0 %v4254
    %4760 = vmatpush.bf16.msra.mxu0 %v4245
    %4761 = vmatpush.bf16.msra.mxu0 %v4236
    %4762 = vmatpush.bf16.msra.mxu0 %v4227
    %4763 = vmatpush.bf16.msra.mxu0 %v4218
    %4764 = vmatpush.bf16.msra.mxu0 %v4209
    %4765 = vmatpush.bf16.msra.mxu0 %v4200
    %4766 = vmatpush.bf16.msra.mxu0 %v4191
    %4767 = vmatmul.bf16.gmra.mxu0 %v2877
    %v4768 = vpop.f32.mrf.mxu0
    %v4769 = vadd.f32 %v4756, %v4768
    %v4770 = vpop.f32.mrf.mxu0
    %4771 = vdwg.mxu0
    %4772 = vmatpush.bf16.msra.mxu0 %v4326
    %4773 = vmatpush.bf16.msra.mxu0 %v4317
    %4774 = vmatpush.bf16.msra.mxu0 %v4308
    %4775 = vmatpush.bf16.msra.mxu0 %v4299
    %4776 = vmatpush.bf16.msra.mxu0 %v4290
    %4777 = vmatpush.bf16.msra.mxu0 %v4281
    %4778 = vmatpush.bf16.msra.mxu0 %v4272
    %4779 = vmatpush.bf16.msra.mxu0 %v4263
    %4780 = vmatmul.bf16.gmra.mxu0 %v2878
    %v4781 = vpop.f32.mrf.mxu0
    %v4782 = vadd.f32 %v4769, %v4781
    %v4783 = vpop.f32.mrf.mxu0
    %4784 = vdwg.mxu0
    %4785 = vmatpush.bf16.msra.mxu0 %v4398
    %4786 = vmatpush.bf16.msra.mxu0 %v4389
    %4787 = vmatpush.bf16.msra.mxu0 %v4380
    %4788 = vmatpush.bf16.msra.mxu0 %v4371
    %4789 = vmatpush.bf16.msra.mxu0 %v4362
    %4790 = vmatpush.bf16.msra.mxu0 %v4353
    %4791 = vmatpush.bf16.msra.mxu0 %v4344
    %4792 = vmatpush.bf16.msra.mxu0 %v4335
    %4793 = vmatmul.bf16.gmra.mxu0 %v2879
    %v4794 = vpop.f32.mrf.mxu0
    %v4795 = vadd.f32 %v4782, %v4794
    %v4796 = vpop.f32.mrf.mxu0
    %4797 = vdwg.mxu0
    %4798 = vmatpush.bf16.msra.mxu0 %v4183
    %4799 = vmatpush.bf16.msra.mxu0 %v4174
    %4800 = vmatpush.bf16.msra.mxu0 %v4165
    %4801 = vmatpush.bf16.msra.mxu0 %v4156
    %4802 = vmatpush.bf16.msra.mxu0 %v4147
    %4803 = vmatpush.bf16.msra.mxu0 %v4138
    %4804 = vmatpush.bf16.msra.mxu0 %v4129
    %4805 = vmatpush.bf16.msra.mxu0 %v4120
    %4806 = vmatmul.bf16.gmra.mxu0 %v2876
    %v4807 = vpop.f32.mrf.mxu0
    %v4808 = vadd.f32 %v3206, %v4807
    %v4809 = vpop.f32.mrf.mxu0
    %4810 = vdwg.mxu0
    %4811 = vmatpush.bf16.msra.mxu0 %v4255
    %4812 = vmatpush.bf16.msra.mxu0 %v4246
    %4813 = vmatpush.bf16.msra.mxu0 %v4237
    %4814 = vmatpush.bf16.msra.mxu0 %v4228
    %4815 = vmatpush.bf16.msra.mxu0 %v4219
    %4816 = vmatpush.bf16.msra.mxu0 %v4210
    %4817 = vmatpush.bf16.msra.mxu0 %v4201
    %4818 = vmatpush.bf16.msra.mxu0 %v4192
    %4819 = vmatmul.bf16.gmra.mxu0 %v2877
    %v4820 = vpop.f32.mrf.mxu0
    %v4821 = vadd.f32 %v4808, %v4820
    %v4822 = vpop.f32.mrf.mxu0
    %4823 = vdwg.mxu0
    %4824 = vmatpush.bf16.msra.mxu0 %v4327
    %4825 = vmatpush.bf16.msra.mxu0 %v4318
    %4826 = vmatpush.bf16.msra.mxu0 %v4309
    %4827 = vmatpush.bf16.msra.mxu0 %v4300
    %4828 = vmatpush.bf16.msra.mxu0 %v4291
    %4829 = vmatpush.bf16.msra.mxu0 %v4282
    %4830 = vmatpush.bf16.msra.mxu0 %v4273
    %4831 = vmatpush.bf16.msra.mxu0 %v4264
    %4832 = vmatmul.bf16.gmra.mxu0 %v2878
    %v4833 = vpop.f32.mrf.mxu0
    %v4834 = vadd.f32 %v4821, %v4833
    %v4835 = vpop.f32.mrf.mxu0
    %4836 = vdwg.mxu0
    %4837 = vmatpush.bf16.msra.mxu0 %v4399
    %4838 = vmatpush.bf16.msra.mxu0 %v4390
    %4839 = vmatpush.bf16.msra.mxu0 %v4381
    %4840 = vmatpush.bf16.msra.mxu0 %v4372
    %4841 = vmatpush.bf16.msra.mxu0 %v4363
    %4842 = vmatpush.bf16.msra.mxu0 %v4354
    %4843 = vmatpush.bf16.msra.mxu0 %v4345
    %4844 = vmatpush.bf16.msra.mxu0 %v4336
    %4845 = vmatmul.bf16.gmra.mxu0 %v2879
    %v4846 = vpop.f32.mrf.mxu0
    %v4847 = vadd.f32 %v4834, %v4846
    %v4848 = vpop.f32.mrf.mxu0
    %4849 = vdwg.mxu0
    %4850 = vmatpush.bf16.msra.mxu0 %v4184
    %4851 = vmatpush.bf16.msra.mxu0 %v4175
    %4852 = vmatpush.bf16.msra.mxu0 %v4166
    %4853 = vmatpush.bf16.msra.mxu0 %v4157
    %4854 = vmatpush.bf16.msra.mxu0 %v4148
    %4855 = vmatpush.bf16.msra.mxu0 %v4139
    %4856 = vmatpush.bf16.msra.mxu0 %v4130
    %4857 = vmatpush.bf16.msra.mxu0 %v4121
    %4858 = vmatmul.bf16.gmra.mxu0 %v2876
    %v4859 = vpop.f32.mrf.mxu0
    %v4860 = vadd.f32 %v3207, %v4859
    %v4861 = vpop.f32.mrf.mxu0
    %4862 = vdwg.mxu0
    %4863 = vmatpush.bf16.msra.mxu0 %v4256
    %4864 = vmatpush.bf16.msra.mxu0 %v4247
    %4865 = vmatpush.bf16.msra.mxu0 %v4238
    %4866 = vmatpush.bf16.msra.mxu0 %v4229
    %4867 = vmatpush.bf16.msra.mxu0 %v4220
    %4868 = vmatpush.bf16.msra.mxu0 %v4211
    %4869 = vmatpush.bf16.msra.mxu0 %v4202
    %4870 = vmatpush.bf16.msra.mxu0 %v4193
    %4871 = vmatmul.bf16.gmra.mxu0 %v2877
    %v4872 = vpop.f32.mrf.mxu0
    %v4873 = vadd.f32 %v4860, %v4872
    %v4874 = vpop.f32.mrf.mxu0
    %4875 = vdwg.mxu0
    %4876 = vmatpush.bf16.msra.mxu0 %v4328
    %4877 = vmatpush.bf16.msra.mxu0 %v4319
    %4878 = vmatpush.bf16.msra.mxu0 %v4310
    %4879 = vmatpush.bf16.msra.mxu0 %v4301
    %4880 = vmatpush.bf16.msra.mxu0 %v4292
    %4881 = vmatpush.bf16.msra.mxu0 %v4283
    %4882 = vmatpush.bf16.msra.mxu0 %v4274
    %4883 = vmatpush.bf16.msra.mxu0 %v4265
    %4884 = vmatmul.bf16.gmra.mxu0 %v2878
    %v4885 = vpop.f32.mrf.mxu0
    %v4886 = vadd.f32 %v4873, %v4885
    %v4887 = vpop.f32.mrf.mxu0
    %4888 = vdwg.mxu0
    %4889 = vmatpush.bf16.msra.mxu0 %v4400
    %4890 = vmatpush.bf16.msra.mxu0 %v4391
    %4891 = vmatpush.bf16.msra.mxu0 %v4382
    %4892 = vmatpush.bf16.msra.mxu0 %v4373
    %4893 = vmatpush.bf16.msra.mxu0 %v4364
    %4894 = vmatpush.bf16.msra.mxu0 %v4355
    %4895 = vmatpush.bf16.msra.mxu0 %v4346
    %4896 = vmatpush.bf16.msra.mxu0 %v4337
    %4897 = vmatmul.bf16.gmra.mxu0 %v2879
    %v4898 = vpop.f32.mrf.mxu0
    %v4899 = vadd.f32 %v4886, %v4898
    %v4900 = vpop.f32.mrf.mxu0
    %4901 = vdwg.mxu0
    %4902 = vmatpush.bf16.msra.mxu0 %v4185
    %4903 = vmatpush.bf16.msra.mxu0 %v4176
    %4904 = vmatpush.bf16.msra.mxu0 %v4167
    %4905 = vmatpush.bf16.msra.mxu0 %v4158
    %4906 = vmatpush.bf16.msra.mxu0 %v4149
    %4907 = vmatpush.bf16.msra.mxu0 %v4140
    %4908 = vmatpush.bf16.msra.mxu0 %v4131
    %4909 = vmatpush.bf16.msra.mxu0 %v4122
    %4910 = vmatmul.bf16.gmra.mxu0 %v2876
    %v4911 = vpop.f32.mrf.mxu0
    %v4912 = vadd.f32 %v3208, %v4911
    %v4913 = vpop.f32.mrf.mxu0
    %4914 = vdwg.mxu0
    %4915 = vmatpush.bf16.msra.mxu0 %v4257
    %4916 = vmatpush.bf16.msra.mxu0 %v4248
    %4917 = vmatpush.bf16.msra.mxu0 %v4239
    %4918 = vmatpush.bf16.msra.mxu0 %v4230
    %4919 = vmatpush.bf16.msra.mxu0 %v4221
    %4920 = vmatpush.bf16.msra.mxu0 %v4212
    %4921 = vmatpush.bf16.msra.mxu0 %v4203
    %4922 = vmatpush.bf16.msra.mxu0 %v4194
    %4923 = vmatmul.bf16.gmra.mxu0 %v2877
    %v4924 = vpop.f32.mrf.mxu0
    %v4925 = vadd.f32 %v4912, %v4924
    %v4926 = vpop.f32.mrf.mxu0
    %4927 = vdwg.mxu0
    %4928 = vmatpush.bf16.msra.mxu0 %v4329
    %4929 = vmatpush.bf16.msra.mxu0 %v4320
    %4930 = vmatpush.bf16.msra.mxu0 %v4311
    %4931 = vmatpush.bf16.msra.mxu0 %v4302
    %4932 = vmatpush.bf16.msra.mxu0 %v4293
    %4933 = vmatpush.bf16.msra.mxu0 %v4284
    %4934 = vmatpush.bf16.msra.mxu0 %v4275
    %4935 = vmatpush.bf16.msra.mxu0 %v4266
    %4936 = vmatmul.bf16.gmra.mxu0 %v2878
    %v4937 = vpop.f32.mrf.mxu0
    %v4938 = vadd.f32 %v4925, %v4937
    %v4939 = vpop.f32.mrf.mxu0
    %4940 = vdwg.mxu0
    %4941 = vmatpush.bf16.msra.mxu0 %v4401
    %4942 = vmatpush.bf16.msra.mxu0 %v4392
    %4943 = vmatpush.bf16.msra.mxu0 %v4383
    %4944 = vmatpush.bf16.msra.mxu0 %v4374
    %4945 = vmatpush.bf16.msra.mxu0 %v4365
    %4946 = vmatpush.bf16.msra.mxu0 %v4356
    %4947 = vmatpush.bf16.msra.mxu0 %v4347
    %4948 = vmatpush.bf16.msra.mxu0 %v4338
    %4949 = vmatmul.bf16.gmra.mxu0 %v2879
    %v4950 = vpop.f32.mrf.mxu0
    %v4951 = vadd.f32 %v4938, %v4950
    %v4952 = vpop.f32.mrf.mxu0
    %4953 = vdwg.mxu0
    %4954 = vmatpush.bf16.msra.mxu0 %v4186
    %4955 = vmatpush.bf16.msra.mxu0 %v4177
    %4956 = vmatpush.bf16.msra.mxu0 %v4168
    %4957 = vmatpush.bf16.msra.mxu0 %v4159
    %4958 = vmatpush.bf16.msra.mxu0 %v4150
    %4959 = vmatpush.bf16.msra.mxu0 %v4141
    %4960 = vmatpush.bf16.msra.mxu0 %v4132
    %4961 = vmatpush.bf16.msra.mxu0 %v4123
    %4962 = vmatmul.bf16.gmra.mxu0 %v2876
    %v4963 = vpop.f32.mrf.mxu0
    %v4964 = vadd.f32 %v3209, %v4963
    %v4965 = vpop.f32.mrf.mxu0
    %4966 = vdwg.mxu0
    %4967 = vmatpush.bf16.msra.mxu0 %v4258
    %4968 = vmatpush.bf16.msra.mxu0 %v4249
    %4969 = vmatpush.bf16.msra.mxu0 %v4240
    %4970 = vmatpush.bf16.msra.mxu0 %v4231
    %4971 = vmatpush.bf16.msra.mxu0 %v4222
    %4972 = vmatpush.bf16.msra.mxu0 %v4213
    %4973 = vmatpush.bf16.msra.mxu0 %v4204
    %4974 = vmatpush.bf16.msra.mxu0 %v4195
    %4975 = vmatmul.bf16.gmra.mxu0 %v2877
    %v4976 = vpop.f32.mrf.mxu0
    %v4977 = vadd.f32 %v4964, %v4976
    %v4978 = vpop.f32.mrf.mxu0
    %4979 = vdwg.mxu0
    %4980 = vmatpush.bf16.msra.mxu0 %v4330
    %4981 = vmatpush.bf16.msra.mxu0 %v4321
    %4982 = vmatpush.bf16.msra.mxu0 %v4312
    %4983 = vmatpush.bf16.msra.mxu0 %v4303
    %4984 = vmatpush.bf16.msra.mxu0 %v4294
    %4985 = vmatpush.bf16.msra.mxu0 %v4285
    %4986 = vmatpush.bf16.msra.mxu0 %v4276
    %4987 = vmatpush.bf16.msra.mxu0 %v4267
    %4988 = vmatmul.bf16.gmra.mxu0 %v2878
    %v4989 = vpop.f32.mrf.mxu0
    %v4990 = vadd.f32 %v4977, %v4989
    %v4991 = vpop.f32.mrf.mxu0
    %4992 = vdwg.mxu0
    %4993 = vmatpush.bf16.msra.mxu0 %v4402
    %4994 = vmatpush.bf16.msra.mxu0 %v4393
    %4995 = vmatpush.bf16.msra.mxu0 %v4384
    %4996 = vmatpush.bf16.msra.mxu0 %v4375
    %4997 = vmatpush.bf16.msra.mxu0 %v4366
    %4998 = vmatpush.bf16.msra.mxu0 %v4357
    %4999 = vmatpush.bf16.msra.mxu0 %v4348
    %5000 = vmatpush.bf16.msra.mxu0 %v4339
    %5001 = vmatmul.bf16.gmra.mxu0 %v2879
    %v5002 = vpop.f32.mrf.mxu0
    %v5003 = vadd.f32 %v4990, %v5002
    %v5004 = vpop.f32.mrf.mxu0
    %5005 = vdwg.mxu0
    %5006 = vmatpush.bf16.msra.mxu0 %v4187
    %5007 = vmatpush.bf16.msra.mxu0 %v4178
    %5008 = vmatpush.bf16.msra.mxu0 %v4169
    %5009 = vmatpush.bf16.msra.mxu0 %v4160
    %5010 = vmatpush.bf16.msra.mxu0 %v4151
    %5011 = vmatpush.bf16.msra.mxu0 %v4142
    %5012 = vmatpush.bf16.msra.mxu0 %v4133
    %5013 = vmatpush.bf16.msra.mxu0 %v4124
    %5014 = vmatmul.bf16.gmra.mxu0 %v2876
    %v5015 = vpop.f32.mrf.mxu0
    %v5016 = vadd.f32 %v3210, %v5015
    %v5017 = vpop.f32.mrf.mxu0
    %5018 = vdwg.mxu0
    %5019 = vmatpush.bf16.msra.mxu0 %v4259
    %5020 = vmatpush.bf16.msra.mxu0 %v4250
    %5021 = vmatpush.bf16.msra.mxu0 %v4241
    %5022 = vmatpush.bf16.msra.mxu0 %v4232
    %5023 = vmatpush.bf16.msra.mxu0 %v4223
    %5024 = vmatpush.bf16.msra.mxu0 %v4214
    %5025 = vmatpush.bf16.msra.mxu0 %v4205
    %5026 = vmatpush.bf16.msra.mxu0 %v4196
    %5027 = vmatmul.bf16.gmra.mxu0 %v2877
    %v5028 = vpop.f32.mrf.mxu0
    %v5029 = vadd.f32 %v5016, %v5028
    %v5030 = vpop.f32.mrf.mxu0
    %5031 = vdwg.mxu0
    %5032 = vmatpush.bf16.msra.mxu0 %v4331
    %5033 = vmatpush.bf16.msra.mxu0 %v4322
    %5034 = vmatpush.bf16.msra.mxu0 %v4313
    %5035 = vmatpush.bf16.msra.mxu0 %v4304
    %5036 = vmatpush.bf16.msra.mxu0 %v4295
    %5037 = vmatpush.bf16.msra.mxu0 %v4286
    %5038 = vmatpush.bf16.msra.mxu0 %v4277
    %5039 = vmatpush.bf16.msra.mxu0 %v4268
    %5040 = vmatmul.bf16.gmra.mxu0 %v2878
    %v5041 = vpop.f32.mrf.mxu0
    %v5042 = vadd.f32 %v5029, %v5041
    %v5043 = vpop.f32.mrf.mxu0
    %5044 = vdwg.mxu0
    %5045 = vmatpush.bf16.msra.mxu0 %v4403
    %5046 = vmatpush.bf16.msra.mxu0 %v4394
    %5047 = vmatpush.bf16.msra.mxu0 %v4385
    %5048 = vmatpush.bf16.msra.mxu0 %v4376
    %5049 = vmatpush.bf16.msra.mxu0 %v4367
    %5050 = vmatpush.bf16.msra.mxu0 %v4358
    %5051 = vmatpush.bf16.msra.mxu0 %v4349
    %5052 = vmatpush.bf16.msra.mxu0 %v4340
    %5053 = vmatmul.bf16.gmra.mxu0 %v2879
    %v5054 = vpop.f32.mrf.mxu0
    %v5055 = vadd.f32 %v5042, %v5054
    %v5056 = vpop.f32.mrf.mxu0
    %5057 = vdwg.mxu0
    %5058 = vmatpush.bf16.msra.mxu0 %v4188
    %5059 = vmatpush.bf16.msra.mxu0 %v4179
    %5060 = vmatpush.bf16.msra.mxu0 %v4170
    %5061 = vmatpush.bf16.msra.mxu0 %v4161
    %5062 = vmatpush.bf16.msra.mxu0 %v4152
    %5063 = vmatpush.bf16.msra.mxu0 %v4143
    %5064 = vmatpush.bf16.msra.mxu0 %v4134
    %5065 = vmatpush.bf16.msra.mxu0 %v4125
    %5066 = vmatmul.bf16.gmra.mxu0 %v2876
    %v5067 = vpop.f32.mrf.mxu0
    %v5068 = vadd.f32 %v3211, %v5067
    %v5069 = vpop.f32.mrf.mxu0
    %5070 = vdwg.mxu0
    %5071 = vmatpush.bf16.msra.mxu0 %v4260
    %5072 = vmatpush.bf16.msra.mxu0 %v4251
    %5073 = vmatpush.bf16.msra.mxu0 %v4242
    %5074 = vmatpush.bf16.msra.mxu0 %v4233
    %5075 = vmatpush.bf16.msra.mxu0 %v4224
    %5076 = vmatpush.bf16.msra.mxu0 %v4215
    %5077 = vmatpush.bf16.msra.mxu0 %v4206
    %5078 = vmatpush.bf16.msra.mxu0 %v4197
    %5079 = vmatmul.bf16.gmra.mxu0 %v2877
    %v5080 = vpop.f32.mrf.mxu0
    %v5081 = vadd.f32 %v5068, %v5080
    %v5082 = vpop.f32.mrf.mxu0
    %5083 = vdwg.mxu0
    %5084 = vmatpush.bf16.msra.mxu0 %v4332
    %5085 = vmatpush.bf16.msra.mxu0 %v4323
    %5086 = vmatpush.bf16.msra.mxu0 %v4314
    %5087 = vmatpush.bf16.msra.mxu0 %v4305
    %5088 = vmatpush.bf16.msra.mxu0 %v4296
    %5089 = vmatpush.bf16.msra.mxu0 %v4287
    %5090 = vmatpush.bf16.msra.mxu0 %v4278
    %5091 = vmatpush.bf16.msra.mxu0 %v4269
    %5092 = vmatmul.bf16.gmra.mxu0 %v2878
    %v5093 = vpop.f32.mrf.mxu0
    %v5094 = vadd.f32 %v5081, %v5093
    %v5095 = vpop.f32.mrf.mxu0
    %5096 = vdwg.mxu0
    %5097 = vmatpush.bf16.msra.mxu0 %v4404
    %5098 = vmatpush.bf16.msra.mxu0 %v4395
    %5099 = vmatpush.bf16.msra.mxu0 %v4386
    %5100 = vmatpush.bf16.msra.mxu0 %v4377
    %5101 = vmatpush.bf16.msra.mxu0 %v4368
    %5102 = vmatpush.bf16.msra.mxu0 %v4359
    %5103 = vmatpush.bf16.msra.mxu0 %v4350
    %5104 = vmatpush.bf16.msra.mxu0 %v4341
    %5105 = vmatmul.bf16.gmra.mxu0 %v2879
    %v5106 = vpop.f32.mrf.mxu0
    %v5107 = vadd.f32 %v5094, %v5106
    %v5108 = vpop.f32.mrf.mxu0
    %5109 = vdwg.mxu0
    %5110 = vmatpush.bf16.msra.mxu0 %v4189
    %5111 = vmatpush.bf16.msra.mxu0 %v4180
    %5112 = vmatpush.bf16.msra.mxu0 %v4171
    %5113 = vmatpush.bf16.msra.mxu0 %v4162
    %5114 = vmatpush.bf16.msra.mxu0 %v4153
    %5115 = vmatpush.bf16.msra.mxu0 %v4144
    %5116 = vmatpush.bf16.msra.mxu0 %v4135
    %5117 = vmatpush.bf16.msra.mxu0 %v4126
    %5118 = vmatmul.bf16.gmra.mxu0 %v2876
    %v5119 = vpop.f32.mrf.mxu0
    %v5120 = vadd.f32 %v3212, %v5119
    %v5121 = vpop.f32.mrf.mxu0
    %5122 = vdwg.mxu0
    %5123 = vmatpush.bf16.msra.mxu0 %v4261
    %5124 = vmatpush.bf16.msra.mxu0 %v4252
    %5125 = vmatpush.bf16.msra.mxu0 %v4243
    %5126 = vmatpush.bf16.msra.mxu0 %v4234
    %5127 = vmatpush.bf16.msra.mxu0 %v4225
    %5128 = vmatpush.bf16.msra.mxu0 %v4216
    %5129 = vmatpush.bf16.msra.mxu0 %v4207
    %5130 = vmatpush.bf16.msra.mxu0 %v4198
    %5131 = vmatmul.bf16.gmra.mxu0 %v2877
    %v5132 = vpop.f32.mrf.mxu0
    %v5133 = vadd.f32 %v5120, %v5132
    %v5134 = vpop.f32.mrf.mxu0
    %5135 = vdwg.mxu0
    %5136 = vmatpush.bf16.msra.mxu0 %v4333
    %5137 = vmatpush.bf16.msra.mxu0 %v4324
    %5138 = vmatpush.bf16.msra.mxu0 %v4315
    %5139 = vmatpush.bf16.msra.mxu0 %v4306
    %5140 = vmatpush.bf16.msra.mxu0 %v4297
    %5141 = vmatpush.bf16.msra.mxu0 %v4288
    %5142 = vmatpush.bf16.msra.mxu0 %v4279
    %5143 = vmatpush.bf16.msra.mxu0 %v4270
    %5144 = vmatmul.bf16.gmra.mxu0 %v2878
    %v5145 = vpop.f32.mrf.mxu0
    %v5146 = vadd.f32 %v5133, %v5145
    %v5147 = vpop.f32.mrf.mxu0
    %5148 = vdwg.mxu0
    %5149 = vmatpush.bf16.msra.mxu0 %v4405
    %5150 = vmatpush.bf16.msra.mxu0 %v4396
    %5151 = vmatpush.bf16.msra.mxu0 %v4387
    %5152 = vmatpush.bf16.msra.mxu0 %v4378
    %5153 = vmatpush.bf16.msra.mxu0 %v4369
    %5154 = vmatpush.bf16.msra.mxu0 %v4360
    %5155 = vmatpush.bf16.msra.mxu0 %v4351
    %5156 = vmatpush.bf16.msra.mxu0 %v4342
    %5157 = vmatmul.bf16.gmra.mxu0 %v2879
    %v5158 = vpop.f32.mrf.mxu0
    %v5159 = vadd.f32 %v5146, %v5158
    %v5160 = vpop.f32.mrf.mxu0
    %5161 = vdwg.mxu0
    %v5162 = vxor.u32 %v4743, 2147483648
    %v5163 = vxor.u32 %v4795, 2147483648
    %v5164 = vxor.u32 %v4847, 2147483648
    %v5165 = vxor.u32 %v4899, 2147483648
    %v5166 = vxor.u32 %v4951, 2147483648
    %v5167 = vxor.u32 %v5003, 2147483648
    %v5168 = vxor.u32 %v5055, 2147483648
    %v5169 = vxor.u32 %v5107, 2147483648
    %v5170 = vxor.u32 %v5159, 2147483648
    %v5171 = vmul.f32 %v5162, 1.442695
    %v5172 = vpow.pop %v5171
    %v5173 = vmul.f32 %v5163, 1.442695
    %v5174 = vpow.pop %v5173
    %v5175 = vmul.f32 %v5164, 1.442695
    %v5176 = vpow.pop %v5175
    %v5177 = vmul.f32 %v5165, 1.442695
    %v5178 = vpow.pop %v5177
    %v5179 = vmul.f32 %v5166, 1.442695
    %v5180 = vpow.pop %v5179
    %v5181 = vmul.f32 %v5167, 1.442695
    %v5182 = vpow.pop %v5181
    %v5183 = vmul.f32 %v5168, 1.442695
    %v5184 = vpow.pop %v5183
    %v5185 = vmul.f32 %v5169, 1.442695
    %v5186 = vpow.pop %v5185
    %v5187 = vmul.f32 %v5170, 1.442695
    %v5188 = vpow.pop %v5187
    %v5189 = vadd.f32 %v5172, 1.0
    %v5190 = vadd.f32 %v5174, 1.0
    %v5191 = vadd.f32 %v5176, 1.0
    %v5192 = vadd.f32 %v5178, 1.0
    %v5193 = vadd.f32 %v5180, 1.0
    %v5194 = vadd.f32 %v5182, 1.0
    %v5195 = vadd.f32 %v5184, 1.0
    %v5196 = vadd.f32 %v5186, 1.0
    %v5197 = vadd.f32 %v5188, 1.0
    %v5198 = vrcp.pop %v5189
    %v5199 = vmul.f32 %v5189, %v5198
    %v5200 = vsub.f32 1.0, %v5199
    %v5201 = vmul.f32 %v5198, %v5200
    %v5202 = vadd.f32 %v5198, %v5201
    %vm5203 = vweird.f32 %v5189
    %vm5204 = vweird.f32 %v5198
    %vm5205 = vmor %vm5203, %vm5204
    %v5206 = vsel %vm5205, %v5198, %v5202
    %v5207 = vand.u32 2147483647, %v5189
    %vm5208 = vcmp.eq.f32.partialorder %v5207, 8.507059e+37
    %v5209 = vand.u32 %v5189, 2147483648
    %v5210 = vor.u32 1.1754944e-38, %v5209
    %v5211 = vsel %vm5208, %v5210, %v5206
    %v5212 = vmul.f32 1.0, %v5211
    %v5213 = vrcp.pop %v5190
    %v5214 = vmul.f32 %v5190, %v5213
    %v5215 = vsub.f32 1.0, %v5214
    %v5216 = vmul.f32 %v5213, %v5215
    %v5217 = vadd.f32 %v5213, %v5216
    %vm5218 = vweird.f32 %v5190
    %vm5219 = vweird.f32 %v5213
    %vm5220 = vmor %vm5218, %vm5219
    %v5221 = vsel %vm5220, %v5213, %v5217
    %v5222 = vand.u32 2147483647, %v5190
    %vm5223 = vcmp.eq.f32.partialorder %v5222, 8.507059e+37
    %v5224 = vand.u32 %v5190, 2147483648
    %v5225 = vor.u32 1.1754944e-38, %v5224
    %v5226 = vsel %vm5223, %v5225, %v5221
    %v5227 = vmul.f32 1.0, %v5226
    %v5228 = vrcp.pop %v5191
    %v5229 = vmul.f32 %v5191, %v5228
    %v5230 = vsub.f32 1.0, %v5229
    %v5231 = vmul.f32 %v5228, %v5230
    %v5232 = vadd.f32 %v5228, %v5231
    %vm5233 = vweird.f32 %v5191
    %vm5234 = vweird.f32 %v5228
    %vm5235 = vmor %vm5233, %vm5234
    %v5236 = vsel %vm5235, %v5228, %v5232
    %v5237 = vand.u32 2147483647, %v5191
    %vm5238 = vcmp.eq.f32.partialorder %v5237, 8.507059e+37
    %v5239 = vand.u32 %v5191, 2147483648
    %v5240 = vor.u32 1.1754944e-38, %v5239
    %v5241 = vsel %vm5238, %v5240, %v5236
    %v5242 = vmul.f32 1.0, %v5241
    %v5243 = vrcp.pop %v5192
    %v5244 = vmul.f32 %v5192, %v5243
    %v5245 = vsub.f32 1.0, %v5244
    %v5246 = vmul.f32 %v5243, %v5245
    %v5247 = vadd.f32 %v5243, %v5246
    %vm5248 = vweird.f32 %v5192
    %vm5249 = vweird.f32 %v5243
    %vm5250 = vmor %vm5248, %vm5249
    %v5251 = vsel %vm5250, %v5243, %v5247
    %v5252 = vand.u32 2147483647, %v5192
    %vm5253 = vcmp.eq.f32.partialorder %v5252, 8.507059e+37
    %v5254 = vand.u32 %v5192, 2147483648
    %v5255 = vor.u32 1.1754944e-38, %v5254
    %v5256 = vsel %vm5253, %v5255, %v5251
    %v5257 = vmul.f32 1.0, %v5256
    %v5258 = vrcp.pop %v5193
    %v5259 = vmul.f32 %v5193, %v5258
    %v5260 = vsub.f32 1.0, %v5259
    %v5261 = vmul.f32 %v5258, %v5260
    %v5262 = vadd.f32 %v5258, %v5261
    %vm5263 = vweird.f32 %v5193
    %vm5264 = vweird.f32 %v5258
    %vm5265 = vmor %vm5263, %vm5264
    %v5266 = vsel %vm5265, %v5258, %v5262
    %v5267 = vand.u32 2147483647, %v5193
    %vm5268 = vcmp.eq.f32.partialorder %v5267, 8.507059e+37
    %v5269 = vand.u32 %v5193, 2147483648
    %v5270 = vor.u32 1.1754944e-38, %v5269
    %v5271 = vsel %vm5268, %v5270, %v5266
    %v5272 = vmul.f32 1.0, %v5271
    %v5273 = vrcp.pop %v5194
    %v5274 = vmul.f32 %v5194, %v5273
    %v5275 = vsub.f32 1.0, %v5274
    %v5276 = vmul.f32 %v5273, %v5275
    %v5277 = vadd.f32 %v5273, %v5276
    %vm5278 = vweird.f32 %v5194
    %vm5279 = vweird.f32 %v5273
    %vm5280 = vmor %vm5278, %vm5279
    %v5281 = vsel %vm5280, %v5273, %v5277
    %v5282 = vand.u32 2147483647, %v5194
    %vm5283 = vcmp.eq.f32.partialorder %v5282, 8.507059e+37
    %v5284 = vand.u32 %v5194, 2147483648
    %v5285 = vor.u32 1.1754944e-38, %v5284
    %v5286 = vsel %vm5283, %v5285, %v5281
    %v5287 = vmul.f32 1.0, %v5286
    %v5288 = vrcp.pop %v5195
    %v5289 = vmul.f32 %v5195, %v5288
    %v5290 = vsub.f32 1.0, %v5289
    %v5291 = vmul.f32 %v5288, %v5290
    %v5292 = vadd.f32 %v5288, %v5291
    %vm5293 = vweird.f32 %v5195
    %vm5294 = vweird.f32 %v5288
    %vm5295 = vmor %vm5293, %vm5294
    %v5296 = vsel %vm5295, %v5288, %v5292
    %v5297 = vand.u32 2147483647, %v5195
    %vm5298 = vcmp.eq.f32.partialorder %v5297, 8.507059e+37
    %v5299 = vand.u32 %v5195, 2147483648
    %v5300 = vor.u32 1.1754944e-38, %v5299
    %v5301 = vsel %vm5298, %v5300, %v5296
    %v5302 = vmul.f32 1.0, %v5301
    %v5303 = vrcp.pop %v5196
    %v5304 = vmul.f32 %v5196, %v5303
    %v5305 = vsub.f32 1.0, %v5304
    %v5306 = vmul.f32 %v5303, %v5305
    %v5307 = vadd.f32 %v5303, %v5306
    %vm5308 = vweird.f32 %v5196
    %vm5309 = vweird.f32 %v5303
    %vm5310 = vmor %vm5308, %vm5309
    %v5311 = vsel %vm5310, %v5303, %v5307
    %v5312 = vand.u32 2147483647, %v5196
    %vm5313 = vcmp.eq.f32.partialorder %v5312, 8.507059e+37
    %v5314 = vand.u32 %v5196, 2147483648
    %v5315 = vor.u32 1.1754944e-38, %v5314
    %v5316 = vsel %vm5313, %v5315, %v5311
    %v5317 = vmul.f32 1.0, %v5316
    %v5318 = vrcp.pop %v5197
    %v5319 = vmul.f32 %v5197, %v5318
    %v5320 = vsub.f32 1.0, %v5319
    %v5321 = vmul.f32 %v5318, %v5320
    %v5322 = vadd.f32 %v5318, %v5321
    %vm5323 = vweird.f32 %v5197
    %vm5324 = vweird.f32 %v5318
    %vm5325 = vmor %vm5323, %vm5324
    %v5326 = vsel %vm5325, %v5318, %v5322
    %v5327 = vand.u32 2147483647, %v5197
    %vm5328 = vcmp.eq.f32.partialorder %v5327, 8.507059e+37
    %v5329 = vand.u32 %v5197, 2147483648
    %v5330 = vor.u32 1.1754944e-38, %v5329
    %v5331 = vsel %vm5328, %v5330, %v5326
    %v5332 = vmul.f32 1.0, %v5331
    %v5333 = vpack.c.bf16 %v5227, %v5212
    %v5334 = vpack.c.bf16 %v5257, %v5242
    %v5335 = vpack.c.bf16 %v5287, %v5272
    %v5336 = vpack.c.bf16 %v5317, %v5302
    %v5337 = vpack.c.bf16 %v5332, %v5332
    %5338 = vst [vmem:[#allocation17] sm:$0xff] %v5333
    %5339 = vst [vmem:[#allocation17 + $0x8] sm:$0xff] %v5334
    %5340 = vst [vmem:[#allocation17 + $0x10] sm:$0xff] %v5335
    %5341 = vst [vmem:[#allocation17 + $0x18] sm:$0xff] %v5336
    %5342 = vst [vmem:[#allocation17 + $0x20] sm:$0xf] %v5337
    // Predicated region
    $region74: #{tpu_custom_call.1} parent=1 // pred_check
      _
    $region75: #{tpu_custom_call.1} parent=1 // pred_check_branch
      %5344 = sbr.rel (0) target = $region77
    $region76: #{tpu_custom_call.1} parent=1 // pred_region
      %5346 = vsyncadd [#allocation4], 0
      %s5348 = sshll.u32 [#allocation17], 4
      %s5349 = int_to_ptr.vmem [resolvable:$true] %s5348
      %s5350 = sshll.u32 %s9, 4
      %s5351 = int_to_ptr.hbm [resolvable:$true] %s5350
      %5353 = dma.vmem_to_hbm [thread:$0]  %s5349, 576, %s5351, [#allocation4]
    $region77: #{tpu_custom_call.1} parent=1 // pred_fallthru
      _
    // Predicated region
    $region78: #{tpu_custom_call.1} parent=1 // pred_check
      _
    $region79: #{tpu_custom_call.1} parent=1 // pred_check_branch
      %5355 = sbr.rel (0) target = $region81
    $region80: #{tpu_custom_call.1} parent=1 // pred_region
      %5357 = dma.done [#allocation4], 576
    $region81: #{tpu_custom_call.1} parent=1 // pred_fallthru
      _
    %5358 = vsyncpa [#allocation3], 1
    %5359 = vsyncpa [#allocation6], 1
    %5360 = vsyncpa [#allocation9], 1
    %5361 = vsyncpa [#allocation12], 1
    %5362 = vsyncpa [#allocation15], 1
    %5363 = vsyncpa [#allocation4], 1

</llo_original>
